<compile_context>
chip_gen: v6e
topology: v6e:2x2x1
jax: 0.10.0
libtpu: 0.0.40
codegen_flags: <defaults>
</compile_context>

<pallas_src>
import functools

import numpy as np

import jax
import jax.numpy as jnp
from jax.experimental import pallas as pl
from jax.experimental.pallas import tpu as pltpu


# Padded lane widths of the intermediate feature maps.
_N1P = 256   # conv1 lanes: 28 cols x 6 ch = 168 valid, padded to 256
_N2P = 256   # conv2 lanes: 10 cols x 16 ch = 160 valid, padded to 256
_N3P = 128   # conv3 / fc lanes: 120 / 84 / 10 valid, padded to 128


# ----------------------------------------------------------------------------
# Fused kernel: TB images per grid step
# ----------------------------------------------------------------------------
def _lenet_kernel(xe_ref, xo_ref, w1_ref, b1_ref, w2_ref, b2_ref,
                  w3_ref, b3_ref, sel_ref, w4_ref, b4_ref, w5_ref, b5_ref,
                  out_ref, asum_ref, act2_ref, *, m):
    """m = TB*16: rows of the per-block "16 rows per image" activation grid."""
    f32, bf16 = jnp.float32, jnp.bfloat16

    # ---- conv1 (1->6, 5x5) as 10 row-banded MXU dots + tanh -----------------
    # Even conv1 output rows (image rows 0,2,..,26) and odd output rows
    # (1,3,..,27) are produced from the even/odd input-row slabs; each term is
    # a contiguous (m, 128) window dotted with a (128, 256) banded matrix.
    even_terms = ((0, xe_ref, 0), (1, xo_ref, 0), (2, xe_ref, 1),
                  (3, xo_ref, 1), (4, xe_ref, 2))
    odd_terms = ((5, xo_ref, 0), (6, xe_ref, 1), (7, xo_ref, 1),
                 (8, xe_ref, 2), (9, xo_ref, 2))

    def banded(terms):
        acc = None
        for t, src, off in terms:
            d = jnp.dot(src[pl.ds(off, m), :], w1_ref[t],
                        preferred_element_type=f32)
            acc = d if acc is None else acc + d
        return acc

    ze = banded(even_terms)                       # (m, 256) f32
    zo = banded(odd_terms)                        # (m, 256) f32
    # tanh, then the 2x2-pool row-pair sum (its 0.25 and the column-pair sum
    # are folded into the conv2 banded matrices).
    asum_ref[pl.ds(0, m), :] = (jnp.tanh(ze + b1_ref[...]) +
                                jnp.tanh(zo + b1_ref[...])).astype(bf16)
    asum_ref[pl.ds(m, 8), :] = jnp.zeros((8, asum_ref.shape[1]), bf16)

    # ---- pool1 + conv2 (6->16, 5x5) folded into 5 banded dots + tanh --------
    z2 = None
    for dy in range(5):
        d = jnp.dot(asum_ref[pl.ds(dy, m), :], w2_ref[dy],
                    preferred_element_type=f32)
        z2 = d if z2 is None else z2 + d
    act2_ref[pl.ds(0, m), :] = jnp.tanh(z2 + b2_ref[...]).astype(bf16)
    act2_ref[pl.ds(m, 16), :] = jnp.zeros((16, act2_ref.shape[1]), bf16)

    # ---- pool2 + conv3 (16->120, 5x5 -> 1x1) folded into 10 banded dots -----
    g = None
    for k in range(10):
        d = jnp.dot(act2_ref[pl.ds(k, m), :], w3_ref[k],
                    preferred_element_type=f32)
        g = d if g is None else g + d
    # Row b*16 of g is image b's conv3 pre-activation; gather those rows with
    # one tiny selector matmul (MXU) instead of strided loads.
    c3 = jnp.dot(sel_ref[...], g.astype(bf16), preferred_element_type=f32)
    h3 = jnp.tanh(c3 + b3_ref[...])               # (TB, 128)

    # ---- lin1 (120->84) + tanh, lin2 (84->10) -------------------------------
    h4 = jnp.tanh(jnp.dot(h3.astype(bf16), w4_ref[...],
                          preferred_element_type=f32) + b4_ref[...])
    out_ref[...] = jnp.dot(h4.astype(bf16), w5_ref[...],
                           preferred_element_type=f32) + b5_ref[...]


# ----------------------------------------------------------------------------
# One-time weight repacking into banded, lane-padded matrices
# ----------------------------------------------------------------------------
def prepare_params(params):
    w1, b1 = [np.asarray(a, np.float32) for a in params["conv1"]]   # (6,1,5,5)
    w2, b2 = [np.asarray(a, np.float32) for a in params["conv2"]]   # (16,6,5,5)
    w3, b3 = [np.asarray(a, np.float32) for a in params["conv3"]]   # (120,16,5,5)
    w4, b4 = [np.asarray(a, np.float32) for a in params["lin1"]]    # (84,120)
    w5, b5 = [np.asarray(a, np.float32) for a in params["lin2"]]    # (10,84)

    # conv1 banded matrices A1[dy]: x columns (K<=32 of 128) -> lanes ox*6+c.
    a1 = np.zeros((5, 128, _N1P), np.float32)
    for dy in range(5):
        for ox in range(28):
            for dx in range(5):
                a1[dy, ox + dx, ox * 6:ox * 6 + 6] = w1[:, 0, dy, dx]
    w1s = np.concatenate([a1, a1], axis=0)         # terms 0..4 even, 5..9 odd
    b1r = np.zeros((1, _N1P), np.float32)
    for ox in range(28):
        b1r[0, ox * 6:ox * 6 + 6] = b1

    # pool1 + conv2 folded: B2[dy2] maps conv1 lanes (ox1*6+c) -> (ox2*16+n).
    b2s = np.zeros((5, _N1P, _N2P), np.float32)
    for dy2 in range(5):
        for ox2 in range(10):
            for dx2 in range(5):
                for rx in range(2):
                    row = (2 * (ox2 + dx2) + rx) * 6
                    b2s[dy2, row:row + 6, ox2 * 16:ox2 * 16 + 16] += (
                        0.25 * w2[:, :, dy2, dx2].T)        # [c, n]
    b2r = np.zeros((1, _N2P), np.float32)
    for ox2 in range(10):
        b2r[0, ox2 * 16:ox2 * 16 + 16] = b2

    # pool2 + conv3 folded: B3[k] maps conv2 lanes (ox2*16+n) -> conv3 channel.
    b3s = np.zeros((10, _N2P, _N3P), np.float32)
    for k in range(10):
        dy3 = k // 2
        for dx3 in range(5):
            for rx in range(2):
                row = (2 * dx3 + rx) * 16
                b3s[k, row:row + 16, 0:120] += 0.25 * w3[:, :, dy3, dx3].T
    b3r = np.zeros((1, _N3P), np.float32)
    b3r[0, :120] = b3

    w4p = np.zeros((_N3P, _N3P), np.float32); w4p[:120, :84] = w4.T
    b4r = np.zeros((1, _N3P), np.float32); b4r[0, :84] = b4
    w5p = np.zeros((_N3P, _N3P), np.float32); w5p[:84, :10] = w5.T
    b5r = np.zeros((1, _N3P), np.float32); b5r[0, :10] = b5

    bf = jnp.bfloat16
    return dict(
        w1s=jnp.asarray(w1s, bf), b1=jnp.asarray(b1r),
        w2s=jnp.asarray(b2s, bf), b2=jnp.asarray(b2r),
        w3s=jnp.asarray(b3s, bf), b3=jnp.asarray(b3r),
        w4=jnp.asarray(w4p, bf), b4=jnp.asarray(b4r),
        w5=jnp.asarray(w5p, bf), b5=jnp.asarray(b5r))


# ----------------------------------------------------------------------------
# Fused forward
# ----------------------------------------------------------------------------
def lenet_forward_fused(prepped, x, tb=8):
    """x: (B, 1, 32, 32) float32 -> logits (B, 10) float32."""
    assert tb % 8 == 0
    B = x.shape[0]
    assert x.shape[1:] == (1, 32, 32)
    bp = ((B + tb - 1) // tb) * tb          # batch padded to a multiple of TB
    g = bp // tb                            # grid length
    m = tb * 16                             # activation rows per block
    r = m + 8                               # +8 zero rows: shifted reads stay in-block

    xi = x.reshape(B, 32, 32)
    if bp != B:
        xi = jnp.pad(xi, ((0, bp - B), (0, 0), (0, 0)))

    def blockify(rows):                     # rows: (bp, 16, 32) image-row slab
        rows = jnp.pad(rows, ((0, 0), (0, 0), (0, 128 - 32)))   # width -> 128 lanes
        rows = rows.reshape(g, m, 128)
        rows = jnp.pad(rows, ((0, 0), (0, r - m), (0, 0)))      # per-block pad rows
        return rows.reshape(g * r, 128).astype(jnp.bfloat16)

    xe = blockify(xi[:, 0::2, :])           # even image rows
    xo = blockify(xi[:, 1::2, :])           # odd image rows

    # Selector picking row b*16 (image b's conv3 row) out of each block.
    sel = (jnp.arange(m)[None, :] == (16 * jnp.arange(tb))[:, None]
           ).astype(jnp.bfloat16)

    def full(shape):
        return pl.BlockSpec(shape, lambda i, _n=len(shape): (0,) * _n)

    kernel = functools.partial(_lenet_kernel, m=m)
    out = pl.pallas_call(
        kernel,
        out_shape=jax.ShapeDtypeStruct((bp, 128), jnp.float32),
        grid=(g,),
        in_specs=[
            pl.BlockSpec((r, 128), lambda i: (i, 0)),      # even-row slab block
            pl.BlockSpec((r, 128), lambda i: (i, 0)),      # odd-row slab block
            full((10, 128, _N1P)), full((1, _N1P)),        # conv1 banded + bias
            full((5, _N1P, _N2P)), full((1, _N2P)),        # pool1+conv2 banded + bias
            full((10, _N2P, _N3P)), full((1, _N3P)),       # pool2+conv3 banded + bias
            full((tb, m)),                                 # row selector
            full((_N3P, _N3P)), full((1, _N3P)),           # lin1
            full((_N3P, _N3P)), full((1, _N3P)),           # lin2
        ],
        out_specs=pl.BlockSpec((tb, 128), lambda i: (i, 0)),
        scratch_shapes=[
            pltpu.VMEM((m + 8, _N1P), jnp.bfloat16),       # tanh(conv1) row-pair sums
            pltpu.VMEM((m + 16, _N2P), jnp.bfloat16),      # tanh(conv2)
        ],
        compiler_params=pltpu.CompilerParams(
            dimension_semantics=("parallel",)),
    )(xe, xo, prepped["w1s"], prepped["b1"], prepped["w2s"], prepped["b2"],
      prepped["w3s"], prepped["b3"], sel, prepped["w4"], prepped["b4"],
      prepped["w5"], prepped["b5"])
    return out[:B, :10]


# ----------------------------------------------------------------------------
# Parameter init (PyTorch default init) + pure-JAX reference
# ----------------------------------------------------------------------------
def init_lenet_params(key):
    def conv_p(key, oc, ic, k):
        k1, k2 = jax.random.split(key)
        bound = 1.0 / jnp.sqrt(ic * k * k)
        w = jax.random.uniform(k1, (oc, ic, k, k), jnp.float32, -bound, bound)
        b = jax.random.uniform(k2, (oc,), jnp.float32, -bound, bound)
        return w, b

    def lin_p(key, out_f, in_f):
        k1, k2 = jax.random.split(key)
        bound = 1.0 / jnp.sqrt(in_f)
        w = jax.random.uniform(k1, (out_f, in_f), jnp.float32, -bound, bound)
        b = jax.random.uniform(k2, (out_f,), jnp.float32, -bound, bound)
        return w, b

    ks = jax.random.split(key, 5)
    return {
        "conv1": conv_p(ks[0], 6, 1, 5),
        "conv2": conv_p(ks[1], 16, 6, 5),
        "conv3": conv_p(ks[2], 120, 16, 5),
        "lin1": lin_p(ks[3], 84, 120),
        "lin2": lin_p(ks[4], 10, 84),
    }


def lenet_reference(params, x):
    def conv(x, w, b):
        y = jax.lax.conv_general_dilated(
            x, w, window_strides=(1, 1), padding="VALID",
            dimension_numbers=("NCHW", "OIHW", "NCHW"))
        return y + b[None, :, None, None]

    def pool(x):
        B, C, H, W = x.shape
        return x.reshape(B, C, H // 2, 2, W // 2, 2).mean(axis=(3, 5))

    out = pool(jnp.tanh(conv(x, *params["conv1"])))
    out = pool(jnp.tanh(conv(out, *params["conv2"])))
    out = jnp.tanh(conv(out, *params["conv3"])).reshape(x.shape[0], -1)
    out = jnp.tanh(out @ params["lin1"][0].T + params["lin1"][1])
    return out @ params["lin2"][0].T + params["lin2"][1]


if __name__ == "__main__":
    key = jax.random.PRNGKey(0)
    k_params, k_x = jax.random.split(key)
    params = init_lenet_params(k_params)
    # LeNet-5 spec: 32x32 single-channel input so conv3 yields 120x1x1.
    x = jax.random.normal(k_x, (4, 1, 32, 32), dtype=jnp.float32)

    prepped = prepare_params(params)          # one-time banded repack of weights
    fwd = jax.jit(lenet_forward_fused)
    out = jax.block_until_ready(fwd(prepped, x))

    assert out.shape == (4, 10) and out.dtype == jnp.float32
    ref = lenet_reference(params, x)
    np.testing.assert_allclose(np.asarray(out), np.asarray(ref),
                               atol=1e-1, rtol=1e-1)
    print("KERNEL_OK")
</pallas_src>

<mosaic_0001>
module attributes {stable_mosaic.version = 11 : i64} {
  func.func @_lenet_kernel(%arg0: i32, %arg1: memref<136x128xbf16, #tpu.memory_space<vmem>>, %arg2: memref<136x128xbf16, #tpu.memory_space<vmem>>, %arg3: memref<10x128x256xbf16, #tpu.memory_space<vmem>>, %arg4: memref<1x256xf32, #tpu.memory_space<vmem>>, %arg5: memref<5x256x256xbf16, #tpu.memory_space<vmem>>, %arg6: memref<1x256xf32, #tpu.memory_space<vmem>>, %arg7: memref<10x256x128xbf16, #tpu.memory_space<vmem>>, %arg8: memref<1x128xf32, #tpu.memory_space<vmem>>, %arg9: memref<8x128xbf16, #tpu.memory_space<vmem>>, %arg10: memref<128x128xbf16, #tpu.memory_space<vmem>>, %arg11: memref<1x128xf32, #tpu.memory_space<vmem>>, %arg12: memref<128x128xbf16, #tpu.memory_space<vmem>>, %arg13: memref<1x128xf32, #tpu.memory_space<vmem>>, %arg14: memref<8x128xf32, #tpu.memory_space<vmem>>, %arg15: memref<136x256xbf16, #tpu.memory_space<vmem>>, %arg16: memref<144x256xbf16, #tpu.memory_space<vmem>>) attributes {dimension_semantics = [#tpu.dimension_semantics<parallel>], iteration_bounds = array<i64: 1>, scalar_prefetch = 0 : i64, scratch_operands = 2 : i64, tpu.core_type = #tpu.core_type<tc>, window_params = [{transform_indices = @transform_0, window_bounds = array<i64: 136, 128>}, {transform_indices = @transform_1, window_bounds = array<i64: 136, 128>}, {pipeline_mode = #tpu.pipeline_mode<synchronous>, transform_indices = @transform_2, window_bounds = array<i64: 10, 128, 256>}, {pipeline_mode = #tpu.pipeline_mode<synchronous>, transform_indices = @transform_3, window_bounds = array<i64: 1, 256>}, {pipeline_mode = #tpu.pipeline_mode<synchronous>, transform_indices = @transform_4, window_bounds = array<i64: 5, 256, 256>}, {pipeline_mode = #tpu.pipeline_mode<synchronous>, transform_indices = @transform_5, window_bounds = array<i64: 1, 256>}, {pipeline_mode = #tpu.pipeline_mode<synchronous>, transform_indices = @transform_6, window_bounds = array<i64: 10, 256, 128>}, {pipeline_mode = #tpu.pipeline_mode<synchronous>, transform_indices = @transform_7, window_bounds = array<i64: 1, 128>}, {pipeline_mode = #tpu.pipeline_mode<synchronous>, transform_indices = @transform_8, window_bounds = array<i64: 8, 128>}, {pipeline_mode = #tpu.pipeline_mode<synchronous>, transform_indices = @transform_9, window_bounds = array<i64: 128, 128>}, {pipeline_mode = #tpu.pipeline_mode<synchronous>, transform_indices = @transform_10, window_bounds = array<i64: 1, 128>}, {pipeline_mode = #tpu.pipeline_mode<synchronous>, transform_indices = @transform_11, window_bounds = array<i64: 128, 128>}, {pipeline_mode = #tpu.pipeline_mode<synchronous>, transform_indices = @transform_12, window_bounds = array<i64: 1, 128>}, {transform_indices = @transform_13, window_bounds = array<i64: 8, 128>}]} {
    %c0 = arith.constant 0 : index
    %c0_0 = arith.constant 0 : index
    %0 = vector.load %arg1[%c0, %c0_0] : memref<136x128xbf16, #tpu.memory_space<vmem>>, vector<128x128xbf16>
    %c0_1 = arith.constant 0 : index
    %c0_2 = arith.constant 0 : index
    %c0_3 = arith.constant 0 : index
    %1 = vector.load %arg3[%c0_1, %c0_2, %c0_3] : memref<10x128x256xbf16, #tpu.memory_space<vmem>>, vector<1x128x256xbf16>
    %2 = vector.shape_cast %1 : vector<1x128x256xbf16> to vector<128x256xbf16>
    %cst = arith.constant dense<0.000000e+00> : vector<128x256xf32>
    %3 = tpu.matmul %0, %2, %cst {dimension_numbers = #tpu.dot_dimension_numbers<[1], [0], [0], [1], [0, 0, 1, 1], [], []>} : vector<128x128xbf16>, vector<128x256xbf16>, vector<128x256xf32> -> vector<128x256xf32>
    %c0_4 = arith.constant 0 : index
    %c0_5 = arith.constant 0 : index
    %4 = vector.load %arg2[%c0_4, %c0_5] : memref<136x128xbf16, #tpu.memory_space<vmem>>, vector<128x128xbf16>
    %c1 = arith.constant 1 : index
    %c0_6 = arith.constant 0 : index
    %c0_7 = arith.constant 0 : index
    %5 = vector.load %arg3[%c1, %c0_6, %c0_7] : memref<10x128x256xbf16, #tpu.memory_space<vmem>>, vector<1x128x256xbf16>
    %6 = vector.shape_cast %5 : vector<1x128x256xbf16> to vector<128x256xbf16>
    %cst_8 = arith.constant dense<0.000000e+00> : vector<128x256xf32>
    %7 = tpu.matmul %4, %6, %cst_8 {dimension_numbers = #tpu.dot_dimension_numbers<[1], [0], [0], [1], [0, 0, 1, 1], [], []>} : vector<128x128xbf16>, vector<128x256xbf16>, vector<128x256xf32> -> vector<128x256xf32>
    %8 = arith.addf %3, %7 : vector<128x256xf32>
    %c1_9 = arith.constant 1 : index
    %c0_10 = arith.constant 0 : index
    %9 = vector.load %arg1[%c1_9, %c0_10] : memref<136x128xbf16, #tpu.memory_space<vmem>>, vector<128x128xbf16>
    %c2 = arith.constant 2 : index
    %c0_11 = arith.constant 0 : index
    %c0_12 = arith.constant 0 : index
    %10 = vector.load %arg3[%c2, %c0_11, %c0_12] : memref<10x128x256xbf16, #tpu.memory_space<vmem>>, vector<1x128x256xbf16>
    %11 = vector.shape_cast %10 : vector<1x128x256xbf16> to vector<128x256xbf16>
    %cst_13 = arith.constant dense<0.000000e+00> : vector<128x256xf32>
    %12 = tpu.matmul %9, %11, %cst_13 {dimension_numbers = #tpu.dot_dimension_numbers<[1], [0], [0], [1], [0, 0, 1, 1], [], []>} : vector<128x128xbf16>, vector<128x256xbf16>, vector<128x256xf32> -> vector<128x256xf32>
    %13 = arith.addf %8, %12 : vector<128x256xf32>
    %c1_14 = arith.constant 1 : index
    %c0_15 = arith.constant 0 : index
    %14 = vector.load %arg2[%c1_14, %c0_15] : memref<136x128xbf16, #tpu.memory_space<vmem>>, vector<128x128xbf16>
    %c3 = arith.constant 3 : index
    %c0_16 = arith.constant 0 : index
    %c0_17 = arith.constant 0 : index
    %15 = vector.load %arg3[%c3, %c0_16, %c0_17] : memref<10x128x256xbf16, #tpu.memory_space<vmem>>, vector<1x128x256xbf16>
    %16 = vector.shape_cast %15 : vector<1x128x256xbf16> to vector<128x256xbf16>
    %cst_18 = arith.constant dense<0.000000e+00> : vector<128x256xf32>
    %17 = tpu.matmul %14, %16, %cst_18 {dimension_numbers = #tpu.dot_dimension_numbers<[1], [0], [0], [1], [0, 0, 1, 1], [], []>} : vector<128x128xbf16>, vector<128x256xbf16>, vector<128x256xf32> -> vector<128x256xf32>
    %18 = arith.addf %13, %17 : vector<128x256xf32>
    %c2_19 = arith.constant 2 : index
    %c0_20 = arith.constant 0 : index
    %19 = vector.load %arg1[%c2_19, %c0_20] : memref<136x128xbf16, #tpu.memory_space<vmem>>, vector<128x128xbf16>
    %c4 = arith.constant 4 : index
    %c0_21 = arith.constant 0 : index
    %c0_22 = arith.constant 0 : index
    %20 = vector.load %arg3[%c4, %c0_21, %c0_22] : memref<10x128x256xbf16, #tpu.memory_space<vmem>>, vector<1x128x256xbf16>
    %21 = vector.shape_cast %20 : vector<1x128x256xbf16> to vector<128x256xbf16>
    %cst_23 = arith.constant dense<0.000000e+00> : vector<128x256xf32>
    %22 = tpu.matmul %19, %21, %cst_23 {dimension_numbers = #tpu.dot_dimension_numbers<[1], [0], [0], [1], [0, 0, 1, 1], [], []>} : vector<128x128xbf16>, vector<128x256xbf16>, vector<128x256xf32> -> vector<128x256xf32>
    %23 = arith.addf %18, %22 : vector<128x256xf32>
    %c0_24 = arith.constant 0 : index
    %c0_25 = arith.constant 0 : index
    %24 = vector.load %arg2[%c0_24, %c0_25] : memref<136x128xbf16, #tpu.memory_space<vmem>>, vector<128x128xbf16>
    %c5 = arith.constant 5 : index
    %c0_26 = arith.constant 0 : index
    %c0_27 = arith.constant 0 : index
    %25 = vector.load %arg3[%c5, %c0_26, %c0_27] : memref<10x128x256xbf16, #tpu.memory_space<vmem>>, vector<1x128x256xbf16>
    %26 = vector.shape_cast %25 : vector<1x128x256xbf16> to vector<128x256xbf16>
    %cst_28 = arith.constant dense<0.000000e+00> : vector<128x256xf32>
    %27 = tpu.matmul %24, %26, %cst_28 {dimension_numbers = #tpu.dot_dimension_numbers<[1], [0], [0], [1], [0, 0, 1, 1], [], []>} : vector<128x128xbf16>, vector<128x256xbf16>, vector<128x256xf32> -> vector<128x256xf32>
    %c1_29 = arith.constant 1 : index
    %c0_30 = arith.constant 0 : index
    %28 = vector.load %arg1[%c1_29, %c0_30] : memref<136x128xbf16, #tpu.memory_space<vmem>>, vector<128x128xbf16>
    %c6 = arith.constant 6 : index
    %c0_31 = arith.constant 0 : index
    %c0_32 = arith.constant 0 : index
    %29 = vector.load %arg3[%c6, %c0_31, %c0_32] : memref<10x128x256xbf16, #tpu.memory_space<vmem>>, vector<1x128x256xbf16>
    %30 = vector.shape_cast %29 : vector<1x128x256xbf16> to vector<128x256xbf16>
    %cst_33 = arith.constant dense<0.000000e+00> : vector<128x256xf32>
    %31 = tpu.matmul %28, %30, %cst_33 {dimension_numbers = #tpu.dot_dimension_numbers<[1], [0], [0], [1], [0, 0, 1, 1], [], []>} : vector<128x128xbf16>, vector<128x256xbf16>, vector<128x256xf32> -> vector<128x256xf32>
    %32 = arith.addf %27, %31 : vector<128x256xf32>
    %c1_34 = arith.constant 1 : index
    %c0_35 = arith.constant 0 : index
    %33 = vector.load %arg2[%c1_34, %c0_35] : memref<136x128xbf16, #tpu.memory_space<vmem>>, vector<128x128xbf16>
    %c7 = arith.constant 7 : index
    %c0_36 = arith.constant 0 : index
    %c0_37 = arith.constant 0 : index
    %34 = vector.load %arg3[%c7, %c0_36, %c0_37] : memref<10x128x256xbf16, #tpu.memory_space<vmem>>, vector<1x128x256xbf16>
    %35 = vector.shape_cast %34 : vector<1x128x256xbf16> to vector<128x256xbf16>
    %cst_38 = arith.constant dense<0.000000e+00> : vector<128x256xf32>
    %36 = tpu.matmul %33, %35, %cst_38 {dimension_numbers = #tpu.dot_dimension_numbers<[1], [0], [0], [1], [0, 0, 1, 1], [], []>} : vector<128x128xbf16>, vector<128x256xbf16>, vector<128x256xf32> -> vector<128x256xf32>
    %37 = arith.addf %32, %36 : vector<128x256xf32>
    %c2_39 = arith.constant 2 : index
    %c0_40 = arith.constant 0 : index
    %38 = vector.load %arg1[%c2_39, %c0_40] : memref<136x128xbf16, #tpu.memory_space<vmem>>, vector<128x128xbf16>
    %c8 = arith.constant 8 : index
    %c0_41 = arith.constant 0 : index
    %c0_42 = arith.constant 0 : index
    %39 = vector.load %arg3[%c8, %c0_41, %c0_42] : memref<10x128x256xbf16, #tpu.memory_space<vmem>>, vector<1x128x256xbf16>
    %40 = vector.shape_cast %39 : vector<1x128x256xbf16> to vector<128x256xbf16>
    %cst_43 = arith.constant dense<0.000000e+00> : vector<128x256xf32>
    %41 = tpu.matmul %38, %40, %cst_43 {dimension_numbers = #tpu.dot_dimension_numbers<[1], [0], [0], [1], [0, 0, 1, 1], [], []>} : vector<128x128xbf16>, vector<128x256xbf16>, vector<128x256xf32> -> vector<128x256xf32>
    %42 = arith.addf %37, %41 : vector<128x256xf32>
    %c2_44 = arith.constant 2 : index
    %c0_45 = arith.constant 0 : index
    %43 = vector.load %arg2[%c2_44, %c0_45] : memref<136x128xbf16, #tpu.memory_space<vmem>>, vector<128x128xbf16>
    %c9 = arith.constant 9 : index
    %c0_46 = arith.constant 0 : index
    %c0_47 = arith.constant 0 : index
    %44 = vector.load %arg3[%c9, %c0_46, %c0_47] : memref<10x128x256xbf16, #tpu.memory_space<vmem>>, vector<1x128x256xbf16>
    %45 = vector.shape_cast %44 : vector<1x128x256xbf16> to vector<128x256xbf16>
    %cst_48 = arith.constant dense<0.000000e+00> : vector<128x256xf32>
    %46 = tpu.matmul %43, %45, %cst_48 {dimension_numbers = #tpu.dot_dimension_numbers<[1], [0], [0], [1], [0, 0, 1, 1], [], []>} : vector<128x128xbf16>, vector<128x256xbf16>, vector<128x256xf32> -> vector<128x256xf32>
    %47 = arith.addf %42, %46 : vector<128x256xf32>
    %c0_49 = arith.constant 0 : index
    %c0_50 = arith.constant 0 : index
    %48 = vector.load %arg4[%c0_49, %c0_50] : memref<1x256xf32, #tpu.memory_space<vmem>>, vector<1x256xf32>
    %49 = vector.broadcast %48 : vector<1x256xf32> to vector<128x256xf32>
    %50 = arith.addf %23, %49 : vector<128x256xf32>
    %51 = math.tanh %50 : vector<128x256xf32>
    %c0_51 = arith.constant 0 : index
    %c0_52 = arith.constant 0 : index
    %52 = vector.load %arg4[%c0_51, %c0_52] : memref<1x256xf32, #tpu.memory_space<vmem>>, vector<1x256xf32>
    %53 = vector.broadcast %52 : vector<1x256xf32> to vector<128x256xf32>
    %54 = arith.addf %47, %53 : vector<128x256xf32>
    %55 = math.tanh %54 : vector<128x256xf32>
    %56 = arith.addf %51, %55 : vector<128x256xf32>
    %57 = arith.truncf %56 : vector<128x256xf32> to vector<128x256xbf16>
    %c0_53 = arith.constant 0 : index
    %c0_54 = arith.constant 0 : index
    %58 = vector.load %arg15[%c0_53, %c0_54] : memref<136x256xbf16, #tpu.memory_space<vmem>>, vector<128x256xbf16>
    tpu.vector_store %arg15[%c0_53, %c0_54], %57 {strides = array<i32>} : memref<136x256xbf16, #tpu.memory_space<vmem>>, vector<128x256xbf16>,
    %cst_55 = arith.constant 0.000000e+00 : bf16
    %59 = vector.broadcast %cst_55 : bf16 to vector<8x256xbf16>
    %c128 = arith.constant 128 : index
    %c0_56 = arith.constant 0 : index
    %60 = vector.load %arg15[%c128, %c0_56] : memref<136x256xbf16, #tpu.memory_space<vmem>>, vector<8x256xbf16>
    tpu.vector_store %arg15[%c128, %c0_56], %59 {strides = array<i32>} : memref<136x256xbf16, #tpu.memory_space<vmem>>, vector<8x256xbf16>,
    %c0_57 = arith.constant 0 : index
    %c0_58 = arith.constant 0 : index
    %61 = vector.load %arg15[%c0_57, %c0_58] : memref<136x256xbf16, #tpu.memory_space<vmem>>, vector<128x256xbf16>
    %c0_59 = arith.constant 0 : index
    %c0_60 = arith.constant 0 : index
    %c0_61 = arith.constant 0 : index
    %62 = vector.load %arg5[%c0_59, %c0_60, %c0_61] : memref<5x256x256xbf16, #tpu.memory_space<vmem>>, vector<1x256x256xbf16>
    %63 = vector.shape_cast %62 : vector<1x256x256xbf16> to vector<256x256xbf16>
    %cst_62 = arith.constant dense<0.000000e+00> : vector<128x256xf32>
    %64 = tpu.matmul %61, %63, %cst_62 {dimension_numbers = #tpu.dot_dimension_numbers<[1], [0], [0], [1], [0, 0, 1, 1], [], []>} : vector<128x256xbf16>, vector<256x256xbf16>, vector<128x256xf32> -> vector<128x256xf32>
    %c1_63 = arith.constant 1 : index
    %c0_64 = arith.constant 0 : index
    %65 = vector.load %arg15[%c1_63, %c0_64] : memref<136x256xbf16, #tpu.memory_space<vmem>>, vector<128x256xbf16>
    %c1_65 = arith.constant 1 : index
    %c0_66 = arith.constant 0 : index
    %c0_67 = arith.constant 0 : index
    %66 = vector.load %arg5[%c1_65, %c0_66, %c0_67] : memref<5x256x256xbf16, #tpu.memory_space<vmem>>, vector<1x256x256xbf16>
    %67 = vector.shape_cast %66 : vector<1x256x256xbf16> to vector<256x256xbf16>
    %cst_68 = arith.constant dense<0.000000e+00> : vector<128x256xf32>
    %68 = tpu.matmul %65, %67, %cst_68 {dimension_numbers = #tpu.dot_dimension_numbers<[1], [0], [0], [1], [0, 0, 1, 1], [], []>} : vector<128x256xbf16>, vector<256x256xbf16>, vector<128x256xf32> -> vector<128x256xf32>
    %69 = arith.addf %64, %68 : vector<128x256xf32>
    %c2_69 = arith.constant 2 : index
    %c0_70 = arith.constant 0 : index
    %70 = vector.load %arg15[%c2_69, %c0_70] : memref<136x256xbf16, #tpu.memory_space<vmem>>, vector<128x256xbf16>
    %c2_71 = arith.constant 2 : index
    %c0_72 = arith.constant 0 : index
    %c0_73 = arith.constant 0 : index
    %71 = vector.load %arg5[%c2_71, %c0_72, %c0_73] : memref<5x256x256xbf16, #tpu.memory_space<vmem>>, vector<1x256x256xbf16>
    %72 = vector.shape_cast %71 : vector<1x256x256xbf16> to vector<256x256xbf16>
    %cst_74 = arith.constant dense<0.000000e+00> : vector<128x256xf32>
    %73 = tpu.matmul %70, %72, %cst_74 {dimension_numbers = #tpu.dot_dimension_numbers<[1], [0], [0], [1], [0, 0, 1, 1], [], []>} : vector<128x256xbf16>, vector<256x256xbf16>, vector<128x256xf32> -> vector<128x256xf32>
    %74 = arith.addf %69, %73 : vector<128x256xf32>
    %c3_75 = arith.constant 3 : index
    %c0_76 = arith.constant 0 : index
    %75 = vector.load %arg15[%c3_75, %c0_76] : memref<136x256xbf16, #tpu.memory_space<vmem>>, vector<128x256xbf16>
    %c3_77 = arith.constant 3 : index
    %c0_78 = arith.constant 0 : index
    %c0_79 = arith.constant 0 : index
    %76 = vector.load %arg5[%c3_77, %c0_78, %c0_79] : memref<5x256x256xbf16, #tpu.memory_space<vmem>>, vector<1x256x256xbf16>
    %77 = vector.shape_cast %76 : vector<1x256x256xbf16> to vector<256x256xbf16>
    %cst_80 = arith.constant dense<0.000000e+00> : vector<128x256xf32>
    %78 = tpu.matmul %75, %77, %cst_80 {dimension_numbers = #tpu.dot_dimension_numbers<[1], [0], [0], [1], [0, 0, 1, 1], [], []>} : vector<128x256xbf16>, vector<256x256xbf16>, vector<128x256xf32> -> vector<128x256xf32>
    %79 = arith.addf %74, %78 : vector<128x256xf32>
    %c4_81 = arith.constant 4 : index
    %c0_82 = arith.constant 0 : index
    %80 = vector.load %arg15[%c4_81, %c0_82] : memref<136x256xbf16, #tpu.memory_space<vmem>>, vector<128x256xbf16>
    %c4_83 = arith.constant 4 : index
    %c0_84 = arith.constant 0 : index
    %c0_85 = arith.constant 0 : index
    %81 = vector.load %arg5[%c4_83, %c0_84, %c0_85] : memref<5x256x256xbf16, #tpu.memory_space<vmem>>, vector<1x256x256xbf16>
    %82 = vector.shape_cast %81 : vector<1x256x256xbf16> to vector<256x256xbf16>
    %cst_86 = arith.constant dense<0.000000e+00> : vector<128x256xf32>
    %83 = tpu.matmul %80, %82, %cst_86 {dimension_numbers = #tpu.dot_dimension_numbers<[1], [0], [0], [1], [0, 0, 1, 1], [], []>} : vector<128x256xbf16>, vector<256x256xbf16>, vector<128x256xf32> -> vector<128x256xf32>
    %84 = arith.addf %79, %83 : vector<128x256xf32>
    %c0_87 = arith.constant 0 : index
    %c0_88 = arith.constant 0 : index
    %85 = vector.load %arg6[%c0_87, %c0_88] : memref<1x256xf32, #tpu.memory_space<vmem>>, vector<1x256xf32>
    %86 = vector.broadcast %85 : vector<1x256xf32> to vector<128x256xf32>
    %87 = arith.addf %84, %86 : vector<128x256xf32>
    %88 = math.tanh %87 : vector<128x256xf32>
    %89 = arith.truncf %88 : vector<128x256xf32> to vector<128x256xbf16>
    %c0_89 = arith.constant 0 : index
    %c0_90 = arith.constant 0 : index
    %90 = vector.load %arg16[%c0_89, %c0_90] : memref<144x256xbf16, #tpu.memory_space<vmem>>, vector<128x256xbf16>
    tpu.vector_store %arg16[%c0_89, %c0_90], %89 {strides = array<i32>} : memref<144x256xbf16, #tpu.memory_space<vmem>>, vector<128x256xbf16>,
    %cst_91 = arith.constant 0.000000e+00 : bf16
    %91 = vector.broadcast %cst_91 : bf16 to vector<16x256xbf16>
    %c128_92 = arith.constant 128 : index
    %c0_93 = arith.constant 0 : index
    %92 = vector.load %arg16[%c128_92, %c0_93] : memref<144x256xbf16, #tpu.memory_space<vmem>>, vector<16x256xbf16>
    tpu.vector_store %arg16[%c128_92, %c0_93], %91 {strides = array<i32>} : memref<144x256xbf16, #tpu.memory_space<vmem>>, vector<16x256xbf16>,
    %c0_94 = arith.constant 0 : index
    %c0_95 = arith.constant 0 : index
    %93 = vector.load %arg16[%c0_94, %c0_95] : memref<144x256xbf16, #tpu.memory_space<vmem>>, vector<128x256xbf16>
    %c0_96 = arith.constant 0 : index
    %c0_97 = arith.constant 0 : index
    %c0_98 = arith.constant 0 : index
    %94 = vector.load %arg7[%c0_96, %c0_97, %c0_98] : memref<10x256x128xbf16, #tpu.memory_space<vmem>>, vector<1x256x128xbf16>
    %95 = vector.shape_cast %94 : vector<1x256x128xbf16> to vector<256x128xbf16>
    %cst_99 = arith.constant dense<0.000000e+00> : vector<128x128xf32>
    %96 = tpu.matmul %93, %95, %cst_99 {dimension_numbers = #tpu.dot_dimension_numbers<[1], [0], [0], [1], [0, 0, 1, 1], [], []>} : vector<128x256xbf16>, vector<256x128xbf16>, vector<128x128xf32> -> vector<128x128xf32>
    %c1_100 = arith.constant 1 : index
    %c0_101 = arith.constant 0 : index
    %97 = vector.load %arg16[%c1_100, %c0_101] : memref<144x256xbf16, #tpu.memory_space<vmem>>, vector<128x256xbf16>
    %c1_102 = arith.constant 1 : index
    %c0_103 = arith.constant 0 : index
    %c0_104 = arith.constant 0 : index
    %98 = vector.load %arg7[%c1_102, %c0_103, %c0_104] : memref<10x256x128xbf16, #tpu.memory_space<vmem>>, vector<1x256x128xbf16>
    %99 = vector.shape_cast %98 : vector<1x256x128xbf16> to vector<256x128xbf16>
    %cst_105 = arith.constant dense<0.000000e+00> : vector<128x128xf32>
    %100 = tpu.matmul %97, %99, %cst_105 {dimension_numbers = #tpu.dot_dimension_numbers<[1], [0], [0], [1], [0, 0, 1, 1], [], []>} : vector<128x256xbf16>, vector<256x128xbf16>, vector<128x128xf32> -> vector<128x128xf32>
    %101 = arith.addf %96, %100 : vector<128x128xf32>
    %c2_106 = arith.constant 2 : index
    %c0_107 = arith.constant 0 : index
    %102 = vector.load %arg16[%c2_106, %c0_107] : memref<144x256xbf16, #tpu.memory_space<vmem>>, vector<128x256xbf16>
    %c2_108 = arith.constant 2 : index
    %c0_109 = arith.constant 0 : index
    %c0_110 = arith.constant 0 : index
    %103 = vector.load %arg7[%c2_108, %c0_109, %c0_110] : memref<10x256x128xbf16, #tpu.memory_space<vmem>>, vector<1x256x128xbf16>
    %104 = vector.shape_cast %103 : vector<1x256x128xbf16> to vector<256x128xbf16>
    %cst_111 = arith.constant dense<0.000000e+00> : vector<128x128xf32>
    %105 = tpu.matmul %102, %104, %cst_111 {dimension_numbers = #tpu.dot_dimension_numbers<[1], [0], [0], [1], [0, 0, 1, 1], [], []>} : vector<128x256xbf16>, vector<256x128xbf16>, vector<128x128xf32> -> vector<128x128xf32>
    %106 = arith.addf %101, %105 : vector<128x128xf32>
    %c3_112 = arith.constant 3 : index
    %c0_113 = arith.constant 0 : index
    %107 = vector.load %arg16[%c3_112, %c0_113] : memref<144x256xbf16, #tpu.memory_space<vmem>>, vector<128x256xbf16>
    %c3_114 = arith.constant 3 : index
    %c0_115 = arith.constant 0 : index
    %c0_116 = arith.constant 0 : index
    %108 = vector.load %arg7[%c3_114, %c0_115, %c0_116] : memref<10x256x128xbf16, #tpu.memory_space<vmem>>, vector<1x256x128xbf16>
    %109 = vector.shape_cast %108 : vector<1x256x128xbf16> to vector<256x128xbf16>
    %cst_117 = arith.constant dense<0.000000e+00> : vector<128x128xf32>
    %110 = tpu.matmul %107, %109, %cst_117 {dimension_numbers = #tpu.dot_dimension_numbers<[1], [0], [0], [1], [0, 0, 1, 1], [], []>} : vector<128x256xbf16>, vector<256x128xbf16>, vector<128x128xf32> -> vector<128x128xf32>
    %111 = arith.addf %106, %110 : vector<128x128xf32>
    %c4_118 = arith.constant 4 : index
    %c0_119 = arith.constant 0 : index
    %112 = vector.load %arg16[%c4_118, %c0_119] : memref<144x256xbf16, #tpu.memory_space<vmem>>, vector<128x256xbf16>
    %c4_120 = arith.constant 4 : index
    %c0_121 = arith.constant 0 : index
    %c0_122 = arith.constant 0 : index
    %113 = vector.load %arg7[%c4_120, %c0_121, %c0_122] : memref<10x256x128xbf16, #tpu.memory_space<vmem>>, vector<1x256x128xbf16>
    %114 = vector.shape_cast %113 : vector<1x256x128xbf16> to vector<256x128xbf16>
    %cst_123 = arith.constant dense<0.000000e+00> : vector<128x128xf32>
    %115 = tpu.matmul %112, %114, %cst_123 {dimension_numbers = #tpu.dot_dimension_numbers<[1], [0], [0], [1], [0, 0, 1, 1], [], []>} : vector<128x256xbf16>, vector<256x128xbf16>, vector<128x128xf32> -> vector<128x128xf32>
    %116 = arith.addf %111, %115 : vector<128x128xf32>
    %c5_124 = arith.constant 5 : index
    %c0_125 = arith.constant 0 : index
    %117 = vector.load %arg16[%c5_124, %c0_125] : memref<144x256xbf16, #tpu.memory_space<vmem>>, vector<128x256xbf16>
    %c5_126 = arith.constant 5 : index
    %c0_127 = arith.constant 0 : index
    %c0_128 = arith.constant 0 : index
    %118 = vector.load %arg7[%c5_126, %c0_127, %c0_128] : memref<10x256x128xbf16, #tpu.memory_space<vmem>>, vector<1x256x128xbf16>
    %119 = vector.shape_cast %118 : vector<1x256x128xbf16> to vector<256x128xbf16>
    %cst_129 = arith.constant dense<0.000000e+00> : vector<128x128xf32>
    %120 = tpu.matmul %117, %119, %cst_129 {dimension_numbers = #tpu.dot_dimension_numbers<[1], [0], [0], [1], [0, 0, 1, 1], [], []>} : vector<128x256xbf16>, vector<256x128xbf16>, vector<128x128xf32> -> vector<128x128xf32>
    %121 = arith.addf %116, %120 : vector<128x128xf32>
    %c6_130 = arith.constant 6 : index
    %c0_131 = arith.constant 0 : index
    %122 = vector.load %arg16[%c6_130, %c0_131] : memref<144x256xbf16, #tpu.memory_space<vmem>>, vector<128x256xbf16>
    %c6_132 = arith.constant 6 : index
    %c0_133 = arith.constant 0 : index
    %c0_134 = arith.constant 0 : index
    %123 = vector.load %arg7[%c6_132, %c0_133, %c0_134] : memref<10x256x128xbf16, #tpu.memory_space<vmem>>, vector<1x256x128xbf16>
    %124 = vector.shape_cast %123 : vector<1x256x128xbf16> to vector<256x128xbf16>
    %cst_135 = arith.constant dense<0.000000e+00> : vector<128x128xf32>
    %125 = tpu.matmul %122, %124, %cst_135 {dimension_numbers = #tpu.dot_dimension_numbers<[1], [0], [0], [1], [0, 0, 1, 1], [], []>} : vector<128x256xbf16>, vector<256x128xbf16>, vector<128x128xf32> -> vector<128x128xf32>
    %126 = arith.addf %121, %125 : vector<128x128xf32>
    %c7_136 = arith.constant 7 : index
    %c0_137 = arith.constant 0 : index
    %127 = vector.load %arg16[%c7_136, %c0_137] : memref<144x256xbf16, #tpu.memory_space<vmem>>, vector<128x256xbf16>
    %c7_138 = arith.constant 7 : index
    %c0_139 = arith.constant 0 : index
    %c0_140 = arith.constant 0 : index
    %128 = vector.load %arg7[%c7_138, %c0_139, %c0_140] : memref<10x256x128xbf16, #tpu.memory_space<vmem>>, vector<1x256x128xbf16>
    %129 = vector.shape_cast %128 : vector<1x256x128xbf16> to vector<256x128xbf16>
    %cst_141 = arith.constant dense<0.000000e+00> : vector<128x128xf32>
    %130 = tpu.matmul %127, %129, %cst_141 {dimension_numbers = #tpu.dot_dimension_numbers<[1], [0], [0], [1], [0, 0, 1, 1], [], []>} : vector<128x256xbf16>, vector<256x128xbf16>, vector<128x128xf32> -> vector<128x128xf32>
    %131 = arith.addf %126, %130 : vector<128x128xf32>
    %c8_142 = arith.constant 8 : index
    %c0_143 = arith.constant 0 : index
    %132 = vector.load %arg16[%c8_142, %c0_143] : memref<144x256xbf16, #tpu.memory_space<vmem>>, vector<128x256xbf16>
    %c8_144 = arith.constant 8 : index
    %c0_145 = arith.constant 0 : index
    %c0_146 = arith.constant 0 : index
    %133 = vector.load %arg7[%c8_144, %c0_145, %c0_146] : memref<10x256x128xbf16, #tpu.memory_space<vmem>>, vector<1x256x128xbf16>
    %134 = vector.shape_cast %133 : vector<1x256x128xbf16> to vector<256x128xbf16>
    %cst_147 = arith.constant dense<0.000000e+00> : vector<128x128xf32>
    %135 = tpu.matmul %132, %134, %cst_147 {dimension_numbers = #tpu.dot_dimension_numbers<[1], [0], [0], [1], [0, 0, 1, 1], [], []>} : vector<128x256xbf16>, vector<256x128xbf16>, vector<128x128xf32> -> vector<128x128xf32>
    %136 = arith.addf %131, %135 : vector<128x128xf32>
    %c9_148 = arith.constant 9 : index
    %c0_149 = arith.constant 0 : index
    %137 = vector.load %arg16[%c9_148, %c0_149] : memref<144x256xbf16, #tpu.memory_space<vmem>>, vector<128x256xbf16>
    %c9_150 = arith.constant 9 : index
    %c0_151 = arith.constant 0 : index
    %c0_152 = arith.constant 0 : index
    %138 = vector.load %arg7[%c9_150, %c0_151, %c0_152] : memref<10x256x128xbf16, #tpu.memory_space<vmem>>, vector<1x256x128xbf16>
    %139 = vector.shape_cast %138 : vector<1x256x128xbf16> to vector<256x128xbf16>
    %cst_153 = arith.constant dense<0.000000e+00> : vector<128x128xf32>
    %140 = tpu.matmul %137, %139, %cst_153 {dimension_numbers = #tpu.dot_dimension_numbers<[1], [0], [0], [1], [0, 0, 1, 1], [], []>} : vector<128x256xbf16>, vector<256x128xbf16>, vector<128x128xf32> -> vector<128x128xf32>
    %141 = arith.addf %136, %140 : vector<128x128xf32>
    %c0_154 = arith.constant 0 : index
    %c0_155 = arith.constant 0 : index
    %142 = vector.load %arg9[%c0_154, %c0_155] : memref<8x128xbf16, #tpu.memory_space<vmem>>, vector<8x128xbf16>
    %143 = arith.truncf %141 : vector<128x128xf32> to vector<128x128xbf16>
    %cst_156 = arith.constant dense<0.000000e+00> : vector<8x128xf32>
    %144 = tpu.matmul %142, %143, %cst_156 {dimension_numbers = #tpu.dot_dimension_numbers<[1], [0], [0], [1], [0, 0, 1, 1], [], []>} : vector<8x128xbf16>, vector<128x128xbf16>, vector<8x128xf32> -> vector<8x128xf32>
    %c0_157 = arith.constant 0 : index
    %c0_158 = arith.constant 0 : index
    %145 = vector.load %arg8[%c0_157, %c0_158] : memref<1x128xf32, #tpu.memory_space<vmem>>, vector<1x128xf32>
    %146 = vector.broadcast %145 : vector<1x128xf32> to vector<8x128xf32>
    %147 = arith.addf %144, %146 : vector<8x128xf32>
    %148 = math.tanh %147 : vector<8x128xf32>
    %149 = arith.truncf %148 : vector<8x128xf32> to vector<8x128xbf16>
    %c0_159 = arith.constant 0 : index
    %c0_160 = arith.constant 0 : index
    %150 = vector.load %arg10[%c0_159, %c0_160] : memref<128x128xbf16, #tpu.memory_space<vmem>>, vector<128x128xbf16>
    %cst_161 = arith.constant dense<0.000000e+00> : vector<8x128xf32>
    %151 = tpu.matmul %149, %150, %cst_161 {dimension_numbers = #tpu.dot_dimension_numbers<[1], [0], [0], [1], [0, 0, 1, 1], [], []>} : vector<8x128xbf16>, vector<128x128xbf16>, vector<8x128xf32> -> vector<8x128xf32>
    %c0_162 = arith.constant 0 : index
    %c0_163 = arith.constant 0 : index
    %152 = vector.load %arg11[%c0_162, %c0_163] : memref<1x128xf32, #tpu.memory_space<vmem>>, vector<1x128xf32>
    %153 = vector.broadcast %152 : vector<1x128xf32> to vector<8x128xf32>
    %154 = arith.addf %151, %153 : vector<8x128xf32>
    %155 = math.tanh %154 : vector<8x128xf32>
    %156 = arith.truncf %155 : vector<8x128xf32> to vector<8x128xbf16>
    %c0_164 = arith.constant 0 : index
    %c0_165 = arith.constant 0 : index
    %157 = vector.load %arg12[%c0_164, %c0_165] : memref<128x128xbf16, #tpu.memory_space<vmem>>, vector<128x128xbf16>
    %cst_166 = arith.constant dense<0.000000e+00> : vector<8x128xf32>
    %158 = tpu.matmul %156, %157, %cst_166 {dimension_numbers = #tpu.dot_dimension_numbers<[1], [0], [0], [1], [0, 0, 1, 1], [], []>} : vector<8x128xbf16>, vector<128x128xbf16>, vector<8x128xf32> -> vector<8x128xf32>
    %c0_167 = arith.constant 0 : index
    %c0_168 = arith.constant 0 : index
    %159 = vector.load %arg13[%c0_167, %c0_168] : memref<1x128xf32, #tpu.memory_space<vmem>>, vector<1x128xf32>
    %160 = vector.broadcast %159 : vector<1x128xf32> to vector<8x128xf32>
    %161 = arith.addf %158, %160 : vector<8x128xf32>
    %c0_169 = arith.constant 0 : index
    %c0_170 = arith.constant 0 : index
    %162 = vector.load %arg14[%c0_169, %c0_170] : memref<8x128xf32, #tpu.memory_space<vmem>>, vector<8x128xf32>
    tpu.vector_store %arg14[%c0_169, %c0_170], %161 {strides = array<i32>} : memref<8x128xf32, #tpu.memory_space<vmem>>, vector<8x128xf32>,
    return
  }
  func.func @transform_0(%arg0: i32) -> (i32, i32) {
    %c0_i32 = arith.constant 0 : i32
    %c0_i32_0 = arith.constant 0 : i32
    return %arg0, %c0_i32 : i32, i32
  }
  func.func @transform_1(%arg0: i32) -> (i32, i32) {
    %c0_i32 = arith.constant 0 : i32
    %c0_i32_0 = arith.constant 0 : i32
    return %arg0, %c0_i32 : i32, i32
  }
  func.func @transform_2(%arg0: i32) -> (i32, i32, i32) {
    %c0_i32 = arith.constant 0 : i32
    %c0_i32_0 = arith.constant 0 : i32
    %c0_i32_1 = arith.constant 0 : i32
    %c0_i32_2 = arith.constant 0 : i32
    return %c0_i32, %c0_i32_0, %c0_i32_1 : i32, i32, i32
  }
  func.func @transform_3(%arg0: i32) -> (i32, i32) {
    %c0_i32 = arith.constant 0 : i32
    %c0_i32_0 = arith.constant 0 : i32
    %c0_i32_1 = arith.constant 0 : i32
    return %c0_i32, %c0_i32_0 : i32, i32
  }
  func.func @transform_4(%arg0: i32) -> (i32, i32, i32) {
    %c0_i32 = arith.constant 0 : i32
    %c0_i32_0 = arith.constant 0 : i32
    %c0_i32_1 = arith.constant 0 : i32
    %c0_i32_2 = arith.constant 0 : i32
    return %c0_i32, %c0_i32_0, %c0_i32_1 : i32, i32, i32
  }
  func.func @transform_5(%arg0: i32) -> (i32, i32) {
    %c0_i32 = arith.constant 0 : i32
    %c0_i32_0 = arith.constant 0 : i32
    %c0_i32_1 = arith.constant 0 : i32
    return %c0_i32, %c0_i32_0 : i32, i32
  }
  func.func @transform_6(%arg0: i32) -> (i32, i32, i32) {
    %c0_i32 = arith.constant 0 : i32
    %c0_i32_0 = arith.constant 0 : i32
    %c0_i32_1 = arith.constant 0 : i32
    %c0_i32_2 = arith.constant 0 : i32
    return %c0_i32, %c0_i32_0, %c0_i32_1 : i32, i32, i32
  }
  func.func @transform_7(%arg0: i32) -> (i32, i32) {
    %c0_i32 = arith.constant 0 : i32
    %c0_i32_0 = arith.constant 0 : i32
    %c0_i32_1 = arith.constant 0 : i32
    return %c0_i32, %c0_i32_0 : i32, i32
  }
  func.func @transform_8(%arg0: i32) -> (i32, i32) {
    %c0_i32 = arith.constant 0 : i32
    %c0_i32_0 = arith.constant 0 : i32
    %c0_i32_1 = arith.constant 0 : i32
    return %c0_i32, %c0_i32_0 : i32, i32
  }
  func.func @transform_9(%arg0: i32) -> (i32, i32) {
    %c0_i32 = arith.constant 0 : i32
    %c0_i32_0 = arith.constant 0 : i32
    %c0_i32_1 = arith.constant 0 : i32
    return %c0_i32, %c0_i32_0 : i32, i32
  }
  func.func @transform_10(%arg0: i32) -> (i32, i32) {
    %c0_i32 = arith.constant 0 : i32
    %c0_i32_0 = arith.constant 0 : i32
    %c0_i32_1 = arith.constant 0 : i32
    return %c0_i32, %c0_i32_0 : i32, i32
  }
  func.func @transform_11(%arg0: i32) -> (i32, i32) {
    %c0_i32 = arith.constant 0 : i32
    %c0_i32_0 = arith.constant 0 : i32
    %c0_i32_1 = arith.constant 0 : i32
    return %c0_i32, %c0_i32_0 : i32, i32
  }
  func.func @transform_12(%arg0: i32) -> (i32, i32) {
    %c0_i32 = arith.constant 0 : i32
    %c0_i32_0 = arith.constant 0 : i32
    %c0_i32_1 = arith.constant 0 : i32
    return %c0_i32, %c0_i32_0 : i32, i32
  }
  func.func @transform_13(%arg0: i32) -> (i32, i32) {
    %c0_i32 = arith.constant 0 : i32
    %c0_i32_0 = arith.constant 0 : i32
    return %arg0, %c0_i32 : i32, i32
  }
}

</mosaic_0001>

<llo_original>
// kernel: lenet_forward_fused.1
$region0: #{lenet_forward_fused.1}
  #allocation0 [shape = 'u32[]', space=smem, size = 0x4, offset = 0x4, fixed_abs, tag = 'smem constant byte address 0x4 - core index']
  #allocation1 [shape = 'u32[144,128]{1,0:T(1,128)}', space=vmem, size = 0x12000, scoped, tag = 'internal scratch']
  #allocation2 [shape = 'bf16[136,256]{1,0:T(8,128)(2,1)}', space=vmem, size = 0x11000, scoped, tag = 'scratch operand']
  #allocation3 [shape = 'bf16[144,256]{1,0:T(8,128)(2,1)}', space=vmem, size = 0x12000, scoped, tag = 'scratch operand']
  %s0 = inlined_call_operand.vmem [shape: bf16[136,128], index: 0, kind: input, shape index: {}]
  %s1 = inlined_call_operand.vmem [shape: bf16[136,128], index: 1, kind: input, shape index: {}]
  %s2 = inlined_call_operand.hbm [shape: bf16[10,128,256], index: 2, kind: input, shape index: {}]
  %s3 = inlined_call_operand.vmem [shape: f32[1,256], index: 3, kind: input, shape index: {}]
  %s4 = inlined_call_operand.hbm [shape: bf16[5,256,256], index: 4, kind: input, shape index: {}]
  %s5 = inlined_call_operand.vmem [shape: f32[1,256], index: 5, kind: input, shape index: {}]
  %s6 = inlined_call_operand.hbm [shape: bf16[10,256,128], index: 6, kind: input, shape index: {}]
  %s7 = inlined_call_operand.vmem [shape: f32[1,128], index: 7, kind: input, shape index: {}]
  %s8 = inlined_call_operand.vmem [shape: bf16[8,128], index: 8, kind: input, shape index: {}]
  %s9 = inlined_call_operand.vmem [shape: bf16[128,128], index: 9, kind: input, shape index: {}]
  %s10 = inlined_call_operand.vmem [shape: f32[1,128], index: 10, kind: input, shape index: {}]
  %s11 = inlined_call_operand.vmem [shape: bf16[128,128], index: 11, kind: input, shape index: {}]
  %s12 = inlined_call_operand.vmem [shape: f32[1,128], index: 12, kind: input, shape index: {}]
  %s13 = inlined_call_operand.vmem [shape: f32[8,128], index: 13, kind: output, shape index: {}]
  %s14 = sld [smem:[#allocation0]]
  $region74: #{lenet_forward_fused.1} parent=0
    _
  %s16 = ssub.s32 1, %s14
  %s17 = scalar_select 0, %s16, %s14
  $region1: #{lenet_forward_fused.1} parent=0
    #allocation4 [shape = 'u8[655360]{0}', space=vmem, size = 0xa0000, scoped, tag = 'input window, operand 2, single buffered']
    #allocation5 [shape = 's32[1]{0}', space=sflag, size = 0x4, scoped, tag = 'scoped memory for lenet_forward_fused.1']
    #allocation6 [shape = 'u8[655360]{0}', space=vmem, size = 0xa0000, scoped, tag = 'input window, operand 4, single buffered']
    #allocation7 [shape = 's32[1]{0}', space=sflag, size = 0x4, scoped, tag = 'scoped memory for lenet_forward_fused.1']
    #allocation8 [shape = 'u8[655360]{0}', space=vmem, size = 0xa0000, scoped, tag = 'input window, operand 6, single buffered']
    %18 = vsyncpa [#allocation5], 0
    %19 = vsyncpa [#allocation7], 0
    // Predicated region
    $region2: #{lenet_forward_fused.1} parent=1 // pred_check
      _
    $region3: #{lenet_forward_fused.1} parent=1 // pred_check_branch
      %21 = sbr.rel (0) target = $region5
    $region4: #{lenet_forward_fused.1} parent=1 // pred_region
      _
    $region5: #{lenet_forward_fused.1} parent=1 // pred_fallthru
      _
    // Predicated region
    $region6: #{lenet_forward_fused.1} parent=1 // pred_check
      _
    $region7: #{lenet_forward_fused.1} parent=1 // pred_check_branch
      %23 = sbr.rel (0) target = $region9
    $region8: #{lenet_forward_fused.1} parent=1 // pred_region
      _
    $region9: #{lenet_forward_fused.1} parent=1 // pred_fallthru
      _
    // Predicated region
    $region10: #{lenet_forward_fused.1} parent=1 // pred_check
      _
    $region11: #{lenet_forward_fused.1} parent=1 // pred_check_branch
      %25 = sbr.rel (0) target = $region13
    $region12: #{lenet_forward_fused.1} parent=1 // pred_region
      %s27 = ssub.s32 20480, 20480
      %28 = vsyncadd [#allocation5], %s27
      %s29 = sshll.u32 [#allocation4], 4
      %s30 = int_to_ptr.vmem [resolvable:$true] %s29
      %35 = dma.hbm_to_vmem [thread:$0]  %s2, 20480, %s30, [#allocation5], 128, 128, 8
    $region13: #{lenet_forward_fused.1} parent=1 // pred_fallthru
      _
    // Predicated region
    $region14: #{lenet_forward_fused.1} parent=1 // pred_check
      _
    $region15: #{lenet_forward_fused.1} parent=1 // pred_check_branch
      %37 = sbr.rel (0) target = $region17
    $region16: #{lenet_forward_fused.1} parent=1 // pred_region
      _
    $region17: #{lenet_forward_fused.1} parent=1 // pred_fallthru
      _
    // Predicated region
    $region18: #{lenet_forward_fused.1} parent=1 // pred_check
      _
    $region19: #{lenet_forward_fused.1} parent=1 // pred_check_branch
      %39 = sbr.rel (0) target = $region21
    $region20: #{lenet_forward_fused.1} parent=1 // pred_region
      %s41 = ssub.s32 20480, 20480
      %42 = vsyncadd [#allocation7], %s41
      %s43 = sshll.u32 [#allocation6], 4
      %s44 = int_to_ptr.vmem [resolvable:$true] %s43
      %49 = dma.hbm_to_vmem [thread:$0]  %s4, 20480, %s44, [#allocation7], 128, 128, 8
    $region21: #{lenet_forward_fused.1} parent=1 // pred_fallthru
      _
    // Predicated region
    $region22: #{lenet_forward_fused.1} parent=1 // pred_check
      _
    $region23: #{lenet_forward_fused.1} parent=1 // pred_check_branch
      %51 = sbr.rel (0) target = $region25
    $region24: #{lenet_forward_fused.1} parent=1 // pred_region
      _
    $region25: #{lenet_forward_fused.1} parent=1 // pred_fallthru
      _
    // Predicated region
    $region26: #{lenet_forward_fused.1} parent=1 // pred_check
      _
    $region27: #{lenet_forward_fused.1} parent=1 // pred_check_branch
      %53 = sbr.rel (0) target = $region29
    $region28: #{lenet_forward_fused.1} parent=1 // pred_region
      %s55 = ssub.s32 20480, 20480
      %56 = vsyncadd [#allocation7], %s55
      %s57 = sshll.u32 [#allocation8], 4
      %s58 = int_to_ptr.vmem [resolvable:$true] %s57
      %63 = dma.hbm_to_vmem [thread:$0]  %s6, 20480, %s58, [#allocation7], 64, 64, 4
    $region29: #{lenet_forward_fused.1} parent=1 // pred_fallthru
      _
    // Predicated region
    $region30: #{lenet_forward_fused.1} parent=1 // pred_check
      _
    $region31: #{lenet_forward_fused.1} parent=1 // pred_check_branch
      %65 = sbr.rel (0) target = $region33
    $region32: #{lenet_forward_fused.1} parent=1 // pred_region
      _
    $region33: #{lenet_forward_fused.1} parent=1 // pred_fallthru
      _
    // Predicated region
    $region34: #{lenet_forward_fused.1} parent=1 // pred_check
      _
    $region35: #{lenet_forward_fused.1} parent=1 // pred_check_branch
      %67 = sbr.rel (0) target = $region37
    $region36: #{lenet_forward_fused.1} parent=1 // pred_region
      _
    $region37: #{lenet_forward_fused.1} parent=1 // pred_fallthru
      _
    // Predicated region
    $region38: #{lenet_forward_fused.1} parent=1 // pred_check
      _
    $region39: #{lenet_forward_fused.1} parent=1 // pred_check_branch
      %69 = sbr.rel (0) target = $region41
    $region40: #{lenet_forward_fused.1} parent=1 // pred_region
      _
    $region41: #{lenet_forward_fused.1} parent=1 // pred_fallthru
      _
    // Predicated region
    $region42: #{lenet_forward_fused.1} parent=1 // pred_check
      _
    $region43: #{lenet_forward_fused.1} parent=1 // pred_check_branch
      %71 = sbr.rel (0) target = $region45
    $region44: #{lenet_forward_fused.1} parent=1 // pred_region
      _
    $region45: #{lenet_forward_fused.1} parent=1 // pred_fallthru
      _
    // Predicated region
    $region46: #{lenet_forward_fused.1} parent=1 // pred_check
      _
    $region47: #{lenet_forward_fused.1} parent=1 // pred_check_branch
      %73 = sbr.rel (0) target = $region49
    $region48: #{lenet_forward_fused.1} parent=1 // pred_region
      _
    $region49: #{lenet_forward_fused.1} parent=1 // pred_fallthru
      _
    // Predicated region
    $region50: #{lenet_forward_fused.1} parent=1 // pred_check
      _
    $region51: #{lenet_forward_fused.1} parent=1 // pred_check_branch
      %75 = sbr.rel (0) target = $region53
    $region52: #{lenet_forward_fused.1} parent=1 // pred_region
      _
    $region53: #{lenet_forward_fused.1} parent=1 // pred_fallthru
      _
    // Predicated region
    $region54: #{lenet_forward_fused.1} parent=1 // pred_check
      _
    $region55: #{lenet_forward_fused.1} parent=1 // pred_check_branch
      %77 = sbr.rel (0) target = $region57
    $region56: #{lenet_forward_fused.1} parent=1 // pred_region
      %78 = dma.done [#allocation5], 20480
    $region57: #{lenet_forward_fused.1} parent=1 // pred_fallthru
      _
    // Predicated region
    $region58: #{lenet_forward_fused.1} parent=1 // pred_check
      _
    $region59: #{lenet_forward_fused.1} parent=1 // pred_check_branch
      %80 = sbr.rel (0) target = $region61
    $region60: #{lenet_forward_fused.1} parent=1 // pred_region
      %81 = dma.done [#allocation7], 20480
    $region61: #{lenet_forward_fused.1} parent=1 // pred_fallthru
      _
    // Predicated region
    $region62: #{lenet_forward_fused.1} parent=1 // pred_check
      _
    $region63: #{lenet_forward_fused.1} parent=1 // pred_check_branch
      %83 = sbr.rel (0) target = $region65
    $region64: #{lenet_forward_fused.1} parent=1 // pred_region
      %84 = dma.done [#allocation7], 20480
    $region65: #{lenet_forward_fused.1} parent=1 // pred_fallthru
      _
    %v86 = vld [vmem:[%s0] sm:$0xf]
    %v87 = vld [vmem:[%s0 + $0x4] sm:$0xf]
    %v88 = vld [vmem:[%s0 + $0x8] sm:$0xf]
    %v89 = vld [vmem:[%s0 + $0xc] sm:$0xf]
    %v90 = vld [vmem:[%s0 + $0x10] sm:$0xf]
    %v91 = vld [vmem:[%s0 + $0x14] sm:$0xf]
    %v92 = vld [vmem:[%s0 + $0x18] sm:$0xf]
    %v93 = vld [vmem:[%s0 + $0x1c] sm:$0xf]
    %v94 = vld [vmem:[%s0 + $0x20] sm:$0xf]
    %v95 = vld [vmem:[%s0 + $0x24] sm:$0xf]
    %v96 = vld [vmem:[%s0 + $0x28] sm:$0xf]
    %v97 = vld [vmem:[%s0 + $0x2c] sm:$0xf]
    %v98 = vld [vmem:[%s0 + $0x30] sm:$0xf]
    %v99 = vld [vmem:[%s0 + $0x34] sm:$0xf]
    %v100 = vld [vmem:[%s0 + $0x38] sm:$0xf]
    %v101 = vld [vmem:[%s0 + $0x3c] sm:$0xf]
    %v102 = vld [vmem:[#allocation4] sm:$0xff]
    %v103 = vld [vmem:[#allocation4 + $0x8] sm:$0xff]
    %v104 = vld [vmem:[#allocation4 + $0x10] sm:$0xff]
    %v105 = vld [vmem:[#allocation4 + $0x18] sm:$0xff]
    %v106 = vld [vmem:[#allocation4 + $0x20] sm:$0xff]
    %v107 = vld [vmem:[#allocation4 + $0x28] sm:$0xff]
    %v108 = vld [vmem:[#allocation4 + $0x30] sm:$0xff]
    %v109 = vld [vmem:[#allocation4 + $0x38] sm:$0xff]
    %v110 = vld [vmem:[#allocation4 + $0x40] sm:$0xff]
    %v111 = vld [vmem:[#allocation4 + $0x48] sm:$0xff]
    %v112 = vld [vmem:[#allocation4 + $0x50] sm:$0xff]
    %v113 = vld [vmem:[#allocation4 + $0x58] sm:$0xff]
    %v114 = vld [vmem:[#allocation4 + $0x60] sm:$0xff]
    %v115 = vld [vmem:[#allocation4 + $0x68] sm:$0xff]
    %v116 = vld [vmem:[#allocation4 + $0x70] sm:$0xff]
    %v117 = vld [vmem:[#allocation4 + $0x78] sm:$0xff]
    %v118 = vld [vmem:[%s1] sm:$0xf]
    %v119 = vld [vmem:[%s1 + $0x4] sm:$0xf]
    %v120 = vld [vmem:[%s1 + $0x8] sm:$0xf]
    %v121 = vld [vmem:[%s1 + $0xc] sm:$0xf]
    %v122 = vld [vmem:[%s1 + $0x10] sm:$0xf]
    %v123 = vld [vmem:[%s1 + $0x14] sm:$0xf]
    %v124 = vld [vmem:[%s1 + $0x18] sm:$0xf]
    %v125 = vld [vmem:[%s1 + $0x1c] sm:$0xf]
    %v126 = vld [vmem:[%s1 + $0x20] sm:$0xf]
    %v127 = vld [vmem:[%s1 + $0x24] sm:$0xf]
    %v128 = vld [vmem:[%s1 + $0x28] sm:$0xf]
    %v129 = vld [vmem:[%s1 + $0x2c] sm:$0xf]
    %v130 = vld [vmem:[%s1 + $0x30] sm:$0xf]
    %v131 = vld [vmem:[%s1 + $0x34] sm:$0xf]
    %v132 = vld [vmem:[%s1 + $0x38] sm:$0xf]
    %v133 = vld [vmem:[%s1 + $0x3c] sm:$0xf]
    %s134 = scalar_lea.vmem [#allocation4], 128
    %v135 = vld [vmem:[%s134] sm:$0xff]
    %v136 = vld [vmem:[%s134 + $0x8] sm:$0xff]
    %v137 = vld [vmem:[%s134 + $0x10] sm:$0xff]
    %v138 = vld [vmem:[%s134 + $0x18] sm:$0xff]
    %v139 = vld [vmem:[%s134 + $0x20] sm:$0xff]
    %v140 = vld [vmem:[%s134 + $0x28] sm:$0xff]
    %v141 = vld [vmem:[%s134 + $0x30] sm:$0xff]
    %v142 = vld [vmem:[%s134 + $0x38] sm:$0xff]
    %v143 = vld [vmem:[%s134 + $0x40] sm:$0xff]
    %v144 = vld [vmem:[%s134 + $0x48] sm:$0xff]
    %v145 = vld [vmem:[%s134 + $0x50] sm:$0xff]
    %v146 = vld [vmem:[%s134 + $0x58] sm:$0xff]
    %v147 = vld [vmem:[%s134 + $0x60] sm:$0xff]
    %v148 = vld [vmem:[%s134 + $0x68] sm:$0xff]
    %v149 = vld [vmem:[%s134 + $0x70] sm:$0xff]
    %v150 = vld [vmem:[%s134 + $0x78] sm:$0xff]
    %v167 = vunpack.c.l.b16 %v118
    %v168 = vunpack.c.l.b16 %v119
    %v169 = vunpack.c.l.b16 %v120
    %v170 = vunpack.c.l.b16 %v121
    %v171 = vunpack.c.l.b16 %v122
    %v172 = vunpack.c.l.b16 %v123
    %v173 = vunpack.c.l.b16 %v124
    %v174 = vunpack.c.l.b16 %v125
    %v175 = vunpack.c.l.b16 %v126
    %v176 = vunpack.c.l.b16 %v127
    %v177 = vunpack.c.l.b16 %v128
    %v178 = vunpack.c.l.b16 %v129
    %v179 = vunpack.c.l.b16 %v130
    %v180 = vunpack.c.l.b16 %v131
    %v181 = vunpack.c.l.b16 %v132
    %v182 = vunpack.c.l.b16 %v133
    %v183 = vpack.c.b16 %v168, %v167
    %v184 = vpack.c.b16 %v170, %v169
    %v185 = vpack.c.b16 %v172, %v171
    %v186 = vpack.c.b16 %v174, %v173
    %v187 = vpack.c.b16 %v176, %v175
    %v188 = vpack.c.b16 %v178, %v177
    %v189 = vpack.c.b16 %v180, %v179
    %v190 = vpack.c.b16 %v182, %v181
    %v215 = vunpack.c.l.b16 %v135
    %v216 = vunpack.c.h.b16 %v135
    %v217 = vunpack.c.l.b16 %v136
    %v218 = vunpack.c.h.b16 %v136
    %v219 = vunpack.c.l.b16 %v137
    %v220 = vunpack.c.h.b16 %v137
    %v221 = vunpack.c.l.b16 %v138
    %v222 = vunpack.c.h.b16 %v138
    %v223 = vunpack.c.l.b16 %v139
    %v224 = vunpack.c.h.b16 %v139
    %v225 = vunpack.c.l.b16 %v140
    %v226 = vunpack.c.h.b16 %v140
    %v227 = vunpack.c.l.b16 %v141
    %v228 = vunpack.c.h.b16 %v141
    %v229 = vunpack.c.l.b16 %v142
    %v230 = vunpack.c.h.b16 %v142
    %v231 = vunpack.c.l.b16 %v143
    %v232 = vunpack.c.h.b16 %v143
    %v233 = vunpack.c.l.b16 %v144
    %v234 = vunpack.c.h.b16 %v144
    %v235 = vunpack.c.l.b16 %v145
    %v236 = vunpack.c.h.b16 %v145
    %v237 = vunpack.c.l.b16 %v146
    %v238 = vunpack.c.h.b16 %v146
    %v239 = vunpack.c.l.b16 %v147
    %v240 = vunpack.c.h.b16 %v147
    %v241 = vunpack.c.l.b16 %v148
    %v242 = vunpack.c.h.b16 %v148
    %v243 = vunpack.c.l.b16 %v149
    %v244 = vunpack.c.h.b16 %v149
    %v245 = vunpack.c.l.b16 %v150
    %v246 = vunpack.c.h.b16 %v150
    %v247 = vpack.c.b16 %v217, %v215
    %v248 = vpack.c.b16 %v218, %v216
    %v249 = vpack.c.b16 %v221, %v219
    %v250 = vpack.c.b16 %v222, %v220
    %v251 = vpack.c.b16 %v225, %v223
    %v252 = vpack.c.b16 %v226, %v224
    %v253 = vpack.c.b16 %v229, %v227
    %v254 = vpack.c.b16 %v230, %v228
    %v255 = vpack.c.b16 %v233, %v231
    %v256 = vpack.c.b16 %v234, %v232
    %v257 = vpack.c.b16 %v237, %v235
    %v258 = vpack.c.b16 %v238, %v236
    %v259 = vpack.c.b16 %v241, %v239
    %v260 = vpack.c.b16 %v242, %v240
    %v261 = vpack.c.b16 %v245, %v243
    %v262 = vpack.c.b16 %v246, %v244
    %279 = vmatprep.subr.bf16.mxu0 %v262
    %280 = vmatpush1.bf16.msra.mxu0 %v261
    %281 = vmatprep.subr.bf16.mxu0 %v260
    %282 = vmatpush1.bf16.msra.mxu0 %v259
    %283 = vmatprep.subr.bf16.mxu0 %v258
    %284 = vmatpush1.bf16.msra.mxu0 %v257
    %285 = vmatprep.subr.bf16.mxu0 %v256
    %286 = vmatpush1.bf16.msra.mxu0 %v255
    %287 = vmatprep.subr.bf16.mxu0 %v254
    %288 = vmatpush1.bf16.msra.mxu0 %v253
    %289 = vmatprep.subr.bf16.mxu0 %v252
    %290 = vmatpush1.bf16.msra.mxu0 %v251
    %291 = vmatprep.subr.bf16.mxu0 %v250
    %292 = vmatpush1.bf16.msra.mxu0 %v249
    %293 = vmatprep.subr.bf16.mxu0 %v248
    %294 = vmatpush1.bf16.msra.mxu0 %v247
    %295 = vmatprep.subr.bf16.mxu0 0
    %296 = vmatpush2.bf16.msra.mxu0 0
    %297 = vmatprep.subr.bf16.mxu0 0
    %298 = vmatpush2.bf16.msra.mxu0 0
    %299 = vmatprep.subr.bf16.mxu0 0
    %300 = vmatpush2.bf16.msra.mxu0 0
    %301 = vmatprep.subr.bf16.mxu0 0
    %302 = vmatpush2.bf16.msra.mxu0 0
    %303 = vmatprep.subr.bf16.mxu0 0
    %304 = vmatpush2.bf16.msra.mxu0 0
    %305 = vmatprep.subr.bf16.mxu0 0
    %306 = vmatpush2.bf16.msra.mxu0 0
    %307 = vmatprep.subr.bf16.mxu0 0
    %308 = vmatpush2.bf16.msra.mxu0 0
    %309 = vmatprep.subr.bf16.mxu0 0
    %310 = vmatpush2.bf16.msra.mxu0 0
    %311 = vmatprep.mubr.bf16.mxu0 0
    %312 = vmatmul.mubr.bf16.gmra.mxu0 %v183
    %v313 = vpop.f32.mrf.mxu0
    %v314 = vadd.f32 0.0, %v313
    %v315 = vpop.f32.mrf.mxu0
    %v316 = vadd.f32 0.0, %v315
    %v317 = vpop.f32.mrf.mxu0
    %v318 = vadd.f32 0.0, %v317
    %v319 = vpop.f32.mrf.mxu0
    %v320 = vadd.f32 0.0, %v319
    %321 = vmatprep.mubr.bf16.mxu0 0
    %322 = vmatmul.mubr.bf16.gmra.mxu0 %v184
    %v323 = vpop.f32.mrf.mxu0
    %v324 = vadd.f32 0.0, %v323
    %v325 = vpop.f32.mrf.mxu0
    %v326 = vadd.f32 0.0, %v325
    %v327 = vpop.f32.mrf.mxu0
    %v328 = vadd.f32 0.0, %v327
    %v329 = vpop.f32.mrf.mxu0
    %v330 = vadd.f32 0.0, %v329
    %331 = vmatprep.mubr.bf16.mxu0 0
    %332 = vmatmul.mubr.bf16.gmra.mxu0 %v185
    %v333 = vpop.f32.mrf.mxu0
    %v334 = vadd.f32 0.0, %v333
    %v335 = vpop.f32.mrf.mxu0
    %v336 = vadd.f32 0.0, %v335
    %v337 = vpop.f32.mrf.mxu0
    %v338 = vadd.f32 0.0, %v337
    %v339 = vpop.f32.mrf.mxu0
    %v340 = vadd.f32 0.0, %v339
    %341 = vmatprep.mubr.bf16.mxu0 0
    %342 = vmatmul.mubr.bf16.gmra.mxu0 %v186
    %v343 = vpop.f32.mrf.mxu0
    %v344 = vadd.f32 0.0, %v343
    %v345 = vpop.f32.mrf.mxu0
    %v346 = vadd.f32 0.0, %v345
    %v347 = vpop.f32.mrf.mxu0
    %v348 = vadd.f32 0.0, %v347
    %v349 = vpop.f32.mrf.mxu0
    %v350 = vadd.f32 0.0, %v349
    %351 = vmatprep.mubr.bf16.mxu0 0
    %352 = vmatmul.mubr.bf16.gmra.mxu0 %v187
    %v353 = vpop.f32.mrf.mxu0
    %v354 = vadd.f32 0.0, %v353
    %v355 = vpop.f32.mrf.mxu0
    %v356 = vadd.f32 0.0, %v355
    %v357 = vpop.f32.mrf.mxu0
    %v358 = vadd.f32 0.0, %v357
    %v359 = vpop.f32.mrf.mxu0
    %v360 = vadd.f32 0.0, %v359
    %361 = vmatprep.mubr.bf16.mxu0 0
    %362 = vmatmul.mubr.bf16.gmra.mxu0 %v188
    %v363 = vpop.f32.mrf.mxu0
    %v364 = vadd.f32 0.0, %v363
    %v365 = vpop.f32.mrf.mxu0
    %v366 = vadd.f32 0.0, %v365
    %v367 = vpop.f32.mrf.mxu0
    %v368 = vadd.f32 0.0, %v367
    %v369 = vpop.f32.mrf.mxu0
    %v370 = vadd.f32 0.0, %v369
    %371 = vmatprep.mubr.bf16.mxu0 0
    %372 = vmatmul.mubr.bf16.gmra.mxu0 %v189
    %v373 = vpop.f32.mrf.mxu0
    %v374 = vadd.f32 0.0, %v373
    %v375 = vpop.f32.mrf.mxu0
    %v376 = vadd.f32 0.0, %v375
    %v377 = vpop.f32.mrf.mxu0
    %v378 = vadd.f32 0.0, %v377
    %v379 = vpop.f32.mrf.mxu0
    %v380 = vadd.f32 0.0, %v379
    %381 = vmatprep.mubr.bf16.mxu0 0
    %382 = vmatmul.mubr.bf16.gmra.mxu0 %v190
    %v383 = vpop.f32.mrf.mxu0
    %v384 = vadd.f32 0.0, %v383
    %v385 = vpop.f32.mrf.mxu0
    %v386 = vadd.f32 0.0, %v385
    %v387 = vpop.f32.mrf.mxu0
    %v388 = vadd.f32 0.0, %v387
    %v389 = vpop.f32.mrf.mxu0
    %v390 = vadd.f32 0.0, %v389
    %391 = vdwg.mxu0
    %v408 = vunpack.c.l.b16 %v86
    %v409 = vunpack.c.l.b16 %v87
    %v410 = vunpack.c.l.b16 %v88
    %v411 = vunpack.c.l.b16 %v89
    %v412 = vunpack.c.l.b16 %v90
    %v413 = vunpack.c.l.b16 %v91
    %v414 = vunpack.c.l.b16 %v92
    %v415 = vunpack.c.l.b16 %v93
    %v416 = vunpack.c.l.b16 %v94
    %v417 = vunpack.c.l.b16 %v95
    %v418 = vunpack.c.l.b16 %v96
    %v419 = vunpack.c.l.b16 %v97
    %v420 = vunpack.c.l.b16 %v98
    %v421 = vunpack.c.l.b16 %v99
    %v422 = vunpack.c.l.b16 %v100
    %v423 = vunpack.c.l.b16 %v101
    %v424 = vpack.c.b16 %v409, %v408
    %v425 = vpack.c.b16 %v411, %v410
    %v426 = vpack.c.b16 %v413, %v412
    %v427 = vpack.c.b16 %v415, %v414
    %v428 = vpack.c.b16 %v417, %v416
    %v429 = vpack.c.b16 %v419, %v418
    %v430 = vpack.c.b16 %v421, %v420
    %v431 = vpack.c.b16 %v423, %v422
    %v456 = vunpack.c.l.b16 %v102
    %v457 = vunpack.c.h.b16 %v102
    %v458 = vunpack.c.l.b16 %v103
    %v459 = vunpack.c.h.b16 %v103
    %v460 = vunpack.c.l.b16 %v104
    %v461 = vunpack.c.h.b16 %v104
    %v462 = vunpack.c.l.b16 %v105
    %v463 = vunpack.c.h.b16 %v105
    %v464 = vunpack.c.l.b16 %v106
    %v465 = vunpack.c.h.b16 %v106
    %v466 = vunpack.c.l.b16 %v107
    %v467 = vunpack.c.h.b16 %v107
    %v468 = vunpack.c.l.b16 %v108
    %v469 = vunpack.c.h.b16 %v108
    %v470 = vunpack.c.l.b16 %v109
    %v471 = vunpack.c.h.b16 %v109
    %v472 = vunpack.c.l.b16 %v110
    %v473 = vunpack.c.h.b16 %v110
    %v474 = vunpack.c.l.b16 %v111
    %v475 = vunpack.c.h.b16 %v111
    %v476 = vunpack.c.l.b16 %v112
    %v477 = vunpack.c.h.b16 %v112
    %v478 = vunpack.c.l.b16 %v113
    %v479 = vunpack.c.h.b16 %v113
    %v480 = vunpack.c.l.b16 %v114
    %v481 = vunpack.c.h.b16 %v114
    %v482 = vunpack.c.l.b16 %v115
    %v483 = vunpack.c.h.b16 %v115
    %v484 = vunpack.c.l.b16 %v116
    %v485 = vunpack.c.h.b16 %v116
    %v486 = vunpack.c.l.b16 %v117
    %v487 = vunpack.c.h.b16 %v117
    %v488 = vpack.c.b16 %v458, %v456
    %v489 = vpack.c.b16 %v459, %v457
    %v490 = vpack.c.b16 %v462, %v460
    %v491 = vpack.c.b16 %v463, %v461
    %v492 = vpack.c.b16 %v466, %v464
    %v493 = vpack.c.b16 %v467, %v465
    %v494 = vpack.c.b16 %v470, %v468
    %v495 = vpack.c.b16 %v471, %v469
    %v496 = vpack.c.b16 %v474, %v472
    %v497 = vpack.c.b16 %v475, %v473
    %v498 = vpack.c.b16 %v478, %v476
    %v499 = vpack.c.b16 %v479, %v477
    %v500 = vpack.c.b16 %v482, %v480
    %v501 = vpack.c.b16 %v483, %v481
    %v502 = vpack.c.b16 %v486, %v484
    %v503 = vpack.c.b16 %v487, %v485
    %520 = vmatprep.subr.bf16.mxu0 %v503
    %521 = vmatpush1.bf16.msra.mxu0 %v502
    %522 = vmatprep.subr.bf16.mxu0 %v501
    %523 = vmatpush1.bf16.msra.mxu0 %v500
    %524 = vmatprep.subr.bf16.mxu0 %v499
    %525 = vmatpush1.bf16.msra.mxu0 %v498
    %526 = vmatprep.subr.bf16.mxu0 %v497
    %527 = vmatpush1.bf16.msra.mxu0 %v496
    %528 = vmatprep.subr.bf16.mxu0 %v495
    %529 = vmatpush1.bf16.msra.mxu0 %v494
    %530 = vmatprep.subr.bf16.mxu0 %v493
    %531 = vmatpush1.bf16.msra.mxu0 %v492
    %532 = vmatprep.subr.bf16.mxu0 %v491
    %533 = vmatpush1.bf16.msra.mxu0 %v490
    %534 = vmatprep.subr.bf16.mxu0 %v489
    %535 = vmatpush1.bf16.msra.mxu0 %v488
    %536 = vmatprep.subr.bf16.mxu0 0
    %537 = vmatpush2.bf16.msra.mxu0 0
    %538 = vmatprep.subr.bf16.mxu0 0
    %539 = vmatpush2.bf16.msra.mxu0 0
    %540 = vmatprep.subr.bf16.mxu0 0
    %541 = vmatpush2.bf16.msra.mxu0 0
    %542 = vmatprep.subr.bf16.mxu0 0
    %543 = vmatpush2.bf16.msra.mxu0 0
    %544 = vmatprep.subr.bf16.mxu0 0
    %545 = vmatpush2.bf16.msra.mxu0 0
    %546 = vmatprep.subr.bf16.mxu0 0
    %547 = vmatpush2.bf16.msra.mxu0 0
    %548 = vmatprep.subr.bf16.mxu0 0
    %549 = vmatpush2.bf16.msra.mxu0 0
    %550 = vmatprep.subr.bf16.mxu0 0
    %551 = vmatpush2.bf16.msra.mxu0 0
    %552 = vmatprep.mubr.bf16.mxu0 0
    %553 = vmatmul.mubr.bf16.gmra.mxu0 %v424
    %v554 = vpop.f32.mrf.mxu0
    %v555 = vadd.f32 %v314, %v554
    %v556 = vpop.f32.mrf.mxu0
    %v557 = vadd.f32 %v316, %v556
    %v558 = vpop.f32.mrf.mxu0
    %v559 = vadd.f32 %v318, %v558
    %v560 = vpop.f32.mrf.mxu0
    %v561 = vadd.f32 %v320, %v560
    %562 = vmatprep.mubr.bf16.mxu0 0
    %563 = vmatmul.mubr.bf16.gmra.mxu0 %v425
    %v564 = vpop.f32.mrf.mxu0
    %v565 = vadd.f32 %v324, %v564
    %v566 = vpop.f32.mrf.mxu0
    %v567 = vadd.f32 %v326, %v566
    %v568 = vpop.f32.mrf.mxu0
    %v569 = vadd.f32 %v328, %v568
    %v570 = vpop.f32.mrf.mxu0
    %v571 = vadd.f32 %v330, %v570
    %572 = vmatprep.mubr.bf16.mxu0 0
    %573 = vmatmul.mubr.bf16.gmra.mxu0 %v426
    %v574 = vpop.f32.mrf.mxu0
    %v575 = vadd.f32 %v334, %v574
    %v576 = vpop.f32.mrf.mxu0
    %v577 = vadd.f32 %v336, %v576
    %v578 = vpop.f32.mrf.mxu0
    %v579 = vadd.f32 %v338, %v578
    %v580 = vpop.f32.mrf.mxu0
    %v581 = vadd.f32 %v340, %v580
    %582 = vmatprep.mubr.bf16.mxu0 0
    %583 = vmatmul.mubr.bf16.gmra.mxu0 %v427
    %v584 = vpop.f32.mrf.mxu0
    %v585 = vadd.f32 %v344, %v584
    %v586 = vpop.f32.mrf.mxu0
    %v587 = vadd.f32 %v346, %v586
    %v588 = vpop.f32.mrf.mxu0
    %v589 = vadd.f32 %v348, %v588
    %v590 = vpop.f32.mrf.mxu0
    %v591 = vadd.f32 %v350, %v590
    %592 = vmatprep.mubr.bf16.mxu0 0
    %593 = vmatmul.mubr.bf16.gmra.mxu0 %v428
    %v594 = vpop.f32.mrf.mxu0
    %v595 = vadd.f32 %v354, %v594
    %v596 = vpop.f32.mrf.mxu0
    %v597 = vadd.f32 %v356, %v596
    %v598 = vpop.f32.mrf.mxu0
    %v599 = vadd.f32 %v358, %v598
    %v600 = vpop.f32.mrf.mxu0
    %v601 = vadd.f32 %v360, %v600
    %602 = vmatprep.mubr.bf16.mxu0 0
    %603 = vmatmul.mubr.bf16.gmra.mxu0 %v429
    %v604 = vpop.f32.mrf.mxu0
    %v605 = vadd.f32 %v364, %v604
    %v606 = vpop.f32.mrf.mxu0
    %v607 = vadd.f32 %v366, %v606
    %v608 = vpop.f32.mrf.mxu0
    %v609 = vadd.f32 %v368, %v608
    %v610 = vpop.f32.mrf.mxu0
    %v611 = vadd.f32 %v370, %v610
    %612 = vmatprep.mubr.bf16.mxu0 0
    %613 = vmatmul.mubr.bf16.gmra.mxu0 %v430
    %v614 = vpop.f32.mrf.mxu0
    %v615 = vadd.f32 %v374, %v614
    %v616 = vpop.f32.mrf.mxu0
    %v617 = vadd.f32 %v376, %v616
    %v618 = vpop.f32.mrf.mxu0
    %v619 = vadd.f32 %v378, %v618
    %v620 = vpop.f32.mrf.mxu0
    %v621 = vadd.f32 %v380, %v620
    %622 = vmatprep.mubr.bf16.mxu0 0
    %623 = vmatmul.mubr.bf16.gmra.mxu0 %v431
    %v624 = vpop.f32.mrf.mxu0
    %v625 = vadd.f32 %v384, %v624
    %v626 = vpop.f32.mrf.mxu0
    %v627 = vadd.f32 %v386, %v626
    %v628 = vpop.f32.mrf.mxu0
    %v629 = vadd.f32 %v388, %v628
    %v630 = vpop.f32.mrf.mxu0
    %v631 = vadd.f32 %v390, %v630
    %632 = vdwg.mxu0
    %v633 = vld [vmem:[%s0] sm:$0xf]
    %v634 = vld [vmem:[%s0 + $0x4] sm:$0xf]
    %v635 = vld [vmem:[%s0 + $0x8] sm:$0xf]
    %v636 = vld [vmem:[%s0 + $0xc] sm:$0xf]
    %v637 = vld [vmem:[%s0 + $0x10] sm:$0xf]
    %v638 = vld [vmem:[%s0 + $0x14] sm:$0xf]
    %v639 = vld [vmem:[%s0 + $0x18] sm:$0xf]
    %v640 = vld [vmem:[%s0 + $0x1c] sm:$0xf]
    %v641 = vld [vmem:[%s0 + $0x20] sm:$0xf]
    %v642 = vld [vmem:[%s0 + $0x24] sm:$0xf]
    %v643 = vld [vmem:[%s0 + $0x28] sm:$0xf]
    %v644 = vld [vmem:[%s0 + $0x2c] sm:$0xf]
    %v645 = vld [vmem:[%s0 + $0x30] sm:$0xf]
    %v646 = vld [vmem:[%s0 + $0x34] sm:$0xf]
    %v647 = vld [vmem:[%s0 + $0x38] sm:$0xf]
    %v648 = vld [vmem:[%s0 + $0x3c] sm:$0xf]
    %v649 = vld [vmem:[%s0 + $0x40] sm:$0x1]
    %s650 = scalar_lea.vmem [#allocation4], 256
    %v651 = vld [vmem:[%s650] sm:$0xff]
    %v652 = vld [vmem:[%s650 + $0x8] sm:$0xff]
    %v653 = vld [vmem:[%s650 + $0x10] sm:$0xff]
    %v654 = vld [vmem:[%s650 + $0x18] sm:$0xff]
    %v655 = vld [vmem:[%s650 + $0x20] sm:$0xff]
    %v656 = vld [vmem:[%s650 + $0x28] sm:$0xff]
    %v657 = vld [vmem:[%s650 + $0x30] sm:$0xff]
    %v658 = vld [vmem:[%s650 + $0x38] sm:$0xff]
    %v659 = vld [vmem:[%s650 + $0x40] sm:$0xff]
    %v660 = vld [vmem:[%s650 + $0x48] sm:$0xff]
    %v661 = vld [vmem:[%s650 + $0x50] sm:$0xff]
    %v662 = vld [vmem:[%s650 + $0x58] sm:$0xff]
    %v663 = vld [vmem:[%s650 + $0x60] sm:$0xff]
    %v664 = vld [vmem:[%s650 + $0x68] sm:$0xff]
    %v665 = vld [vmem:[%s650 + $0x70] sm:$0xff]
    %v666 = vld [vmem:[%s650 + $0x78] sm:$0xff]
    %v684 = vunpack.c.l.b16 %v633
    %v685 = vunpack.c.l.b16 %v634
    %v686 = vunpack.c.l.b16 %v635
    %v687 = vunpack.c.l.b16 %v636
    %v688 = vunpack.c.l.b16 %v637
    %v689 = vunpack.c.l.b16 %v638
    %v690 = vunpack.c.l.b16 %v639
    %v691 = vunpack.c.l.b16 %v640
    %v692 = vunpack.c.l.b16 %v641
    %v693 = vunpack.c.l.b16 %v642
    %v694 = vunpack.c.l.b16 %v643
    %v695 = vunpack.c.l.b16 %v644
    %v696 = vunpack.c.l.b16 %v645
    %v697 = vunpack.c.l.b16 %v646
    %v698 = vunpack.c.l.b16 %v647
    %v699 = vunpack.c.l.b16 %v648
    %v700 = vunpack.c.l.b16 %v649
    %v701 = vpack.c.b16 %v685, %v684
    %v702 = vpack.c.b16 %v687, %v686
    %v703 = vpack.c.b16 %v689, %v688
    %v704 = vpack.c.b16 %v691, %v690
    %v705 = vpack.c.b16 %v693, %v692
    %v706 = vpack.c.b16 %v695, %v694
    %v707 = vpack.c.b16 %v697, %v696
    %v708 = vpack.c.b16 %v699, %v698
    %v709 = vpack.c.b16 %v700, %v700
    %vm710 = vsmask.f32 7424
    %v712 = vshrl.u32 %v701, 16
    %v714 = vshll.u32 %v701, 16
    %v716 = vrot.slane %v714, 1
    %v717 = vor.u32 %v712, %v716
    %v719 = vshll.u32 %v702, 16
    %v721 = vrot.slane %v719, 1
    %v722 = vsel %vm710, %v717, %v721
    %v723 = vshrl.u32 %v702, 16
    %v725 = vor.u32 %v723, %v721
    %v727 = vshll.u32 %v703, 16
    %v729 = vrot.slane %v727, 1
    %v730 = vsel %vm710, %v725, %v729
    %v731 = vshrl.u32 %v703, 16
    %v733 = vor.u32 %v731, %v729
    %v735 = vshll.u32 %v704, 16
    %v737 = vrot.slane %v735, 1
    %v738 = vsel %vm710, %v733, %v737
    %v739 = vshrl.u32 %v704, 16
    %v741 = vor.u32 %v739, %v737
    %v743 = vshll.u32 %v705, 16
    %v745 = vrot.slane %v743, 1
    %v746 = vsel %vm710, %v741, %v745
    %v747 = vshrl.u32 %v705, 16
    %v749 = vor.u32 %v747, %v745
    %v751 = vshll.u32 %v706, 16
    %v753 = vrot.slane %v751, 1
    %v754 = vsel %vm710, %v749, %v753
    %v755 = vshrl.u32 %v706, 16
    %v757 = vor.u32 %v755, %v753
    %v759 = vshll.u32 %v707, 16
    %v761 = vrot.slane %v759, 1
    %v762 = vsel %vm710, %v757, %v761
    %v763 = vshrl.u32 %v707, 16
    %v765 = vor.u32 %v763, %v761
    %v767 = vshll.u32 %v708, 16
    %v769 = vrot.slane %v767, 1
    %v770 = vsel %vm710, %v765, %v769
    %v771 = vshrl.u32 %v708, 16
    %v773 = vor.u32 %v771, %v769
    %v775 = vshll.u32 %v709, 16
    %v777 = vrot.slane %v775, 1
    %v778 = vsel %vm710, %v773, %v777
    %v803 = vunpack.c.l.b16 %v651
    %v804 = vunpack.c.h.b16 %v651
    %v805 = vunpack.c.l.b16 %v652
    %v806 = vunpack.c.h.b16 %v652
    %v807 = vunpack.c.l.b16 %v653
    %v808 = vunpack.c.h.b16 %v653
    %v809 = vunpack.c.l.b16 %v654
    %v810 = vunpack.c.h.b16 %v654
    %v811 = vunpack.c.l.b16 %v655
    %v812 = vunpack.c.h.b16 %v655
    %v813 = vunpack.c.l.b16 %v656
    %v814 = vunpack.c.h.b16 %v656
    %v815 = vunpack.c.l.b16 %v657
    %v816 = vunpack.c.h.b16 %v657
    %v817 = vunpack.c.l.b16 %v658
    %v818 = vunpack.c.h.b16 %v658
    %v819 = vunpack.c.l.b16 %v659
    %v820 = vunpack.c.h.b16 %v659
    %v821 = vunpack.c.l.b16 %v660
    %v822 = vunpack.c.h.b16 %v660
    %v823 = vunpack.c.l.b16 %v661
    %v824 = vunpack.c.h.b16 %v661
    %v825 = vunpack.c.l.b16 %v662
    %v826 = vunpack.c.h.b16 %v662
    %v827 = vunpack.c.l.b16 %v663
    %v828 = vunpack.c.h.b16 %v663
    %v829 = vunpack.c.l.b16 %v664
    %v830 = vunpack.c.h.b16 %v664
    %v831 = vunpack.c.l.b16 %v665
    %v832 = vunpack.c.h.b16 %v665
    %v833 = vunpack.c.l.b16 %v666
    %v834 = vunpack.c.h.b16 %v666
    %v835 = vpack.c.b16 %v805, %v803
    %v836 = vpack.c.b16 %v806, %v804
    %v837 = vpack.c.b16 %v809, %v807
    %v838 = vpack.c.b16 %v810, %v808
    %v839 = vpack.c.b16 %v813, %v811
    %v840 = vpack.c.b16 %v814, %v812
    %v841 = vpack.c.b16 %v817, %v815
    %v842 = vpack.c.b16 %v818, %v816
    %v843 = vpack.c.b16 %v821, %v819
    %v844 = vpack.c.b16 %v822, %v820
    %v845 = vpack.c.b16 %v825, %v823
    %v846 = vpack.c.b16 %v826, %v824
    %v847 = vpack.c.b16 %v829, %v827
    %v848 = vpack.c.b16 %v830, %v828
    %v849 = vpack.c.b16 %v833, %v831
    %v850 = vpack.c.b16 %v834, %v832
    %867 = vmatprep.subr.bf16.mxu0 %v850
    %868 = vmatpush1.bf16.msra.mxu0 %v849
    %869 = vmatprep.subr.bf16.mxu0 %v848
    %870 = vmatpush1.bf16.msra.mxu0 %v847
    %871 = vmatprep.subr.bf16.mxu0 %v846
    %872 = vmatpush1.bf16.msra.mxu0 %v845
    %873 = vmatprep.subr.bf16.mxu0 %v844
    %874 = vmatpush1.bf16.msra.mxu0 %v843
    %875 = vmatprep.subr.bf16.mxu0 %v842
    %876 = vmatpush1.bf16.msra.mxu0 %v841
    %877 = vmatprep.subr.bf16.mxu0 %v840
    %878 = vmatpush1.bf16.msra.mxu0 %v839
    %879 = vmatprep.subr.bf16.mxu0 %v838
    %880 = vmatpush1.bf16.msra.mxu0 %v837
    %881 = vmatprep.subr.bf16.mxu0 %v836
    %882 = vmatpush1.bf16.msra.mxu0 %v835
    %883 = vmatprep.subr.bf16.mxu0 0
    %884 = vmatpush2.bf16.msra.mxu0 0
    %885 = vmatprep.subr.bf16.mxu0 0
    %886 = vmatpush2.bf16.msra.mxu0 0
    %887 = vmatprep.subr.bf16.mxu0 0
    %888 = vmatpush2.bf16.msra.mxu0 0
    %889 = vmatprep.subr.bf16.mxu0 0
    %890 = vmatpush2.bf16.msra.mxu0 0
    %891 = vmatprep.subr.bf16.mxu0 0
    %892 = vmatpush2.bf16.msra.mxu0 0
    %893 = vmatprep.subr.bf16.mxu0 0
    %894 = vmatpush2.bf16.msra.mxu0 0
    %895 = vmatprep.subr.bf16.mxu0 0
    %896 = vmatpush2.bf16.msra.mxu0 0
    %897 = vmatprep.subr.bf16.mxu0 0
    %898 = vmatpush2.bf16.msra.mxu0 0
    %899 = vmatprep.mubr.bf16.mxu0 0
    %900 = vmatmul.mubr.bf16.gmra.mxu0 %v722
    %v901 = vpop.f32.mrf.mxu0
    %v902 = vadd.f32 0.0, %v901
    %v903 = vpop.f32.mrf.mxu0
    %v904 = vadd.f32 0.0, %v903
    %v905 = vpop.f32.mrf.mxu0
    %v906 = vadd.f32 0.0, %v905
    %v907 = vpop.f32.mrf.mxu0
    %v908 = vadd.f32 0.0, %v907
    %909 = vmatprep.mubr.bf16.mxu0 0
    %910 = vmatmul.mubr.bf16.gmra.mxu0 %v730
    %v911 = vpop.f32.mrf.mxu0
    %v912 = vadd.f32 0.0, %v911
    %v913 = vpop.f32.mrf.mxu0
    %v914 = vadd.f32 0.0, %v913
    %v915 = vpop.f32.mrf.mxu0
    %v916 = vadd.f32 0.0, %v915
    %v917 = vpop.f32.mrf.mxu0
    %v918 = vadd.f32 0.0, %v917
    %919 = vmatprep.mubr.bf16.mxu0 0
    %920 = vmatmul.mubr.bf16.gmra.mxu0 %v738
    %v921 = vpop.f32.mrf.mxu0
    %v922 = vadd.f32 0.0, %v921
    %v923 = vpop.f32.mrf.mxu0
    %v924 = vadd.f32 0.0, %v923
    %v925 = vpop.f32.mrf.mxu0
    %v926 = vadd.f32 0.0, %v925
    %v927 = vpop.f32.mrf.mxu0
    %v928 = vadd.f32 0.0, %v927
    %929 = vmatprep.mubr.bf16.mxu0 0
    %930 = vmatmul.mubr.bf16.gmra.mxu0 %v746
    %v931 = vpop.f32.mrf.mxu0
    %v932 = vadd.f32 0.0, %v931
    %v933 = vpop.f32.mrf.mxu0
    %v934 = vadd.f32 0.0, %v933
    %v935 = vpop.f32.mrf.mxu0
    %v936 = vadd.f32 0.0, %v935
    %v937 = vpop.f32.mrf.mxu0
    %v938 = vadd.f32 0.0, %v937
    %939 = vmatprep.mubr.bf16.mxu0 0
    %940 = vmatmul.mubr.bf16.gmra.mxu0 %v754
    %v941 = vpop.f32.mrf.mxu0
    %v942 = vadd.f32 0.0, %v941
    %v943 = vpop.f32.mrf.mxu0
    %v944 = vadd.f32 0.0, %v943
    %v945 = vpop.f32.mrf.mxu0
    %v946 = vadd.f32 0.0, %v945
    %v947 = vpop.f32.mrf.mxu0
    %v948 = vadd.f32 0.0, %v947
    %949 = vmatprep.mubr.bf16.mxu0 0
    %950 = vmatmul.mubr.bf16.gmra.mxu0 %v762
    %v951 = vpop.f32.mrf.mxu0
    %v952 = vadd.f32 0.0, %v951
    %v953 = vpop.f32.mrf.mxu0
    %v954 = vadd.f32 0.0, %v953
    %v955 = vpop.f32.mrf.mxu0
    %v956 = vadd.f32 0.0, %v955
    %v957 = vpop.f32.mrf.mxu0
    %v958 = vadd.f32 0.0, %v957
    %959 = vmatprep.mubr.bf16.mxu0 0
    %960 = vmatmul.mubr.bf16.gmra.mxu0 %v770
    %v961 = vpop.f32.mrf.mxu0
    %v962 = vadd.f32 0.0, %v961
    %v963 = vpop.f32.mrf.mxu0
    %v964 = vadd.f32 0.0, %v963
    %v965 = vpop.f32.mrf.mxu0
    %v966 = vadd.f32 0.0, %v965
    %v967 = vpop.f32.mrf.mxu0
    %v968 = vadd.f32 0.0, %v967
    %969 = vmatprep.mubr.bf16.mxu0 0
    %970 = vmatmul.mubr.bf16.gmra.mxu0 %v778
    %v971 = vpop.f32.mrf.mxu0
    %v972 = vadd.f32 0.0, %v971
    %v973 = vpop.f32.mrf.mxu0
    %v974 = vadd.f32 0.0, %v973
    %v975 = vpop.f32.mrf.mxu0
    %v976 = vadd.f32 0.0, %v975
    %v977 = vpop.f32.mrf.mxu0
    %v978 = vadd.f32 0.0, %v977
    %979 = vdwg.mxu0
    %v980 = vadd.f32 %v555, %v902
    %v981 = vadd.f32 %v557, %v904
    %v982 = vadd.f32 %v559, %v906
    %v983 = vadd.f32 %v561, %v908
    %v984 = vadd.f32 %v565, %v912
    %v985 = vadd.f32 %v567, %v914
    %v986 = vadd.f32 %v569, %v916
    %v987 = vadd.f32 %v571, %v918
    %v988 = vadd.f32 %v575, %v922
    %v989 = vadd.f32 %v577, %v924
    %v990 = vadd.f32 %v579, %v926
    %v991 = vadd.f32 %v581, %v928
    %v992 = vadd.f32 %v585, %v932
    %v993 = vadd.f32 %v587, %v934
    %v994 = vadd.f32 %v589, %v936
    %v995 = vadd.f32 %v591, %v938
    %v996 = vadd.f32 %v595, %v942
    %v997 = vadd.f32 %v597, %v944
    %v998 = vadd.f32 %v599, %v946
    %v999 = vadd.f32 %v601, %v948
    %v1000 = vadd.f32 %v605, %v952
    %v1001 = vadd.f32 %v607, %v954
    %v1002 = vadd.f32 %v609, %v956
    %v1003 = vadd.f32 %v611, %v958
    %v1004 = vadd.f32 %v615, %v962
    %v1005 = vadd.f32 %v617, %v964
    %v1006 = vadd.f32 %v619, %v966
    %v1007 = vadd.f32 %v621, %v968
    %v1008 = vadd.f32 %v625, %v972
    %v1009 = vadd.f32 %v627, %v974
    %v1010 = vadd.f32 %v629, %v976
    %v1011 = vadd.f32 %v631, %v978
    %v1012 = vld [vmem:[%s1] sm:$0xf]
    %v1013 = vld [vmem:[%s1 + $0x4] sm:$0xf]
    %v1014 = vld [vmem:[%s1 + $0x8] sm:$0xf]
    %v1015 = vld [vmem:[%s1 + $0xc] sm:$0xf]
    %v1016 = vld [vmem:[%s1 + $0x10] sm:$0xf]
    %v1017 = vld [vmem:[%s1 + $0x14] sm:$0xf]
    %v1018 = vld [vmem:[%s1 + $0x18] sm:$0xf]
    %v1019 = vld [vmem:[%s1 + $0x1c] sm:$0xf]
    %v1020 = vld [vmem:[%s1 + $0x20] sm:$0xf]
    %v1021 = vld [vmem:[%s1 + $0x24] sm:$0xf]
    %v1022 = vld [vmem:[%s1 + $0x28] sm:$0xf]
    %v1023 = vld [vmem:[%s1 + $0x2c] sm:$0xf]
    %v1024 = vld [vmem:[%s1 + $0x30] sm:$0xf]
    %v1025 = vld [vmem:[%s1 + $0x34] sm:$0xf]
    %v1026 = vld [vmem:[%s1 + $0x38] sm:$0xf]
    %v1027 = vld [vmem:[%s1 + $0x3c] sm:$0xf]
    %v1028 = vld [vmem:[%s1 + $0x40] sm:$0x1]
    %s1029 = scalar_lea.vmem [#allocation4], 384
    %v1030 = vld [vmem:[%s1029] sm:$0xff]
    %v1031 = vld [vmem:[%s1029 + $0x8] sm:$0xff]
    %v1032 = vld [vmem:[%s1029 + $0x10] sm:$0xff]
    %v1033 = vld [vmem:[%s1029 + $0x18] sm:$0xff]
    %v1034 = vld [vmem:[%s1029 + $0x20] sm:$0xff]
    %v1035 = vld [vmem:[%s1029 + $0x28] sm:$0xff]
    %v1036 = vld [vmem:[%s1029 + $0x30] sm:$0xff]
    %v1037 = vld [vmem:[%s1029 + $0x38] sm:$0xff]
    %v1038 = vld [vmem:[%s1029 + $0x40] sm:$0xff]
    %v1039 = vld [vmem:[%s1029 + $0x48] sm:$0xff]
    %v1040 = vld [vmem:[%s1029 + $0x50] sm:$0xff]
    %v1041 = vld [vmem:[%s1029 + $0x58] sm:$0xff]
    %v1042 = vld [vmem:[%s1029 + $0x60] sm:$0xff]
    %v1043 = vld [vmem:[%s1029 + $0x68] sm:$0xff]
    %v1044 = vld [vmem:[%s1029 + $0x70] sm:$0xff]
    %v1045 = vld [vmem:[%s1029 + $0x78] sm:$0xff]
    %v1063 = vunpack.c.l.b16 %v1012
    %v1064 = vunpack.c.l.b16 %v1013
    %v1065 = vunpack.c.l.b16 %v1014
    %v1066 = vunpack.c.l.b16 %v1015
    %v1067 = vunpack.c.l.b16 %v1016
    %v1068 = vunpack.c.l.b16 %v1017
    %v1069 = vunpack.c.l.b16 %v1018
    %v1070 = vunpack.c.l.b16 %v1019
    %v1071 = vunpack.c.l.b16 %v1020
    %v1072 = vunpack.c.l.b16 %v1021
    %v1073 = vunpack.c.l.b16 %v1022
    %v1074 = vunpack.c.l.b16 %v1023
    %v1075 = vunpack.c.l.b16 %v1024
    %v1076 = vunpack.c.l.b16 %v1025
    %v1077 = vunpack.c.l.b16 %v1026
    %v1078 = vunpack.c.l.b16 %v1027
    %v1079 = vunpack.c.l.b16 %v1028
    %v1080 = vpack.c.b16 %v1064, %v1063
    %v1081 = vpack.c.b16 %v1066, %v1065
    %v1082 = vpack.c.b16 %v1068, %v1067
    %v1083 = vpack.c.b16 %v1070, %v1069
    %v1084 = vpack.c.b16 %v1072, %v1071
    %v1085 = vpack.c.b16 %v1074, %v1073
    %v1086 = vpack.c.b16 %v1076, %v1075
    %v1087 = vpack.c.b16 %v1078, %v1077
    %v1088 = vpack.c.b16 %v1079, %v1079
    %v1090 = vshrl.u32 %v1080, 16
    %v1092 = vshll.u32 %v1080, 16
    %v1094 = vrot.slane %v1092, 1
    %v1095 = vor.u32 %v1090, %v1094
    %v1097 = vshll.u32 %v1081, 16
    %v1099 = vrot.slane %v1097, 1
    %v1100 = vsel %vm710, %v1095, %v1099
    %v1101 = vshrl.u32 %v1081, 16
    %v1103 = vor.u32 %v1101, %v1099
    %v1105 = vshll.u32 %v1082, 16
    %v1107 = vrot.slane %v1105, 1
    %v1108 = vsel %vm710, %v1103, %v1107
    %v1109 = vshrl.u32 %v1082, 16
    %v1111 = vor.u32 %v1109, %v1107
    %v1113 = vshll.u32 %v1083, 16
    %v1115 = vrot.slane %v1113, 1
    %v1116 = vsel %vm710, %v1111, %v1115
    %v1117 = vshrl.u32 %v1083, 16
    %v1119 = vor.u32 %v1117, %v1115
    %v1121 = vshll.u32 %v1084, 16
    %v1123 = vrot.slane %v1121, 1
    %v1124 = vsel %vm710, %v1119, %v1123
    %v1125 = vshrl.u32 %v1084, 16
    %v1127 = vor.u32 %v1125, %v1123
    %v1129 = vshll.u32 %v1085, 16
    %v1131 = vrot.slane %v1129, 1
    %v1132 = vsel %vm710, %v1127, %v1131
    %v1133 = vshrl.u32 %v1085, 16
    %v1135 = vor.u32 %v1133, %v1131
    %v1137 = vshll.u32 %v1086, 16
    %v1139 = vrot.slane %v1137, 1
    %v1140 = vsel %vm710, %v1135, %v1139
    %v1141 = vshrl.u32 %v1086, 16
    %v1143 = vor.u32 %v1141, %v1139
    %v1145 = vshll.u32 %v1087, 16
    %v1147 = vrot.slane %v1145, 1
    %v1148 = vsel %vm710, %v1143, %v1147
    %v1149 = vshrl.u32 %v1087, 16
    %v1151 = vor.u32 %v1149, %v1147
    %v1153 = vshll.u32 %v1088, 16
    %v1155 = vrot.slane %v1153, 1
    %v1156 = vsel %vm710, %v1151, %v1155
    %v1181 = vunpack.c.l.b16 %v1030
    %v1182 = vunpack.c.h.b16 %v1030
    %v1183 = vunpack.c.l.b16 %v1031
    %v1184 = vunpack.c.h.b16 %v1031
    %v1185 = vunpack.c.l.b16 %v1032
    %v1186 = vunpack.c.h.b16 %v1032
    %v1187 = vunpack.c.l.b16 %v1033
    %v1188 = vunpack.c.h.b16 %v1033
    %v1189 = vunpack.c.l.b16 %v1034
    %v1190 = vunpack.c.h.b16 %v1034
    %v1191 = vunpack.c.l.b16 %v1035
    %v1192 = vunpack.c.h.b16 %v1035
    %v1193 = vunpack.c.l.b16 %v1036
    %v1194 = vunpack.c.h.b16 %v1036
    %v1195 = vunpack.c.l.b16 %v1037
    %v1196 = vunpack.c.h.b16 %v1037
    %v1197 = vunpack.c.l.b16 %v1038
    %v1198 = vunpack.c.h.b16 %v1038
    %v1199 = vunpack.c.l.b16 %v1039
    %v1200 = vunpack.c.h.b16 %v1039
    %v1201 = vunpack.c.l.b16 %v1040
    %v1202 = vunpack.c.h.b16 %v1040
    %v1203 = vunpack.c.l.b16 %v1041
    %v1204 = vunpack.c.h.b16 %v1041
    %v1205 = vunpack.c.l.b16 %v1042
    %v1206 = vunpack.c.h.b16 %v1042
    %v1207 = vunpack.c.l.b16 %v1043
    %v1208 = vunpack.c.h.b16 %v1043
    %v1209 = vunpack.c.l.b16 %v1044
    %v1210 = vunpack.c.h.b16 %v1044
    %v1211 = vunpack.c.l.b16 %v1045
    %v1212 = vunpack.c.h.b16 %v1045
    %v1213 = vpack.c.b16 %v1183, %v1181
    %v1214 = vpack.c.b16 %v1184, %v1182
    %v1215 = vpack.c.b16 %v1187, %v1185
    %v1216 = vpack.c.b16 %v1188, %v1186
    %v1217 = vpack.c.b16 %v1191, %v1189
    %v1218 = vpack.c.b16 %v1192, %v1190
    %v1219 = vpack.c.b16 %v1195, %v1193
    %v1220 = vpack.c.b16 %v1196, %v1194
    %v1221 = vpack.c.b16 %v1199, %v1197
    %v1222 = vpack.c.b16 %v1200, %v1198
    %v1223 = vpack.c.b16 %v1203, %v1201
    %v1224 = vpack.c.b16 %v1204, %v1202
    %v1225 = vpack.c.b16 %v1207, %v1205
    %v1226 = vpack.c.b16 %v1208, %v1206
    %v1227 = vpack.c.b16 %v1211, %v1209
    %v1228 = vpack.c.b16 %v1212, %v1210
    %1245 = vmatprep.subr.bf16.mxu0 %v1228
    %1246 = vmatpush1.bf16.msra.mxu0 %v1227
    %1247 = vmatprep.subr.bf16.mxu0 %v1226
    %1248 = vmatpush1.bf16.msra.mxu0 %v1225
    %1249 = vmatprep.subr.bf16.mxu0 %v1224
    %1250 = vmatpush1.bf16.msra.mxu0 %v1223
    %1251 = vmatprep.subr.bf16.mxu0 %v1222
    %1252 = vmatpush1.bf16.msra.mxu0 %v1221
    %1253 = vmatprep.subr.bf16.mxu0 %v1220
    %1254 = vmatpush1.bf16.msra.mxu0 %v1219
    %1255 = vmatprep.subr.bf16.mxu0 %v1218
    %1256 = vmatpush1.bf16.msra.mxu0 %v1217
    %1257 = vmatprep.subr.bf16.mxu0 %v1216
    %1258 = vmatpush1.bf16.msra.mxu0 %v1215
    %1259 = vmatprep.subr.bf16.mxu0 %v1214
    %1260 = vmatpush1.bf16.msra.mxu0 %v1213
    %1261 = vmatprep.subr.bf16.mxu0 0
    %1262 = vmatpush2.bf16.msra.mxu0 0
    %1263 = vmatprep.subr.bf16.mxu0 0
    %1264 = vmatpush2.bf16.msra.mxu0 0
    %1265 = vmatprep.subr.bf16.mxu0 0
    %1266 = vmatpush2.bf16.msra.mxu0 0
    %1267 = vmatprep.subr.bf16.mxu0 0
    %1268 = vmatpush2.bf16.msra.mxu0 0
    %1269 = vmatprep.subr.bf16.mxu0 0
    %1270 = vmatpush2.bf16.msra.mxu0 0
    %1271 = vmatprep.subr.bf16.mxu0 0
    %1272 = vmatpush2.bf16.msra.mxu0 0
    %1273 = vmatprep.subr.bf16.mxu0 0
    %1274 = vmatpush2.bf16.msra.mxu0 0
    %1275 = vmatprep.subr.bf16.mxu0 0
    %1276 = vmatpush2.bf16.msra.mxu0 0
    %1277 = vmatprep.mubr.bf16.mxu0 0
    %1278 = vmatmul.mubr.bf16.gmra.mxu0 %v1100
    %v1279 = vpop.f32.mrf.mxu0
    %v1280 = vadd.f32 0.0, %v1279
    %v1281 = vpop.f32.mrf.mxu0
    %v1282 = vadd.f32 0.0, %v1281
    %v1283 = vpop.f32.mrf.mxu0
    %v1284 = vadd.f32 0.0, %v1283
    %v1285 = vpop.f32.mrf.mxu0
    %v1286 = vadd.f32 0.0, %v1285
    %1287 = vmatprep.mubr.bf16.mxu0 0
    %1288 = vmatmul.mubr.bf16.gmra.mxu0 %v1108
    %v1289 = vpop.f32.mrf.mxu0
    %v1290 = vadd.f32 0.0, %v1289
    %v1291 = vpop.f32.mrf.mxu0
    %v1292 = vadd.f32 0.0, %v1291
    %v1293 = vpop.f32.mrf.mxu0
    %v1294 = vadd.f32 0.0, %v1293
    %v1295 = vpop.f32.mrf.mxu0
    %v1296 = vadd.f32 0.0, %v1295
    %1297 = vmatprep.mubr.bf16.mxu0 0
    %1298 = vmatmul.mubr.bf16.gmra.mxu0 %v1116
    %v1299 = vpop.f32.mrf.mxu0
    %v1300 = vadd.f32 0.0, %v1299
    %v1301 = vpop.f32.mrf.mxu0
    %v1302 = vadd.f32 0.0, %v1301
    %v1303 = vpop.f32.mrf.mxu0
    %v1304 = vadd.f32 0.0, %v1303
    %v1305 = vpop.f32.mrf.mxu0
    %v1306 = vadd.f32 0.0, %v1305
    %1307 = vmatprep.mubr.bf16.mxu0 0
    %1308 = vmatmul.mubr.bf16.gmra.mxu0 %v1124
    %v1309 = vpop.f32.mrf.mxu0
    %v1310 = vadd.f32 0.0, %v1309
    %v1311 = vpop.f32.mrf.mxu0
    %v1312 = vadd.f32 0.0, %v1311
    %v1313 = vpop.f32.mrf.mxu0
    %v1314 = vadd.f32 0.0, %v1313
    %v1315 = vpop.f32.mrf.mxu0
    %v1316 = vadd.f32 0.0, %v1315
    %1317 = vmatprep.mubr.bf16.mxu0 0
    %1318 = vmatmul.mubr.bf16.gmra.mxu0 %v1132
    %v1319 = vpop.f32.mrf.mxu0
    %v1320 = vadd.f32 0.0, %v1319
    %v1321 = vpop.f32.mrf.mxu0
    %v1322 = vadd.f32 0.0, %v1321
    %v1323 = vpop.f32.mrf.mxu0
    %v1324 = vadd.f32 0.0, %v1323
    %v1325 = vpop.f32.mrf.mxu0
    %v1326 = vadd.f32 0.0, %v1325
    %1327 = vmatprep.mubr.bf16.mxu0 0
    %1328 = vmatmul.mubr.bf16.gmra.mxu0 %v1140
    %v1329 = vpop.f32.mrf.mxu0
    %v1330 = vadd.f32 0.0, %v1329
    %v1331 = vpop.f32.mrf.mxu0
    %v1332 = vadd.f32 0.0, %v1331
    %v1333 = vpop.f32.mrf.mxu0
    %v1334 = vadd.f32 0.0, %v1333
    %v1335 = vpop.f32.mrf.mxu0
    %v1336 = vadd.f32 0.0, %v1335
    %1337 = vmatprep.mubr.bf16.mxu0 0
    %1338 = vmatmul.mubr.bf16.gmra.mxu0 %v1148
    %v1339 = vpop.f32.mrf.mxu0
    %v1340 = vadd.f32 0.0, %v1339
    %v1341 = vpop.f32.mrf.mxu0
    %v1342 = vadd.f32 0.0, %v1341
    %v1343 = vpop.f32.mrf.mxu0
    %v1344 = vadd.f32 0.0, %v1343
    %v1345 = vpop.f32.mrf.mxu0
    %v1346 = vadd.f32 0.0, %v1345
    %1347 = vmatprep.mubr.bf16.mxu0 0
    %1348 = vmatmul.mubr.bf16.gmra.mxu0 %v1156
    %v1349 = vpop.f32.mrf.mxu0
    %v1350 = vadd.f32 0.0, %v1349
    %v1351 = vpop.f32.mrf.mxu0
    %v1352 = vadd.f32 0.0, %v1351
    %v1353 = vpop.f32.mrf.mxu0
    %v1354 = vadd.f32 0.0, %v1353
    %v1355 = vpop.f32.mrf.mxu0
    %v1356 = vadd.f32 0.0, %v1355
    %1357 = vdwg.mxu0
    %v1358 = vadd.f32 %v980, %v1280
    %v1359 = vadd.f32 %v981, %v1282
    %v1360 = vadd.f32 %v982, %v1284
    %v1361 = vadd.f32 %v983, %v1286
    %v1362 = vadd.f32 %v984, %v1290
    %v1363 = vadd.f32 %v985, %v1292
    %v1364 = vadd.f32 %v986, %v1294
    %v1365 = vadd.f32 %v987, %v1296
    %v1366 = vadd.f32 %v988, %v1300
    %v1367 = vadd.f32 %v989, %v1302
    %v1368 = vadd.f32 %v990, %v1304
    %v1369 = vadd.f32 %v991, %v1306
    %v1370 = vadd.f32 %v992, %v1310
    %v1371 = vadd.f32 %v993, %v1312
    %v1372 = vadd.f32 %v994, %v1314
    %v1373 = vadd.f32 %v995, %v1316
    %v1374 = vadd.f32 %v996, %v1320
    %v1375 = vadd.f32 %v997, %v1322
    %v1376 = vadd.f32 %v998, %v1324
    %v1377 = vadd.f32 %v999, %v1326
    %v1378 = vadd.f32 %v1000, %v1330
    %v1379 = vadd.f32 %v1001, %v1332
    %v1380 = vadd.f32 %v1002, %v1334
    %v1381 = vadd.f32 %v1003, %v1336
    %v1382 = vadd.f32 %v1004, %v1340
    %v1383 = vadd.f32 %v1005, %v1342
    %v1384 = vadd.f32 %v1006, %v1344
    %v1385 = vadd.f32 %v1007, %v1346
    %v1386 = vadd.f32 %v1008, %v1350
    %v1387 = vadd.f32 %v1009, %v1352
    %v1388 = vadd.f32 %v1010, %v1354
    %v1389 = vadd.f32 %v1011, %v1356
    %v1390 = vld [vmem:[%s0] sm:$0xe]
    %s1391 = scalar_lea.vmem [#allocation4], 512
    %v1392 = vld [vmem:[%s1391] sm:$0xff]
    %v1393 = vld [vmem:[%s1391 + $0x8] sm:$0xff]
    %v1394 = vld [vmem:[%s1391 + $0x10] sm:$0xff]
    %v1395 = vld [vmem:[%s1391 + $0x18] sm:$0xff]
    %v1396 = vld [vmem:[%s1391 + $0x20] sm:$0xff]
    %v1397 = vld [vmem:[%s1391 + $0x28] sm:$0xff]
    %v1398 = vld [vmem:[%s1391 + $0x30] sm:$0xff]
    %v1399 = vld [vmem:[%s1391 + $0x38] sm:$0xff]
    %v1400 = vld [vmem:[%s1391 + $0x40] sm:$0xff]
    %v1401 = vld [vmem:[%s1391 + $0x48] sm:$0xff]
    %v1402 = vld [vmem:[%s1391 + $0x50] sm:$0xff]
    %v1403 = vld [vmem:[%s1391 + $0x58] sm:$0xff]
    %v1404 = vld [vmem:[%s1391 + $0x60] sm:$0xff]
    %v1405 = vld [vmem:[%s1391 + $0x68] sm:$0xff]
    %v1406 = vld [vmem:[%s1391 + $0x70] sm:$0xff]
    %v1407 = vld [vmem:[%s1391 + $0x78] sm:$0xff]
    %v1409 = vunpack.c.l.b16 %v1390
    %v1410 = vpack.c.b16 %v685, %v1409
    %vm1411 = vcmask 1046528
    %v1412 = vrot.slane %v1410, 1
    %v1413 = vrot.slane %v702, 1
    %v1414 = vsel %vm1411, %v1412, %v1413
    %v1415 = vrot.slane %v703, 1
    %v1416 = vsel %vm1411, %v1413, %v1415
    %v1417 = vrot.slane %v704, 1
    %v1418 = vsel %vm1411, %v1415, %v1417
    %v1419 = vrot.slane %v705, 1
    %v1420 = vsel %vm1411, %v1417, %v1419
    %v1421 = vrot.slane %v706, 1
    %v1422 = vsel %vm1411, %v1419, %v1421
    %v1423 = vrot.slane %v707, 1
    %v1424 = vsel %vm1411, %v1421, %v1423
    %v1425 = vrot.slane %v708, 1
    %v1426 = vsel %vm1411, %v1423, %v1425
    %v1427 = vrot.slane %v709, 1
    %v1428 = vsel %vm1411, %v1425, %v1427
    %v1453 = vunpack.c.l.b16 %v1392
    %v1454 = vunpack.c.h.b16 %v1392
    %v1455 = vunpack.c.l.b16 %v1393
    %v1456 = vunpack.c.h.b16 %v1393
    %v1457 = vunpack.c.l.b16 %v1394
    %v1458 = vunpack.c.h.b16 %v1394
    %v1459 = vunpack.c.l.b16 %v1395
    %v1460 = vunpack.c.h.b16 %v1395
    %v1461 = vunpack.c.l.b16 %v1396
    %v1462 = vunpack.c.h.b16 %v1396
    %v1463 = vunpack.c.l.b16 %v1397
    %v1464 = vunpack.c.h.b16 %v1397
    %v1465 = vunpack.c.l.b16 %v1398
    %v1466 = vunpack.c.h.b16 %v1398
    %v1467 = vunpack.c.l.b16 %v1399
    %v1468 = vunpack.c.h.b16 %v1399
    %v1469 = vunpack.c.l.b16 %v1400
    %v1470 = vunpack.c.h.b16 %v1400
    %v1471 = vunpack.c.l.b16 %v1401
    %v1472 = vunpack.c.h.b16 %v1401
    %v1473 = vunpack.c.l.b16 %v1402
    %v1474 = vunpack.c.h.b16 %v1402
    %v1475 = vunpack.c.l.b16 %v1403
    %v1476 = vunpack.c.h.b16 %v1403
    %v1477 = vunpack.c.l.b16 %v1404
    %v1478 = vunpack.c.h.b16 %v1404
    %v1479 = vunpack.c.l.b16 %v1405
    %v1480 = vunpack.c.h.b16 %v1405
    %v1481 = vunpack.c.l.b16 %v1406
    %v1482 = vunpack.c.h.b16 %v1406
    %v1483 = vunpack.c.l.b16 %v1407
    %v1484 = vunpack.c.h.b16 %v1407
    %v1485 = vpack.c.b16 %v1455, %v1453
    %v1486 = vpack.c.b16 %v1456, %v1454
    %v1487 = vpack.c.b16 %v1459, %v1457
    %v1488 = vpack.c.b16 %v1460, %v1458
    %v1489 = vpack.c.b16 %v1463, %v1461
    %v1490 = vpack.c.b16 %v1464, %v1462
    %v1491 = vpack.c.b16 %v1467, %v1465
    %v1492 = vpack.c.b16 %v1468, %v1466
    %v1493 = vpack.c.b16 %v1471, %v1469
    %v1494 = vpack.c.b16 %v1472, %v1470
    %v1495 = vpack.c.b16 %v1475, %v1473
    %v1496 = vpack.c.b16 %v1476, %v1474
    %v1497 = vpack.c.b16 %v1479, %v1477
    %v1498 = vpack.c.b16 %v1480, %v1478
    %v1499 = vpack.c.b16 %v1483, %v1481
    %v1500 = vpack.c.b16 %v1484, %v1482
    %1517 = vmatprep.subr.bf16.mxu0 %v1500
    %1518 = vmatpush1.bf16.msra.mxu0 %v1499
    %1519 = vmatprep.subr.bf16.mxu0 %v1498
    %1520 = vmatpush1.bf16.msra.mxu0 %v1497
    %1521 = vmatprep.subr.bf16.mxu0 %v1496
    %1522 = vmatpush1.bf16.msra.mxu0 %v1495
    %1523 = vmatprep.subr.bf16.mxu0 %v1494
    %1524 = vmatpush1.bf16.msra.mxu0 %v1493
    %1525 = vmatprep.subr.bf16.mxu0 %v1492
    %1526 = vmatpush1.bf16.msra.mxu0 %v1491
    %1527 = vmatprep.subr.bf16.mxu0 %v1490
    %1528 = vmatpush1.bf16.msra.mxu0 %v1489
    %1529 = vmatprep.subr.bf16.mxu0 %v1488
    %1530 = vmatpush1.bf16.msra.mxu0 %v1487
    %1531 = vmatprep.subr.bf16.mxu0 %v1486
    %1532 = vmatpush1.bf16.msra.mxu0 %v1485
    %1533 = vmatprep.subr.bf16.mxu0 0
    %1534 = vmatpush2.bf16.msra.mxu0 0
    %1535 = vmatprep.subr.bf16.mxu0 0
    %1536 = vmatpush2.bf16.msra.mxu0 0
    %1537 = vmatprep.subr.bf16.mxu0 0
    %1538 = vmatpush2.bf16.msra.mxu0 0
    %1539 = vmatprep.subr.bf16.mxu0 0
    %1540 = vmatpush2.bf16.msra.mxu0 0
    %1541 = vmatprep.subr.bf16.mxu0 0
    %1542 = vmatpush2.bf16.msra.mxu0 0
    %1543 = vmatprep.subr.bf16.mxu0 0
    %1544 = vmatpush2.bf16.msra.mxu0 0
    %1545 = vmatprep.subr.bf16.mxu0 0
    %1546 = vmatpush2.bf16.msra.mxu0 0
    %1547 = vmatprep.subr.bf16.mxu0 0
    %1548 = vmatpush2.bf16.msra.mxu0 0
    %1549 = vmatprep.mubr.bf16.mxu0 0
    %1550 = vmatmul.mubr.bf16.gmra.mxu0 %v1414
    %v1551 = vpop.f32.mrf.mxu0
    %v1552 = vadd.f32 0.0, %v1551
    %v1553 = vpop.f32.mrf.mxu0
    %v1554 = vadd.f32 0.0, %v1553
    %v1555 = vpop.f32.mrf.mxu0
    %v1556 = vadd.f32 0.0, %v1555
    %v1557 = vpop.f32.mrf.mxu0
    %v1558 = vadd.f32 0.0, %v1557
    %1559 = vmatprep.mubr.bf16.mxu0 0
    %1560 = vmatmul.mubr.bf16.gmra.mxu0 %v1416
    %v1561 = vpop.f32.mrf.mxu0
    %v1562 = vadd.f32 0.0, %v1561
    %v1563 = vpop.f32.mrf.mxu0
    %v1564 = vadd.f32 0.0, %v1563
    %v1565 = vpop.f32.mrf.mxu0
    %v1566 = vadd.f32 0.0, %v1565
    %v1567 = vpop.f32.mrf.mxu0
    %v1568 = vadd.f32 0.0, %v1567
    %1569 = vmatprep.mubr.bf16.mxu0 0
    %1570 = vmatmul.mubr.bf16.gmra.mxu0 %v1418
    %v1571 = vpop.f32.mrf.mxu0
    %v1572 = vadd.f32 0.0, %v1571
    %v1573 = vpop.f32.mrf.mxu0
    %v1574 = vadd.f32 0.0, %v1573
    %v1575 = vpop.f32.mrf.mxu0
    %v1576 = vadd.f32 0.0, %v1575
    %v1577 = vpop.f32.mrf.mxu0
    %v1578 = vadd.f32 0.0, %v1577
    %1579 = vmatprep.mubr.bf16.mxu0 0
    %1580 = vmatmul.mubr.bf16.gmra.mxu0 %v1420
    %v1581 = vpop.f32.mrf.mxu0
    %v1582 = vadd.f32 0.0, %v1581
    %v1583 = vpop.f32.mrf.mxu0
    %v1584 = vadd.f32 0.0, %v1583
    %v1585 = vpop.f32.mrf.mxu0
    %v1586 = vadd.f32 0.0, %v1585
    %v1587 = vpop.f32.mrf.mxu0
    %v1588 = vadd.f32 0.0, %v1587
    %1589 = vmatprep.mubr.bf16.mxu0 0
    %1590 = vmatmul.mubr.bf16.gmra.mxu0 %v1422
    %v1591 = vpop.f32.mrf.mxu0
    %v1592 = vadd.f32 0.0, %v1591
    %v1593 = vpop.f32.mrf.mxu0
    %v1594 = vadd.f32 0.0, %v1593
    %v1595 = vpop.f32.mrf.mxu0
    %v1596 = vadd.f32 0.0, %v1595
    %v1597 = vpop.f32.mrf.mxu0
    %v1598 = vadd.f32 0.0, %v1597
    %1599 = vmatprep.mubr.bf16.mxu0 0
    %1600 = vmatmul.mubr.bf16.gmra.mxu0 %v1424
    %v1601 = vpop.f32.mrf.mxu0
    %v1602 = vadd.f32 0.0, %v1601
    %v1603 = vpop.f32.mrf.mxu0
    %v1604 = vadd.f32 0.0, %v1603
    %v1605 = vpop.f32.mrf.mxu0
    %v1606 = vadd.f32 0.0, %v1605
    %v1607 = vpop.f32.mrf.mxu0
    %v1608 = vadd.f32 0.0, %v1607
    %1609 = vmatprep.mubr.bf16.mxu0 0
    %1610 = vmatmul.mubr.bf16.gmra.mxu0 %v1426
    %v1611 = vpop.f32.mrf.mxu0
    %v1612 = vadd.f32 0.0, %v1611
    %v1613 = vpop.f32.mrf.mxu0
    %v1614 = vadd.f32 0.0, %v1613
    %v1615 = vpop.f32.mrf.mxu0
    %v1616 = vadd.f32 0.0, %v1615
    %v1617 = vpop.f32.mrf.mxu0
    %v1618 = vadd.f32 0.0, %v1617
    %1619 = vmatprep.mubr.bf16.mxu0 0
    %1620 = vmatmul.mubr.bf16.gmra.mxu0 %v1428
    %v1621 = vpop.f32.mrf.mxu0
    %v1622 = vadd.f32 0.0, %v1621
    %v1623 = vpop.f32.mrf.mxu0
    %v1624 = vadd.f32 0.0, %v1623
    %v1625 = vpop.f32.mrf.mxu0
    %v1626 = vadd.f32 0.0, %v1625
    %v1627 = vpop.f32.mrf.mxu0
    %v1628 = vadd.f32 0.0, %v1627
    %1629 = vdwg.mxu0
    %v1630 = vadd.f32 %v1358, %v1552
    %v1631 = vadd.f32 %v1359, %v1554
    %v1632 = vadd.f32 %v1360, %v1556
    %v1633 = vadd.f32 %v1361, %v1558
    %v1634 = vadd.f32 %v1362, %v1562
    %v1635 = vadd.f32 %v1363, %v1564
    %v1636 = vadd.f32 %v1364, %v1566
    %v1637 = vadd.f32 %v1365, %v1568
    %v1638 = vadd.f32 %v1366, %v1572
    %v1639 = vadd.f32 %v1367, %v1574
    %v1640 = vadd.f32 %v1368, %v1576
    %v1641 = vadd.f32 %v1369, %v1578
    %v1642 = vadd.f32 %v1370, %v1582
    %v1643 = vadd.f32 %v1371, %v1584
    %v1644 = vadd.f32 %v1372, %v1586
    %v1645 = vadd.f32 %v1373, %v1588
    %v1646 = vadd.f32 %v1374, %v1592
    %v1647 = vadd.f32 %v1375, %v1594
    %v1648 = vadd.f32 %v1376, %v1596
    %v1649 = vadd.f32 %v1377, %v1598
    %v1650 = vadd.f32 %v1378, %v1602
    %v1651 = vadd.f32 %v1379, %v1604
    %v1652 = vadd.f32 %v1380, %v1606
    %v1653 = vadd.f32 %v1381, %v1608
    %v1654 = vadd.f32 %v1382, %v1612
    %v1655 = vadd.f32 %v1383, %v1614
    %v1656 = vadd.f32 %v1384, %v1616
    %v1657 = vadd.f32 %v1385, %v1618
    %v1658 = vadd.f32 %v1386, %v1622
    %v1659 = vadd.f32 %v1387, %v1624
    %v1660 = vadd.f32 %v1388, %v1626
    %v1661 = vadd.f32 %v1389, %v1628
    %s1662 = scalar_lea.vmem [#allocation4], 640
    %v1663 = vld [vmem:[%s1662] sm:$0xff]
    %v1664 = vld [vmem:[%s1662 + $0x8] sm:$0xff]
    %v1665 = vld [vmem:[%s1662 + $0x10] sm:$0xff]
    %v1666 = vld [vmem:[%s1662 + $0x18] sm:$0xff]
    %v1667 = vld [vmem:[%s1662 + $0x20] sm:$0xff]
    %v1668 = vld [vmem:[%s1662 + $0x28] sm:$0xff]
    %v1669 = vld [vmem:[%s1662 + $0x30] sm:$0xff]
    %v1670 = vld [vmem:[%s1662 + $0x38] sm:$0xff]
    %v1671 = vld [vmem:[%s1662 + $0x40] sm:$0xff]
    %v1672 = vld [vmem:[%s1662 + $0x48] sm:$0xff]
    %v1673 = vld [vmem:[%s1662 + $0x50] sm:$0xff]
    %v1674 = vld [vmem:[%s1662 + $0x58] sm:$0xff]
    %v1675 = vld [vmem:[%s1662 + $0x60] sm:$0xff]
    %v1676 = vld [vmem:[%s1662 + $0x68] sm:$0xff]
    %v1677 = vld [vmem:[%s1662 + $0x70] sm:$0xff]
    %v1678 = vld [vmem:[%s1662 + $0x78] sm:$0xff]
    %s1679 = scalar_lea.vmem [#allocation4], 768
    %v1680 = vld [vmem:[%s1679] sm:$0xff]
    %v1681 = vld [vmem:[%s1679 + $0x8] sm:$0xff]
    %v1682 = vld [vmem:[%s1679 + $0x10] sm:$0xff]
    %v1683 = vld [vmem:[%s1679 + $0x18] sm:$0xff]
    %v1684 = vld [vmem:[%s1679 + $0x20] sm:$0xff]
    %v1685 = vld [vmem:[%s1679 + $0x28] sm:$0xff]
    %v1686 = vld [vmem:[%s1679 + $0x30] sm:$0xff]
    %v1687 = vld [vmem:[%s1679 + $0x38] sm:$0xff]
    %v1688 = vld [vmem:[%s1679 + $0x40] sm:$0xff]
    %v1689 = vld [vmem:[%s1679 + $0x48] sm:$0xff]
    %v1690 = vld [vmem:[%s1679 + $0x50] sm:$0xff]
    %v1691 = vld [vmem:[%s1679 + $0x58] sm:$0xff]
    %v1692 = vld [vmem:[%s1679 + $0x60] sm:$0xff]
    %v1693 = vld [vmem:[%s1679 + $0x68] sm:$0xff]
    %v1694 = vld [vmem:[%s1679 + $0x70] sm:$0xff]
    %v1695 = vld [vmem:[%s1679 + $0x78] sm:$0xff]
    %v1712 = vunpack.c.l.b16 %v1680
    %v1713 = vunpack.c.h.b16 %v1680
    %v1714 = vunpack.c.l.b16 %v1681
    %v1715 = vunpack.c.h.b16 %v1681
    %v1716 = vunpack.c.l.b16 %v1682
    %v1717 = vunpack.c.h.b16 %v1682
    %v1718 = vunpack.c.l.b16 %v1683
    %v1719 = vunpack.c.h.b16 %v1683
    %v1720 = vunpack.c.l.b16 %v1684
    %v1721 = vunpack.c.h.b16 %v1684
    %v1722 = vunpack.c.l.b16 %v1685
    %v1723 = vunpack.c.h.b16 %v1685
    %v1724 = vunpack.c.l.b16 %v1686
    %v1725 = vunpack.c.h.b16 %v1686
    %v1726 = vunpack.c.l.b16 %v1687
    %v1727 = vunpack.c.h.b16 %v1687
    %v1728 = vunpack.c.l.b16 %v1688
    %v1729 = vunpack.c.h.b16 %v1688
    %v1730 = vunpack.c.l.b16 %v1689
    %v1731 = vunpack.c.h.b16 %v1689
    %v1732 = vunpack.c.l.b16 %v1690
    %v1733 = vunpack.c.h.b16 %v1690
    %v1734 = vunpack.c.l.b16 %v1691
    %v1735 = vunpack.c.h.b16 %v1691
    %v1736 = vunpack.c.l.b16 %v1692
    %v1737 = vunpack.c.h.b16 %v1692
    %v1738 = vunpack.c.l.b16 %v1693
    %v1739 = vunpack.c.h.b16 %v1693
    %v1740 = vunpack.c.l.b16 %v1694
    %v1741 = vunpack.c.h.b16 %v1694
    %v1742 = vunpack.c.l.b16 %v1695
    %v1743 = vunpack.c.h.b16 %v1695
    %v1744 = vpack.c.b16 %v1714, %v1712
    %v1745 = vpack.c.b16 %v1715, %v1713
    %v1746 = vpack.c.b16 %v1718, %v1716
    %v1747 = vpack.c.b16 %v1719, %v1717
    %v1748 = vpack.c.b16 %v1722, %v1720
    %v1749 = vpack.c.b16 %v1723, %v1721
    %v1750 = vpack.c.b16 %v1726, %v1724
    %v1751 = vpack.c.b16 %v1727, %v1725
    %v1752 = vpack.c.b16 %v1730, %v1728
    %v1753 = vpack.c.b16 %v1731, %v1729
    %v1754 = vpack.c.b16 %v1734, %v1732
    %v1755 = vpack.c.b16 %v1735, %v1733
    %v1756 = vpack.c.b16 %v1738, %v1736
    %v1757 = vpack.c.b16 %v1739, %v1737
    %v1758 = vpack.c.b16 %v1742, %v1740
    %v1759 = vpack.c.b16 %v1743, %v1741
    %1776 = vmatprep.subr.bf16.mxu0 %v1759
    %1777 = vmatpush1.bf16.msra.mxu0 %v1758
    %1778 = vmatprep.subr.bf16.mxu0 %v1757
    %1779 = vmatpush1.bf16.msra.mxu0 %v1756
    %1780 = vmatprep.subr.bf16.mxu0 %v1755
    %1781 = vmatpush1.bf16.msra.mxu0 %v1754
    %1782 = vmatprep.subr.bf16.mxu0 %v1753
    %1783 = vmatpush1.bf16.msra.mxu0 %v1752
    %1784 = vmatprep.subr.bf16.mxu0 %v1751
    %1785 = vmatpush1.bf16.msra.mxu0 %v1750
    %1786 = vmatprep.subr.bf16.mxu0 %v1749
    %1787 = vmatpush1.bf16.msra.mxu0 %v1748
    %1788 = vmatprep.subr.bf16.mxu0 %v1747
    %1789 = vmatpush1.bf16.msra.mxu0 %v1746
    %1790 = vmatprep.subr.bf16.mxu0 %v1745
    %1791 = vmatpush1.bf16.msra.mxu0 %v1744
    %1792 = vmatprep.subr.bf16.mxu0 0
    %1793 = vmatpush2.bf16.msra.mxu0 0
    %1794 = vmatprep.subr.bf16.mxu0 0
    %1795 = vmatpush2.bf16.msra.mxu0 0
    %1796 = vmatprep.subr.bf16.mxu0 0
    %1797 = vmatpush2.bf16.msra.mxu0 0
    %1798 = vmatprep.subr.bf16.mxu0 0
    %1799 = vmatpush2.bf16.msra.mxu0 0
    %1800 = vmatprep.subr.bf16.mxu0 0
    %1801 = vmatpush2.bf16.msra.mxu0 0
    %1802 = vmatprep.subr.bf16.mxu0 0
    %1803 = vmatpush2.bf16.msra.mxu0 0
    %1804 = vmatprep.subr.bf16.mxu0 0
    %1805 = vmatpush2.bf16.msra.mxu0 0
    %1806 = vmatprep.subr.bf16.mxu0 0
    %1807 = vmatpush2.bf16.msra.mxu0 0
    %1808 = vmatprep.mubr.bf16.mxu0 0
    %1809 = vmatmul.mubr.bf16.gmra.mxu0 %v722
    %v1810 = vpop.f32.mrf.mxu0
    %v1811 = vadd.f32 0.0, %v1810
    %v1812 = vpop.f32.mrf.mxu0
    %v1813 = vadd.f32 0.0, %v1812
    %v1814 = vpop.f32.mrf.mxu0
    %v1815 = vadd.f32 0.0, %v1814
    %v1816 = vpop.f32.mrf.mxu0
    %v1817 = vadd.f32 0.0, %v1816
    %1818 = vmatprep.mubr.bf16.mxu0 0
    %1819 = vmatmul.mubr.bf16.gmra.mxu0 %v730
    %v1820 = vpop.f32.mrf.mxu0
    %v1821 = vadd.f32 0.0, %v1820
    %v1822 = vpop.f32.mrf.mxu0
    %v1823 = vadd.f32 0.0, %v1822
    %v1824 = vpop.f32.mrf.mxu0
    %v1825 = vadd.f32 0.0, %v1824
    %v1826 = vpop.f32.mrf.mxu0
    %v1827 = vadd.f32 0.0, %v1826
    %1828 = vmatprep.mubr.bf16.mxu0 0
    %1829 = vmatmul.mubr.bf16.gmra.mxu0 %v738
    %v1830 = vpop.f32.mrf.mxu0
    %v1831 = vadd.f32 0.0, %v1830
    %v1832 = vpop.f32.mrf.mxu0
    %v1833 = vadd.f32 0.0, %v1832
    %v1834 = vpop.f32.mrf.mxu0
    %v1835 = vadd.f32 0.0, %v1834
    %v1836 = vpop.f32.mrf.mxu0
    %v1837 = vadd.f32 0.0, %v1836
    %1838 = vmatprep.mubr.bf16.mxu0 0
    %1839 = vmatmul.mubr.bf16.gmra.mxu0 %v746
    %v1840 = vpop.f32.mrf.mxu0
    %v1841 = vadd.f32 0.0, %v1840
    %v1842 = vpop.f32.mrf.mxu0
    %v1843 = vadd.f32 0.0, %v1842
    %v1844 = vpop.f32.mrf.mxu0
    %v1845 = vadd.f32 0.0, %v1844
    %v1846 = vpop.f32.mrf.mxu0
    %v1847 = vadd.f32 0.0, %v1846
    %1848 = vmatprep.mubr.bf16.mxu0 0
    %1849 = vmatmul.mubr.bf16.gmra.mxu0 %v754
    %v1850 = vpop.f32.mrf.mxu0
    %v1851 = vadd.f32 0.0, %v1850
    %v1852 = vpop.f32.mrf.mxu0
    %v1853 = vadd.f32 0.0, %v1852
    %v1854 = vpop.f32.mrf.mxu0
    %v1855 = vadd.f32 0.0, %v1854
    %v1856 = vpop.f32.mrf.mxu0
    %v1857 = vadd.f32 0.0, %v1856
    %1858 = vmatprep.mubr.bf16.mxu0 0
    %1859 = vmatmul.mubr.bf16.gmra.mxu0 %v762
    %v1860 = vpop.f32.mrf.mxu0
    %v1861 = vadd.f32 0.0, %v1860
    %v1862 = vpop.f32.mrf.mxu0
    %v1863 = vadd.f32 0.0, %v1862
    %v1864 = vpop.f32.mrf.mxu0
    %v1865 = vadd.f32 0.0, %v1864
    %v1866 = vpop.f32.mrf.mxu0
    %v1867 = vadd.f32 0.0, %v1866
    %1868 = vmatprep.mubr.bf16.mxu0 0
    %1869 = vmatmul.mubr.bf16.gmra.mxu0 %v770
    %v1870 = vpop.f32.mrf.mxu0
    %v1871 = vadd.f32 0.0, %v1870
    %v1872 = vpop.f32.mrf.mxu0
    %v1873 = vadd.f32 0.0, %v1872
    %v1874 = vpop.f32.mrf.mxu0
    %v1875 = vadd.f32 0.0, %v1874
    %v1876 = vpop.f32.mrf.mxu0
    %v1877 = vadd.f32 0.0, %v1876
    %1878 = vmatprep.mubr.bf16.mxu0 0
    %1879 = vmatmul.mubr.bf16.gmra.mxu0 %v778
    %v1880 = vpop.f32.mrf.mxu0
    %v1881 = vadd.f32 0.0, %v1880
    %v1882 = vpop.f32.mrf.mxu0
    %v1883 = vadd.f32 0.0, %v1882
    %v1884 = vpop.f32.mrf.mxu0
    %v1885 = vadd.f32 0.0, %v1884
    %v1886 = vpop.f32.mrf.mxu0
    %v1887 = vadd.f32 0.0, %v1886
    %1888 = vdwg.mxu0
    %v1905 = vunpack.c.l.b16 %v1663
    %v1906 = vunpack.c.h.b16 %v1663
    %v1907 = vunpack.c.l.b16 %v1664
    %v1908 = vunpack.c.h.b16 %v1664
    %v1909 = vunpack.c.l.b16 %v1665
    %v1910 = vunpack.c.h.b16 %v1665
    %v1911 = vunpack.c.l.b16 %v1666
    %v1912 = vunpack.c.h.b16 %v1666
    %v1913 = vunpack.c.l.b16 %v1667
    %v1914 = vunpack.c.h.b16 %v1667
    %v1915 = vunpack.c.l.b16 %v1668
    %v1916 = vunpack.c.h.b16 %v1668
    %v1917 = vunpack.c.l.b16 %v1669
    %v1918 = vunpack.c.h.b16 %v1669
    %v1919 = vunpack.c.l.b16 %v1670
    %v1920 = vunpack.c.h.b16 %v1670
    %v1921 = vunpack.c.l.b16 %v1671
    %v1922 = vunpack.c.h.b16 %v1671
    %v1923 = vunpack.c.l.b16 %v1672
    %v1924 = vunpack.c.h.b16 %v1672
    %v1925 = vunpack.c.l.b16 %v1673
    %v1926 = vunpack.c.h.b16 %v1673
    %v1927 = vunpack.c.l.b16 %v1674
    %v1928 = vunpack.c.h.b16 %v1674
    %v1929 = vunpack.c.l.b16 %v1675
    %v1930 = vunpack.c.h.b16 %v1675
    %v1931 = vunpack.c.l.b16 %v1676
    %v1932 = vunpack.c.h.b16 %v1676
    %v1933 = vunpack.c.l.b16 %v1677
    %v1934 = vunpack.c.h.b16 %v1677
    %v1935 = vunpack.c.l.b16 %v1678
    %v1936 = vunpack.c.h.b16 %v1678
    %v1937 = vpack.c.b16 %v1907, %v1905
    %v1938 = vpack.c.b16 %v1908, %v1906
    %v1939 = vpack.c.b16 %v1911, %v1909
    %v1940 = vpack.c.b16 %v1912, %v1910
    %v1941 = vpack.c.b16 %v1915, %v1913
    %v1942 = vpack.c.b16 %v1916, %v1914
    %v1943 = vpack.c.b16 %v1919, %v1917
    %v1944 = vpack.c.b16 %v1920, %v1918
    %v1945 = vpack.c.b16 %v1923, %v1921
    %v1946 = vpack.c.b16 %v1924, %v1922
    %v1947 = vpack.c.b16 %v1927, %v1925
    %v1948 = vpack.c.b16 %v1928, %v1926
    %v1949 = vpack.c.b16 %v1931, %v1929
    %v1950 = vpack.c.b16 %v1932, %v1930
    %v1951 = vpack.c.b16 %v1935, %v1933
    %v1952 = vpack.c.b16 %v1936, %v1934
    %1969 = vmatprep.subr.bf16.mxu0 %v1952
    %1970 = vmatpush1.bf16.msra.mxu0 %v1951
    %1971 = vmatprep.subr.bf16.mxu0 %v1950
    %1972 = vmatpush1.bf16.msra.mxu0 %v1949
    %1973 = vmatprep.subr.bf16.mxu0 %v1948
    %1974 = vmatpush1.bf16.msra.mxu0 %v1947
    %1975 = vmatprep.subr.bf16.mxu0 %v1946
    %1976 = vmatpush1.bf16.msra.mxu0 %v1945
    %1977 = vmatprep.subr.bf16.mxu0 %v1944
    %1978 = vmatpush1.bf16.msra.mxu0 %v1943
    %1979 = vmatprep.subr.bf16.mxu0 %v1942
    %1980 = vmatpush1.bf16.msra.mxu0 %v1941
    %1981 = vmatprep.subr.bf16.mxu0 %v1940
    %1982 = vmatpush1.bf16.msra.mxu0 %v1939
    %1983 = vmatprep.subr.bf16.mxu0 %v1938
    %1984 = vmatpush1.bf16.msra.mxu0 %v1937
    %1985 = vmatprep.subr.bf16.mxu0 0
    %1986 = vmatpush2.bf16.msra.mxu0 0
    %1987 = vmatprep.subr.bf16.mxu0 0
    %1988 = vmatpush2.bf16.msra.mxu0 0
    %1989 = vmatprep.subr.bf16.mxu0 0
    %1990 = vmatpush2.bf16.msra.mxu0 0
    %1991 = vmatprep.subr.bf16.mxu0 0
    %1992 = vmatpush2.bf16.msra.mxu0 0
    %1993 = vmatprep.subr.bf16.mxu0 0
    %1994 = vmatpush2.bf16.msra.mxu0 0
    %1995 = vmatprep.subr.bf16.mxu0 0
    %1996 = vmatpush2.bf16.msra.mxu0 0
    %1997 = vmatprep.subr.bf16.mxu0 0
    %1998 = vmatpush2.bf16.msra.mxu0 0
    %1999 = vmatprep.subr.bf16.mxu0 0
    %2000 = vmatpush2.bf16.msra.mxu0 0
    %2001 = vmatprep.mubr.bf16.mxu0 0
    %2002 = vmatmul.mubr.bf16.gmra.mxu0 %v183
    %v2003 = vpop.f32.mrf.mxu0
    %v2004 = vadd.f32 %v1811, %v2003
    %v2005 = vpop.f32.mrf.mxu0
    %v2006 = vadd.f32 %v1813, %v2005
    %v2007 = vpop.f32.mrf.mxu0
    %v2008 = vadd.f32 %v1815, %v2007
    %v2009 = vpop.f32.mrf.mxu0
    %v2010 = vadd.f32 %v1817, %v2009
    %2011 = vmatprep.mubr.bf16.mxu0 0
    %2012 = vmatmul.mubr.bf16.gmra.mxu0 %v184
    %v2013 = vpop.f32.mrf.mxu0
    %v2014 = vadd.f32 %v1821, %v2013
    %v2015 = vpop.f32.mrf.mxu0
    %v2016 = vadd.f32 %v1823, %v2015
    %v2017 = vpop.f32.mrf.mxu0
    %v2018 = vadd.f32 %v1825, %v2017
    %v2019 = vpop.f32.mrf.mxu0
    %v2020 = vadd.f32 %v1827, %v2019
    %2021 = vmatprep.mubr.bf16.mxu0 0
    %2022 = vmatmul.mubr.bf16.gmra.mxu0 %v185
    %v2023 = vpop.f32.mrf.mxu0
    %v2024 = vadd.f32 %v1831, %v2023
    %v2025 = vpop.f32.mrf.mxu0
    %v2026 = vadd.f32 %v1833, %v2025
    %v2027 = vpop.f32.mrf.mxu0
    %v2028 = vadd.f32 %v1835, %v2027
    %v2029 = vpop.f32.mrf.mxu0
    %v2030 = vadd.f32 %v1837, %v2029
    %2031 = vmatprep.mubr.bf16.mxu0 0
    %2032 = vmatmul.mubr.bf16.gmra.mxu0 %v186
    %v2033 = vpop.f32.mrf.mxu0
    %v2034 = vadd.f32 %v1841, %v2033
    %v2035 = vpop.f32.mrf.mxu0
    %v2036 = vadd.f32 %v1843, %v2035
    %v2037 = vpop.f32.mrf.mxu0
    %v2038 = vadd.f32 %v1845, %v2037
    %v2039 = vpop.f32.mrf.mxu0
    %v2040 = vadd.f32 %v1847, %v2039
    %2041 = vmatprep.mubr.bf16.mxu0 0
    %2042 = vmatmul.mubr.bf16.gmra.mxu0 %v187
    %v2043 = vpop.f32.mrf.mxu0
    %v2044 = vadd.f32 %v1851, %v2043
    %v2045 = vpop.f32.mrf.mxu0
    %v2046 = vadd.f32 %v1853, %v2045
    %v2047 = vpop.f32.mrf.mxu0
    %v2048 = vadd.f32 %v1855, %v2047
    %v2049 = vpop.f32.mrf.mxu0
    %v2050 = vadd.f32 %v1857, %v2049
    %2051 = vmatprep.mubr.bf16.mxu0 0
    %2052 = vmatmul.mubr.bf16.gmra.mxu0 %v188
    %v2053 = vpop.f32.mrf.mxu0
    %v2054 = vadd.f32 %v1861, %v2053
    %v2055 = vpop.f32.mrf.mxu0
    %v2056 = vadd.f32 %v1863, %v2055
    %v2057 = vpop.f32.mrf.mxu0
    %v2058 = vadd.f32 %v1865, %v2057
    %v2059 = vpop.f32.mrf.mxu0
    %v2060 = vadd.f32 %v1867, %v2059
    %2061 = vmatprep.mubr.bf16.mxu0 0
    %2062 = vmatmul.mubr.bf16.gmra.mxu0 %v189
    %v2063 = vpop.f32.mrf.mxu0
    %v2064 = vadd.f32 %v1871, %v2063
    %v2065 = vpop.f32.mrf.mxu0
    %v2066 = vadd.f32 %v1873, %v2065
    %v2067 = vpop.f32.mrf.mxu0
    %v2068 = vadd.f32 %v1875, %v2067
    %v2069 = vpop.f32.mrf.mxu0
    %v2070 = vadd.f32 %v1877, %v2069
    %2071 = vmatprep.mubr.bf16.mxu0 0
    %2072 = vmatmul.mubr.bf16.gmra.mxu0 %v190
    %v2073 = vpop.f32.mrf.mxu0
    %v2074 = vadd.f32 %v1881, %v2073
    %v2075 = vpop.f32.mrf.mxu0
    %v2076 = vadd.f32 %v1883, %v2075
    %v2077 = vpop.f32.mrf.mxu0
    %v2078 = vadd.f32 %v1885, %v2077
    %v2079 = vpop.f32.mrf.mxu0
    %v2080 = vadd.f32 %v1887, %v2079
    %2081 = vdwg.mxu0
    %s2082 = scalar_lea.vmem [#allocation4], 896
    %v2083 = vld [vmem:[%s2082] sm:$0xff]
    %v2084 = vld [vmem:[%s2082 + $0x8] sm:$0xff]
    %v2085 = vld [vmem:[%s2082 + $0x10] sm:$0xff]
    %v2086 = vld [vmem:[%s2082 + $0x18] sm:$0xff]
    %v2087 = vld [vmem:[%s2082 + $0x20] sm:$0xff]
    %v2088 = vld [vmem:[%s2082 + $0x28] sm:$0xff]
    %v2089 = vld [vmem:[%s2082 + $0x30] sm:$0xff]
    %v2090 = vld [vmem:[%s2082 + $0x38] sm:$0xff]
    %v2091 = vld [vmem:[%s2082 + $0x40] sm:$0xff]
    %v2092 = vld [vmem:[%s2082 + $0x48] sm:$0xff]
    %v2093 = vld [vmem:[%s2082 + $0x50] sm:$0xff]
    %v2094 = vld [vmem:[%s2082 + $0x58] sm:$0xff]
    %v2095 = vld [vmem:[%s2082 + $0x60] sm:$0xff]
    %v2096 = vld [vmem:[%s2082 + $0x68] sm:$0xff]
    %v2097 = vld [vmem:[%s2082 + $0x70] sm:$0xff]
    %v2098 = vld [vmem:[%s2082 + $0x78] sm:$0xff]
    %v2115 = vunpack.c.l.b16 %v2083
    %v2116 = vunpack.c.h.b16 %v2083
    %v2117 = vunpack.c.l.b16 %v2084
    %v2118 = vunpack.c.h.b16 %v2084
    %v2119 = vunpack.c.l.b16 %v2085
    %v2120 = vunpack.c.h.b16 %v2085
    %v2121 = vunpack.c.l.b16 %v2086
    %v2122 = vunpack.c.h.b16 %v2086
    %v2123 = vunpack.c.l.b16 %v2087
    %v2124 = vunpack.c.h.b16 %v2087
    %v2125 = vunpack.c.l.b16 %v2088
    %v2126 = vunpack.c.h.b16 %v2088
    %v2127 = vunpack.c.l.b16 %v2089
    %v2128 = vunpack.c.h.b16 %v2089
    %v2129 = vunpack.c.l.b16 %v2090
    %v2130 = vunpack.c.h.b16 %v2090
    %v2131 = vunpack.c.l.b16 %v2091
    %v2132 = vunpack.c.h.b16 %v2091
    %v2133 = vunpack.c.l.b16 %v2092
    %v2134 = vunpack.c.h.b16 %v2092
    %v2135 = vunpack.c.l.b16 %v2093
    %v2136 = vunpack.c.h.b16 %v2093
    %v2137 = vunpack.c.l.b16 %v2094
    %v2138 = vunpack.c.h.b16 %v2094
    %v2139 = vunpack.c.l.b16 %v2095
    %v2140 = vunpack.c.h.b16 %v2095
    %v2141 = vunpack.c.l.b16 %v2096
    %v2142 = vunpack.c.h.b16 %v2096
    %v2143 = vunpack.c.l.b16 %v2097
    %v2144 = vunpack.c.h.b16 %v2097
    %v2145 = vunpack.c.l.b16 %v2098
    %v2146 = vunpack.c.h.b16 %v2098
    %v2147 = vpack.c.b16 %v2117, %v2115
    %v2148 = vpack.c.b16 %v2118, %v2116
    %v2149 = vpack.c.b16 %v2121, %v2119
    %v2150 = vpack.c.b16 %v2122, %v2120
    %v2151 = vpack.c.b16 %v2125, %v2123
    %v2152 = vpack.c.b16 %v2126, %v2124
    %v2153 = vpack.c.b16 %v2129, %v2127
    %v2154 = vpack.c.b16 %v2130, %v2128
    %v2155 = vpack.c.b16 %v2133, %v2131
    %v2156 = vpack.c.b16 %v2134, %v2132
    %v2157 = vpack.c.b16 %v2137, %v2135
    %v2158 = vpack.c.b16 %v2138, %v2136
    %v2159 = vpack.c.b16 %v2141, %v2139
    %v2160 = vpack.c.b16 %v2142, %v2140
    %v2161 = vpack.c.b16 %v2145, %v2143
    %v2162 = vpack.c.b16 %v2146, %v2144
    %2179 = vmatprep.subr.bf16.mxu0 %v2162
    %2180 = vmatpush1.bf16.msra.mxu0 %v2161
    %2181 = vmatprep.subr.bf16.mxu0 %v2160
    %2182 = vmatpush1.bf16.msra.mxu0 %v2159
    %2183 = vmatprep.subr.bf16.mxu0 %v2158
    %2184 = vmatpush1.bf16.msra.mxu0 %v2157
    %2185 = vmatprep.subr.bf16.mxu0 %v2156
    %2186 = vmatpush1.bf16.msra.mxu0 %v2155
    %2187 = vmatprep.subr.bf16.mxu0 %v2154
    %2188 = vmatpush1.bf16.msra.mxu0 %v2153
    %2189 = vmatprep.subr.bf16.mxu0 %v2152
    %2190 = vmatpush1.bf16.msra.mxu0 %v2151
    %2191 = vmatprep.subr.bf16.mxu0 %v2150
    %2192 = vmatpush1.bf16.msra.mxu0 %v2149
    %2193 = vmatprep.subr.bf16.mxu0 %v2148
    %2194 = vmatpush1.bf16.msra.mxu0 %v2147
    %2195 = vmatprep.subr.bf16.mxu0 0
    %2196 = vmatpush2.bf16.msra.mxu0 0
    %2197 = vmatprep.subr.bf16.mxu0 0
    %2198 = vmatpush2.bf16.msra.mxu0 0
    %2199 = vmatprep.subr.bf16.mxu0 0
    %2200 = vmatpush2.bf16.msra.mxu0 0
    %2201 = vmatprep.subr.bf16.mxu0 0
    %2202 = vmatpush2.bf16.msra.mxu0 0
    %2203 = vmatprep.subr.bf16.mxu0 0
    %2204 = vmatpush2.bf16.msra.mxu0 0
    %2205 = vmatprep.subr.bf16.mxu0 0
    %2206 = vmatpush2.bf16.msra.mxu0 0
    %2207 = vmatprep.subr.bf16.mxu0 0
    %2208 = vmatpush2.bf16.msra.mxu0 0
    %2209 = vmatprep.subr.bf16.mxu0 0
    %2210 = vmatpush2.bf16.msra.mxu0 0
    %2211 = vmatprep.mubr.bf16.mxu0 0
    %2212 = vmatmul.mubr.bf16.gmra.mxu0 %v1100
    %v2213 = vpop.f32.mrf.mxu0
    %v2214 = vadd.f32 0.0, %v2213
    %v2215 = vpop.f32.mrf.mxu0
    %v2216 = vadd.f32 0.0, %v2215
    %v2217 = vpop.f32.mrf.mxu0
    %v2218 = vadd.f32 0.0, %v2217
    %v2219 = vpop.f32.mrf.mxu0
    %v2220 = vadd.f32 0.0, %v2219
    %2221 = vmatprep.mubr.bf16.mxu0 0
    %2222 = vmatmul.mubr.bf16.gmra.mxu0 %v1108
    %v2223 = vpop.f32.mrf.mxu0
    %v2224 = vadd.f32 0.0, %v2223
    %v2225 = vpop.f32.mrf.mxu0
    %v2226 = vadd.f32 0.0, %v2225
    %v2227 = vpop.f32.mrf.mxu0
    %v2228 = vadd.f32 0.0, %v2227
    %v2229 = vpop.f32.mrf.mxu0
    %v2230 = vadd.f32 0.0, %v2229
    %2231 = vmatprep.mubr.bf16.mxu0 0
    %2232 = vmatmul.mubr.bf16.gmra.mxu0 %v1116
    %v2233 = vpop.f32.mrf.mxu0
    %v2234 = vadd.f32 0.0, %v2233
    %v2235 = vpop.f32.mrf.mxu0
    %v2236 = vadd.f32 0.0, %v2235
    %v2237 = vpop.f32.mrf.mxu0
    %v2238 = vadd.f32 0.0, %v2237
    %v2239 = vpop.f32.mrf.mxu0
    %v2240 = vadd.f32 0.0, %v2239
    %2241 = vmatprep.mubr.bf16.mxu0 0
    %2242 = vmatmul.mubr.bf16.gmra.mxu0 %v1124
    %v2243 = vpop.f32.mrf.mxu0
    %v2244 = vadd.f32 0.0, %v2243
    %v2245 = vpop.f32.mrf.mxu0
    %v2246 = vadd.f32 0.0, %v2245
    %v2247 = vpop.f32.mrf.mxu0
    %v2248 = vadd.f32 0.0, %v2247
    %v2249 = vpop.f32.mrf.mxu0
    %v2250 = vadd.f32 0.0, %v2249
    %2251 = vmatprep.mubr.bf16.mxu0 0
    %2252 = vmatmul.mubr.bf16.gmra.mxu0 %v1132
    %v2253 = vpop.f32.mrf.mxu0
    %v2254 = vadd.f32 0.0, %v2253
    %v2255 = vpop.f32.mrf.mxu0
    %v2256 = vadd.f32 0.0, %v2255
    %v2257 = vpop.f32.mrf.mxu0
    %v2258 = vadd.f32 0.0, %v2257
    %v2259 = vpop.f32.mrf.mxu0
    %v2260 = vadd.f32 0.0, %v2259
    %2261 = vmatprep.mubr.bf16.mxu0 0
    %2262 = vmatmul.mubr.bf16.gmra.mxu0 %v1140
    %v2263 = vpop.f32.mrf.mxu0
    %v2264 = vadd.f32 0.0, %v2263
    %v2265 = vpop.f32.mrf.mxu0
    %v2266 = vadd.f32 0.0, %v2265
    %v2267 = vpop.f32.mrf.mxu0
    %v2268 = vadd.f32 0.0, %v2267
    %v2269 = vpop.f32.mrf.mxu0
    %v2270 = vadd.f32 0.0, %v2269
    %2271 = vmatprep.mubr.bf16.mxu0 0
    %2272 = vmatmul.mubr.bf16.gmra.mxu0 %v1148
    %v2273 = vpop.f32.mrf.mxu0
    %v2274 = vadd.f32 0.0, %v2273
    %v2275 = vpop.f32.mrf.mxu0
    %v2276 = vadd.f32 0.0, %v2275
    %v2277 = vpop.f32.mrf.mxu0
    %v2278 = vadd.f32 0.0, %v2277
    %v2279 = vpop.f32.mrf.mxu0
    %v2280 = vadd.f32 0.0, %v2279
    %2281 = vmatprep.mubr.bf16.mxu0 0
    %2282 = vmatmul.mubr.bf16.gmra.mxu0 %v1156
    %v2283 = vpop.f32.mrf.mxu0
    %v2284 = vadd.f32 0.0, %v2283
    %v2285 = vpop.f32.mrf.mxu0
    %v2286 = vadd.f32 0.0, %v2285
    %v2287 = vpop.f32.mrf.mxu0
    %v2288 = vadd.f32 0.0, %v2287
    %v2289 = vpop.f32.mrf.mxu0
    %v2290 = vadd.f32 0.0, %v2289
    %2291 = vdwg.mxu0
    %v2292 = vadd.f32 %v2004, %v2214
    %v2293 = vadd.f32 %v2006, %v2216
    %v2294 = vadd.f32 %v2008, %v2218
    %v2295 = vadd.f32 %v2010, %v2220
    %v2296 = vadd.f32 %v2014, %v2224
    %v2297 = vadd.f32 %v2016, %v2226
    %v2298 = vadd.f32 %v2018, %v2228
    %v2299 = vadd.f32 %v2020, %v2230
    %v2300 = vadd.f32 %v2024, %v2234
    %v2301 = vadd.f32 %v2026, %v2236
    %v2302 = vadd.f32 %v2028, %v2238
    %v2303 = vadd.f32 %v2030, %v2240
    %v2304 = vadd.f32 %v2034, %v2244
    %v2305 = vadd.f32 %v2036, %v2246
    %v2306 = vadd.f32 %v2038, %v2248
    %v2307 = vadd.f32 %v2040, %v2250
    %v2308 = vadd.f32 %v2044, %v2254
    %v2309 = vadd.f32 %v2046, %v2256
    %v2310 = vadd.f32 %v2048, %v2258
    %v2311 = vadd.f32 %v2050, %v2260
    %v2312 = vadd.f32 %v2054, %v2264
    %v2313 = vadd.f32 %v2056, %v2266
    %v2314 = vadd.f32 %v2058, %v2268
    %v2315 = vadd.f32 %v2060, %v2270
    %v2316 = vadd.f32 %v2064, %v2274
    %v2317 = vadd.f32 %v2066, %v2276
    %v2318 = vadd.f32 %v2068, %v2278
    %v2319 = vadd.f32 %v2070, %v2280
    %v2320 = vadd.f32 %v2074, %v2284
    %v2321 = vadd.f32 %v2076, %v2286
    %v2322 = vadd.f32 %v2078, %v2288
    %v2323 = vadd.f32 %v2080, %v2290
    %s2324 = scalar_lea.vmem [#allocation4], 1024
    %v2325 = vld [vmem:[%s2324] sm:$0xff]
    %v2326 = vld [vmem:[%s2324 + $0x8] sm:$0xff]
    %v2327 = vld [vmem:[%s2324 + $0x10] sm:$0xff]
    %v2328 = vld [vmem:[%s2324 + $0x18] sm:$0xff]
    %v2329 = vld [vmem:[%s2324 + $0x20] sm:$0xff]
    %v2330 = vld [vmem:[%s2324 + $0x28] sm:$0xff]
    %v2331 = vld [vmem:[%s2324 + $0x30] sm:$0xff]
    %v2332 = vld [vmem:[%s2324 + $0x38] sm:$0xff]
    %v2333 = vld [vmem:[%s2324 + $0x40] sm:$0xff]
    %v2334 = vld [vmem:[%s2324 + $0x48] sm:$0xff]
    %v2335 = vld [vmem:[%s2324 + $0x50] sm:$0xff]
    %v2336 = vld [vmem:[%s2324 + $0x58] sm:$0xff]
    %v2337 = vld [vmem:[%s2324 + $0x60] sm:$0xff]
    %v2338 = vld [vmem:[%s2324 + $0x68] sm:$0xff]
    %v2339 = vld [vmem:[%s2324 + $0x70] sm:$0xff]
    %v2340 = vld [vmem:[%s2324 + $0x78] sm:$0xff]
    %v2357 = vunpack.c.l.b16 %v2325
    %v2358 = vunpack.c.h.b16 %v2325
    %v2359 = vunpack.c.l.b16 %v2326
    %v2360 = vunpack.c.h.b16 %v2326
    %v2361 = vunpack.c.l.b16 %v2327
    %v2362 = vunpack.c.h.b16 %v2327
    %v2363 = vunpack.c.l.b16 %v2328
    %v2364 = vunpack.c.h.b16 %v2328
    %v2365 = vunpack.c.l.b16 %v2329
    %v2366 = vunpack.c.h.b16 %v2329
    %v2367 = vunpack.c.l.b16 %v2330
    %v2368 = vunpack.c.h.b16 %v2330
    %v2369 = vunpack.c.l.b16 %v2331
    %v2370 = vunpack.c.h.b16 %v2331
    %v2371 = vunpack.c.l.b16 %v2332
    %v2372 = vunpack.c.h.b16 %v2332
    %v2373 = vunpack.c.l.b16 %v2333
    %v2374 = vunpack.c.h.b16 %v2333
    %v2375 = vunpack.c.l.b16 %v2334
    %v2376 = vunpack.c.h.b16 %v2334
    %v2377 = vunpack.c.l.b16 %v2335
    %v2378 = vunpack.c.h.b16 %v2335
    %v2379 = vunpack.c.l.b16 %v2336
    %v2380 = vunpack.c.h.b16 %v2336
    %v2381 = vunpack.c.l.b16 %v2337
    %v2382 = vunpack.c.h.b16 %v2337
    %v2383 = vunpack.c.l.b16 %v2338
    %v2384 = vunpack.c.h.b16 %v2338
    %v2385 = vunpack.c.l.b16 %v2339
    %v2386 = vunpack.c.h.b16 %v2339
    %v2387 = vunpack.c.l.b16 %v2340
    %v2388 = vunpack.c.h.b16 %v2340
    %v2389 = vpack.c.b16 %v2359, %v2357
    %v2390 = vpack.c.b16 %v2360, %v2358
    %v2391 = vpack.c.b16 %v2363, %v2361
    %v2392 = vpack.c.b16 %v2364, %v2362
    %v2393 = vpack.c.b16 %v2367, %v2365
    %v2394 = vpack.c.b16 %v2368, %v2366
    %v2395 = vpack.c.b16 %v2371, %v2369
    %v2396 = vpack.c.b16 %v2372, %v2370
    %v2397 = vpack.c.b16 %v2375, %v2373
    %v2398 = vpack.c.b16 %v2376, %v2374
    %v2399 = vpack.c.b16 %v2379, %v2377
    %v2400 = vpack.c.b16 %v2380, %v2378
    %v2401 = vpack.c.b16 %v2383, %v2381
    %v2402 = vpack.c.b16 %v2384, %v2382
    %v2403 = vpack.c.b16 %v2387, %v2385
    %v2404 = vpack.c.b16 %v2388, %v2386
    %2421 = vmatprep.subr.bf16.mxu0 %v2404
    %2422 = vmatpush1.bf16.msra.mxu0 %v2403
    %2423 = vmatprep.subr.bf16.mxu0 %v2402
    %2424 = vmatpush1.bf16.msra.mxu0 %v2401
    %2425 = vmatprep.subr.bf16.mxu0 %v2400
    %2426 = vmatpush1.bf16.msra.mxu0 %v2399
    %2427 = vmatprep.subr.bf16.mxu0 %v2398
    %2428 = vmatpush1.bf16.msra.mxu0 %v2397
    %2429 = vmatprep.subr.bf16.mxu0 %v2396
    %2430 = vmatpush1.bf16.msra.mxu0 %v2395
    %2431 = vmatprep.subr.bf16.mxu0 %v2394
    %2432 = vmatpush1.bf16.msra.mxu0 %v2393
    %2433 = vmatprep.subr.bf16.mxu0 %v2392
    %2434 = vmatpush1.bf16.msra.mxu0 %v2391
    %2435 = vmatprep.subr.bf16.mxu0 %v2390
    %2436 = vmatpush1.bf16.msra.mxu0 %v2389
    %2437 = vmatprep.subr.bf16.mxu0 0
    %2438 = vmatpush2.bf16.msra.mxu0 0
    %2439 = vmatprep.subr.bf16.mxu0 0
    %2440 = vmatpush2.bf16.msra.mxu0 0
    %2441 = vmatprep.subr.bf16.mxu0 0
    %2442 = vmatpush2.bf16.msra.mxu0 0
    %2443 = vmatprep.subr.bf16.mxu0 0
    %2444 = vmatpush2.bf16.msra.mxu0 0
    %2445 = vmatprep.subr.bf16.mxu0 0
    %2446 = vmatpush2.bf16.msra.mxu0 0
    %2447 = vmatprep.subr.bf16.mxu0 0
    %2448 = vmatpush2.bf16.msra.mxu0 0
    %2449 = vmatprep.subr.bf16.mxu0 0
    %2450 = vmatpush2.bf16.msra.mxu0 0
    %2451 = vmatprep.subr.bf16.mxu0 0
    %2452 = vmatpush2.bf16.msra.mxu0 0
    %2453 = vmatprep.mubr.bf16.mxu0 0
    %2454 = vmatmul.mubr.bf16.gmra.mxu0 %v1414
    %v2455 = vpop.f32.mrf.mxu0
    %v2456 = vadd.f32 0.0, %v2455
    %v2457 = vpop.f32.mrf.mxu0
    %v2458 = vadd.f32 0.0, %v2457
    %v2459 = vpop.f32.mrf.mxu0
    %v2460 = vadd.f32 0.0, %v2459
    %v2461 = vpop.f32.mrf.mxu0
    %v2462 = vadd.f32 0.0, %v2461
    %2463 = vmatprep.mubr.bf16.mxu0 0
    %2464 = vmatmul.mubr.bf16.gmra.mxu0 %v1416
    %v2465 = vpop.f32.mrf.mxu0
    %v2466 = vadd.f32 0.0, %v2465
    %v2467 = vpop.f32.mrf.mxu0
    %v2468 = vadd.f32 0.0, %v2467
    %v2469 = vpop.f32.mrf.mxu0
    %v2470 = vadd.f32 0.0, %v2469
    %v2471 = vpop.f32.mrf.mxu0
    %v2472 = vadd.f32 0.0, %v2471
    %2473 = vmatprep.mubr.bf16.mxu0 0
    %2474 = vmatmul.mubr.bf16.gmra.mxu0 %v1418
    %v2475 = vpop.f32.mrf.mxu0
    %v2476 = vadd.f32 0.0, %v2475
    %v2477 = vpop.f32.mrf.mxu0
    %v2478 = vadd.f32 0.0, %v2477
    %v2479 = vpop.f32.mrf.mxu0
    %v2480 = vadd.f32 0.0, %v2479
    %v2481 = vpop.f32.mrf.mxu0
    %v2482 = vadd.f32 0.0, %v2481
    %2483 = vmatprep.mubr.bf16.mxu0 0
    %2484 = vmatmul.mubr.bf16.gmra.mxu0 %v1420
    %v2485 = vpop.f32.mrf.mxu0
    %v2486 = vadd.f32 0.0, %v2485
    %v2487 = vpop.f32.mrf.mxu0
    %v2488 = vadd.f32 0.0, %v2487
    %v2489 = vpop.f32.mrf.mxu0
    %v2490 = vadd.f32 0.0, %v2489
    %v2491 = vpop.f32.mrf.mxu0
    %v2492 = vadd.f32 0.0, %v2491
    %2493 = vmatprep.mubr.bf16.mxu0 0
    %2494 = vmatmul.mubr.bf16.gmra.mxu0 %v1422
    %v2495 = vpop.f32.mrf.mxu0
    %v2496 = vadd.f32 0.0, %v2495
    %v2497 = vpop.f32.mrf.mxu0
    %v2498 = vadd.f32 0.0, %v2497
    %v2499 = vpop.f32.mrf.mxu0
    %v2500 = vadd.f32 0.0, %v2499
    %v2501 = vpop.f32.mrf.mxu0
    %v2502 = vadd.f32 0.0, %v2501
    %2503 = vmatprep.mubr.bf16.mxu0 0
    %2504 = vmatmul.mubr.bf16.gmra.mxu0 %v1424
    %v2505 = vpop.f32.mrf.mxu0
    %v2506 = vadd.f32 0.0, %v2505
    %v2507 = vpop.f32.mrf.mxu0
    %v2508 = vadd.f32 0.0, %v2507
    %v2509 = vpop.f32.mrf.mxu0
    %v2510 = vadd.f32 0.0, %v2509
    %v2511 = vpop.f32.mrf.mxu0
    %v2512 = vadd.f32 0.0, %v2511
    %2513 = vmatprep.mubr.bf16.mxu0 0
    %2514 = vmatmul.mubr.bf16.gmra.mxu0 %v1426
    %v2515 = vpop.f32.mrf.mxu0
    %v2516 = vadd.f32 0.0, %v2515
    %v2517 = vpop.f32.mrf.mxu0
    %v2518 = vadd.f32 0.0, %v2517
    %v2519 = vpop.f32.mrf.mxu0
    %v2520 = vadd.f32 0.0, %v2519
    %v2521 = vpop.f32.mrf.mxu0
    %v2522 = vadd.f32 0.0, %v2521
    %2523 = vmatprep.mubr.bf16.mxu0 0
    %2524 = vmatmul.mubr.bf16.gmra.mxu0 %v1428
    %v2525 = vpop.f32.mrf.mxu0
    %v2526 = vadd.f32 0.0, %v2525
    %v2527 = vpop.f32.mrf.mxu0
    %v2528 = vadd.f32 0.0, %v2527
    %v2529 = vpop.f32.mrf.mxu0
    %v2530 = vadd.f32 0.0, %v2529
    %v2531 = vpop.f32.mrf.mxu0
    %v2532 = vadd.f32 0.0, %v2531
    %2533 = vdwg.mxu0
    %v2534 = vadd.f32 %v2292, %v2456
    %v2535 = vadd.f32 %v2293, %v2458
    %v2536 = vadd.f32 %v2294, %v2460
    %v2537 = vadd.f32 %v2295, %v2462
    %v2538 = vadd.f32 %v2296, %v2466
    %v2539 = vadd.f32 %v2297, %v2468
    %v2540 = vadd.f32 %v2298, %v2470
    %v2541 = vadd.f32 %v2299, %v2472
    %v2542 = vadd.f32 %v2300, %v2476
    %v2543 = vadd.f32 %v2301, %v2478
    %v2544 = vadd.f32 %v2302, %v2480
    %v2545 = vadd.f32 %v2303, %v2482
    %v2546 = vadd.f32 %v2304, %v2486
    %v2547 = vadd.f32 %v2305, %v2488
    %v2548 = vadd.f32 %v2306, %v2490
    %v2549 = vadd.f32 %v2307, %v2492
    %v2550 = vadd.f32 %v2308, %v2496
    %v2551 = vadd.f32 %v2309, %v2498
    %v2552 = vadd.f32 %v2310, %v2500
    %v2553 = vadd.f32 %v2311, %v2502
    %v2554 = vadd.f32 %v2312, %v2506
    %v2555 = vadd.f32 %v2313, %v2508
    %v2556 = vadd.f32 %v2314, %v2510
    %v2557 = vadd.f32 %v2315, %v2512
    %v2558 = vadd.f32 %v2316, %v2516
    %v2559 = vadd.f32 %v2317, %v2518
    %v2560 = vadd.f32 %v2318, %v2520
    %v2561 = vadd.f32 %v2319, %v2522
    %v2562 = vadd.f32 %v2320, %v2526
    %v2563 = vadd.f32 %v2321, %v2528
    %v2564 = vadd.f32 %v2322, %v2530
    %v2565 = vadd.f32 %v2323, %v2532
    %v2566 = vld [vmem:[%s1] sm:$0xe]
    %s2567 = scalar_lea.vmem [#allocation4], 1152
    %v2568 = vld [vmem:[%s2567] sm:$0xff]
    %v2569 = vld [vmem:[%s2567 + $0x8] sm:$0xff]
    %v2570 = vld [vmem:[%s2567 + $0x10] sm:$0xff]
    %v2571 = vld [vmem:[%s2567 + $0x18] sm:$0xff]
    %v2572 = vld [vmem:[%s2567 + $0x20] sm:$0xff]
    %v2573 = vld [vmem:[%s2567 + $0x28] sm:$0xff]
    %v2574 = vld [vmem:[%s2567 + $0x30] sm:$0xff]
    %v2575 = vld [vmem:[%s2567 + $0x38] sm:$0xff]
    %v2576 = vld [vmem:[%s2567 + $0x40] sm:$0xff]
    %v2577 = vld [vmem:[%s2567 + $0x48] sm:$0xff]
    %v2578 = vld [vmem:[%s2567 + $0x50] sm:$0xff]
    %v2579 = vld [vmem:[%s2567 + $0x58] sm:$0xff]
    %v2580 = vld [vmem:[%s2567 + $0x60] sm:$0xff]
    %v2581 = vld [vmem:[%s2567 + $0x68] sm:$0xff]
    %v2582 = vld [vmem:[%s2567 + $0x70] sm:$0xff]
    %v2583 = vld [vmem:[%s2567 + $0x78] sm:$0xff]
    %v2585 = vunpack.c.l.b16 %v2566
    %v2586 = vpack.c.b16 %v1064, %v2585
    %v2587 = vrot.slane %v2586, 1
    %v2588 = vrot.slane %v1081, 1
    %v2589 = vsel %vm1411, %v2587, %v2588
    %v2590 = vrot.slane %v1082, 1
    %v2591 = vsel %vm1411, %v2588, %v2590
    %v2592 = vrot.slane %v1083, 1
    %v2593 = vsel %vm1411, %v2590, %v2592
    %v2594 = vrot.slane %v1084, 1
    %v2595 = vsel %vm1411, %v2592, %v2594
    %v2596 = vrot.slane %v1085, 1
    %v2597 = vsel %vm1411, %v2594, %v2596
    %v2598 = vrot.slane %v1086, 1
    %v2599 = vsel %vm1411, %v2596, %v2598
    %v2600 = vrot.slane %v1087, 1
    %v2601 = vsel %vm1411, %v2598, %v2600
    %v2602 = vrot.slane %v1088, 1
    %v2603 = vsel %vm1411, %v2600, %v2602
    %v2628 = vunpack.c.l.b16 %v2568
    %v2629 = vunpack.c.h.b16 %v2568
    %v2630 = vunpack.c.l.b16 %v2569
    %v2631 = vunpack.c.h.b16 %v2569
    %v2632 = vunpack.c.l.b16 %v2570
    %v2633 = vunpack.c.h.b16 %v2570
    %v2634 = vunpack.c.l.b16 %v2571
    %v2635 = vunpack.c.h.b16 %v2571
    %v2636 = vunpack.c.l.b16 %v2572
    %v2637 = vunpack.c.h.b16 %v2572
    %v2638 = vunpack.c.l.b16 %v2573
    %v2639 = vunpack.c.h.b16 %v2573
    %v2640 = vunpack.c.l.b16 %v2574
    %v2641 = vunpack.c.h.b16 %v2574
    %v2642 = vunpack.c.l.b16 %v2575
    %v2643 = vunpack.c.h.b16 %v2575
    %v2644 = vunpack.c.l.b16 %v2576
    %v2645 = vunpack.c.h.b16 %v2576
    %v2646 = vunpack.c.l.b16 %v2577
    %v2647 = vunpack.c.h.b16 %v2577
    %v2648 = vunpack.c.l.b16 %v2578
    %v2649 = vunpack.c.h.b16 %v2578
    %v2650 = vunpack.c.l.b16 %v2579
    %v2651 = vunpack.c.h.b16 %v2579
    %v2652 = vunpack.c.l.b16 %v2580
    %v2653 = vunpack.c.h.b16 %v2580
    %v2654 = vunpack.c.l.b16 %v2581
    %v2655 = vunpack.c.h.b16 %v2581
    %v2656 = vunpack.c.l.b16 %v2582
    %v2657 = vunpack.c.h.b16 %v2582
    %v2658 = vunpack.c.l.b16 %v2583
    %v2659 = vunpack.c.h.b16 %v2583
    %v2660 = vpack.c.b16 %v2630, %v2628
    %v2661 = vpack.c.b16 %v2631, %v2629
    %v2662 = vpack.c.b16 %v2634, %v2632
    %v2663 = vpack.c.b16 %v2635, %v2633
    %v2664 = vpack.c.b16 %v2638, %v2636
    %v2665 = vpack.c.b16 %v2639, %v2637
    %v2666 = vpack.c.b16 %v2642, %v2640
    %v2667 = vpack.c.b16 %v2643, %v2641
    %v2668 = vpack.c.b16 %v2646, %v2644
    %v2669 = vpack.c.b16 %v2647, %v2645
    %v2670 = vpack.c.b16 %v2650, %v2648
    %v2671 = vpack.c.b16 %v2651, %v2649
    %v2672 = vpack.c.b16 %v2654, %v2652
    %v2673 = vpack.c.b16 %v2655, %v2653
    %v2674 = vpack.c.b16 %v2658, %v2656
    %v2675 = vpack.c.b16 %v2659, %v2657
    %2692 = vmatprep.subr.bf16.mxu0 %v2675
    %2693 = vmatpush1.bf16.msra.mxu0 %v2674
    %2694 = vmatprep.subr.bf16.mxu0 %v2673
    %2695 = vmatpush1.bf16.msra.mxu0 %v2672
    %2696 = vmatprep.subr.bf16.mxu0 %v2671
    %2697 = vmatpush1.bf16.msra.mxu0 %v2670
    %2698 = vmatprep.subr.bf16.mxu0 %v2669
    %2699 = vmatpush1.bf16.msra.mxu0 %v2668
    %2700 = vmatprep.subr.bf16.mxu0 %v2667
    %2701 = vmatpush1.bf16.msra.mxu0 %v2666
    %2702 = vmatprep.subr.bf16.mxu0 %v2665
    %2703 = vmatpush1.bf16.msra.mxu0 %v2664
    %2704 = vmatprep.subr.bf16.mxu0 %v2663
    %2705 = vmatpush1.bf16.msra.mxu0 %v2662
    %2706 = vmatprep.subr.bf16.mxu0 %v2661
    %2707 = vmatpush1.bf16.msra.mxu0 %v2660
    %2708 = vmatprep.subr.bf16.mxu0 0
    %2709 = vmatpush2.bf16.msra.mxu0 0
    %2710 = vmatprep.subr.bf16.mxu0 0
    %2711 = vmatpush2.bf16.msra.mxu0 0
    %2712 = vmatprep.subr.bf16.mxu0 0
    %2713 = vmatpush2.bf16.msra.mxu0 0
    %2714 = vmatprep.subr.bf16.mxu0 0
    %2715 = vmatpush2.bf16.msra.mxu0 0
    %2716 = vmatprep.subr.bf16.mxu0 0
    %2717 = vmatpush2.bf16.msra.mxu0 0
    %2718 = vmatprep.subr.bf16.mxu0 0
    %2719 = vmatpush2.bf16.msra.mxu0 0
    %2720 = vmatprep.subr.bf16.mxu0 0
    %2721 = vmatpush2.bf16.msra.mxu0 0
    %2722 = vmatprep.subr.bf16.mxu0 0
    %2723 = vmatpush2.bf16.msra.mxu0 0
    %2724 = vmatprep.mubr.bf16.mxu0 0
    %2725 = vmatmul.mubr.bf16.gmra.mxu0 %v2589
    %v2726 = vpop.f32.mrf.mxu0
    %v2727 = vadd.f32 0.0, %v2726
    %v2728 = vpop.f32.mrf.mxu0
    %v2729 = vadd.f32 0.0, %v2728
    %v2730 = vpop.f32.mrf.mxu0
    %v2731 = vadd.f32 0.0, %v2730
    %v2732 = vpop.f32.mrf.mxu0
    %v2733 = vadd.f32 0.0, %v2732
    %2734 = vmatprep.mubr.bf16.mxu0 0
    %2735 = vmatmul.mubr.bf16.gmra.mxu0 %v2591
    %v2736 = vpop.f32.mrf.mxu0
    %v2737 = vadd.f32 0.0, %v2736
    %v2738 = vpop.f32.mrf.mxu0
    %v2739 = vadd.f32 0.0, %v2738
    %v2740 = vpop.f32.mrf.mxu0
    %v2741 = vadd.f32 0.0, %v2740
    %v2742 = vpop.f32.mrf.mxu0
    %v2743 = vadd.f32 0.0, %v2742
    %2744 = vmatprep.mubr.bf16.mxu0 0
    %2745 = vmatmul.mubr.bf16.gmra.mxu0 %v2593
    %v2746 = vpop.f32.mrf.mxu0
    %v2747 = vadd.f32 0.0, %v2746
    %v2748 = vpop.f32.mrf.mxu0
    %v2749 = vadd.f32 0.0, %v2748
    %v2750 = vpop.f32.mrf.mxu0
    %v2751 = vadd.f32 0.0, %v2750
    %v2752 = vpop.f32.mrf.mxu0
    %v2753 = vadd.f32 0.0, %v2752
    %2754 = vmatprep.mubr.bf16.mxu0 0
    %2755 = vmatmul.mubr.bf16.gmra.mxu0 %v2595
    %v2756 = vpop.f32.mrf.mxu0
    %v2757 = vadd.f32 0.0, %v2756
    %v2758 = vpop.f32.mrf.mxu0
    %v2759 = vadd.f32 0.0, %v2758
    %v2760 = vpop.f32.mrf.mxu0
    %v2761 = vadd.f32 0.0, %v2760
    %v2762 = vpop.f32.mrf.mxu0
    %v2763 = vadd.f32 0.0, %v2762
    %2764 = vmatprep.mubr.bf16.mxu0 0
    %2765 = vmatmul.mubr.bf16.gmra.mxu0 %v2597
    %v2766 = vpop.f32.mrf.mxu0
    %v2767 = vadd.f32 0.0, %v2766
    %v2768 = vpop.f32.mrf.mxu0
    %v2769 = vadd.f32 0.0, %v2768
    %v2770 = vpop.f32.mrf.mxu0
    %v2771 = vadd.f32 0.0, %v2770
    %v2772 = vpop.f32.mrf.mxu0
    %v2773 = vadd.f32 0.0, %v2772
    %2774 = vmatprep.mubr.bf16.mxu0 0
    %2775 = vmatmul.mubr.bf16.gmra.mxu0 %v2599
    %v2776 = vpop.f32.mrf.mxu0
    %v2777 = vadd.f32 0.0, %v2776
    %v2778 = vpop.f32.mrf.mxu0
    %v2779 = vadd.f32 0.0, %v2778
    %v2780 = vpop.f32.mrf.mxu0
    %v2781 = vadd.f32 0.0, %v2780
    %v2782 = vpop.f32.mrf.mxu0
    %v2783 = vadd.f32 0.0, %v2782
    %2784 = vmatprep.mubr.bf16.mxu0 0
    %2785 = vmatmul.mubr.bf16.gmra.mxu0 %v2601
    %v2786 = vpop.f32.mrf.mxu0
    %v2787 = vadd.f32 0.0, %v2786
    %v2788 = vpop.f32.mrf.mxu0
    %v2789 = vadd.f32 0.0, %v2788
    %v2790 = vpop.f32.mrf.mxu0
    %v2791 = vadd.f32 0.0, %v2790
    %v2792 = vpop.f32.mrf.mxu0
    %v2793 = vadd.f32 0.0, %v2792
    %2794 = vmatprep.mubr.bf16.mxu0 0
    %2795 = vmatmul.mubr.bf16.gmra.mxu0 %v2603
    %v2796 = vpop.f32.mrf.mxu0
    %v2797 = vadd.f32 0.0, %v2796
    %v2798 = vpop.f32.mrf.mxu0
    %v2799 = vadd.f32 0.0, %v2798
    %v2800 = vpop.f32.mrf.mxu0
    %v2801 = vadd.f32 0.0, %v2800
    %v2802 = vpop.f32.mrf.mxu0
    %v2803 = vadd.f32 0.0, %v2802
    %2804 = vdwg.mxu0
    %v2805 = vadd.f32 %v2534, %v2727
    %v2806 = vadd.f32 %v2535, %v2729
    %v2807 = vadd.f32 %v2536, %v2731
    %v2808 = vadd.f32 %v2537, %v2733
    %v2809 = vadd.f32 %v2538, %v2737
    %v2810 = vadd.f32 %v2539, %v2739
    %v2811 = vadd.f32 %v2540, %v2741
    %v2812 = vadd.f32 %v2541, %v2743
    %v2813 = vadd.f32 %v2542, %v2747
    %v2814 = vadd.f32 %v2543, %v2749
    %v2815 = vadd.f32 %v2544, %v2751
    %v2816 = vadd.f32 %v2545, %v2753
    %v2817 = vadd.f32 %v2546, %v2757
    %v2818 = vadd.f32 %v2547, %v2759
    %v2819 = vadd.f32 %v2548, %v2761
    %v2820 = vadd.f32 %v2549, %v2763
    %v2821 = vadd.f32 %v2550, %v2767
    %v2822 = vadd.f32 %v2551, %v2769
    %v2823 = vadd.f32 %v2552, %v2771
    %v2824 = vadd.f32 %v2553, %v2773
    %v2825 = vadd.f32 %v2554, %v2777
    %v2826 = vadd.f32 %v2555, %v2779
    %v2827 = vadd.f32 %v2556, %v2781
    %v2828 = vadd.f32 %v2557, %v2783
    %v2829 = vadd.f32 %v2558, %v2787
    %v2830 = vadd.f32 %v2559, %v2789
    %v2831 = vadd.f32 %v2560, %v2791
    %v2832 = vadd.f32 %v2561, %v2793
    %v2833 = vadd.f32 %v2562, %v2797
    %v2834 = vadd.f32 %v2563, %v2799
    %v2835 = vadd.f32 %v2564, %v2801
    %v2836 = vadd.f32 %v2565, %v2803
    %v2837 = vld [vmem:[%s3] sm:$0x3]
    %v2839 = vlaneseq
    %v2840 = vshrl.u32 %v2839, 7
    %v2841 = vsub.s32 0, %v2840
    %v2842 = vrot.slane %v2837, %v2841
    %v2843 = vlaneseq
    %v2844 = vshrl.u32 %v2843, 7
    %v2845 = vsub.s32 1, %v2844
    %v2846 = vrot.slane %v2837, %v2845
    %v2849 = vadd.f32 %v1630, %v2842
    %v2850 = vadd.f32 %v1631, %v2846
    %v2851 = vadd.f32 %v1632, %v2842
    %v2852 = vadd.f32 %v1633, %v2846
    %v2853 = vadd.f32 %v1634, %v2842
    %v2854 = vadd.f32 %v1635, %v2846
    %v2855 = vadd.f32 %v1636, %v2842
    %v2856 = vadd.f32 %v1637, %v2846
    %v2857 = vadd.f32 %v1638, %v2842
    %v2858 = vadd.f32 %v1639, %v2846
    %v2859 = vadd.f32 %v1640, %v2842
    %v2860 = vadd.f32 %v1641, %v2846
    %v2861 = vadd.f32 %v1642, %v2842
    %v2862 = vadd.f32 %v1643, %v2846
    %v2863 = vadd.f32 %v1644, %v2842
    %v2864 = vadd.f32 %v1645, %v2846
    %v2865 = vadd.f32 %v1646, %v2842
    %v2866 = vadd.f32 %v1647, %v2846
    %v2867 = vadd.f32 %v1648, %v2842
    %v2868 = vadd.f32 %v1649, %v2846
    %v2869 = vadd.f32 %v1650, %v2842
    %v2870 = vadd.f32 %v1651, %v2846
    %v2871 = vadd.f32 %v1652, %v2842
    %v2872 = vadd.f32 %v1653, %v2846
    %v2873 = vadd.f32 %v1654, %v2842
    %v2874 = vadd.f32 %v1655, %v2846
    %v2875 = vadd.f32 %v1656, %v2842
    %v2876 = vadd.f32 %v1657, %v2846
    %v2877 = vadd.f32 %v1658, %v2842
    %v2878 = vadd.f32 %v1659, %v2846
    %v2879 = vadd.f32 %v1660, %v2842
    %v2880 = vadd.f32 %v1661, %v2846
    %v2881 = vtanh.pop %v2849
    %v2882 = vtanh.pop %v2850
    %v2883 = vtanh.pop %v2851
    %v2884 = vtanh.pop %v2852
    %v2885 = vtanh.pop %v2853
    %v2886 = vtanh.pop %v2854
    %v2887 = vtanh.pop %v2855
    %v2888 = vtanh.pop %v2856
    %v2889 = vtanh.pop %v2857
    %v2890 = vtanh.pop %v2858
    %v2891 = vtanh.pop %v2859
    %v2892 = vtanh.pop %v2860
    %v2893 = vtanh.pop %v2861
    %v2894 = vtanh.pop %v2862
    %v2895 = vtanh.pop %v2863
    %v2896 = vtanh.pop %v2864
    %v2897 = vtanh.pop %v2865
    %v2898 = vtanh.pop %v2866
    %v2899 = vtanh.pop %v2867
    %v2900 = vtanh.pop %v2868
    %v2901 = vtanh.pop %v2869
    %v2902 = vtanh.pop %v2870
    %v2903 = vtanh.pop %v2871
    %v2904 = vtanh.pop %v2872
    %v2905 = vtanh.pop %v2873
    %v2906 = vtanh.pop %v2874
    %v2907 = vtanh.pop %v2875
    %v2908 = vtanh.pop %v2876
    %v2909 = vtanh.pop %v2877
    %v2910 = vtanh.pop %v2878
    %v2911 = vtanh.pop %v2879
    %v2912 = vtanh.pop %v2880
    %v2913 = vadd.f32 %v2805, %v2842
    %v2914 = vadd.f32 %v2806, %v2846
    %v2915 = vadd.f32 %v2807, %v2842
    %v2916 = vadd.f32 %v2808, %v2846
    %v2917 = vadd.f32 %v2809, %v2842
    %v2918 = vadd.f32 %v2810, %v2846
    %v2919 = vadd.f32 %v2811, %v2842
    %v2920 = vadd.f32 %v2812, %v2846
    %v2921 = vadd.f32 %v2813, %v2842
    %v2922 = vadd.f32 %v2814, %v2846
    %v2923 = vadd.f32 %v2815, %v2842
    %v2924 = vadd.f32 %v2816, %v2846
    %v2925 = vadd.f32 %v2817, %v2842
    %v2926 = vadd.f32 %v2818, %v2846
    %v2927 = vadd.f32 %v2819, %v2842
    %v2928 = vadd.f32 %v2820, %v2846
    %v2929 = vadd.f32 %v2821, %v2842
    %v2930 = vadd.f32 %v2822, %v2846
    %v2931 = vadd.f32 %v2823, %v2842
    %v2932 = vadd.f32 %v2824, %v2846
    %v2933 = vadd.f32 %v2825, %v2842
    %v2934 = vadd.f32 %v2826, %v2846
    %v2935 = vadd.f32 %v2827, %v2842
    %v2936 = vadd.f32 %v2828, %v2846
    %v2937 = vadd.f32 %v2829, %v2842
    %v2938 = vadd.f32 %v2830, %v2846
    %v2939 = vadd.f32 %v2831, %v2842
    %v2940 = vadd.f32 %v2832, %v2846
    %v2941 = vadd.f32 %v2833, %v2842
    %v2942 = vadd.f32 %v2834, %v2846
    %v2943 = vadd.f32 %v2835, %v2842
    %v2944 = vadd.f32 %v2836, %v2846
    %v2945 = vtanh.pop %v2913
    %v2946 = vtanh.pop %v2914
    %v2947 = vtanh.pop %v2915
    %v2948 = vtanh.pop %v2916
    %v2949 = vtanh.pop %v2917
    %v2950 = vtanh.pop %v2918
    %v2951 = vtanh.pop %v2919
    %v2952 = vtanh.pop %v2920
    %v2953 = vtanh.pop %v2921
    %v2954 = vtanh.pop %v2922
    %v2955 = vtanh.pop %v2923
    %v2956 = vtanh.pop %v2924
    %v2957 = vtanh.pop %v2925
    %v2958 = vtanh.pop %v2926
    %v2959 = vtanh.pop %v2927
    %v2960 = vtanh.pop %v2928
    %v2961 = vtanh.pop %v2929
    %v2962 = vtanh.pop %v2930
    %v2963 = vtanh.pop %v2931
    %v2964 = vtanh.pop %v2932
    %v2965 = vtanh.pop %v2933
    %v2966 = vtanh.pop %v2934
    %v2967 = vtanh.pop %v2935
    %v2968 = vtanh.pop %v2936
    %v2969 = vtanh.pop %v2937
    %v2970 = vtanh.pop %v2938
    %v2971 = vtanh.pop %v2939
    %v2972 = vtanh.pop %v2940
    %v2973 = vtanh.pop %v2941
    %v2974 = vtanh.pop %v2942
    %v2975 = vtanh.pop %v2943
    %v2976 = vtanh.pop %v2944
    %v2977 = vadd.f32 %v2881, %v2945
    %v2978 = vadd.f32 %v2882, %v2946
    %v2979 = vadd.f32 %v2883, %v2947
    %v2980 = vadd.f32 %v2884, %v2948
    %v2981 = vadd.f32 %v2885, %v2949
    %v2982 = vadd.f32 %v2886, %v2950
    %v2983 = vadd.f32 %v2887, %v2951
    %v2984 = vadd.f32 %v2888, %v2952
    %v2985 = vadd.f32 %v2889, %v2953
    %v2986 = vadd.f32 %v2890, %v2954
    %v2987 = vadd.f32 %v2891, %v2955
    %v2988 = vadd.f32 %v2892, %v2956
    %v2989 = vadd.f32 %v2893, %v2957
    %v2990 = vadd.f32 %v2894, %v2958
    %v2991 = vadd.f32 %v2895, %v2959
    %v2992 = vadd.f32 %v2896, %v2960
    %v2993 = vadd.f32 %v2897, %v2961
    %v2994 = vadd.f32 %v2898, %v2962
    %v2995 = vadd.f32 %v2899, %v2963
    %v2996 = vadd.f32 %v2900, %v2964
    %v2997 = vadd.f32 %v2901, %v2965
    %v2998 = vadd.f32 %v2902, %v2966
    %v2999 = vadd.f32 %v2903, %v2967
    %v3000 = vadd.f32 %v2904, %v2968
    %v3001 = vadd.f32 %v2905, %v2969
    %v3002 = vadd.f32 %v2906, %v2970
    %v3003 = vadd.f32 %v2907, %v2971
    %v3004 = vadd.f32 %v2908, %v2972
    %v3005 = vadd.f32 %v2909, %v2973
    %v3006 = vadd.f32 %v2910, %v2974
    %v3007 = vadd.f32 %v2911, %v2975
    %v3008 = vadd.f32 %v2912, %v2976
    %v3009 = vpack.c.bf16 %v2979, %v2977
    %v3010 = vpack.c.bf16 %v2980, %v2978
    %v3011 = vpack.c.bf16 %v2983, %v2981
    %v3012 = vpack.c.bf16 %v2984, %v2982
    %v3013 = vpack.c.bf16 %v2987, %v2985
    %v3014 = vpack.c.bf16 %v2988, %v2986
    %v3015 = vpack.c.bf16 %v2991, %v2989
    %v3016 = vpack.c.bf16 %v2992, %v2990
    %v3017 = vpack.c.bf16 %v2995, %v2993
    %v3018 = vpack.c.bf16 %v2996, %v2994
    %v3019 = vpack.c.bf16 %v2999, %v2997
    %v3020 = vpack.c.bf16 %v3000, %v2998
    %v3021 = vpack.c.bf16 %v3003, %v3001
    %v3022 = vpack.c.bf16 %v3004, %v3002
    %v3023 = vpack.c.bf16 %v3007, %v3005
    %v3024 = vpack.c.bf16 %v3008, %v3006
    %v3041 = vunpack.c.l.b16 %v3009
    %v3042 = vunpack.c.l.b16 %v3010
    %v3043 = vunpack.c.h.b16 %v3009
    %v3044 = vunpack.c.h.b16 %v3010
    %v3045 = vunpack.c.l.b16 %v3011
    %v3046 = vunpack.c.l.b16 %v3012
    %v3047 = vunpack.c.h.b16 %v3011
    %v3048 = vunpack.c.h.b16 %v3012
    %v3049 = vunpack.c.l.b16 %v3013
    %v3050 = vunpack.c.l.b16 %v3014
    %v3051 = vunpack.c.h.b16 %v3013
    %v3052 = vunpack.c.h.b16 %v3014
    %v3053 = vunpack.c.l.b16 %v3015
    %v3054 = vunpack.c.l.b16 %v3016
    %v3055 = vunpack.c.h.b16 %v3015
    %v3056 = vunpack.c.h.b16 %v3016
    %v3057 = vunpack.c.l.b16 %v3017
    %v3058 = vunpack.c.l.b16 %v3018
    %v3059 = vunpack.c.h.b16 %v3017
    %v3060 = vunpack.c.h.b16 %v3018
    %v3061 = vunpack.c.l.b16 %v3019
    %v3062 = vunpack.c.l.b16 %v3020
    %v3063 = vunpack.c.h.b16 %v3019
    %v3064 = vunpack.c.h.b16 %v3020
    %v3065 = vunpack.c.l.b16 %v3021
    %v3066 = vunpack.c.l.b16 %v3022
    %v3067 = vunpack.c.h.b16 %v3021
    %v3068 = vunpack.c.h.b16 %v3022
    %v3069 = vunpack.c.l.b16 %v3023
    %v3070 = vunpack.c.l.b16 %v3024
    %v3071 = vunpack.c.h.b16 %v3023
    %v3072 = vunpack.c.h.b16 %v3024
    %v3073 = vpack.c.b16 %v3042, %v3041
    %v3074 = vpack.c.b16 %v3044, %v3043
    %v3075 = vpack.c.b16 %v3046, %v3045
    %v3076 = vpack.c.b16 %v3048, %v3047
    %v3077 = vpack.c.b16 %v3050, %v3049
    %v3078 = vpack.c.b16 %v3052, %v3051
    %v3079 = vpack.c.b16 %v3054, %v3053
    %v3080 = vpack.c.b16 %v3056, %v3055
    %v3081 = vpack.c.b16 %v3058, %v3057
    %v3082 = vpack.c.b16 %v3060, %v3059
    %v3083 = vpack.c.b16 %v3062, %v3061
    %v3084 = vpack.c.b16 %v3064, %v3063
    %v3085 = vpack.c.b16 %v3066, %v3065
    %v3086 = vpack.c.b16 %v3068, %v3067
    %v3087 = vpack.c.b16 %v3070, %v3069
    %v3088 = vpack.c.b16 %v3072, %v3071
    %3105 = vst [vmem:[#allocation2] sm:$0xff] %v3073
    %3106 = vst [vmem:[#allocation2 + $0x8] sm:$0xff] %v3074
    %3107 = vst [vmem:[#allocation2 + $0x10] sm:$0xff] %v3075
    %3108 = vst [vmem:[#allocation2 + $0x18] sm:$0xff] %v3076
    %3109 = vst [vmem:[#allocation2 + $0x20] sm:$0xff] %v3077
    %3110 = vst [vmem:[#allocation2 + $0x28] sm:$0xff] %v3078
    %3111 = vst [vmem:[#allocation2 + $0x30] sm:$0xff] %v3079
    %3112 = vst [vmem:[#allocation2 + $0x38] sm:$0xff] %v3080
    %3113 = vst [vmem:[#allocation2 + $0x40] sm:$0xff] %v3081
    %3114 = vst [vmem:[#allocation2 + $0x48] sm:$0xff] %v3082
    %3115 = vst [vmem:[#allocation2 + $0x50] sm:$0xff] %v3083
    %3116 = vst [vmem:[#allocation2 + $0x58] sm:$0xff] %v3084
    %3117 = vst [vmem:[#allocation2 + $0x60] sm:$0xff] %v3085
    %3118 = vst [vmem:[#allocation2 + $0x68] sm:$0xff] %v3086
    %3119 = vst [vmem:[#allocation2 + $0x70] sm:$0xff] %v3087
    %3120 = vst [vmem:[#allocation2 + $0x78] sm:$0xff] %v3088
    %3121 = vst [vmem:[#allocation2 + $0x80] sm:$0xff] 0
    %v3122 = vld [vmem:[#allocation2] sm:$0xff]
    %v3123 = vld [vmem:[#allocation2 + $0x8] sm:$0xff]
    %v3124 = vld [vmem:[#allocation2 + $0x10] sm:$0xff]
    %v3125 = vld [vmem:[#allocation2 + $0x18] sm:$0xff]
    %v3126 = vld [vmem:[#allocation2 + $0x20] sm:$0xff]
    %v3127 = vld [vmem:[#allocation2 + $0x28] sm:$0xff]
    %v3128 = vld [vmem:[#allocation2 + $0x30] sm:$0xff]
    %v3129 = vld [vmem:[#allocation2 + $0x38] sm:$0xff]
    %v3130 = vld [vmem:[#allocation2 + $0x40] sm:$0xff]
    %v3131 = vld [vmem:[#allocation2 + $0x48] sm:$0xff]
    %v3132 = vld [vmem:[#allocation2 + $0x50] sm:$0xff]
    %v3133 = vld [vmem:[#allocation2 + $0x58] sm:$0xff]
    %v3134 = vld [vmem:[#allocation2 + $0x60] sm:$0xff]
    %v3135 = vld [vmem:[#allocation2 + $0x68] sm:$0xff]
    %v3136 = vld [vmem:[#allocation2 + $0x70] sm:$0xff]
    %v3137 = vld [vmem:[#allocation2 + $0x78] sm:$0xff]
    %v3138 = vld [vmem:[#allocation6] sm:$0xff]
    %v3139 = vld [vmem:[#allocation6 + $0x8] sm:$0xff]
    %v3140 = vld [vmem:[#allocation6 + $0x10] sm:$0xff]
    %v3141 = vld [vmem:[#allocation6 + $0x18] sm:$0xff]
    %v3142 = vld [vmem:[#allocation6 + $0x20] sm:$0xff]
    %v3143 = vld [vmem:[#allocation6 + $0x28] sm:$0xff]
    %v3144 = vld [vmem:[#allocation6 + $0x30] sm:$0xff]
    %v3145 = vld [vmem:[#allocation6 + $0x38] sm:$0xff]
    %v3146 = vld [vmem:[#allocation6 + $0x40] sm:$0xff]
    %v3147 = vld [vmem:[#allocation6 + $0x48] sm:$0xff]
    %v3148 = vld [vmem:[#allocation6 + $0x50] sm:$0xff]
    %v3149 = vld [vmem:[#allocation6 + $0x58] sm:$0xff]
    %v3150 = vld [vmem:[#allocation6 + $0x60] sm:$0xff]
    %v3151 = vld [vmem:[#allocation6 + $0x68] sm:$0xff]
    %v3152 = vld [vmem:[#allocation6 + $0x70] sm:$0xff]
    %v3153 = vld [vmem:[#allocation6 + $0x78] sm:$0xff]
    %v3154 = vld [vmem:[#allocation6 + $0x80] sm:$0xff]
    %v3155 = vld [vmem:[#allocation6 + $0x88] sm:$0xff]
    %v3156 = vld [vmem:[#allocation6 + $0x90] sm:$0xff]
    %v3157 = vld [vmem:[#allocation6 + $0x98] sm:$0xff]
    %v3158 = vld [vmem:[#allocation6 + $0xa0] sm:$0xff]
    %v3159 = vld [vmem:[#allocation6 + $0xa8] sm:$0xff]
    %v3160 = vld [vmem:[#allocation6 + $0xb0] sm:$0xff]
    %v3161 = vld [vmem:[#allocation6 + $0xb8] sm:$0xff]
    %v3162 = vld [vmem:[#allocation6 + $0xc0] sm:$0xff]
    %v3163 = vld [vmem:[#allocation6 + $0xc8] sm:$0xff]
    %v3164 = vld [vmem:[#allocation6 + $0xd0] sm:$0xff]
    %v3165 = vld [vmem:[#allocation6 + $0xd8] sm:$0xff]
    %v3166 = vld [vmem:[#allocation6 + $0xe0] sm:$0xff]
    %v3167 = vld [vmem:[#allocation6 + $0xe8] sm:$0xff]
    %v3168 = vld [vmem:[#allocation6 + $0xf0] sm:$0xff]
    %v3169 = vld [vmem:[#allocation6 + $0xf8] sm:$0xff]
    %v3170 = vld [vmem:[#allocation2] sm:$0xff]
    %v3171 = vld [vmem:[#allocation2 + $0x8] sm:$0xff]
    %v3172 = vld [vmem:[#allocation2 + $0x10] sm:$0xff]
    %v3173 = vld [vmem:[#allocation2 + $0x18] sm:$0xff]
    %v3174 = vld [vmem:[#allocation2 + $0x20] sm:$0xff]
    %v3175 = vld [vmem:[#allocation2 + $0x28] sm:$0xff]
    %v3176 = vld [vmem:[#allocation2 + $0x30] sm:$0xff]
    %v3177 = vld [vmem:[#allocation2 + $0x38] sm:$0xff]
    %v3178 = vld [vmem:[#allocation2 + $0x40] sm:$0xff]
    %v3179 = vld [vmem:[#allocation2 + $0x48] sm:$0xff]
    %v3180 = vld [vmem:[#allocation2 + $0x50] sm:$0xff]
    %v3181 = vld [vmem:[#allocation2 + $0x58] sm:$0xff]
    %v3182 = vld [vmem:[#allocation2 + $0x60] sm:$0xff]
    %v3183 = vld [vmem:[#allocation2 + $0x68] sm:$0xff]
    %v3184 = vld [vmem:[#allocation2 + $0x70] sm:$0xff]
    %v3185 = vld [vmem:[#allocation2 + $0x78] sm:$0xff]
    %v3186 = vld [vmem:[#allocation2 + $0x80] sm:$0x11]
    %s3187 = scalar_lea.vmem [#allocation6], 256
    %v3188 = vld [vmem:[%s3187] sm:$0xff]
    %v3189 = vld [vmem:[%s3187 + $0x8] sm:$0xff]
    %v3190 = vld [vmem:[%s3187 + $0x10] sm:$0xff]
    %v3191 = vld [vmem:[%s3187 + $0x18] sm:$0xff]
    %v3192 = vld [vmem:[%s3187 + $0x20] sm:$0xff]
    %v3193 = vld [vmem:[%s3187 + $0x28] sm:$0xff]
    %v3194 = vld [vmem:[%s3187 + $0x30] sm:$0xff]
    %v3195 = vld [vmem:[%s3187 + $0x38] sm:$0xff]
    %v3196 = vld [vmem:[%s3187 + $0x40] sm:$0xff]
    %v3197 = vld [vmem:[%s3187 + $0x48] sm:$0xff]
    %v3198 = vld [vmem:[%s3187 + $0x50] sm:$0xff]
    %v3199 = vld [vmem:[%s3187 + $0x58] sm:$0xff]
    %v3200 = vld [vmem:[%s3187 + $0x60] sm:$0xff]
    %v3201 = vld [vmem:[%s3187 + $0x68] sm:$0xff]
    %v3202 = vld [vmem:[%s3187 + $0x70] sm:$0xff]
    %v3203 = vld [vmem:[%s3187 + $0x78] sm:$0xff]
    %v3204 = vld [vmem:[%s3187 + $0x80] sm:$0xff]
    %v3205 = vld [vmem:[%s3187 + $0x88] sm:$0xff]
    %v3206 = vld [vmem:[%s3187 + $0x90] sm:$0xff]
    %v3207 = vld [vmem:[%s3187 + $0x98] sm:$0xff]
    %v3208 = vld [vmem:[%s3187 + $0xa0] sm:$0xff]
    %v3209 = vld [vmem:[%s3187 + $0xa8] sm:$0xff]
    %v3210 = vld [vmem:[%s3187 + $0xb0] sm:$0xff]
    %v3211 = vld [vmem:[%s3187 + $0xb8] sm:$0xff]
    %v3212 = vld [vmem:[%s3187 + $0xc0] sm:$0xff]
    %v3213 = vld [vmem:[%s3187 + $0xc8] sm:$0xff]
    %v3214 = vld [vmem:[%s3187 + $0xd0] sm:$0xff]
    %v3215 = vld [vmem:[%s3187 + $0xd8] sm:$0xff]
    %v3216 = vld [vmem:[%s3187 + $0xe0] sm:$0xff]
    %v3217 = vld [vmem:[%s3187 + $0xe8] sm:$0xff]
    %v3218 = vld [vmem:[%s3187 + $0xf0] sm:$0xff]
    %v3219 = vld [vmem:[%s3187 + $0xf8] sm:$0xff]
    %v3237 = vunpack.c.l.b16 %v3170
    %v3238 = vunpack.c.h.b16 %v3170
    %v3239 = vunpack.c.l.b16 %v3171
    %v3240 = vunpack.c.h.b16 %v3171
    %v3241 = vunpack.c.l.b16 %v3172
    %v3242 = vunpack.c.h.b16 %v3172
    %v3243 = vunpack.c.l.b16 %v3173
    %v3244 = vunpack.c.h.b16 %v3173
    %v3245 = vunpack.c.l.b16 %v3174
    %v3246 = vunpack.c.h.b16 %v3174
    %v3247 = vunpack.c.l.b16 %v3175
    %v3248 = vunpack.c.h.b16 %v3175
    %v3249 = vunpack.c.l.b16 %v3176
    %v3250 = vunpack.c.h.b16 %v3176
    %v3251 = vunpack.c.l.b16 %v3177
    %v3252 = vunpack.c.h.b16 %v3177
    %v3253 = vunpack.c.l.b16 %v3178
    %v3254 = vunpack.c.h.b16 %v3178
    %v3255 = vunpack.c.l.b16 %v3179
    %v3256 = vunpack.c.h.b16 %v3179
    %v3257 = vunpack.c.l.b16 %v3180
    %v3258 = vunpack.c.h.b16 %v3180
    %v3259 = vunpack.c.l.b16 %v3181
    %v3260 = vunpack.c.h.b16 %v3181
    %v3261 = vunpack.c.l.b16 %v3182
    %v3262 = vunpack.c.h.b16 %v3182
    %v3263 = vunpack.c.l.b16 %v3183
    %v3264 = vunpack.c.h.b16 %v3183
    %v3265 = vunpack.c.l.b16 %v3184
    %v3266 = vunpack.c.h.b16 %v3184
    %v3267 = vunpack.c.l.b16 %v3185
    %v3268 = vunpack.c.h.b16 %v3185
    %v3269 = vunpack.c.l.b16 %v3186
    %v3270 = vunpack.c.h.b16 %v3186
    %v3271 = vpack.c.b16 %v3239, %v3237
    %v3272 = vpack.c.b16 %v3240, %v3238
    %v3273 = vpack.c.b16 %v3243, %v3241
    %v3274 = vpack.c.b16 %v3244, %v3242
    %v3275 = vpack.c.b16 %v3247, %v3245
    %v3276 = vpack.c.b16 %v3248, %v3246
    %v3277 = vpack.c.b16 %v3251, %v3249
    %v3278 = vpack.c.b16 %v3252, %v3250
    %v3279 = vpack.c.b16 %v3255, %v3253
    %v3280 = vpack.c.b16 %v3256, %v3254
    %v3281 = vpack.c.b16 %v3259, %v3257
    %v3282 = vpack.c.b16 %v3260, %v3258
    %v3283 = vpack.c.b16 %v3263, %v3261
    %v3284 = vpack.c.b16 %v3264, %v3262
    %v3285 = vpack.c.b16 %v3267, %v3265
    %v3286 = vpack.c.b16 %v3268, %v3266
    %v3287 = vpack.c.b16 %v3269, %v3269
    %v3288 = vpack.c.b16 %v3270, %v3270
    %v3290 = vshrl.u32 %v3271, 16
    %v3292 = vshll.u32 %v3271, 16
    %v3294 = vrot.slane %v3292, 1
    %v3295 = vor.u32 %v3290, %v3294
    %v3297 = vshll.u32 %v3273, 16
    %v3299 = vrot.slane %v3297, 1
    %v3300 = vsel %vm710, %v3295, %v3299
    %v3302 = vshrl.u32 %v3272, 16
    %v3304 = vshll.u32 %v3272, 16
    %v3306 = vrot.slane %v3304, 1
    %v3307 = vor.u32 %v3302, %v3306
    %v3309 = vshll.u32 %v3274, 16
    %v3311 = vrot.slane %v3309, 1
    %v3312 = vsel %vm710, %v3307, %v3311
    %v3313 = vshrl.u32 %v3273, 16
    %v3315 = vor.u32 %v3313, %v3299
    %v3317 = vshll.u32 %v3275, 16
    %v3319 = vrot.slane %v3317, 1
    %v3320 = vsel %vm710, %v3315, %v3319
    %v3321 = vshrl.u32 %v3274, 16
    %v3323 = vor.u32 %v3321, %v3311
    %v3325 = vshll.u32 %v3276, 16
    %v3327 = vrot.slane %v3325, 1
    %v3328 = vsel %vm710, %v3323, %v3327
    %v3329 = vshrl.u32 %v3275, 16
    %v3331 = vor.u32 %v3329, %v3319
    %v3333 = vshll.u32 %v3277, 16
    %v3335 = vrot.slane %v3333, 1
    %v3336 = vsel %vm710, %v3331, %v3335
    %v3337 = vshrl.u32 %v3276, 16
    %v3339 = vor.u32 %v3337, %v3327
    %v3341 = vshll.u32 %v3278, 16
    %v3343 = vrot.slane %v3341, 1
    %v3344 = vsel %vm710, %v3339, %v3343
    %v3345 = vshrl.u32 %v3277, 16
    %v3347 = vor.u32 %v3345, %v3335
    %v3349 = vshll.u32 %v3279, 16
    %v3351 = vrot.slane %v3349, 1
    %v3352 = vsel %vm710, %v3347, %v3351
    %v3353 = vshrl.u32 %v3278, 16
    %v3355 = vor.u32 %v3353, %v3343
    %v3357 = vshll.u32 %v3280, 16
    %v3359 = vrot.slane %v3357, 1
    %v3360 = vsel %vm710, %v3355, %v3359
    %v3361 = vshrl.u32 %v3279, 16
    %v3363 = vor.u32 %v3361, %v3351
    %v3365 = vshll.u32 %v3281, 16
    %v3367 = vrot.slane %v3365, 1
    %v3368 = vsel %vm710, %v3363, %v3367
    %v3369 = vshrl.u32 %v3280, 16
    %v3371 = vor.u32 %v3369, %v3359
    %v3373 = vshll.u32 %v3282, 16
    %v3375 = vrot.slane %v3373, 1
    %v3376 = vsel %vm710, %v3371, %v3375
    %v3377 = vshrl.u32 %v3281, 16
    %v3379 = vor.u32 %v3377, %v3367
    %v3381 = vshll.u32 %v3283, 16
    %v3383 = vrot.slane %v3381, 1
    %v3384 = vsel %vm710, %v3379, %v3383
    %v3385 = vshrl.u32 %v3282, 16
    %v3387 = vor.u32 %v3385, %v3375
    %v3389 = vshll.u32 %v3284, 16
    %v3391 = vrot.slane %v3389, 1
    %v3392 = vsel %vm710, %v3387, %v3391
    %v3393 = vshrl.u32 %v3283, 16
    %v3395 = vor.u32 %v3393, %v3383
    %v3397 = vshll.u32 %v3285, 16
    %v3399 = vrot.slane %v3397, 1
    %v3400 = vsel %vm710, %v3395, %v3399
    %v3401 = vshrl.u32 %v3284, 16
    %v3403 = vor.u32 %v3401, %v3391
    %v3405 = vshll.u32 %v3286, 16
    %v3407 = vrot.slane %v3405, 1
    %v3408 = vsel %vm710, %v3403, %v3407
    %v3409 = vshrl.u32 %v3285, 16
    %v3411 = vor.u32 %v3409, %v3399
    %v3413 = vshll.u32 %v3287, 16
    %v3415 = vrot.slane %v3413, 1
    %v3416 = vsel %vm710, %v3411, %v3415
    %v3417 = vshrl.u32 %v3286, 16
    %v3419 = vor.u32 %v3417, %v3407
    %v3421 = vshll.u32 %v3288, 16
    %v3423 = vrot.slane %v3421, 1
    %v3424 = vsel %vm710, %v3419, %v3423
    %v3473 = vunpack.c.l.b16 %v3188
    %v3474 = vunpack.c.h.b16 %v3188
    %v3475 = vunpack.c.l.b16 %v3189
    %v3476 = vunpack.c.h.b16 %v3189
    %v3477 = vunpack.c.l.b16 %v3190
    %v3478 = vunpack.c.h.b16 %v3190
    %v3479 = vunpack.c.l.b16 %v3191
    %v3480 = vunpack.c.h.b16 %v3191
    %v3481 = vunpack.c.l.b16 %v3192
    %v3482 = vunpack.c.h.b16 %v3192
    %v3483 = vunpack.c.l.b16 %v3193
    %v3484 = vunpack.c.h.b16 %v3193
    %v3485 = vunpack.c.l.b16 %v3194
    %v3486 = vunpack.c.h.b16 %v3194
    %v3487 = vunpack.c.l.b16 %v3195
    %v3488 = vunpack.c.h.b16 %v3195
    %v3489 = vunpack.c.l.b16 %v3196
    %v3490 = vunpack.c.h.b16 %v3196
    %v3491 = vunpack.c.l.b16 %v3197
    %v3492 = vunpack.c.h.b16 %v3197
    %v3493 = vunpack.c.l.b16 %v3198
    %v3494 = vunpack.c.h.b16 %v3198
    %v3495 = vunpack.c.l.b16 %v3199
    %v3496 = vunpack.c.h.b16 %v3199
    %v3497 = vunpack.c.l.b16 %v3200
    %v3498 = vunpack.c.h.b16 %v3200
    %v3499 = vunpack.c.l.b16 %v3201
    %v3500 = vunpack.c.h.b16 %v3201
    %v3501 = vunpack.c.l.b16 %v3202
    %v3502 = vunpack.c.h.b16 %v3202
    %v3503 = vunpack.c.l.b16 %v3203
    %v3504 = vunpack.c.h.b16 %v3203
    %v3505 = vunpack.c.l.b16 %v3204
    %v3506 = vunpack.c.h.b16 %v3204
    %v3507 = vunpack.c.l.b16 %v3205
    %v3508 = vunpack.c.h.b16 %v3205
    %v3509 = vunpack.c.l.b16 %v3206
    %v3510 = vunpack.c.h.b16 %v3206
    %v3511 = vunpack.c.l.b16 %v3207
    %v3512 = vunpack.c.h.b16 %v3207
    %v3513 = vunpack.c.l.b16 %v3208
    %v3514 = vunpack.c.h.b16 %v3208
    %v3515 = vunpack.c.l.b16 %v3209
    %v3516 = vunpack.c.h.b16 %v3209
    %v3517 = vunpack.c.l.b16 %v3210
    %v3518 = vunpack.c.h.b16 %v3210
    %v3519 = vunpack.c.l.b16 %v3211
    %v3520 = vunpack.c.h.b16 %v3211
    %v3521 = vunpack.c.l.b16 %v3212
    %v3522 = vunpack.c.h.b16 %v3212
    %v3523 = vunpack.c.l.b16 %v3213
    %v3524 = vunpack.c.h.b16 %v3213
    %v3525 = vunpack.c.l.b16 %v3214
    %v3526 = vunpack.c.h.b16 %v3214
    %v3527 = vunpack.c.l.b16 %v3215
    %v3528 = vunpack.c.h.b16 %v3215
    %v3529 = vunpack.c.l.b16 %v3216
    %v3530 = vunpack.c.h.b16 %v3216
    %v3531 = vunpack.c.l.b16 %v3217
    %v3532 = vunpack.c.h.b16 %v3217
    %v3533 = vunpack.c.l.b16 %v3218
    %v3534 = vunpack.c.h.b16 %v3218
    %v3535 = vunpack.c.l.b16 %v3219
    %v3536 = vunpack.c.h.b16 %v3219
    %v3537 = vpack.c.b16 %v3475, %v3473
    %v3538 = vpack.c.b16 %v3476, %v3474
    %v3539 = vpack.c.b16 %v3479, %v3477
    %v3540 = vpack.c.b16 %v3480, %v3478
    %v3541 = vpack.c.b16 %v3483, %v3481
    %v3542 = vpack.c.b16 %v3484, %v3482
    %v3543 = vpack.c.b16 %v3487, %v3485
    %v3544 = vpack.c.b16 %v3488, %v3486
    %v3545 = vpack.c.b16 %v3491, %v3489
    %v3546 = vpack.c.b16 %v3492, %v3490
    %v3547 = vpack.c.b16 %v3495, %v3493
    %v3548 = vpack.c.b16 %v3496, %v3494
    %v3549 = vpack.c.b16 %v3499, %v3497
    %v3550 = vpack.c.b16 %v3500, %v3498
    %v3551 = vpack.c.b16 %v3503, %v3501
    %v3552 = vpack.c.b16 %v3504, %v3502
    %v3553 = vpack.c.b16 %v3507, %v3505
    %v3554 = vpack.c.b16 %v3508, %v3506
    %v3555 = vpack.c.b16 %v3511, %v3509
    %v3556 = vpack.c.b16 %v3512, %v3510
    %v3557 = vpack.c.b16 %v3515, %v3513
    %v3558 = vpack.c.b16 %v3516, %v3514
    %v3559 = vpack.c.b16 %v3519, %v3517
    %v3560 = vpack.c.b16 %v3520, %v3518
    %v3561 = vpack.c.b16 %v3523, %v3521
    %v3562 = vpack.c.b16 %v3524, %v3522
    %v3563 = vpack.c.b16 %v3527, %v3525
    %v3564 = vpack.c.b16 %v3528, %v3526
    %v3565 = vpack.c.b16 %v3531, %v3529
    %v3566 = vpack.c.b16 %v3532, %v3530
    %v3567 = vpack.c.b16 %v3535, %v3533
    %v3568 = vpack.c.b16 %v3536, %v3534
    %3601 = vmatprep.subr.bf16.mxu0 %v3552
    %3602 = vmatpush1.bf16.msra.mxu0 %v3551
    %3603 = vmatprep.subr.bf16.mxu0 %v3550
    %3604 = vmatpush1.bf16.msra.mxu0 %v3549
    %3605 = vmatprep.subr.bf16.mxu0 %v3548
    %3606 = vmatpush1.bf16.msra.mxu0 %v3547
    %3607 = vmatprep.subr.bf16.mxu0 %v3546
    %3608 = vmatpush1.bf16.msra.mxu0 %v3545
    %3609 = vmatprep.subr.bf16.mxu0 %v3544
    %3610 = vmatpush1.bf16.msra.mxu0 %v3543
    %3611 = vmatprep.subr.bf16.mxu0 %v3542
    %3612 = vmatpush1.bf16.msra.mxu0 %v3541
    %3613 = vmatprep.subr.bf16.mxu0 %v3540
    %3614 = vmatpush1.bf16.msra.mxu0 %v3539
    %3615 = vmatprep.subr.bf16.mxu0 %v3538
    %3616 = vmatpush1.bf16.msra.mxu0 %v3537
    %3617 = vmatprep.subr.bf16.mxu0 %v3568
    %3618 = vmatpush2.bf16.msra.mxu0 %v3567
    %3619 = vmatprep.subr.bf16.mxu0 %v3566
    %3620 = vmatpush2.bf16.msra.mxu0 %v3565
    %3621 = vmatprep.subr.bf16.mxu0 %v3564
    %3622 = vmatpush2.bf16.msra.mxu0 %v3563
    %3623 = vmatprep.subr.bf16.mxu0 %v3562
    %3624 = vmatpush2.bf16.msra.mxu0 %v3561
    %3625 = vmatprep.subr.bf16.mxu0 %v3560
    %3626 = vmatpush2.bf16.msra.mxu0 %v3559
    %3627 = vmatprep.subr.bf16.mxu0 %v3558
    %3628 = vmatpush2.bf16.msra.mxu0 %v3557
    %3629 = vmatprep.subr.bf16.mxu0 %v3556
    %3630 = vmatpush2.bf16.msra.mxu0 %v3555
    %3631 = vmatprep.subr.bf16.mxu0 %v3554
    %3632 = vmatpush2.bf16.msra.mxu0 %v3553
    %3633 = vmatprep.mubr.bf16.mxu0 %v3312
    %3634 = vmatmul.mubr.bf16.gmra.mxu0 %v3300
    %v3635 = vpop.f32.mrf.mxu0
    %v3636 = vadd.f32 0.0, %v3635
    %v3637 = vpop.f32.mrf.mxu0
    %v3638 = vadd.f32 0.0, %v3637
    %v3639 = vpop.f32.mrf.mxu0
    %v3640 = vadd.f32 0.0, %v3639
    %v3641 = vpop.f32.mrf.mxu0
    %v3642 = vadd.f32 0.0, %v3641
    %3643 = vmatprep.mubr.bf16.mxu0 %v3328
    %3644 = vmatmul.mubr.bf16.gmra.mxu0 %v3320
    %v3645 = vpop.f32.mrf.mxu0
    %v3646 = vadd.f32 0.0, %v3645
    %v3647 = vpop.f32.mrf.mxu0
    %v3648 = vadd.f32 0.0, %v3647
    %v3649 = vpop.f32.mrf.mxu0
    %v3650 = vadd.f32 0.0, %v3649
    %v3651 = vpop.f32.mrf.mxu0
    %v3652 = vadd.f32 0.0, %v3651
    %3653 = vmatprep.mubr.bf16.mxu0 %v3344
    %3654 = vmatmul.mubr.bf16.gmra.mxu0 %v3336
    %v3655 = vpop.f32.mrf.mxu0
    %v3656 = vadd.f32 0.0, %v3655
    %v3657 = vpop.f32.mrf.mxu0
    %v3658 = vadd.f32 0.0, %v3657
    %v3659 = vpop.f32.mrf.mxu0
    %v3660 = vadd.f32 0.0, %v3659
    %v3661 = vpop.f32.mrf.mxu0
    %v3662 = vadd.f32 0.0, %v3661
    %3663 = vmatprep.mubr.bf16.mxu0 %v3360
    %3664 = vmatmul.mubr.bf16.gmra.mxu0 %v3352
    %v3665 = vpop.f32.mrf.mxu0
    %v3666 = vadd.f32 0.0, %v3665
    %v3667 = vpop.f32.mrf.mxu0
    %v3668 = vadd.f32 0.0, %v3667
    %v3669 = vpop.f32.mrf.mxu0
    %v3670 = vadd.f32 0.0, %v3669
    %v3671 = vpop.f32.mrf.mxu0
    %v3672 = vadd.f32 0.0, %v3671
    %3673 = vmatprep.mubr.bf16.mxu0 %v3376
    %3674 = vmatmul.mubr.bf16.gmra.mxu0 %v3368
    %v3675 = vpop.f32.mrf.mxu0
    %v3676 = vadd.f32 0.0, %v3675
    %v3677 = vpop.f32.mrf.mxu0
    %v3678 = vadd.f32 0.0, %v3677
    %v3679 = vpop.f32.mrf.mxu0
    %v3680 = vadd.f32 0.0, %v3679
    %v3681 = vpop.f32.mrf.mxu0
    %v3682 = vadd.f32 0.0, %v3681
    %3683 = vmatprep.mubr.bf16.mxu0 %v3392
    %3684 = vmatmul.mubr.bf16.gmra.mxu0 %v3384
    %v3685 = vpop.f32.mrf.mxu0
    %v3686 = vadd.f32 0.0, %v3685
    %v3687 = vpop.f32.mrf.mxu0
    %v3688 = vadd.f32 0.0, %v3687
    %v3689 = vpop.f32.mrf.mxu0
    %v3690 = vadd.f32 0.0, %v3689
    %v3691 = vpop.f32.mrf.mxu0
    %v3692 = vadd.f32 0.0, %v3691
    %3693 = vmatprep.mubr.bf16.mxu0 %v3408
    %3694 = vmatmul.mubr.bf16.gmra.mxu0 %v3400
    %v3695 = vpop.f32.mrf.mxu0
    %v3696 = vadd.f32 0.0, %v3695
    %v3697 = vpop.f32.mrf.mxu0
    %v3698 = vadd.f32 0.0, %v3697
    %v3699 = vpop.f32.mrf.mxu0
    %v3700 = vadd.f32 0.0, %v3699
    %v3701 = vpop.f32.mrf.mxu0
    %v3702 = vadd.f32 0.0, %v3701
    %3703 = vmatprep.mubr.bf16.mxu0 %v3424
    %3704 = vmatmul.mubr.bf16.gmra.mxu0 %v3416
    %v3705 = vpop.f32.mrf.mxu0
    %v3706 = vadd.f32 0.0, %v3705
    %v3707 = vpop.f32.mrf.mxu0
    %v3708 = vadd.f32 0.0, %v3707
    %v3709 = vpop.f32.mrf.mxu0
    %v3710 = vadd.f32 0.0, %v3709
    %v3711 = vpop.f32.mrf.mxu0
    %v3712 = vadd.f32 0.0, %v3711
    %3713 = vdwg.mxu0
    %v3730 = vunpack.c.l.b16 %v3122
    %v3731 = vunpack.c.h.b16 %v3122
    %v3732 = vunpack.c.l.b16 %v3123
    %v3733 = vunpack.c.h.b16 %v3123
    %v3734 = vunpack.c.l.b16 %v3124
    %v3735 = vunpack.c.h.b16 %v3124
    %v3736 = vunpack.c.l.b16 %v3125
    %v3737 = vunpack.c.h.b16 %v3125
    %v3738 = vunpack.c.l.b16 %v3126
    %v3739 = vunpack.c.h.b16 %v3126
    %v3740 = vunpack.c.l.b16 %v3127
    %v3741 = vunpack.c.h.b16 %v3127
    %v3742 = vunpack.c.l.b16 %v3128
    %v3743 = vunpack.c.h.b16 %v3128
    %v3744 = vunpack.c.l.b16 %v3129
    %v3745 = vunpack.c.h.b16 %v3129
    %v3746 = vunpack.c.l.b16 %v3130
    %v3747 = vunpack.c.h.b16 %v3130
    %v3748 = vunpack.c.l.b16 %v3131
    %v3749 = vunpack.c.h.b16 %v3131
    %v3750 = vunpack.c.l.b16 %v3132
    %v3751 = vunpack.c.h.b16 %v3132
    %v3752 = vunpack.c.l.b16 %v3133
    %v3753 = vunpack.c.h.b16 %v3133
    %v3754 = vunpack.c.l.b16 %v3134
    %v3755 = vunpack.c.h.b16 %v3134
    %v3756 = vunpack.c.l.b16 %v3135
    %v3757 = vunpack.c.h.b16 %v3135
    %v3758 = vunpack.c.l.b16 %v3136
    %v3759 = vunpack.c.h.b16 %v3136
    %v3760 = vunpack.c.l.b16 %v3137
    %v3761 = vunpack.c.h.b16 %v3137
    %v3762 = vpack.c.b16 %v3732, %v3730
    %v3763 = vpack.c.b16 %v3733, %v3731
    %v3764 = vpack.c.b16 %v3736, %v3734
    %v3765 = vpack.c.b16 %v3737, %v3735
    %v3766 = vpack.c.b16 %v3740, %v3738
    %v3767 = vpack.c.b16 %v3741, %v3739
    %v3768 = vpack.c.b16 %v3744, %v3742
    %v3769 = vpack.c.b16 %v3745, %v3743
    %v3770 = vpack.c.b16 %v3748, %v3746
    %v3771 = vpack.c.b16 %v3749, %v3747
    %v3772 = vpack.c.b16 %v3752, %v3750
    %v3773 = vpack.c.b16 %v3753, %v3751
    %v3774 = vpack.c.b16 %v3756, %v3754
    %v3775 = vpack.c.b16 %v3757, %v3755
    %v3776 = vpack.c.b16 %v3760, %v3758
    %v3777 = vpack.c.b16 %v3761, %v3759
    %v3826 = vunpack.c.l.b16 %v3138
    %v3827 = vunpack.c.h.b16 %v3138
    %v3828 = vunpack.c.l.b16 %v3139
    %v3829 = vunpack.c.h.b16 %v3139
    %v3830 = vunpack.c.l.b16 %v3140
    %v3831 = vunpack.c.h.b16 %v3140
    %v3832 = vunpack.c.l.b16 %v3141
    %v3833 = vunpack.c.h.b16 %v3141
    %v3834 = vunpack.c.l.b16 %v3142
    %v3835 = vunpack.c.h.b16 %v3142
    %v3836 = vunpack.c.l.b16 %v3143
    %v3837 = vunpack.c.h.b16 %v3143
    %v3838 = vunpack.c.l.b16 %v3144
    %v3839 = vunpack.c.h.b16 %v3144
    %v3840 = vunpack.c.l.b16 %v3145
    %v3841 = vunpack.c.h.b16 %v3145
    %v3842 = vunpack.c.l.b16 %v3146
    %v3843 = vunpack.c.h.b16 %v3146
    %v3844 = vunpack.c.l.b16 %v3147
    %v3845 = vunpack.c.h.b16 %v3147
    %v3846 = vunpack.c.l.b16 %v3148
    %v3847 = vunpack.c.h.b16 %v3148
    %v3848 = vunpack.c.l.b16 %v3149
    %v3849 = vunpack.c.h.b16 %v3149
    %v3850 = vunpack.c.l.b16 %v3150
    %v3851 = vunpack.c.h.b16 %v3150
    %v3852 = vunpack.c.l.b16 %v3151
    %v3853 = vunpack.c.h.b16 %v3151
    %v3854 = vunpack.c.l.b16 %v3152
    %v3855 = vunpack.c.h.b16 %v3152
    %v3856 = vunpack.c.l.b16 %v3153
    %v3857 = vunpack.c.h.b16 %v3153
    %v3858 = vunpack.c.l.b16 %v3154
    %v3859 = vunpack.c.h.b16 %v3154
    %v3860 = vunpack.c.l.b16 %v3155
    %v3861 = vunpack.c.h.b16 %v3155
    %v3862 = vunpack.c.l.b16 %v3156
    %v3863 = vunpack.c.h.b16 %v3156
    %v3864 = vunpack.c.l.b16 %v3157
    %v3865 = vunpack.c.h.b16 %v3157
    %v3866 = vunpack.c.l.b16 %v3158
    %v3867 = vunpack.c.h.b16 %v3158
    %v3868 = vunpack.c.l.b16 %v3159
    %v3869 = vunpack.c.h.b16 %v3159
    %v3870 = vunpack.c.l.b16 %v3160
    %v3871 = vunpack.c.h.b16 %v3160
    %v3872 = vunpack.c.l.b16 %v3161
    %v3873 = vunpack.c.h.b16 %v3161
    %v3874 = vunpack.c.l.b16 %v3162
    %v3875 = vunpack.c.h.b16 %v3162
    %v3876 = vunpack.c.l.b16 %v3163
    %v3877 = vunpack.c.h.b16 %v3163
    %v3878 = vunpack.c.l.b16 %v3164
    %v3879 = vunpack.c.h.b16 %v3164
    %v3880 = vunpack.c.l.b16 %v3165
    %v3881 = vunpack.c.h.b16 %v3165
    %v3882 = vunpack.c.l.b16 %v3166
    %v3883 = vunpack.c.h.b16 %v3166
    %v3884 = vunpack.c.l.b16 %v3167
    %v3885 = vunpack.c.h.b16 %v3167
    %v3886 = vunpack.c.l.b16 %v3168
    %v3887 = vunpack.c.h.b16 %v3168
    %v3888 = vunpack.c.l.b16 %v3169
    %v3889 = vunpack.c.h.b16 %v3169
    %v3890 = vpack.c.b16 %v3828, %v3826
    %v3891 = vpack.c.b16 %v3829, %v3827
    %v3892 = vpack.c.b16 %v3832, %v3830
    %v3893 = vpack.c.b16 %v3833, %v3831
    %v3894 = vpack.c.b16 %v3836, %v3834
    %v3895 = vpack.c.b16 %v3837, %v3835
    %v3896 = vpack.c.b16 %v3840, %v3838
    %v3897 = vpack.c.b16 %v3841, %v3839
    %v3898 = vpack.c.b16 %v3844, %v3842
    %v3899 = vpack.c.b16 %v3845, %v3843
    %v3900 = vpack.c.b16 %v3848, %v3846
    %v3901 = vpack.c.b16 %v3849, %v3847
    %v3902 = vpack.c.b16 %v3852, %v3850
    %v3903 = vpack.c.b16 %v3853, %v3851
    %v3904 = vpack.c.b16 %v3856, %v3854
    %v3905 = vpack.c.b16 %v3857, %v3855
    %v3906 = vpack.c.b16 %v3860, %v3858
    %v3907 = vpack.c.b16 %v3861, %v3859
    %v3908 = vpack.c.b16 %v3864, %v3862
    %v3909 = vpack.c.b16 %v3865, %v3863
    %v3910 = vpack.c.b16 %v3868, %v3866
    %v3911 = vpack.c.b16 %v3869, %v3867
    %v3912 = vpack.c.b16 %v3872, %v3870
    %v3913 = vpack.c.b16 %v3873, %v3871
    %v3914 = vpack.c.b16 %v3876, %v3874
    %v3915 = vpack.c.b16 %v3877, %v3875
    %v3916 = vpack.c.b16 %v3880, %v3878
    %v3917 = vpack.c.b16 %v3881, %v3879
    %v3918 = vpack.c.b16 %v3884, %v3882
    %v3919 = vpack.c.b16 %v3885, %v3883
    %v3920 = vpack.c.b16 %v3888, %v3886
    %v3921 = vpack.c.b16 %v3889, %v3887
    %3954 = vmatprep.subr.bf16.mxu0 %v3905
    %3955 = vmatpush1.bf16.msra.mxu0 %v3904
    %3956 = vmatprep.subr.bf16.mxu0 %v3903
    %3957 = vmatpush1.bf16.msra.mxu0 %v3902
    %3958 = vmatprep.subr.bf16.mxu0 %v3901
    %3959 = vmatpush1.bf16.msra.mxu0 %v3900
    %3960 = vmatprep.subr.bf16.mxu0 %v3899
    %3961 = vmatpush1.bf16.msra.mxu0 %v3898
    %3962 = vmatprep.subr.bf16.mxu0 %v3897
    %3963 = vmatpush1.bf16.msra.mxu0 %v3896
    %3964 = vmatprep.subr.bf16.mxu0 %v3895
    %3965 = vmatpush1.bf16.msra.mxu0 %v3894
    %3966 = vmatprep.subr.bf16.mxu0 %v3893
    %3967 = vmatpush1.bf16.msra.mxu0 %v3892
    %3968 = vmatprep.subr.bf16.mxu0 %v3891
    %3969 = vmatpush1.bf16.msra.mxu0 %v3890
    %3970 = vmatprep.subr.bf16.mxu0 %v3921
    %3971 = vmatpush2.bf16.msra.mxu0 %v3920
    %3972 = vmatprep.subr.bf16.mxu0 %v3919
    %3973 = vmatpush2.bf16.msra.mxu0 %v3918
    %3974 = vmatprep.subr.bf16.mxu0 %v3917
    %3975 = vmatpush2.bf16.msra.mxu0 %v3916
    %3976 = vmatprep.subr.bf16.mxu0 %v3915
    %3977 = vmatpush2.bf16.msra.mxu0 %v3914
    %3978 = vmatprep.subr.bf16.mxu0 %v3913
    %3979 = vmatpush2.bf16.msra.mxu0 %v3912
    %3980 = vmatprep.subr.bf16.mxu0 %v3911
    %3981 = vmatpush2.bf16.msra.mxu0 %v3910
    %3982 = vmatprep.subr.bf16.mxu0 %v3909
    %3983 = vmatpush2.bf16.msra.mxu0 %v3908
    %3984 = vmatprep.subr.bf16.mxu0 %v3907
    %3985 = vmatpush2.bf16.msra.mxu0 %v3906
    %3986 = vmatprep.mubr.bf16.mxu0 %v3763
    %3987 = vmatmul.mubr.bf16.gmra.mxu0 %v3762
    %v3988 = vpop.f32.mrf.mxu0
    %v3989 = vadd.f32 %v3636, %v3988
    %v3990 = vpop.f32.mrf.mxu0
    %v3991 = vadd.f32 %v3638, %v3990
    %v3992 = vpop.f32.mrf.mxu0
    %v3993 = vadd.f32 %v3640, %v3992
    %v3994 = vpop.f32.mrf.mxu0
    %v3995 = vadd.f32 %v3642, %v3994
    %3996 = vmatprep.mubr.bf16.mxu0 %v3765
    %3997 = vmatmul.mubr.bf16.gmra.mxu0 %v3764
    %v3998 = vpop.f32.mrf.mxu0
    %v3999 = vadd.f32 %v3646, %v3998
    %v4000 = vpop.f32.mrf.mxu0
    %v4001 = vadd.f32 %v3648, %v4000
    %v4002 = vpop.f32.mrf.mxu0
    %v4003 = vadd.f32 %v3650, %v4002
    %v4004 = vpop.f32.mrf.mxu0
    %v4005 = vadd.f32 %v3652, %v4004
    %4006 = vmatprep.mubr.bf16.mxu0 %v3767
    %4007 = vmatmul.mubr.bf16.gmra.mxu0 %v3766
    %v4008 = vpop.f32.mrf.mxu0
    %v4009 = vadd.f32 %v3656, %v4008
    %v4010 = vpop.f32.mrf.mxu0
    %v4011 = vadd.f32 %v3658, %v4010
    %v4012 = vpop.f32.mrf.mxu0
    %v4013 = vadd.f32 %v3660, %v4012
    %v4014 = vpop.f32.mrf.mxu0
    %v4015 = vadd.f32 %v3662, %v4014
    %4016 = vmatprep.mubr.bf16.mxu0 %v3769
    %4017 = vmatmul.mubr.bf16.gmra.mxu0 %v3768
    %v4018 = vpop.f32.mrf.mxu0
    %v4019 = vadd.f32 %v3666, %v4018
    %v4020 = vpop.f32.mrf.mxu0
    %v4021 = vadd.f32 %v3668, %v4020
    %v4022 = vpop.f32.mrf.mxu0
    %v4023 = vadd.f32 %v3670, %v4022
    %v4024 = vpop.f32.mrf.mxu0
    %v4025 = vadd.f32 %v3672, %v4024
    %4026 = vmatprep.mubr.bf16.mxu0 %v3771
    %4027 = vmatmul.mubr.bf16.gmra.mxu0 %v3770
    %v4028 = vpop.f32.mrf.mxu0
    %v4029 = vadd.f32 %v3676, %v4028
    %v4030 = vpop.f32.mrf.mxu0
    %v4031 = vadd.f32 %v3678, %v4030
    %v4032 = vpop.f32.mrf.mxu0
    %v4033 = vadd.f32 %v3680, %v4032
    %v4034 = vpop.f32.mrf.mxu0
    %v4035 = vadd.f32 %v3682, %v4034
    %4036 = vmatprep.mubr.bf16.mxu0 %v3773
    %4037 = vmatmul.mubr.bf16.gmra.mxu0 %v3772
    %v4038 = vpop.f32.mrf.mxu0
    %v4039 = vadd.f32 %v3686, %v4038
    %v4040 = vpop.f32.mrf.mxu0
    %v4041 = vadd.f32 %v3688, %v4040
    %v4042 = vpop.f32.mrf.mxu0
    %v4043 = vadd.f32 %v3690, %v4042
    %v4044 = vpop.f32.mrf.mxu0
    %v4045 = vadd.f32 %v3692, %v4044
    %4046 = vmatprep.mubr.bf16.mxu0 %v3775
    %4047 = vmatmul.mubr.bf16.gmra.mxu0 %v3774
    %v4048 = vpop.f32.mrf.mxu0
    %v4049 = vadd.f32 %v3696, %v4048
    %v4050 = vpop.f32.mrf.mxu0
    %v4051 = vadd.f32 %v3698, %v4050
    %v4052 = vpop.f32.mrf.mxu0
    %v4053 = vadd.f32 %v3700, %v4052
    %v4054 = vpop.f32.mrf.mxu0
    %v4055 = vadd.f32 %v3702, %v4054
    %4056 = vmatprep.mubr.bf16.mxu0 %v3777
    %4057 = vmatmul.mubr.bf16.gmra.mxu0 %v3776
    %v4058 = vpop.f32.mrf.mxu0
    %v4059 = vadd.f32 %v3706, %v4058
    %v4060 = vpop.f32.mrf.mxu0
    %v4061 = vadd.f32 %v3708, %v4060
    %v4062 = vpop.f32.mrf.mxu0
    %v4063 = vadd.f32 %v3710, %v4062
    %v4064 = vpop.f32.mrf.mxu0
    %v4065 = vadd.f32 %v3712, %v4064
    %4066 = vdwg.mxu0
    %v4067 = vld [vmem:[#allocation2] sm:$0xee]
    %s4068 = scalar_lea.vmem [#allocation6], 512
    %v4069 = vld [vmem:[%s4068] sm:$0xff]
    %v4070 = vld [vmem:[%s4068 + $0x8] sm:$0xff]
    %v4071 = vld [vmem:[%s4068 + $0x10] sm:$0xff]
    %v4072 = vld [vmem:[%s4068 + $0x18] sm:$0xff]
    %v4073 = vld [vmem:[%s4068 + $0x20] sm:$0xff]
    %v4074 = vld [vmem:[%s4068 + $0x28] sm:$0xff]
    %v4075 = vld [vmem:[%s4068 + $0x30] sm:$0xff]
    %v4076 = vld [vmem:[%s4068 + $0x38] sm:$0xff]
    %v4077 = vld [vmem:[%s4068 + $0x40] sm:$0xff]
    %v4078 = vld [vmem:[%s4068 + $0x48] sm:$0xff]
    %v4079 = vld [vmem:[%s4068 + $0x50] sm:$0xff]
    %v4080 = vld [vmem:[%s4068 + $0x58] sm:$0xff]
    %v4081 = vld [vmem:[%s4068 + $0x60] sm:$0xff]
    %v4082 = vld [vmem:[%s4068 + $0x68] sm:$0xff]
    %v4083 = vld [vmem:[%s4068 + $0x70] sm:$0xff]
    %v4084 = vld [vmem:[%s4068 + $0x78] sm:$0xff]
    %v4085 = vld [vmem:[%s4068 + $0x80] sm:$0xff]
    %v4086 = vld [vmem:[%s4068 + $0x88] sm:$0xff]
    %v4087 = vld [vmem:[%s4068 + $0x90] sm:$0xff]
    %v4088 = vld [vmem:[%s4068 + $0x98] sm:$0xff]
    %v4089 = vld [vmem:[%s4068 + $0xa0] sm:$0xff]
    %v4090 = vld [vmem:[%s4068 + $0xa8] sm:$0xff]
    %v4091 = vld [vmem:[%s4068 + $0xb0] sm:$0xff]
    %v4092 = vld [vmem:[%s4068 + $0xb8] sm:$0xff]
    %v4093 = vld [vmem:[%s4068 + $0xc0] sm:$0xff]
    %v4094 = vld [vmem:[%s4068 + $0xc8] sm:$0xff]
    %v4095 = vld [vmem:[%s4068 + $0xd0] sm:$0xff]
    %v4096 = vld [vmem:[%s4068 + $0xd8] sm:$0xff]
    %v4097 = vld [vmem:[%s4068 + $0xe0] sm:$0xff]
    %v4098 = vld [vmem:[%s4068 + $0xe8] sm:$0xff]
    %v4099 = vld [vmem:[%s4068 + $0xf0] sm:$0xff]
    %v4100 = vld [vmem:[%s4068 + $0xf8] sm:$0xff]
    %v4102 = vunpack.c.l.b16 %v4067
    %v4103 = vunpack.c.h.b16 %v4067
    %v4104 = vpack.c.b16 %v3239, %v4102
    %v4105 = vpack.c.b16 %v3240, %v4103
    %v4106 = vrot.slane %v4104, 1
    %v4107 = vrot.slane %v3273, 1
    %v4108 = vsel %vm1411, %v4106, %v4107
    %v4109 = vrot.slane %v4105, 1
    %v4110 = vrot.slane %v3274, 1
    %v4111 = vsel %vm1411, %v4109, %v4110
    %v4112 = vrot.slane %v3275, 1
    %v4113 = vsel %vm1411, %v4107, %v4112
    %v4114 = vrot.slane %v3276, 1
    %v4115 = vsel %vm1411, %v4110, %v4114
    %v4116 = vrot.slane %v3277, 1
    %v4117 = vsel %vm1411, %v4112, %v4116
    %v4118 = vrot.slane %v3278, 1
    %v4119 = vsel %vm1411, %v4114, %v4118
    %v4120 = vrot.slane %v3279, 1
    %v4121 = vsel %vm1411, %v4116, %v4120
    %v4122 = vrot.slane %v3280, 1
    %v4123 = vsel %vm1411, %v4118, %v4122
    %v4124 = vrot.slane %v3281, 1
    %v4125 = vsel %vm1411, %v4120, %v4124
    %v4126 = vrot.slane %v3282, 1
    %v4127 = vsel %vm1411, %v4122, %v4126
    %v4128 = vrot.slane %v3283, 1
    %v4129 = vsel %vm1411, %v4124, %v4128
    %v4130 = vrot.slane %v3284, 1
    %v4131 = vsel %vm1411, %v4126, %v4130
    %v4132 = vrot.slane %v3285, 1
    %v4133 = vsel %vm1411, %v4128, %v4132
    %v4134 = vrot.slane %v3286, 1
    %v4135 = vsel %vm1411, %v4130, %v4134
    %v4136 = vrot.slane %v3287, 1
    %v4137 = vsel %vm1411, %v4132, %v4136
    %v4138 = vrot.slane %v3288, 1
    %v4139 = vsel %vm1411, %v4134, %v4138
    %v4188 = vunpack.c.l.b16 %v4069
    %v4189 = vunpack.c.h.b16 %v4069
    %v4190 = vunpack.c.l.b16 %v4070
    %v4191 = vunpack.c.h.b16 %v4070
    %v4192 = vunpack.c.l.b16 %v4071
    %v4193 = vunpack.c.h.b16 %v4071
    %v4194 = vunpack.c.l.b16 %v4072
    %v4195 = vunpack.c.h.b16 %v4072
    %v4196 = vunpack.c.l.b16 %v4073
    %v4197 = vunpack.c.h.b16 %v4073
    %v4198 = vunpack.c.l.b16 %v4074
    %v4199 = vunpack.c.h.b16 %v4074
    %v4200 = vunpack.c.l.b16 %v4075
    %v4201 = vunpack.c.h.b16 %v4075
    %v4202 = vunpack.c.l.b16 %v4076
    %v4203 = vunpack.c.h.b16 %v4076
    %v4204 = vunpack.c.l.b16 %v4077
    %v4205 = vunpack.c.h.b16 %v4077
    %v4206 = vunpack.c.l.b16 %v4078
    %v4207 = vunpack.c.h.b16 %v4078
    %v4208 = vunpack.c.l.b16 %v4079
    %v4209 = vunpack.c.h.b16 %v4079
    %v4210 = vunpack.c.l.b16 %v4080
    %v4211 = vunpack.c.h.b16 %v4080
    %v4212 = vunpack.c.l.b16 %v4081
    %v4213 = vunpack.c.h.b16 %v4081
    %v4214 = vunpack.c.l.b16 %v4082
    %v4215 = vunpack.c.h.b16 %v4082
    %v4216 = vunpack.c.l.b16 %v4083
    %v4217 = vunpack.c.h.b16 %v4083
    %v4218 = vunpack.c.l.b16 %v4084
    %v4219 = vunpack.c.h.b16 %v4084
    %v4220 = vunpack.c.l.b16 %v4085
    %v4221 = vunpack.c.h.b16 %v4085
    %v4222 = vunpack.c.l.b16 %v4086
    %v4223 = vunpack.c.h.b16 %v4086
    %v4224 = vunpack.c.l.b16 %v4087
    %v4225 = vunpack.c.h.b16 %v4087
    %v4226 = vunpack.c.l.b16 %v4088
    %v4227 = vunpack.c.h.b16 %v4088
    %v4228 = vunpack.c.l.b16 %v4089
    %v4229 = vunpack.c.h.b16 %v4089
    %v4230 = vunpack.c.l.b16 %v4090
    %v4231 = vunpack.c.h.b16 %v4090
    %v4232 = vunpack.c.l.b16 %v4091
    %v4233 = vunpack.c.h.b16 %v4091
    %v4234 = vunpack.c.l.b16 %v4092
    %v4235 = vunpack.c.h.b16 %v4092
    %v4236 = vunpack.c.l.b16 %v4093
    %v4237 = vunpack.c.h.b16 %v4093
    %v4238 = vunpack.c.l.b16 %v4094
    %v4239 = vunpack.c.h.b16 %v4094
    %v4240 = vunpack.c.l.b16 %v4095
    %v4241 = vunpack.c.h.b16 %v4095
    %v4242 = vunpack.c.l.b16 %v4096
    %v4243 = vunpack.c.h.b16 %v4096
    %v4244 = vunpack.c.l.b16 %v4097
    %v4245 = vunpack.c.h.b16 %v4097
    %v4246 = vunpack.c.l.b16 %v4098
    %v4247 = vunpack.c.h.b16 %v4098
    %v4248 = vunpack.c.l.b16 %v4099
    %v4249 = vunpack.c.h.b16 %v4099
    %v4250 = vunpack.c.l.b16 %v4100
    %v4251 = vunpack.c.h.b16 %v4100
    %v4252 = vpack.c.b16 %v4190, %v4188
    %v4253 = vpack.c.b16 %v4191, %v4189
    %v4254 = vpack.c.b16 %v4194, %v4192
    %v4255 = vpack.c.b16 %v4195, %v4193
    %v4256 = vpack.c.b16 %v4198, %v4196
    %v4257 = vpack.c.b16 %v4199, %v4197
    %v4258 = vpack.c.b16 %v4202, %v4200
    %v4259 = vpack.c.b16 %v4203, %v4201
    %v4260 = vpack.c.b16 %v4206, %v4204
    %v4261 = vpack.c.b16 %v4207, %v4205
    %v4262 = vpack.c.b16 %v4210, %v4208
    %v4263 = vpack.c.b16 %v4211, %v4209
    %v4264 = vpack.c.b16 %v4214, %v4212
    %v4265 = vpack.c.b16 %v4215, %v4213
    %v4266 = vpack.c.b16 %v4218, %v4216
    %v4267 = vpack.c.b16 %v4219, %v4217
    %v4268 = vpack.c.b16 %v4222, %v4220
    %v4269 = vpack.c.b16 %v4223, %v4221
    %v4270 = vpack.c.b16 %v4226, %v4224
    %v4271 = vpack.c.b16 %v4227, %v4225
    %v4272 = vpack.c.b16 %v4230, %v4228
    %v4273 = vpack.c.b16 %v4231, %v4229
    %v4274 = vpack.c.b16 %v4234, %v4232
    %v4275 = vpack.c.b16 %v4235, %v4233
    %v4276 = vpack.c.b16 %v4238, %v4236
    %v4277 = vpack.c.b16 %v4239, %v4237
    %v4278 = vpack.c.b16 %v4242, %v4240
    %v4279 = vpack.c.b16 %v4243, %v4241
    %v4280 = vpack.c.b16 %v4246, %v4244
    %v4281 = vpack.c.b16 %v4247, %v4245
    %v4282 = vpack.c.b16 %v4250, %v4248
    %v4283 = vpack.c.b16 %v4251, %v4249
    %4316 = vmatprep.subr.bf16.mxu0 %v4267
    %4317 = vmatpush1.bf16.msra.mxu0 %v4266
    %4318 = vmatprep.subr.bf16.mxu0 %v4265
    %4319 = vmatpush1.bf16.msra.mxu0 %v4264
    %4320 = vmatprep.subr.bf16.mxu0 %v4263
    %4321 = vmatpush1.bf16.msra.mxu0 %v4262
    %4322 = vmatprep.subr.bf16.mxu0 %v4261
    %4323 = vmatpush1.bf16.msra.mxu0 %v4260
    %4324 = vmatprep.subr.bf16.mxu0 %v4259
    %4325 = vmatpush1.bf16.msra.mxu0 %v4258
    %4326 = vmatprep.subr.bf16.mxu0 %v4257
    %4327 = vmatpush1.bf16.msra.mxu0 %v4256
    %4328 = vmatprep.subr.bf16.mxu0 %v4255
    %4329 = vmatpush1.bf16.msra.mxu0 %v4254
    %4330 = vmatprep.subr.bf16.mxu0 %v4253
    %4331 = vmatpush1.bf16.msra.mxu0 %v4252
    %4332 = vmatprep.subr.bf16.mxu0 %v4283
    %4333 = vmatpush2.bf16.msra.mxu0 %v4282
    %4334 = vmatprep.subr.bf16.mxu0 %v4281
    %4335 = vmatpush2.bf16.msra.mxu0 %v4280
    %4336 = vmatprep.subr.bf16.mxu0 %v4279
    %4337 = vmatpush2.bf16.msra.mxu0 %v4278
    %4338 = vmatprep.subr.bf16.mxu0 %v4277
    %4339 = vmatpush2.bf16.msra.mxu0 %v4276
    %4340 = vmatprep.subr.bf16.mxu0 %v4275
    %4341 = vmatpush2.bf16.msra.mxu0 %v4274
    %4342 = vmatprep.subr.bf16.mxu0 %v4273
    %4343 = vmatpush2.bf16.msra.mxu0 %v4272
    %4344 = vmatprep.subr.bf16.mxu0 %v4271
    %4345 = vmatpush2.bf16.msra.mxu0 %v4270
    %4346 = vmatprep.subr.bf16.mxu0 %v4269
    %4347 = vmatpush2.bf16.msra.mxu0 %v4268
    %4348 = vmatprep.mubr.bf16.mxu0 %v4111
    %4349 = vmatmul.mubr.bf16.gmra.mxu0 %v4108
    %v4350 = vpop.f32.mrf.mxu0
    %v4351 = vadd.f32 0.0, %v4350
    %v4352 = vpop.f32.mrf.mxu0
    %v4353 = vadd.f32 0.0, %v4352
    %v4354 = vpop.f32.mrf.mxu0
    %v4355 = vadd.f32 0.0, %v4354
    %v4356 = vpop.f32.mrf.mxu0
    %v4357 = vadd.f32 0.0, %v4356
    %4358 = vmatprep.mubr.bf16.mxu0 %v4115
    %4359 = vmatmul.mubr.bf16.gmra.mxu0 %v4113
    %v4360 = vpop.f32.mrf.mxu0
    %v4361 = vadd.f32 0.0, %v4360
    %v4362 = vpop.f32.mrf.mxu0
    %v4363 = vadd.f32 0.0, %v4362
    %v4364 = vpop.f32.mrf.mxu0
    %v4365 = vadd.f32 0.0, %v4364
    %v4366 = vpop.f32.mrf.mxu0
    %v4367 = vadd.f32 0.0, %v4366
    %4368 = vmatprep.mubr.bf16.mxu0 %v4119
    %4369 = vmatmul.mubr.bf16.gmra.mxu0 %v4117
    %v4370 = vpop.f32.mrf.mxu0
    %v4371 = vadd.f32 0.0, %v4370
    %v4372 = vpop.f32.mrf.mxu0
    %v4373 = vadd.f32 0.0, %v4372
    %v4374 = vpop.f32.mrf.mxu0
    %v4375 = vadd.f32 0.0, %v4374
    %v4376 = vpop.f32.mrf.mxu0
    %v4377 = vadd.f32 0.0, %v4376
    %4378 = vmatprep.mubr.bf16.mxu0 %v4123
    %4379 = vmatmul.mubr.bf16.gmra.mxu0 %v4121
    %v4380 = vpop.f32.mrf.mxu0
    %v4381 = vadd.f32 0.0, %v4380
    %v4382 = vpop.f32.mrf.mxu0
    %v4383 = vadd.f32 0.0, %v4382
    %v4384 = vpop.f32.mrf.mxu0
    %v4385 = vadd.f32 0.0, %v4384
    %v4386 = vpop.f32.mrf.mxu0
    %v4387 = vadd.f32 0.0, %v4386
    %4388 = vmatprep.mubr.bf16.mxu0 %v4127
    %4389 = vmatmul.mubr.bf16.gmra.mxu0 %v4125
    %v4390 = vpop.f32.mrf.mxu0
    %v4391 = vadd.f32 0.0, %v4390
    %v4392 = vpop.f32.mrf.mxu0
    %v4393 = vadd.f32 0.0, %v4392
    %v4394 = vpop.f32.mrf.mxu0
    %v4395 = vadd.f32 0.0, %v4394
    %v4396 = vpop.f32.mrf.mxu0
    %v4397 = vadd.f32 0.0, %v4396
    %4398 = vmatprep.mubr.bf16.mxu0 %v4131
    %4399 = vmatmul.mubr.bf16.gmra.mxu0 %v4129
    %v4400 = vpop.f32.mrf.mxu0
    %v4401 = vadd.f32 0.0, %v4400
    %v4402 = vpop.f32.mrf.mxu0
    %v4403 = vadd.f32 0.0, %v4402
    %v4404 = vpop.f32.mrf.mxu0
    %v4405 = vadd.f32 0.0, %v4404
    %v4406 = vpop.f32.mrf.mxu0
    %v4407 = vadd.f32 0.0, %v4406
    %4408 = vmatprep.mubr.bf16.mxu0 %v4135
    %4409 = vmatmul.mubr.bf16.gmra.mxu0 %v4133
    %v4410 = vpop.f32.mrf.mxu0
    %v4411 = vadd.f32 0.0, %v4410
    %v4412 = vpop.f32.mrf.mxu0
    %v4413 = vadd.f32 0.0, %v4412
    %v4414 = vpop.f32.mrf.mxu0
    %v4415 = vadd.f32 0.0, %v4414
    %v4416 = vpop.f32.mrf.mxu0
    %v4417 = vadd.f32 0.0, %v4416
    %4418 = vmatprep.mubr.bf16.mxu0 %v4139
    %4419 = vmatmul.mubr.bf16.gmra.mxu0 %v4137
    %v4420 = vpop.f32.mrf.mxu0
    %v4421 = vadd.f32 0.0, %v4420
    %v4422 = vpop.f32.mrf.mxu0
    %v4423 = vadd.f32 0.0, %v4422
    %v4424 = vpop.f32.mrf.mxu0
    %v4425 = vadd.f32 0.0, %v4424
    %v4426 = vpop.f32.mrf.mxu0
    %v4427 = vadd.f32 0.0, %v4426
    %4428 = vdwg.mxu0
    %v4429 = vadd.f32 %v3989, %v4351
    %v4430 = vadd.f32 %v3991, %v4353
    %v4431 = vadd.f32 %v3993, %v4355
    %v4432 = vadd.f32 %v3995, %v4357
    %v4433 = vadd.f32 %v3999, %v4361
    %v4434 = vadd.f32 %v4001, %v4363
    %v4435 = vadd.f32 %v4003, %v4365
    %v4436 = vadd.f32 %v4005, %v4367
    %v4437 = vadd.f32 %v4009, %v4371
    %v4438 = vadd.f32 %v4011, %v4373
    %v4439 = vadd.f32 %v4013, %v4375
    %v4440 = vadd.f32 %v4015, %v4377
    %v4441 = vadd.f32 %v4019, %v4381
    %v4442 = vadd.f32 %v4021, %v4383
    %v4443 = vadd.f32 %v4023, %v4385
    %v4444 = vadd.f32 %v4025, %v4387
    %v4445 = vadd.f32 %v4029, %v4391
    %v4446 = vadd.f32 %v4031, %v4393
    %v4447 = vadd.f32 %v4033, %v4395
    %v4448 = vadd.f32 %v4035, %v4397
    %v4449 = vadd.f32 %v4039, %v4401
    %v4450 = vadd.f32 %v4041, %v4403
    %v4451 = vadd.f32 %v4043, %v4405
    %v4452 = vadd.f32 %v4045, %v4407
    %v4453 = vadd.f32 %v4049, %v4411
    %v4454 = vadd.f32 %v4051, %v4413
    %v4455 = vadd.f32 %v4053, %v4415
    %v4456 = vadd.f32 %v4055, %v4417
    %v4457 = vadd.f32 %v4059, %v4421
    %v4458 = vadd.f32 %v4061, %v4423
    %v4459 = vadd.f32 %v4063, %v4425
    %v4460 = vadd.f32 %v4065, %v4427
    %v4461 = vld [vmem:[#allocation2 + $0x80] sm:$0x33]
    %s4462 = scalar_lea.vmem [#allocation6], 768
    %v4463 = vld [vmem:[%s4462] sm:$0xff]
    %v4464 = vld [vmem:[%s4462 + $0x8] sm:$0xff]
    %v4465 = vld [vmem:[%s4462 + $0x10] sm:$0xff]
    %v4466 = vld [vmem:[%s4462 + $0x18] sm:$0xff]
    %v4467 = vld [vmem:[%s4462 + $0x20] sm:$0xff]
    %v4468 = vld [vmem:[%s4462 + $0x28] sm:$0xff]
    %v4469 = vld [vmem:[%s4462 + $0x30] sm:$0xff]
    %v4470 = vld [vmem:[%s4462 + $0x38] sm:$0xff]
    %v4471 = vld [vmem:[%s4462 + $0x40] sm:$0xff]
    %v4472 = vld [vmem:[%s4462 + $0x48] sm:$0xff]
    %v4473 = vld [vmem:[%s4462 + $0x50] sm:$0xff]
    %v4474 = vld [vmem:[%s4462 + $0x58] sm:$0xff]
    %v4475 = vld [vmem:[%s4462 + $0x60] sm:$0xff]
    %v4476 = vld [vmem:[%s4462 + $0x68] sm:$0xff]
    %v4477 = vld [vmem:[%s4462 + $0x70] sm:$0xff]
    %v4478 = vld [vmem:[%s4462 + $0x78] sm:$0xff]
    %v4479 = vld [vmem:[%s4462 + $0x80] sm:$0xff]
    %v4480 = vld [vmem:[%s4462 + $0x88] sm:$0xff]
    %v4481 = vld [vmem:[%s4462 + $0x90] sm:$0xff]
    %v4482 = vld [vmem:[%s4462 + $0x98] sm:$0xff]
    %v4483 = vld [vmem:[%s4462 + $0xa0] sm:$0xff]
    %v4484 = vld [vmem:[%s4462 + $0xa8] sm:$0xff]
    %v4485 = vld [vmem:[%s4462 + $0xb0] sm:$0xff]
    %v4486 = vld [vmem:[%s4462 + $0xb8] sm:$0xff]
    %v4487 = vld [vmem:[%s4462 + $0xc0] sm:$0xff]
    %v4488 = vld [vmem:[%s4462 + $0xc8] sm:$0xff]
    %v4489 = vld [vmem:[%s4462 + $0xd0] sm:$0xff]
    %v4490 = vld [vmem:[%s4462 + $0xd8] sm:$0xff]
    %v4491 = vld [vmem:[%s4462 + $0xe0] sm:$0xff]
    %v4492 = vld [vmem:[%s4462 + $0xe8] sm:$0xff]
    %v4493 = vld [vmem:[%s4462 + $0xf0] sm:$0xff]
    %v4494 = vld [vmem:[%s4462 + $0xf8] sm:$0xff]
    %v4496 = vunpack.c.l.b16 %v4461
    %v4497 = vunpack.c.h.b16 %v4461
    %v4498 = vpack.c.b16 %v4496, %v4496
    %v4499 = vpack.c.b16 %v4497, %v4497
    %vm4500 = vsmask.f32 6400
    %v4502 = vshrl.u32 %v4104, 16
    %v4504 = vrot.slane %v4502, 1
    %v4505 = vshll.u32 %v4104, 16
    %v4507 = vrot.slane %v4505, 2
    %v4508 = vor.u32 %v4504, %v4507
    %v4509 = vrot.slane %v3313, 1
    %v4510 = vrot.slane %v3297, 2
    %v4511 = vor.u32 %v4509, %v4510
    %v4512 = vsel %vm4500, %v4508, %v4511
    %v4514 = vshrl.u32 %v4105, 16
    %v4516 = vrot.slane %v4514, 1
    %v4517 = vshll.u32 %v4105, 16
    %v4519 = vrot.slane %v4517, 2
    %v4520 = vor.u32 %v4516, %v4519
    %v4521 = vrot.slane %v3321, 1
    %v4522 = vrot.slane %v3309, 2
    %v4523 = vor.u32 %v4521, %v4522
    %v4524 = vsel %vm4500, %v4520, %v4523
    %v4525 = vrot.slane %v3329, 1
    %v4526 = vrot.slane %v3317, 2
    %v4527 = vor.u32 %v4525, %v4526
    %v4528 = vsel %vm4500, %v4511, %v4527
    %v4529 = vrot.slane %v3337, 1
    %v4530 = vrot.slane %v3325, 2
    %v4531 = vor.u32 %v4529, %v4530
    %v4532 = vsel %vm4500, %v4523, %v4531
    %v4533 = vrot.slane %v3345, 1
    %v4534 = vrot.slane %v3333, 2
    %v4535 = vor.u32 %v4533, %v4534
    %v4536 = vsel %vm4500, %v4527, %v4535
    %v4537 = vrot.slane %v3353, 1
    %v4538 = vrot.slane %v3341, 2
    %v4539 = vor.u32 %v4537, %v4538
    %v4540 = vsel %vm4500, %v4531, %v4539
    %v4541 = vrot.slane %v3361, 1
    %v4542 = vrot.slane %v3349, 2
    %v4543 = vor.u32 %v4541, %v4542
    %v4544 = vsel %vm4500, %v4535, %v4543
    %v4545 = vrot.slane %v3369, 1
    %v4546 = vrot.slane %v3357, 2
    %v4547 = vor.u32 %v4545, %v4546
    %v4548 = vsel %vm4500, %v4539, %v4547
    %v4549 = vrot.slane %v3377, 1
    %v4550 = vrot.slane %v3365, 2
    %v4551 = vor.u32 %v4549, %v4550
    %v4552 = vsel %vm4500, %v4543, %v4551
    %v4553 = vrot.slane %v3385, 1
    %v4554 = vrot.slane %v3373, 2
    %v4555 = vor.u32 %v4553, %v4554
    %v4556 = vsel %vm4500, %v4547, %v4555
    %v4557 = vrot.slane %v3393, 1
    %v4558 = vrot.slane %v3381, 2
    %v4559 = vor.u32 %v4557, %v4558
    %v4560 = vsel %vm4500, %v4551, %v4559
    %v4561 = vrot.slane %v3401, 1
    %v4562 = vrot.slane %v3389, 2
    %v4563 = vor.u32 %v4561, %v4562
    %v4564 = vsel %vm4500, %v4555, %v4563
    %v4565 = vrot.slane %v3409, 1
    %v4566 = vrot.slane %v3397, 2
    %v4567 = vor.u32 %v4565, %v4566
    %v4568 = vsel %vm4500, %v4559, %v4567
    %v4569 = vrot.slane %v3417, 1
    %v4570 = vrot.slane %v3405, 2
    %v4571 = vor.u32 %v4569, %v4570
    %v4572 = vsel %vm4500, %v4563, %v4571
    %v4574 = vshrl.u32 %v4498, 16
    %v4576 = vrot.slane %v4574, 1
    %v4577 = vshll.u32 %v4498, 16
    %v4579 = vrot.slane %v4577, 2
    %v4580 = vor.u32 %v4576, %v4579
    %v4581 = vsel %vm4500, %v4567, %v4580
    %v4583 = vshrl.u32 %v4499, 16
    %v4585 = vrot.slane %v4583, 1
    %v4586 = vshll.u32 %v4499, 16
    %v4588 = vrot.slane %v4586, 2
    %v4589 = vor.u32 %v4585, %v4588
    %v4590 = vsel %vm4500, %v4571, %v4589
    %v4639 = vunpack.c.l.b16 %v4463
    %v4640 = vunpack.c.h.b16 %v4463
    %v4641 = vunpack.c.l.b16 %v4464
    %v4642 = vunpack.c.h.b16 %v4464
    %v4643 = vunpack.c.l.b16 %v4465
    %v4644 = vunpack.c.h.b16 %v4465
    %v4645 = vunpack.c.l.b16 %v4466
    %v4646 = vunpack.c.h.b16 %v4466
    %v4647 = vunpack.c.l.b16 %v4467
    %v4648 = vunpack.c.h.b16 %v4467
    %v4649 = vunpack.c.l.b16 %v4468
    %v4650 = vunpack.c.h.b16 %v4468
    %v4651 = vunpack.c.l.b16 %v4469
    %v4652 = vunpack.c.h.b16 %v4469
    %v4653 = vunpack.c.l.b16 %v4470
    %v4654 = vunpack.c.h.b16 %v4470
    %v4655 = vunpack.c.l.b16 %v4471
    %v4656 = vunpack.c.h.b16 %v4471
    %v4657 = vunpack.c.l.b16 %v4472
    %v4658 = vunpack.c.h.b16 %v4472
    %v4659 = vunpack.c.l.b16 %v4473
    %v4660 = vunpack.c.h.b16 %v4473
    %v4661 = vunpack.c.l.b16 %v4474
    %v4662 = vunpack.c.h.b16 %v4474
    %v4663 = vunpack.c.l.b16 %v4475
    %v4664 = vunpack.c.h.b16 %v4475
    %v4665 = vunpack.c.l.b16 %v4476
    %v4666 = vunpack.c.h.b16 %v4476
    %v4667 = vunpack.c.l.b16 %v4477
    %v4668 = vunpack.c.h.b16 %v4477
    %v4669 = vunpack.c.l.b16 %v4478
    %v4670 = vunpack.c.h.b16 %v4478
    %v4671 = vunpack.c.l.b16 %v4479
    %v4672 = vunpack.c.h.b16 %v4479
    %v4673 = vunpack.c.l.b16 %v4480
    %v4674 = vunpack.c.h.b16 %v4480
    %v4675 = vunpack.c.l.b16 %v4481
    %v4676 = vunpack.c.h.b16 %v4481
    %v4677 = vunpack.c.l.b16 %v4482
    %v4678 = vunpack.c.h.b16 %v4482
    %v4679 = vunpack.c.l.b16 %v4483
    %v4680 = vunpack.c.h.b16 %v4483
    %v4681 = vunpack.c.l.b16 %v4484
    %v4682 = vunpack.c.h.b16 %v4484
    %v4683 = vunpack.c.l.b16 %v4485
    %v4684 = vunpack.c.h.b16 %v4485
    %v4685 = vunpack.c.l.b16 %v4486
    %v4686 = vunpack.c.h.b16 %v4486
    %v4687 = vunpack.c.l.b16 %v4487
    %v4688 = vunpack.c.h.b16 %v4487
    %v4689 = vunpack.c.l.b16 %v4488
    %v4690 = vunpack.c.h.b16 %v4488
    %v4691 = vunpack.c.l.b16 %v4489
    %v4692 = vunpack.c.h.b16 %v4489
    %v4693 = vunpack.c.l.b16 %v4490
    %v4694 = vunpack.c.h.b16 %v4490
    %v4695 = vunpack.c.l.b16 %v4491
    %v4696 = vunpack.c.h.b16 %v4491
    %v4697 = vunpack.c.l.b16 %v4492
    %v4698 = vunpack.c.h.b16 %v4492
    %v4699 = vunpack.c.l.b16 %v4493
    %v4700 = vunpack.c.h.b16 %v4493
    %v4701 = vunpack.c.l.b16 %v4494
    %v4702 = vunpack.c.h.b16 %v4494
    %v4703 = vpack.c.b16 %v4641, %v4639
    %v4704 = vpack.c.b16 %v4642, %v4640
    %v4705 = vpack.c.b16 %v4645, %v4643
    %v4706 = vpack.c.b16 %v4646, %v4644
    %v4707 = vpack.c.b16 %v4649, %v4647
    %v4708 = vpack.c.b16 %v4650, %v4648
    %v4709 = vpack.c.b16 %v4653, %v4651
    %v4710 = vpack.c.b16 %v4654, %v4652
    %v4711 = vpack.c.b16 %v4657, %v4655
    %v4712 = vpack.c.b16 %v4658, %v4656
    %v4713 = vpack.c.b16 %v4661, %v4659
    %v4714 = vpack.c.b16 %v4662, %v4660
    %v4715 = vpack.c.b16 %v4665, %v4663
    %v4716 = vpack.c.b16 %v4666, %v4664
    %v4717 = vpack.c.b16 %v4669, %v4667
    %v4718 = vpack.c.b16 %v4670, %v4668
    %v4719 = vpack.c.b16 %v4673, %v4671
    %v4720 = vpack.c.b16 %v4674, %v4672
    %v4721 = vpack.c.b16 %v4677, %v4675
    %v4722 = vpack.c.b16 %v4678, %v4676
    %v4723 = vpack.c.b16 %v4681, %v4679
    %v4724 = vpack.c.b16 %v4682, %v4680
    %v4725 = vpack.c.b16 %v4685, %v4683
    %v4726 = vpack.c.b16 %v4686, %v4684
    %v4727 = vpack.c.b16 %v4689, %v4687
    %v4728 = vpack.c.b16 %v4690, %v4688
    %v4729 = vpack.c.b16 %v4693, %v4691
    %v4730 = vpack.c.b16 %v4694, %v4692
    %v4731 = vpack.c.b16 %v4697, %v4695
    %v4732 = vpack.c.b16 %v4698, %v4696
    %v4733 = vpack.c.b16 %v4701, %v4699
    %v4734 = vpack.c.b16 %v4702, %v4700
    %4767 = vmatprep.subr.bf16.mxu0 %v4718
    %4768 = vmatpush1.bf16.msra.mxu0 %v4717
    %4769 = vmatprep.subr.bf16.mxu0 %v4716
    %4770 = vmatpush1.bf16.msra.mxu0 %v4715
    %4771 = vmatprep.subr.bf16.mxu0 %v4714
    %4772 = vmatpush1.bf16.msra.mxu0 %v4713
    %4773 = vmatprep.subr.bf16.mxu0 %v4712
    %4774 = vmatpush1.bf16.msra.mxu0 %v4711
    %4775 = vmatprep.subr.bf16.mxu0 %v4710
    %4776 = vmatpush1.bf16.msra.mxu0 %v4709
    %4777 = vmatprep.subr.bf16.mxu0 %v4708
    %4778 = vmatpush1.bf16.msra.mxu0 %v4707
    %4779 = vmatprep.subr.bf16.mxu0 %v4706
    %4780 = vmatpush1.bf16.msra.mxu0 %v4705
    %4781 = vmatprep.subr.bf16.mxu0 %v4704
    %4782 = vmatpush1.bf16.msra.mxu0 %v4703
    %4783 = vmatprep.subr.bf16.mxu0 %v4734
    %4784 = vmatpush2.bf16.msra.mxu0 %v4733
    %4785 = vmatprep.subr.bf16.mxu0 %v4732
    %4786 = vmatpush2.bf16.msra.mxu0 %v4731
    %4787 = vmatprep.subr.bf16.mxu0 %v4730
    %4788 = vmatpush2.bf16.msra.mxu0 %v4729
    %4789 = vmatprep.subr.bf16.mxu0 %v4728
    %4790 = vmatpush2.bf16.msra.mxu0 %v4727
    %4791 = vmatprep.subr.bf16.mxu0 %v4726
    %4792 = vmatpush2.bf16.msra.mxu0 %v4725
    %4793 = vmatprep.subr.bf16.mxu0 %v4724
    %4794 = vmatpush2.bf16.msra.mxu0 %v4723
    %4795 = vmatprep.subr.bf16.mxu0 %v4722
    %4796 = vmatpush2.bf16.msra.mxu0 %v4721
    %4797 = vmatprep.subr.bf16.mxu0 %v4720
    %4798 = vmatpush2.bf16.msra.mxu0 %v4719
    %4799 = vmatprep.mubr.bf16.mxu0 %v4524
    %4800 = vmatmul.mubr.bf16.gmra.mxu0 %v4512
    %v4801 = vpop.f32.mrf.mxu0
    %v4802 = vadd.f32 0.0, %v4801
    %v4803 = vpop.f32.mrf.mxu0
    %v4804 = vadd.f32 0.0, %v4803
    %v4805 = vpop.f32.mrf.mxu0
    %v4806 = vadd.f32 0.0, %v4805
    %v4807 = vpop.f32.mrf.mxu0
    %v4808 = vadd.f32 0.0, %v4807
    %4809 = vmatprep.mubr.bf16.mxu0 %v4532
    %4810 = vmatmul.mubr.bf16.gmra.mxu0 %v4528
    %v4811 = vpop.f32.mrf.mxu0
    %v4812 = vadd.f32 0.0, %v4811
    %v4813 = vpop.f32.mrf.mxu0
    %v4814 = vadd.f32 0.0, %v4813
    %v4815 = vpop.f32.mrf.mxu0
    %v4816 = vadd.f32 0.0, %v4815
    %v4817 = vpop.f32.mrf.mxu0
    %v4818 = vadd.f32 0.0, %v4817
    %4819 = vmatprep.mubr.bf16.mxu0 %v4540
    %4820 = vmatmul.mubr.bf16.gmra.mxu0 %v4536
    %v4821 = vpop.f32.mrf.mxu0
    %v4822 = vadd.f32 0.0, %v4821
    %v4823 = vpop.f32.mrf.mxu0
    %v4824 = vadd.f32 0.0, %v4823
    %v4825 = vpop.f32.mrf.mxu0
    %v4826 = vadd.f32 0.0, %v4825
    %v4827 = vpop.f32.mrf.mxu0
    %v4828 = vadd.f32 0.0, %v4827
    %4829 = vmatprep.mubr.bf16.mxu0 %v4548
    %4830 = vmatmul.mubr.bf16.gmra.mxu0 %v4544
    %v4831 = vpop.f32.mrf.mxu0
    %v4832 = vadd.f32 0.0, %v4831
    %v4833 = vpop.f32.mrf.mxu0
    %v4834 = vadd.f32 0.0, %v4833
    %v4835 = vpop.f32.mrf.mxu0
    %v4836 = vadd.f32 0.0, %v4835
    %v4837 = vpop.f32.mrf.mxu0
    %v4838 = vadd.f32 0.0, %v4837
    %4839 = vmatprep.mubr.bf16.mxu0 %v4556
    %4840 = vmatmul.mubr.bf16.gmra.mxu0 %v4552
    %v4841 = vpop.f32.mrf.mxu0
    %v4842 = vadd.f32 0.0, %v4841
    %v4843 = vpop.f32.mrf.mxu0
    %v4844 = vadd.f32 0.0, %v4843
    %v4845 = vpop.f32.mrf.mxu0
    %v4846 = vadd.f32 0.0, %v4845
    %v4847 = vpop.f32.mrf.mxu0
    %v4848 = vadd.f32 0.0, %v4847
    %4849 = vmatprep.mubr.bf16.mxu0 %v4564
    %4850 = vmatmul.mubr.bf16.gmra.mxu0 %v4560
    %v4851 = vpop.f32.mrf.mxu0
    %v4852 = vadd.f32 0.0, %v4851
    %v4853 = vpop.f32.mrf.mxu0
    %v4854 = vadd.f32 0.0, %v4853
    %v4855 = vpop.f32.mrf.mxu0
    %v4856 = vadd.f32 0.0, %v4855
    %v4857 = vpop.f32.mrf.mxu0
    %v4858 = vadd.f32 0.0, %v4857
    %4859 = vmatprep.mubr.bf16.mxu0 %v4572
    %4860 = vmatmul.mubr.bf16.gmra.mxu0 %v4568
    %v4861 = vpop.f32.mrf.mxu0
    %v4862 = vadd.f32 0.0, %v4861
    %v4863 = vpop.f32.mrf.mxu0
    %v4864 = vadd.f32 0.0, %v4863
    %v4865 = vpop.f32.mrf.mxu0
    %v4866 = vadd.f32 0.0, %v4865
    %v4867 = vpop.f32.mrf.mxu0
    %v4868 = vadd.f32 0.0, %v4867
    %4869 = vmatprep.mubr.bf16.mxu0 %v4590
    %4870 = vmatmul.mubr.bf16.gmra.mxu0 %v4581
    %v4871 = vpop.f32.mrf.mxu0
    %v4872 = vadd.f32 0.0, %v4871
    %v4873 = vpop.f32.mrf.mxu0
    %v4874 = vadd.f32 0.0, %v4873
    %v4875 = vpop.f32.mrf.mxu0
    %v4876 = vadd.f32 0.0, %v4875
    %v4877 = vpop.f32.mrf.mxu0
    %v4878 = vadd.f32 0.0, %v4877
    %4879 = vdwg.mxu0
    %v4880 = vadd.f32 %v4429, %v4802
    %v4881 = vadd.f32 %v4430, %v4804
    %v4882 = vadd.f32 %v4431, %v4806
    %v4883 = vadd.f32 %v4432, %v4808
    %v4884 = vadd.f32 %v4433, %v4812
    %v4885 = vadd.f32 %v4434, %v4814
    %v4886 = vadd.f32 %v4435, %v4816
    %v4887 = vadd.f32 %v4436, %v4818
    %v4888 = vadd.f32 %v4437, %v4822
    %v4889 = vadd.f32 %v4438, %v4824
    %v4890 = vadd.f32 %v4439, %v4826
    %v4891 = vadd.f32 %v4440, %v4828
    %v4892 = vadd.f32 %v4441, %v4832
    %v4893 = vadd.f32 %v4442, %v4834
    %v4894 = vadd.f32 %v4443, %v4836
    %v4895 = vadd.f32 %v4444, %v4838
    %v4896 = vadd.f32 %v4445, %v4842
    %v4897 = vadd.f32 %v4446, %v4844
    %v4898 = vadd.f32 %v4447, %v4846
    %v4899 = vadd.f32 %v4448, %v4848
    %v4900 = vadd.f32 %v4449, %v4852
    %v4901 = vadd.f32 %v4450, %v4854
    %v4902 = vadd.f32 %v4451, %v4856
    %v4903 = vadd.f32 %v4452, %v4858
    %v4904 = vadd.f32 %v4453, %v4862
    %v4905 = vadd.f32 %v4454, %v4864
    %v4906 = vadd.f32 %v4455, %v4866
    %v4907 = vadd.f32 %v4456, %v4868
    %v4908 = vadd.f32 %v4457, %v4872
    %v4909 = vadd.f32 %v4458, %v4874
    %v4910 = vadd.f32 %v4459, %v4876
    %v4911 = vadd.f32 %v4460, %v4878
    %v4912 = vld [vmem:[#allocation2] sm:$0xcc]
    %s4913 = scalar_lea.vmem [#allocation6], 1024
    %v4914 = vld [vmem:[%s4913] sm:$0xff]
    %v4915 = vld [vmem:[%s4913 + $0x8] sm:$0xff]
    %v4916 = vld [vmem:[%s4913 + $0x10] sm:$0xff]
    %v4917 = vld [vmem:[%s4913 + $0x18] sm:$0xff]
    %v4918 = vld [vmem:[%s4913 + $0x20] sm:$0xff]
    %v4919 = vld [vmem:[%s4913 + $0x28] sm:$0xff]
    %v4920 = vld [vmem:[%s4913 + $0x30] sm:$0xff]
    %v4921 = vld [vmem:[%s4913 + $0x38] sm:$0xff]
    %v4922 = vld [vmem:[%s4913 + $0x40] sm:$0xff]
    %v4923 = vld [vmem:[%s4913 + $0x48] sm:$0xff]
    %v4924 = vld [vmem:[%s4913 + $0x50] sm:$0xff]
    %v4925 = vld [vmem:[%s4913 + $0x58] sm:$0xff]
    %v4926 = vld [vmem:[%s4913 + $0x60] sm:$0xff]
    %v4927 = vld [vmem:[%s4913 + $0x68] sm:$0xff]
    %v4928 = vld [vmem:[%s4913 + $0x70] sm:$0xff]
    %v4929 = vld [vmem:[%s4913 + $0x78] sm:$0xff]
    %v4930 = vld [vmem:[%s4913 + $0x80] sm:$0xff]
    %v4931 = vld [vmem:[%s4913 + $0x88] sm:$0xff]
    %v4932 = vld [vmem:[%s4913 + $0x90] sm:$0xff]
    %v4933 = vld [vmem:[%s4913 + $0x98] sm:$0xff]
    %v4934 = vld [vmem:[%s4913 + $0xa0] sm:$0xff]
    %v4935 = vld [vmem:[%s4913 + $0xa8] sm:$0xff]
    %v4936 = vld [vmem:[%s4913 + $0xb0] sm:$0xff]
    %v4937 = vld [vmem:[%s4913 + $0xb8] sm:$0xff]
    %v4938 = vld [vmem:[%s4913 + $0xc0] sm:$0xff]
    %v4939 = vld [vmem:[%s4913 + $0xc8] sm:$0xff]
    %v4940 = vld [vmem:[%s4913 + $0xd0] sm:$0xff]
    %v4941 = vld [vmem:[%s4913 + $0xd8] sm:$0xff]
    %v4942 = vld [vmem:[%s4913 + $0xe0] sm:$0xff]
    %v4943 = vld [vmem:[%s4913 + $0xe8] sm:$0xff]
    %v4944 = vld [vmem:[%s4913 + $0xf0] sm:$0xff]
    %v4945 = vld [vmem:[%s4913 + $0xf8] sm:$0xff]
    %v4947 = vunpack.c.l.b16 %v4912
    %v4948 = vunpack.c.h.b16 %v4912
    %v4949 = vpack.c.b16 %v3239, %v4947
    %v4950 = vpack.c.b16 %v3240, %v4948
    %vm4951 = vcmask 1045504
    %v4952 = vrot.slane %v4949, 2
    %v4953 = vrot.slane %v3273, 2
    %v4954 = vsel %vm4951, %v4952, %v4953
    %v4955 = vrot.slane %v4950, 2
    %v4956 = vrot.slane %v3274, 2
    %v4957 = vsel %vm4951, %v4955, %v4956
    %v4958 = vrot.slane %v3275, 2
    %v4959 = vsel %vm4951, %v4953, %v4958
    %v4960 = vrot.slane %v3276, 2
    %v4961 = vsel %vm4951, %v4956, %v4960
    %v4962 = vrot.slane %v3277, 2
    %v4963 = vsel %vm4951, %v4958, %v4962
    %v4964 = vrot.slane %v3278, 2
    %v4965 = vsel %vm4951, %v4960, %v4964
    %v4966 = vrot.slane %v3279, 2
    %v4967 = vsel %vm4951, %v4962, %v4966
    %v4968 = vrot.slane %v3280, 2
    %v4969 = vsel %vm4951, %v4964, %v4968
    %v4970 = vrot.slane %v3281, 2
    %v4971 = vsel %vm4951, %v4966, %v4970
    %v4972 = vrot.slane %v3282, 2
    %v4973 = vsel %vm4951, %v4968, %v4972
    %v4974 = vrot.slane %v3283, 2
    %v4975 = vsel %vm4951, %v4970, %v4974
    %v4976 = vrot.slane %v3284, 2
    %v4977 = vsel %vm4951, %v4972, %v4976
    %v4978 = vrot.slane %v3285, 2
    %v4979 = vsel %vm4951, %v4974, %v4978
    %v4980 = vrot.slane %v3286, 2
    %v4981 = vsel %vm4951, %v4976, %v4980
    %v4982 = vrot.slane %v4498, 2
    %v4983 = vsel %vm4951, %v4978, %v4982
    %v4984 = vrot.slane %v4499, 2
    %v4985 = vsel %vm4951, %v4980, %v4984
    %v5034 = vunpack.c.l.b16 %v4914
    %v5035 = vunpack.c.h.b16 %v4914
    %v5036 = vunpack.c.l.b16 %v4915
    %v5037 = vunpack.c.h.b16 %v4915
    %v5038 = vunpack.c.l.b16 %v4916
    %v5039 = vunpack.c.h.b16 %v4916
    %v5040 = vunpack.c.l.b16 %v4917
    %v5041 = vunpack.c.h.b16 %v4917
    %v5042 = vunpack.c.l.b16 %v4918
    %v5043 = vunpack.c.h.b16 %v4918
    %v5044 = vunpack.c.l.b16 %v4919
    %v5045 = vunpack.c.h.b16 %v4919
    %v5046 = vunpack.c.l.b16 %v4920
    %v5047 = vunpack.c.h.b16 %v4920
    %v5048 = vunpack.c.l.b16 %v4921
    %v5049 = vunpack.c.h.b16 %v4921
    %v5050 = vunpack.c.l.b16 %v4922
    %v5051 = vunpack.c.h.b16 %v4922
    %v5052 = vunpack.c.l.b16 %v4923
    %v5053 = vunpack.c.h.b16 %v4923
    %v5054 = vunpack.c.l.b16 %v4924
    %v5055 = vunpack.c.h.b16 %v4924
    %v5056 = vunpack.c.l.b16 %v4925
    %v5057 = vunpack.c.h.b16 %v4925
    %v5058 = vunpack.c.l.b16 %v4926
    %v5059 = vunpack.c.h.b16 %v4926
    %v5060 = vunpack.c.l.b16 %v4927
    %v5061 = vunpack.c.h.b16 %v4927
    %v5062 = vunpack.c.l.b16 %v4928
    %v5063 = vunpack.c.h.b16 %v4928
    %v5064 = vunpack.c.l.b16 %v4929
    %v5065 = vunpack.c.h.b16 %v4929
    %v5066 = vunpack.c.l.b16 %v4930
    %v5067 = vunpack.c.h.b16 %v4930
    %v5068 = vunpack.c.l.b16 %v4931
    %v5069 = vunpack.c.h.b16 %v4931
    %v5070 = vunpack.c.l.b16 %v4932
    %v5071 = vunpack.c.h.b16 %v4932
    %v5072 = vunpack.c.l.b16 %v4933
    %v5073 = vunpack.c.h.b16 %v4933
    %v5074 = vunpack.c.l.b16 %v4934
    %v5075 = vunpack.c.h.b16 %v4934
    %v5076 = vunpack.c.l.b16 %v4935
    %v5077 = vunpack.c.h.b16 %v4935
    %v5078 = vunpack.c.l.b16 %v4936
    %v5079 = vunpack.c.h.b16 %v4936
    %v5080 = vunpack.c.l.b16 %v4937
    %v5081 = vunpack.c.h.b16 %v4937
    %v5082 = vunpack.c.l.b16 %v4938
    %v5083 = vunpack.c.h.b16 %v4938
    %v5084 = vunpack.c.l.b16 %v4939
    %v5085 = vunpack.c.h.b16 %v4939
    %v5086 = vunpack.c.l.b16 %v4940
    %v5087 = vunpack.c.h.b16 %v4940
    %v5088 = vunpack.c.l.b16 %v4941
    %v5089 = vunpack.c.h.b16 %v4941
    %v5090 = vunpack.c.l.b16 %v4942
    %v5091 = vunpack.c.h.b16 %v4942
    %v5092 = vunpack.c.l.b16 %v4943
    %v5093 = vunpack.c.h.b16 %v4943
    %v5094 = vunpack.c.l.b16 %v4944
    %v5095 = vunpack.c.h.b16 %v4944
    %v5096 = vunpack.c.l.b16 %v4945
    %v5097 = vunpack.c.h.b16 %v4945
    %v5098 = vpack.c.b16 %v5036, %v5034
    %v5099 = vpack.c.b16 %v5037, %v5035
    %v5100 = vpack.c.b16 %v5040, %v5038
    %v5101 = vpack.c.b16 %v5041, %v5039
    %v5102 = vpack.c.b16 %v5044, %v5042
    %v5103 = vpack.c.b16 %v5045, %v5043
    %v5104 = vpack.c.b16 %v5048, %v5046
    %v5105 = vpack.c.b16 %v5049, %v5047
    %v5106 = vpack.c.b16 %v5052, %v5050
    %v5107 = vpack.c.b16 %v5053, %v5051
    %v5108 = vpack.c.b16 %v5056, %v5054
    %v5109 = vpack.c.b16 %v5057, %v5055
    %v5110 = vpack.c.b16 %v5060, %v5058
    %v5111 = vpack.c.b16 %v5061, %v5059
    %v5112 = vpack.c.b16 %v5064, %v5062
    %v5113 = vpack.c.b16 %v5065, %v5063
    %v5114 = vpack.c.b16 %v5068, %v5066
    %v5115 = vpack.c.b16 %v5069, %v5067
    %v5116 = vpack.c.b16 %v5072, %v5070
    %v5117 = vpack.c.b16 %v5073, %v5071
    %v5118 = vpack.c.b16 %v5076, %v5074
    %v5119 = vpack.c.b16 %v5077, %v5075
    %v5120 = vpack.c.b16 %v5080, %v5078
    %v5121 = vpack.c.b16 %v5081, %v5079
    %v5122 = vpack.c.b16 %v5084, %v5082
    %v5123 = vpack.c.b16 %v5085, %v5083
    %v5124 = vpack.c.b16 %v5088, %v5086
    %v5125 = vpack.c.b16 %v5089, %v5087
    %v5126 = vpack.c.b16 %v5092, %v5090
    %v5127 = vpack.c.b16 %v5093, %v5091
    %v5128 = vpack.c.b16 %v5096, %v5094
    %v5129 = vpack.c.b16 %v5097, %v5095
    %5162 = vmatprep.subr.bf16.mxu0 %v5113
    %5163 = vmatpush1.bf16.msra.mxu0 %v5112
    %5164 = vmatprep.subr.bf16.mxu0 %v5111
    %5165 = vmatpush1.bf16.msra.mxu0 %v5110
    %5166 = vmatprep.subr.bf16.mxu0 %v5109
    %5167 = vmatpush1.bf16.msra.mxu0 %v5108
    %5168 = vmatprep.subr.bf16.mxu0 %v5107
    %5169 = vmatpush1.bf16.msra.mxu0 %v5106
    %5170 = vmatprep.subr.bf16.mxu0 %v5105
    %5171 = vmatpush1.bf16.msra.mxu0 %v5104
    %5172 = vmatprep.subr.bf16.mxu0 %v5103
    %5173 = vmatpush1.bf16.msra.mxu0 %v5102
    %5174 = vmatprep.subr.bf16.mxu0 %v5101
    %5175 = vmatpush1.bf16.msra.mxu0 %v5100
    %5176 = vmatprep.subr.bf16.mxu0 %v5099
    %5177 = vmatpush1.bf16.msra.mxu0 %v5098
    %5178 = vmatprep.subr.bf16.mxu0 %v5129
    %5179 = vmatpush2.bf16.msra.mxu0 %v5128
    %5180 = vmatprep.subr.bf16.mxu0 %v5127
    %5181 = vmatpush2.bf16.msra.mxu0 %v5126
    %5182 = vmatprep.subr.bf16.mxu0 %v5125
    %5183 = vmatpush2.bf16.msra.mxu0 %v5124
    %5184 = vmatprep.subr.bf16.mxu0 %v5123
    %5185 = vmatpush2.bf16.msra.mxu0 %v5122
    %5186 = vmatprep.subr.bf16.mxu0 %v5121
    %5187 = vmatpush2.bf16.msra.mxu0 %v5120
    %5188 = vmatprep.subr.bf16.mxu0 %v5119
    %5189 = vmatpush2.bf16.msra.mxu0 %v5118
    %5190 = vmatprep.subr.bf16.mxu0 %v5117
    %5191 = vmatpush2.bf16.msra.mxu0 %v5116
    %5192 = vmatprep.subr.bf16.mxu0 %v5115
    %5193 = vmatpush2.bf16.msra.mxu0 %v5114
    %5194 = vmatprep.mubr.bf16.mxu0 %v4957
    %5195 = vmatmul.mubr.bf16.gmra.mxu0 %v4954
    %v5196 = vpop.f32.mrf.mxu0
    %v5197 = vadd.f32 0.0, %v5196
    %v5198 = vpop.f32.mrf.mxu0
    %v5199 = vadd.f32 0.0, %v5198
    %v5200 = vpop.f32.mrf.mxu0
    %v5201 = vadd.f32 0.0, %v5200
    %v5202 = vpop.f32.mrf.mxu0
    %v5203 = vadd.f32 0.0, %v5202
    %5204 = vmatprep.mubr.bf16.mxu0 %v4961
    %5205 = vmatmul.mubr.bf16.gmra.mxu0 %v4959
    %v5206 = vpop.f32.mrf.mxu0
    %v5207 = vadd.f32 0.0, %v5206
    %v5208 = vpop.f32.mrf.mxu0
    %v5209 = vadd.f32 0.0, %v5208
    %v5210 = vpop.f32.mrf.mxu0
    %v5211 = vadd.f32 0.0, %v5210
    %v5212 = vpop.f32.mrf.mxu0
    %v5213 = vadd.f32 0.0, %v5212
    %5214 = vmatprep.mubr.bf16.mxu0 %v4965
    %5215 = vmatmul.mubr.bf16.gmra.mxu0 %v4963
    %v5216 = vpop.f32.mrf.mxu0
    %v5217 = vadd.f32 0.0, %v5216
    %v5218 = vpop.f32.mrf.mxu0
    %v5219 = vadd.f32 0.0, %v5218
    %v5220 = vpop.f32.mrf.mxu0
    %v5221 = vadd.f32 0.0, %v5220
    %v5222 = vpop.f32.mrf.mxu0
    %v5223 = vadd.f32 0.0, %v5222
    %5224 = vmatprep.mubr.bf16.mxu0 %v4969
    %5225 = vmatmul.mubr.bf16.gmra.mxu0 %v4967
    %v5226 = vpop.f32.mrf.mxu0
    %v5227 = vadd.f32 0.0, %v5226
    %v5228 = vpop.f32.mrf.mxu0
    %v5229 = vadd.f32 0.0, %v5228
    %v5230 = vpop.f32.mrf.mxu0
    %v5231 = vadd.f32 0.0, %v5230
    %v5232 = vpop.f32.mrf.mxu0
    %v5233 = vadd.f32 0.0, %v5232
    %5234 = vmatprep.mubr.bf16.mxu0 %v4973
    %5235 = vmatmul.mubr.bf16.gmra.mxu0 %v4971
    %v5236 = vpop.f32.mrf.mxu0
    %v5237 = vadd.f32 0.0, %v5236
    %v5238 = vpop.f32.mrf.mxu0
    %v5239 = vadd.f32 0.0, %v5238
    %v5240 = vpop.f32.mrf.mxu0
    %v5241 = vadd.f32 0.0, %v5240
    %v5242 = vpop.f32.mrf.mxu0
    %v5243 = vadd.f32 0.0, %v5242
    %5244 = vmatprep.mubr.bf16.mxu0 %v4977
    %5245 = vmatmul.mubr.bf16.gmra.mxu0 %v4975
    %v5246 = vpop.f32.mrf.mxu0
    %v5247 = vadd.f32 0.0, %v5246
    %v5248 = vpop.f32.mrf.mxu0
    %v5249 = vadd.f32 0.0, %v5248
    %v5250 = vpop.f32.mrf.mxu0
    %v5251 = vadd.f32 0.0, %v5250
    %v5252 = vpop.f32.mrf.mxu0
    %v5253 = vadd.f32 0.0, %v5252
    %5254 = vmatprep.mubr.bf16.mxu0 %v4981
    %5255 = vmatmul.mubr.bf16.gmra.mxu0 %v4979
    %v5256 = vpop.f32.mrf.mxu0
    %v5257 = vadd.f32 0.0, %v5256
    %v5258 = vpop.f32.mrf.mxu0
    %v5259 = vadd.f32 0.0, %v5258
    %v5260 = vpop.f32.mrf.mxu0
    %v5261 = vadd.f32 0.0, %v5260
    %v5262 = vpop.f32.mrf.mxu0
    %v5263 = vadd.f32 0.0, %v5262
    %5264 = vmatprep.mubr.bf16.mxu0 %v4985
    %5265 = vmatmul.mubr.bf16.gmra.mxu0 %v4983
    %v5266 = vpop.f32.mrf.mxu0
    %v5267 = vadd.f32 0.0, %v5266
    %v5268 = vpop.f32.mrf.mxu0
    %v5269 = vadd.f32 0.0, %v5268
    %v5270 = vpop.f32.mrf.mxu0
    %v5271 = vadd.f32 0.0, %v5270
    %v5272 = vpop.f32.mrf.mxu0
    %v5273 = vadd.f32 0.0, %v5272
    %5274 = vdwg.mxu0
    %v5275 = vadd.f32 %v4880, %v5197
    %v5276 = vadd.f32 %v4881, %v5199
    %v5277 = vadd.f32 %v4882, %v5201
    %v5278 = vadd.f32 %v4883, %v5203
    %v5279 = vadd.f32 %v4884, %v5207
    %v5280 = vadd.f32 %v4885, %v5209
    %v5281 = vadd.f32 %v4886, %v5211
    %v5282 = vadd.f32 %v4887, %v5213
    %v5283 = vadd.f32 %v4888, %v5217
    %v5284 = vadd.f32 %v4889, %v5219
    %v5285 = vadd.f32 %v4890, %v5221
    %v5286 = vadd.f32 %v4891, %v5223
    %v5287 = vadd.f32 %v4892, %v5227
    %v5288 = vadd.f32 %v4893, %v5229
    %v5289 = vadd.f32 %v4894, %v5231
    %v5290 = vadd.f32 %v4895, %v5233
    %v5291 = vadd.f32 %v4896, %v5237
    %v5292 = vadd.f32 %v4897, %v5239
    %v5293 = vadd.f32 %v4898, %v5241
    %v5294 = vadd.f32 %v4899, %v5243
    %v5295 = vadd.f32 %v4900, %v5247
    %v5296 = vadd.f32 %v4901, %v5249
    %v5297 = vadd.f32 %v4902, %v5251
    %v5298 = vadd.f32 %v4903, %v5253
    %v5299 = vadd.f32 %v4904, %v5257
    %v5300 = vadd.f32 %v4905, %v5259
    %v5301 = vadd.f32 %v4906, %v5261
    %v5302 = vadd.f32 %v4907, %v5263
    %v5303 = vadd.f32 %v4908, %v5267
    %v5304 = vadd.f32 %v4909, %v5269
    %v5305 = vadd.f32 %v4910, %v5271
    %v5306 = vadd.f32 %v4911, %v5273
    %v5307 = vld [vmem:[%s5] sm:$0x3]
    %v5309 = vlaneseq
    %v5310 = vshrl.u32 %v5309, 7
    %v5311 = vsub.s32 0, %v5310
    %v5312 = vrot.slane %v5307, %v5311
    %v5313 = vlaneseq
    %v5314 = vshrl.u32 %v5313, 7
    %v5315 = vsub.s32 1, %v5314
    %v5316 = vrot.slane %v5307, %v5315
    %v5319 = vadd.f32 %v5275, %v5312
    %v5320 = vadd.f32 %v5276, %v5316
    %v5321 = vadd.f32 %v5277, %v5312
    %v5322 = vadd.f32 %v5278, %v5316
    %v5323 = vadd.f32 %v5279, %v5312
    %v5324 = vadd.f32 %v5280, %v5316
    %v5325 = vadd.f32 %v5281, %v5312
    %v5326 = vadd.f32 %v5282, %v5316
    %v5327 = vadd.f32 %v5283, %v5312
    %v5328 = vadd.f32 %v5284, %v5316
    %v5329 = vadd.f32 %v5285, %v5312
    %v5330 = vadd.f32 %v5286, %v5316
    %v5331 = vadd.f32 %v5287, %v5312
    %v5332 = vadd.f32 %v5288, %v5316
    %v5333 = vadd.f32 %v5289, %v5312
    %v5334 = vadd.f32 %v5290, %v5316
    %v5335 = vadd.f32 %v5291, %v5312
    %v5336 = vadd.f32 %v5292, %v5316
    %v5337 = vadd.f32 %v5293, %v5312
    %v5338 = vadd.f32 %v5294, %v5316
    %v5339 = vadd.f32 %v5295, %v5312
    %v5340 = vadd.f32 %v5296, %v5316
    %v5341 = vadd.f32 %v5297, %v5312
    %v5342 = vadd.f32 %v5298, %v5316
    %v5343 = vadd.f32 %v5299, %v5312
    %v5344 = vadd.f32 %v5300, %v5316
    %v5345 = vadd.f32 %v5301, %v5312
    %v5346 = vadd.f32 %v5302, %v5316
    %v5347 = vadd.f32 %v5303, %v5312
    %v5348 = vadd.f32 %v5304, %v5316
    %v5349 = vadd.f32 %v5305, %v5312
    %v5350 = vadd.f32 %v5306, %v5316
    %v5351 = vtanh.pop %v5319
    %v5352 = vtanh.pop %v5320
    %v5353 = vtanh.pop %v5321
    %v5354 = vtanh.pop %v5322
    %v5355 = vtanh.pop %v5323
    %v5356 = vtanh.pop %v5324
    %v5357 = vtanh.pop %v5325
    %v5358 = vtanh.pop %v5326
    %v5359 = vtanh.pop %v5327
    %v5360 = vtanh.pop %v5328
    %v5361 = vtanh.pop %v5329
    %v5362 = vtanh.pop %v5330
    %v5363 = vtanh.pop %v5331
    %v5364 = vtanh.pop %v5332
    %v5365 = vtanh.pop %v5333
    %v5366 = vtanh.pop %v5334
    %v5367 = vtanh.pop %v5335
    %v5368 = vtanh.pop %v5336
    %v5369 = vtanh.pop %v5337
    %v5370 = vtanh.pop %v5338
    %v5371 = vtanh.pop %v5339
    %v5372 = vtanh.pop %v5340
    %v5373 = vtanh.pop %v5341
    %v5374 = vtanh.pop %v5342
    %v5375 = vtanh.pop %v5343
    %v5376 = vtanh.pop %v5344
    %v5377 = vtanh.pop %v5345
    %v5378 = vtanh.pop %v5346
    %v5379 = vtanh.pop %v5347
    %v5380 = vtanh.pop %v5348
    %v5381 = vtanh.pop %v5349
    %v5382 = vtanh.pop %v5350
    %v5383 = vpack.c.bf16 %v5353, %v5351
    %v5384 = vpack.c.bf16 %v5354, %v5352
    %v5385 = vpack.c.bf16 %v5357, %v5355
    %v5386 = vpack.c.bf16 %v5358, %v5356
    %v5387 = vpack.c.bf16 %v5361, %v5359
    %v5388 = vpack.c.bf16 %v5362, %v5360
    %v5389 = vpack.c.bf16 %v5365, %v5363
    %v5390 = vpack.c.bf16 %v5366, %v5364
    %v5391 = vpack.c.bf16 %v5369, %v5367
    %v5392 = vpack.c.bf16 %v5370, %v5368
    %v5393 = vpack.c.bf16 %v5373, %v5371
    %v5394 = vpack.c.bf16 %v5374, %v5372
    %v5395 = vpack.c.bf16 %v5377, %v5375
    %v5396 = vpack.c.bf16 %v5378, %v5376
    %v5397 = vpack.c.bf16 %v5381, %v5379
    %v5398 = vpack.c.bf16 %v5382, %v5380
    %v5415 = vunpack.c.l.b16 %v5383
    %v5416 = vunpack.c.l.b16 %v5384
    %v5417 = vunpack.c.h.b16 %v5383
    %v5418 = vunpack.c.h.b16 %v5384
    %v5419 = vunpack.c.l.b16 %v5385
    %v5420 = vunpack.c.l.b16 %v5386
    %v5421 = vunpack.c.h.b16 %v5385
    %v5422 = vunpack.c.h.b16 %v5386
    %v5423 = vunpack.c.l.b16 %v5387
    %v5424 = vunpack.c.l.b16 %v5388
    %v5425 = vunpack.c.h.b16 %v5387
    %v5426 = vunpack.c.h.b16 %v5388
    %v5427 = vunpack.c.l.b16 %v5389
    %v5428 = vunpack.c.l.b16 %v5390
    %v5429 = vunpack.c.h.b16 %v5389
    %v5430 = vunpack.c.h.b16 %v5390
    %v5431 = vunpack.c.l.b16 %v5391
    %v5432 = vunpack.c.l.b16 %v5392
    %v5433 = vunpack.c.h.b16 %v5391
    %v5434 = vunpack.c.h.b16 %v5392
    %v5435 = vunpack.c.l.b16 %v5393
    %v5436 = vunpack.c.l.b16 %v5394
    %v5437 = vunpack.c.h.b16 %v5393
    %v5438 = vunpack.c.h.b16 %v5394
    %v5439 = vunpack.c.l.b16 %v5395
    %v5440 = vunpack.c.l.b16 %v5396
    %v5441 = vunpack.c.h.b16 %v5395
    %v5442 = vunpack.c.h.b16 %v5396
    %v5443 = vunpack.c.l.b16 %v5397
    %v5444 = vunpack.c.l.b16 %v5398
    %v5445 = vunpack.c.h.b16 %v5397
    %v5446 = vunpack.c.h.b16 %v5398
    %v5447 = vpack.c.b16 %v5416, %v5415
    %v5448 = vpack.c.b16 %v5418, %v5417
    %v5449 = vpack.c.b16 %v5420, %v5419
    %v5450 = vpack.c.b16 %v5422, %v5421
    %v5451 = vpack.c.b16 %v5424, %v5423
    %v5452 = vpack.c.b16 %v5426, %v5425
    %v5453 = vpack.c.b16 %v5428, %v5427
    %v5454 = vpack.c.b16 %v5430, %v5429
    %v5455 = vpack.c.b16 %v5432, %v5431
    %v5456 = vpack.c.b16 %v5434, %v5433
    %v5457 = vpack.c.b16 %v5436, %v5435
    %v5458 = vpack.c.b16 %v5438, %v5437
    %v5459 = vpack.c.b16 %v5440, %v5439
    %v5460 = vpack.c.b16 %v5442, %v5441
    %v5461 = vpack.c.b16 %v5444, %v5443
    %v5462 = vpack.c.b16 %v5446, %v5445
    %5479 = vst [vmem:[#allocation3] sm:$0xff] %v5447
    %5480 = vst [vmem:[#allocation3 + $0x8] sm:$0xff] %v5448
    %5481 = vst [vmem:[#allocation3 + $0x10] sm:$0xff] %v5449
    %5482 = vst [vmem:[#allocation3 + $0x18] sm:$0xff] %v5450
    %5483 = vst [vmem:[#allocation3 + $0x20] sm:$0xff] %v5451
    %5484 = vst [vmem:[#allocation3 + $0x28] sm:$0xff] %v5452
    %5485 = vst [vmem:[#allocation3 + $0x30] sm:$0xff] %v5453
    %5486 = vst [vmem:[#allocation3 + $0x38] sm:$0xff] %v5454
    %5487 = vst [vmem:[#allocation3 + $0x40] sm:$0xff] %v5455
    %5488 = vst [vmem:[#allocation3 + $0x48] sm:$0xff] %v5456
    %5489 = vst [vmem:[#allocation3 + $0x50] sm:$0xff] %v5457
    %5490 = vst [vmem:[#allocation3 + $0x58] sm:$0xff] %v5458
    %5491 = vst [vmem:[#allocation3 + $0x60] sm:$0xff] %v5459
    %5492 = vst [vmem:[#allocation3 + $0x68] sm:$0xff] %v5460
    %5493 = vst [vmem:[#allocation3 + $0x70] sm:$0xff] %v5461
    %5494 = vst [vmem:[#allocation3 + $0x78] sm:$0xff] %v5462
    %5495 = vst [vmem:[#allocation3 + $0x80] sm:$0xff] 0
    %5496 = vst [vmem:[#allocation3 + $0x88] sm:$0xff] 0
    %v5497 = vld [vmem:[#allocation3] sm:$0xff]
    %v5498 = vld [vmem:[#allocation3 + $0x8] sm:$0xff]
    %v5499 = vld [vmem:[#allocation3 + $0x10] sm:$0xff]
    %v5500 = vld [vmem:[#allocation3 + $0x18] sm:$0xff]
    %v5501 = vld [vmem:[#allocation3 + $0x20] sm:$0xff]
    %v5502 = vld [vmem:[#allocation3 + $0x28] sm:$0xff]
    %v5503 = vld [vmem:[#allocation3 + $0x30] sm:$0xff]
    %v5504 = vld [vmem:[#allocation3 + $0x38] sm:$0xff]
    %v5505 = vld [vmem:[#allocation3 + $0x40] sm:$0xff]
    %v5506 = vld [vmem:[#allocation3 + $0x48] sm:$0xff]
    %v5507 = vld [vmem:[#allocation3 + $0x50] sm:$0xff]
    %v5508 = vld [vmem:[#allocation3 + $0x58] sm:$0xff]
    %v5509 = vld [vmem:[#allocation3 + $0x60] sm:$0xff]
    %v5510 = vld [vmem:[#allocation3 + $0x68] sm:$0xff]
    %v5511 = vld [vmem:[#allocation3 + $0x70] sm:$0xff]
    %v5512 = vld [vmem:[#allocation3 + $0x78] sm:$0xff]
    %v5513 = vld [vmem:[#allocation8] sm:$0xf]
    %v5514 = vld [vmem:[#allocation8 + $0x4] sm:$0xf]
    %v5515 = vld [vmem:[#allocation8 + $0x8] sm:$0xf]
    %v5516 = vld [vmem:[#allocation8 + $0xc] sm:$0xf]
    %v5517 = vld [vmem:[#allocation8 + $0x10] sm:$0xf]
    %v5518 = vld [vmem:[#allocation8 + $0x14] sm:$0xf]
    %v5519 = vld [vmem:[#allocation8 + $0x18] sm:$0xf]
    %v5520 = vld [vmem:[#allocation8 + $0x1c] sm:$0xf]
    %v5521 = vld [vmem:[#allocation8 + $0x20] sm:$0xf]
    %v5522 = vld [vmem:[#allocation8 + $0x24] sm:$0xf]
    %v5523 = vld [vmem:[#allocation8 + $0x28] sm:$0xf]
    %v5524 = vld [vmem:[#allocation8 + $0x2c] sm:$0xf]
    %v5525 = vld [vmem:[#allocation8 + $0x30] sm:$0xf]
    %v5526 = vld [vmem:[#allocation8 + $0x34] sm:$0xf]
    %v5527 = vld [vmem:[#allocation8 + $0x38] sm:$0xf]
    %v5528 = vld [vmem:[#allocation8 + $0x3c] sm:$0xf]
    %v5529 = vld [vmem:[#allocation8 + $0x40] sm:$0xf]
    %v5530 = vld [vmem:[#allocation8 + $0x44] sm:$0xf]
    %v5531 = vld [vmem:[#allocation8 + $0x48] sm:$0xf]
    %v5532 = vld [vmem:[#allocation8 + $0x4c] sm:$0xf]
    %v5533 = vld [vmem:[#allocation8 + $0x50] sm:$0xf]
    %v5534 = vld [vmem:[#allocation8 + $0x54] sm:$0xf]
    %v5535 = vld [vmem:[#allocation8 + $0x58] sm:$0xf]
    %v5536 = vld [vmem:[#allocation8 + $0x5c] sm:$0xf]
    %v5537 = vld [vmem:[#allocation8 + $0x60] sm:$0xf]
    %v5538 = vld [vmem:[#allocation8 + $0x64] sm:$0xf]
    %v5539 = vld [vmem:[#allocation8 + $0x68] sm:$0xf]
    %v5540 = vld [vmem:[#allocation8 + $0x6c] sm:$0xf]
    %v5541 = vld [vmem:[#allocation8 + $0x70] sm:$0xf]
    %v5542 = vld [vmem:[#allocation8 + $0x74] sm:$0xf]
    %v5543 = vld [vmem:[#allocation8 + $0x78] sm:$0xf]
    %v5544 = vld [vmem:[#allocation8 + $0x7c] sm:$0xf]
    %v5545 = vld [vmem:[#allocation3 + $0x80] sm:$0x11]
    %s5546 = scalar_lea.vmem [#allocation8], 128
    %v5547 = vld [vmem:[%s5546] sm:$0xf]
    %v5548 = vld [vmem:[%s5546 + $0x4] sm:$0xf]
    %v5549 = vld [vmem:[%s5546 + $0x8] sm:$0xf]
    %v5550 = vld [vmem:[%s5546 + $0xc] sm:$0xf]
    %v5551 = vld [vmem:[%s5546 + $0x10] sm:$0xf]
    %v5552 = vld [vmem:[%s5546 + $0x14] sm:$0xf]
    %v5553 = vld [vmem:[%s5546 + $0x18] sm:$0xf]
    %v5554 = vld [vmem:[%s5546 + $0x1c] sm:$0xf]
    %v5555 = vld [vmem:[%s5546 + $0x20] sm:$0xf]
    %v5556 = vld [vmem:[%s5546 + $0x24] sm:$0xf]
    %v5557 = vld [vmem:[%s5546 + $0x28] sm:$0xf]
    %v5558 = vld [vmem:[%s5546 + $0x2c] sm:$0xf]
    %v5559 = vld [vmem:[%s5546 + $0x30] sm:$0xf]
    %v5560 = vld [vmem:[%s5546 + $0x34] sm:$0xf]
    %v5561 = vld [vmem:[%s5546 + $0x38] sm:$0xf]
    %v5562 = vld [vmem:[%s5546 + $0x3c] sm:$0xf]
    %v5563 = vld [vmem:[%s5546 + $0x40] sm:$0xf]
    %v5564 = vld [vmem:[%s5546 + $0x44] sm:$0xf]
    %v5565 = vld [vmem:[%s5546 + $0x48] sm:$0xf]
    %v5566 = vld [vmem:[%s5546 + $0x4c] sm:$0xf]
    %v5567 = vld [vmem:[%s5546 + $0x50] sm:$0xf]
    %v5568 = vld [vmem:[%s5546 + $0x54] sm:$0xf]
    %v5569 = vld [vmem:[%s5546 + $0x58] sm:$0xf]
    %v5570 = vld [vmem:[%s5546 + $0x5c] sm:$0xf]
    %v5571 = vld [vmem:[%s5546 + $0x60] sm:$0xf]
    %v5572 = vld [vmem:[%s5546 + $0x64] sm:$0xf]
    %v5573 = vld [vmem:[%s5546 + $0x68] sm:$0xf]
    %v5574 = vld [vmem:[%s5546 + $0x6c] sm:$0xf]
    %v5575 = vld [vmem:[%s5546 + $0x70] sm:$0xf]
    %v5576 = vld [vmem:[%s5546 + $0x74] sm:$0xf]
    %v5577 = vld [vmem:[%s5546 + $0x78] sm:$0xf]
    %v5578 = vld [vmem:[%s5546 + $0x7c] sm:$0xf]
    %v5596 = vunpack.c.l.b16 %v5497
    %v5597 = vunpack.c.h.b16 %v5497
    %v5598 = vunpack.c.l.b16 %v5498
    %v5599 = vunpack.c.h.b16 %v5498
    %v5600 = vunpack.c.l.b16 %v5499
    %v5601 = vunpack.c.h.b16 %v5499
    %v5602 = vunpack.c.l.b16 %v5500
    %v5603 = vunpack.c.h.b16 %v5500
    %v5604 = vunpack.c.l.b16 %v5501
    %v5605 = vunpack.c.h.b16 %v5501
    %v5606 = vunpack.c.l.b16 %v5502
    %v5607 = vunpack.c.h.b16 %v5502
    %v5608 = vunpack.c.l.b16 %v5503
    %v5609 = vunpack.c.h.b16 %v5503
    %v5610 = vunpack.c.l.b16 %v5504
    %v5611 = vunpack.c.h.b16 %v5504
    %v5612 = vunpack.c.l.b16 %v5505
    %v5613 = vunpack.c.h.b16 %v5505
    %v5614 = vunpack.c.l.b16 %v5506
    %v5615 = vunpack.c.h.b16 %v5506
    %v5616 = vunpack.c.l.b16 %v5507
    %v5617 = vunpack.c.h.b16 %v5507
    %v5618 = vunpack.c.l.b16 %v5508
    %v5619 = vunpack.c.h.b16 %v5508
    %v5620 = vunpack.c.l.b16 %v5509
    %v5621 = vunpack.c.h.b16 %v5509
    %v5622 = vunpack.c.l.b16 %v5510
    %v5623 = vunpack.c.h.b16 %v5510
    %v5624 = vunpack.c.l.b16 %v5511
    %v5625 = vunpack.c.h.b16 %v5511
    %v5626 = vunpack.c.l.b16 %v5512
    %v5627 = vunpack.c.h.b16 %v5512
    %v5628 = vunpack.c.l.b16 %v5545
    %v5629 = vunpack.c.h.b16 %v5545
    %v5630 = vpack.c.b16 %v5598, %v5596
    %v5631 = vpack.c.b16 %v5599, %v5597
    %v5632 = vpack.c.b16 %v5602, %v5600
    %v5633 = vpack.c.b16 %v5603, %v5601
    %v5634 = vpack.c.b16 %v5606, %v5604
    %v5635 = vpack.c.b16 %v5607, %v5605
    %v5636 = vpack.c.b16 %v5610, %v5608
    %v5637 = vpack.c.b16 %v5611, %v5609
    %v5638 = vpack.c.b16 %v5614, %v5612
    %v5639 = vpack.c.b16 %v5615, %v5613
    %v5640 = vpack.c.b16 %v5618, %v5616
    %v5641 = vpack.c.b16 %v5619, %v5617
    %v5642 = vpack.c.b16 %v5622, %v5620
    %v5643 = vpack.c.b16 %v5623, %v5621
    %v5644 = vpack.c.b16 %v5626, %v5624
    %v5645 = vpack.c.b16 %v5627, %v5625
    %v5646 = vpack.c.b16 %v5628, %v5628
    %v5647 = vpack.c.b16 %v5629, %v5629
    %v5649 = vshrl.u32 %v5630, 16
    %v5651 = vshll.u32 %v5630, 16
    %v5653 = vrot.slane %v5651, 1
    %v5654 = vor.u32 %v5649, %v5653
    %v5656 = vshll.u32 %v5632, 16
    %v5658 = vrot.slane %v5656, 1
    %v5659 = vsel %vm710, %v5654, %v5658
    %v5661 = vshrl.u32 %v5631, 16
    %v5663 = vshll.u32 %v5631, 16
    %v5665 = vrot.slane %v5663, 1
    %v5666 = vor.u32 %v5661, %v5665
    %v5668 = vshll.u32 %v5633, 16
    %v5670 = vrot.slane %v5668, 1
    %v5671 = vsel %vm710, %v5666, %v5670
    %v5672 = vshrl.u32 %v5632, 16
    %v5674 = vor.u32 %v5672, %v5658
    %v5676 = vshll.u32 %v5634, 16
    %v5678 = vrot.slane %v5676, 1
    %v5679 = vsel %vm710, %v5674, %v5678
    %v5680 = vshrl.u32 %v5633, 16
    %v5682 = vor.u32 %v5680, %v5670
    %v5684 = vshll.u32 %v5635, 16
    %v5686 = vrot.slane %v5684, 1
    %v5687 = vsel %vm710, %v5682, %v5686
    %v5688 = vshrl.u32 %v5634, 16
    %v5690 = vor.u32 %v5688, %v5678
    %v5692 = vshll.u32 %v5636, 16
    %v5694 = vrot.slane %v5692, 1
    %v5695 = vsel %vm710, %v5690, %v5694
    %v5696 = vshrl.u32 %v5635, 16
    %v5698 = vor.u32 %v5696, %v5686
    %v5700 = vshll.u32 %v5637, 16
    %v5702 = vrot.slane %v5700, 1
    %v5703 = vsel %vm710, %v5698, %v5702
    %v5704 = vshrl.u32 %v5636, 16
    %v5706 = vor.u32 %v5704, %v5694
    %v5708 = vshll.u32 %v5638, 16
    %v5710 = vrot.slane %v5708, 1
    %v5711 = vsel %vm710, %v5706, %v5710
    %v5712 = vshrl.u32 %v5637, 16
    %v5714 = vor.u32 %v5712, %v5702
    %v5716 = vshll.u32 %v5639, 16
    %v5718 = vrot.slane %v5716, 1
    %v5719 = vsel %vm710, %v5714, %v5718
    %v5720 = vshrl.u32 %v5638, 16
    %v5722 = vor.u32 %v5720, %v5710
    %v5724 = vshll.u32 %v5640, 16
    %v5726 = vrot.slane %v5724, 1
    %v5727 = vsel %vm710, %v5722, %v5726
    %v5728 = vshrl.u32 %v5639, 16
    %v5730 = vor.u32 %v5728, %v5718
    %v5732 = vshll.u32 %v5641, 16
    %v5734 = vrot.slane %v5732, 1
    %v5735 = vsel %vm710, %v5730, %v5734
    %v5736 = vshrl.u32 %v5640, 16
    %v5738 = vor.u32 %v5736, %v5726
    %v5740 = vshll.u32 %v5642, 16
    %v5742 = vrot.slane %v5740, 1
    %v5743 = vsel %vm710, %v5738, %v5742
    %v5744 = vshrl.u32 %v5641, 16
    %v5746 = vor.u32 %v5744, %v5734
    %v5748 = vshll.u32 %v5643, 16
    %v5750 = vrot.slane %v5748, 1
    %v5751 = vsel %vm710, %v5746, %v5750
    %v5752 = vshrl.u32 %v5642, 16
    %v5754 = vor.u32 %v5752, %v5742
    %v5756 = vshll.u32 %v5644, 16
    %v5758 = vrot.slane %v5756, 1
    %v5759 = vsel %vm710, %v5754, %v5758
    %v5760 = vshrl.u32 %v5643, 16
    %v5762 = vor.u32 %v5760, %v5750
    %v5764 = vshll.u32 %v5645, 16
    %v5766 = vrot.slane %v5764, 1
    %v5767 = vsel %vm710, %v5762, %v5766
    %v5768 = vshrl.u32 %v5644, 16
    %v5770 = vor.u32 %v5768, %v5758
    %v5772 = vshll.u32 %v5646, 16
    %v5774 = vrot.slane %v5772, 1
    %v5775 = vsel %vm710, %v5770, %v5774
    %v5776 = vshrl.u32 %v5645, 16
    %v5778 = vor.u32 %v5776, %v5766
    %v5780 = vshll.u32 %v5647, 16
    %v5782 = vrot.slane %v5780, 1
    %v5783 = vsel %vm710, %v5778, %v5782
    %v5832 = vunpack.c.l.b16 %v5547
    %v5833 = vunpack.c.l.b16 %v5548
    %v5834 = vunpack.c.l.b16 %v5549
    %v5835 = vunpack.c.l.b16 %v5550
    %v5836 = vunpack.c.l.b16 %v5551
    %v5837 = vunpack.c.l.b16 %v5552
    %v5838 = vunpack.c.l.b16 %v5553
    %v5839 = vunpack.c.l.b16 %v5554
    %v5840 = vunpack.c.l.b16 %v5555
    %v5841 = vunpack.c.l.b16 %v5556
    %v5842 = vunpack.c.l.b16 %v5557
    %v5843 = vunpack.c.l.b16 %v5558
    %v5844 = vunpack.c.l.b16 %v5559
    %v5845 = vunpack.c.l.b16 %v5560
    %v5846 = vunpack.c.l.b16 %v5561
    %v5847 = vunpack.c.l.b16 %v5562
    %v5848 = vunpack.c.l.b16 %v5563
    %v5849 = vunpack.c.l.b16 %v5564
    %v5850 = vunpack.c.l.b16 %v5565
    %v5851 = vunpack.c.l.b16 %v5566
    %v5852 = vunpack.c.l.b16 %v5567
    %v5853 = vunpack.c.l.b16 %v5568
    %v5854 = vunpack.c.l.b16 %v5569
    %v5855 = vunpack.c.l.b16 %v5570
    %v5856 = vunpack.c.l.b16 %v5571
    %v5857 = vunpack.c.l.b16 %v5572
    %v5858 = vunpack.c.l.b16 %v5573
    %v5859 = vunpack.c.l.b16 %v5574
    %v5860 = vunpack.c.l.b16 %v5575
    %v5861 = vunpack.c.l.b16 %v5576
    %v5862 = vunpack.c.l.b16 %v5577
    %v5863 = vunpack.c.l.b16 %v5578
    %v5864 = vpack.c.b16 %v5833, %v5832
    %v5865 = vpack.c.b16 %v5835, %v5834
    %v5866 = vpack.c.b16 %v5837, %v5836
    %v5867 = vpack.c.b16 %v5839, %v5838
    %v5868 = vpack.c.b16 %v5841, %v5840
    %v5869 = vpack.c.b16 %v5843, %v5842
    %v5870 = vpack.c.b16 %v5845, %v5844
    %v5871 = vpack.c.b16 %v5847, %v5846
    %v5872 = vpack.c.b16 %v5849, %v5848
    %v5873 = vpack.c.b16 %v5851, %v5850
    %v5874 = vpack.c.b16 %v5853, %v5852
    %v5875 = vpack.c.b16 %v5855, %v5854
    %v5876 = vpack.c.b16 %v5857, %v5856
    %v5877 = vpack.c.b16 %v5859, %v5858
    %v5878 = vpack.c.b16 %v5861, %v5860
    %v5879 = vpack.c.b16 %v5863, %v5862
    %5896 = vmatprep.subr.bf16.mxu0 0
    %5897 = vmatpush1.bf16.msra.mxu0 %v5871
    %5898 = vmatprep.subr.bf16.mxu0 0
    %5899 = vmatpush1.bf16.msra.mxu0 %v5870
    %5900 = vmatprep.subr.bf16.mxu0 0
    %5901 = vmatpush1.bf16.msra.mxu0 %v5869
    %5902 = vmatprep.subr.bf16.mxu0 0
    %5903 = vmatpush1.bf16.msra.mxu0 %v5868
    %5904 = vmatprep.subr.bf16.mxu0 0
    %5905 = vmatpush1.bf16.msra.mxu0 %v5867
    %5906 = vmatprep.subr.bf16.mxu0 0
    %5907 = vmatpush1.bf16.msra.mxu0 %v5866
    %5908 = vmatprep.subr.bf16.mxu0 0
    %5909 = vmatpush1.bf16.msra.mxu0 %v5865
    %5910 = vmatprep.subr.bf16.mxu0 0
    %5911 = vmatpush1.bf16.msra.mxu0 %v5864
    %5912 = vmatprep.subr.bf16.mxu0 0
    %5913 = vmatpush2.bf16.msra.mxu0 %v5879
    %5914 = vmatprep.subr.bf16.mxu0 0
    %5915 = vmatpush2.bf16.msra.mxu0 %v5878
    %5916 = vmatprep.subr.bf16.mxu0 0
    %5917 = vmatpush2.bf16.msra.mxu0 %v5877
    %5918 = vmatprep.subr.bf16.mxu0 0
    %5919 = vmatpush2.bf16.msra.mxu0 %v5876
    %5920 = vmatprep.subr.bf16.mxu0 0
    %5921 = vmatpush2.bf16.msra.mxu0 %v5875
    %5922 = vmatprep.subr.bf16.mxu0 0
    %5923 = vmatpush2.bf16.msra.mxu0 %v5874
    %5924 = vmatprep.subr.bf16.mxu0 0
    %5925 = vmatpush2.bf16.msra.mxu0 %v5873
    %5926 = vmatprep.subr.bf16.mxu0 0
    %5927 = vmatpush2.bf16.msra.mxu0 %v5872
    %5928 = vmatprep.mubr.bf16.mxu0 %v5671
    %5929 = vmatmul.mubr.bf16.gmra.mxu0 %v5659
    %v5930 = vpop.f32.mrf.mxu0
    %v5931 = vadd.f32 0.0, %v5930
    %v5932 = vpop.f32.mrf.mxu0
    %v5933 = vpop.f32.mrf.mxu0
    %v5934 = vadd.f32 0.0, %v5933
    %v5935 = vpop.f32.mrf.mxu0
    %5936 = vmatprep.mubr.bf16.mxu0 %v5687
    %5937 = vmatmul.mubr.bf16.gmra.mxu0 %v5679
    %v5938 = vpop.f32.mrf.mxu0
    %v5939 = vadd.f32 0.0, %v5938
    %v5940 = vpop.f32.mrf.mxu0
    %v5941 = vpop.f32.mrf.mxu0
    %v5942 = vadd.f32 0.0, %v5941
    %v5943 = vpop.f32.mrf.mxu0
    %5944 = vmatprep.mubr.bf16.mxu0 %v5703
    %5945 = vmatmul.mubr.bf16.gmra.mxu0 %v5695
    %v5946 = vpop.f32.mrf.mxu0
    %v5947 = vadd.f32 0.0, %v5946
    %v5948 = vpop.f32.mrf.mxu0
    %v5949 = vpop.f32.mrf.mxu0
    %v5950 = vadd.f32 0.0, %v5949
    %v5951 = vpop.f32.mrf.mxu0
    %5952 = vmatprep.mubr.bf16.mxu0 %v5719
    %5953 = vmatmul.mubr.bf16.gmra.mxu0 %v5711
    %v5954 = vpop.f32.mrf.mxu0
    %v5955 = vadd.f32 0.0, %v5954
    %v5956 = vpop.f32.mrf.mxu0
    %v5957 = vpop.f32.mrf.mxu0
    %v5958 = vadd.f32 0.0, %v5957
    %v5959 = vpop.f32.mrf.mxu0
    %5960 = vmatprep.mubr.bf16.mxu0 %v5735
    %5961 = vmatmul.mubr.bf16.gmra.mxu0 %v5727
    %v5962 = vpop.f32.mrf.mxu0
    %v5963 = vadd.f32 0.0, %v5962
    %v5964 = vpop.f32.mrf.mxu0
    %v5965 = vpop.f32.mrf.mxu0
    %v5966 = vadd.f32 0.0, %v5965
    %v5967 = vpop.f32.mrf.mxu0
    %5968 = vmatprep.mubr.bf16.mxu0 %v5751
    %5969 = vmatmul.mubr.bf16.gmra.mxu0 %v5743
    %v5970 = vpop.f32.mrf.mxu0
    %v5971 = vadd.f32 0.0, %v5970
    %v5972 = vpop.f32.mrf.mxu0
    %v5973 = vpop.f32.mrf.mxu0
    %v5974 = vadd.f32 0.0, %v5973
    %v5975 = vpop.f32.mrf.mxu0
    %5976 = vmatprep.mubr.bf16.mxu0 %v5767
    %5977 = vmatmul.mubr.bf16.gmra.mxu0 %v5759
    %v5978 = vpop.f32.mrf.mxu0
    %v5979 = vadd.f32 0.0, %v5978
    %v5980 = vpop.f32.mrf.mxu0
    %v5981 = vpop.f32.mrf.mxu0
    %v5982 = vadd.f32 0.0, %v5981
    %v5983 = vpop.f32.mrf.mxu0
    %5984 = vmatprep.mubr.bf16.mxu0 %v5783
    %5985 = vmatmul.mubr.bf16.gmra.mxu0 %v5775
    %v5986 = vpop.f32.mrf.mxu0
    %v5987 = vadd.f32 0.0, %v5986
    %v5988 = vpop.f32.mrf.mxu0
    %v5989 = vpop.f32.mrf.mxu0
    %v5990 = vadd.f32 0.0, %v5989
    %v5991 = vpop.f32.mrf.mxu0
    %5992 = vdwg.mxu0
    %v6041 = vunpack.c.l.b16 %v5513
    %v6042 = vunpack.c.l.b16 %v5514
    %v6043 = vunpack.c.l.b16 %v5515
    %v6044 = vunpack.c.l.b16 %v5516
    %v6045 = vunpack.c.l.b16 %v5517
    %v6046 = vunpack.c.l.b16 %v5518
    %v6047 = vunpack.c.l.b16 %v5519
    %v6048 = vunpack.c.l.b16 %v5520
    %v6049 = vunpack.c.l.b16 %v5521
    %v6050 = vunpack.c.l.b16 %v5522
    %v6051 = vunpack.c.l.b16 %v5523
    %v6052 = vunpack.c.l.b16 %v5524
    %v6053 = vunpack.c.l.b16 %v5525
    %v6054 = vunpack.c.l.b16 %v5526
    %v6055 = vunpack.c.l.b16 %v5527
    %v6056 = vunpack.c.l.b16 %v5528
    %v6057 = vunpack.c.l.b16 %v5529
    %v6058 = vunpack.c.l.b16 %v5530
    %v6059 = vunpack.c.l.b16 %v5531
    %v6060 = vunpack.c.l.b16 %v5532
    %v6061 = vunpack.c.l.b16 %v5533
    %v6062 = vunpack.c.l.b16 %v5534
    %v6063 = vunpack.c.l.b16 %v5535
    %v6064 = vunpack.c.l.b16 %v5536
    %v6065 = vunpack.c.l.b16 %v5537
    %v6066 = vunpack.c.l.b16 %v5538
    %v6067 = vunpack.c.l.b16 %v5539
    %v6068 = vunpack.c.l.b16 %v5540
    %v6069 = vunpack.c.l.b16 %v5541
    %v6070 = vunpack.c.l.b16 %v5542
    %v6071 = vunpack.c.l.b16 %v5543
    %v6072 = vunpack.c.l.b16 %v5544
    %v6073 = vpack.c.b16 %v6042, %v6041
    %v6074 = vpack.c.b16 %v6044, %v6043
    %v6075 = vpack.c.b16 %v6046, %v6045
    %v6076 = vpack.c.b16 %v6048, %v6047
    %v6077 = vpack.c.b16 %v6050, %v6049
    %v6078 = vpack.c.b16 %v6052, %v6051
    %v6079 = vpack.c.b16 %v6054, %v6053
    %v6080 = vpack.c.b16 %v6056, %v6055
    %v6081 = vpack.c.b16 %v6058, %v6057
    %v6082 = vpack.c.b16 %v6060, %v6059
    %v6083 = vpack.c.b16 %v6062, %v6061
    %v6084 = vpack.c.b16 %v6064, %v6063
    %v6085 = vpack.c.b16 %v6066, %v6065
    %v6086 = vpack.c.b16 %v6068, %v6067
    %v6087 = vpack.c.b16 %v6070, %v6069
    %v6088 = vpack.c.b16 %v6072, %v6071
    %6105 = vmatprep.subr.bf16.mxu0 0
    %6106 = vmatpush1.bf16.msra.mxu0 %v6080
    %6107 = vmatprep.subr.bf16.mxu0 0
    %6108 = vmatpush1.bf16.msra.mxu0 %v6079
    %6109 = vmatprep.subr.bf16.mxu0 0
    %6110 = vmatpush1.bf16.msra.mxu0 %v6078
    %6111 = vmatprep.subr.bf16.mxu0 0
    %6112 = vmatpush1.bf16.msra.mxu0 %v6077
    %6113 = vmatprep.subr.bf16.mxu0 0
    %6114 = vmatpush1.bf16.msra.mxu0 %v6076
    %6115 = vmatprep.subr.bf16.mxu0 0
    %6116 = vmatpush1.bf16.msra.mxu0 %v6075
    %6117 = vmatprep.subr.bf16.mxu0 0
    %6118 = vmatpush1.bf16.msra.mxu0 %v6074
    %6119 = vmatprep.subr.bf16.mxu0 0
    %6120 = vmatpush1.bf16.msra.mxu0 %v6073
    %6121 = vmatprep.subr.bf16.mxu0 0
    %6122 = vmatpush2.bf16.msra.mxu0 %v6088
    %6123 = vmatprep.subr.bf16.mxu0 0
    %6124 = vmatpush2.bf16.msra.mxu0 %v6087
    %6125 = vmatprep.subr.bf16.mxu0 0
    %6126 = vmatpush2.bf16.msra.mxu0 %v6086
    %6127 = vmatprep.subr.bf16.mxu0 0
    %6128 = vmatpush2.bf16.msra.mxu0 %v6085
    %6129 = vmatprep.subr.bf16.mxu0 0
    %6130 = vmatpush2.bf16.msra.mxu0 %v6084
    %6131 = vmatprep.subr.bf16.mxu0 0
    %6132 = vmatpush2.bf16.msra.mxu0 %v6083
    %6133 = vmatprep.subr.bf16.mxu0 0
    %6134 = vmatpush2.bf16.msra.mxu0 %v6082
    %6135 = vmatprep.subr.bf16.mxu0 0
    %6136 = vmatpush2.bf16.msra.mxu0 %v6081
    %6137 = vmatprep.mubr.bf16.mxu0 %v5631
    %6138 = vmatmul.mubr.bf16.gmra.mxu0 %v5630
    %v6139 = vpop.f32.mrf.mxu0
    %v6140 = vadd.f32 %v5931, %v6139
    %v6141 = vpop.f32.mrf.mxu0
    %v6142 = vpop.f32.mrf.mxu0
    %v6143 = vadd.f32 %v5934, %v6142
    %v6144 = vpop.f32.mrf.mxu0
    %6145 = vmatprep.mubr.bf16.mxu0 %v5633
    %6146 = vmatmul.mubr.bf16.gmra.mxu0 %v5632
    %v6147 = vpop.f32.mrf.mxu0
    %v6148 = vadd.f32 %v5939, %v6147
    %v6149 = vpop.f32.mrf.mxu0
    %v6150 = vpop.f32.mrf.mxu0
    %v6151 = vadd.f32 %v5942, %v6150
    %v6152 = vpop.f32.mrf.mxu0
    %6153 = vmatprep.mubr.bf16.mxu0 %v5635
    %6154 = vmatmul.mubr.bf16.gmra.mxu0 %v5634
    %v6155 = vpop.f32.mrf.mxu0
    %v6156 = vadd.f32 %v5947, %v6155
    %v6157 = vpop.f32.mrf.mxu0
    %v6158 = vpop.f32.mrf.mxu0
    %v6159 = vadd.f32 %v5950, %v6158
    %v6160 = vpop.f32.mrf.mxu0
    %6161 = vmatprep.mubr.bf16.mxu0 %v5637
    %6162 = vmatmul.mubr.bf16.gmra.mxu0 %v5636
    %v6163 = vpop.f32.mrf.mxu0
    %v6164 = vadd.f32 %v5955, %v6163
    %v6165 = vpop.f32.mrf.mxu0
    %v6166 = vpop.f32.mrf.mxu0
    %v6167 = vadd.f32 %v5958, %v6166
    %v6168 = vpop.f32.mrf.mxu0
    %6169 = vmatprep.mubr.bf16.mxu0 %v5639
    %6170 = vmatmul.mubr.bf16.gmra.mxu0 %v5638
    %v6171 = vpop.f32.mrf.mxu0
    %v6172 = vadd.f32 %v5963, %v6171
    %v6173 = vpop.f32.mrf.mxu0
    %v6174 = vpop.f32.mrf.mxu0
    %v6175 = vadd.f32 %v5966, %v6174
    %v6176 = vpop.f32.mrf.mxu0
    %6177 = vmatprep.mubr.bf16.mxu0 %v5641
    %6178 = vmatmul.mubr.bf16.gmra.mxu0 %v5640
    %v6179 = vpop.f32.mrf.mxu0
    %v6180 = vadd.f32 %v5971, %v6179
    %v6181 = vpop.f32.mrf.mxu0
    %v6182 = vpop.f32.mrf.mxu0
    %v6183 = vadd.f32 %v5974, %v6182
    %v6184 = vpop.f32.mrf.mxu0
    %6185 = vmatprep.mubr.bf16.mxu0 %v5643
    %6186 = vmatmul.mubr.bf16.gmra.mxu0 %v5642
    %v6187 = vpop.f32.mrf.mxu0
    %v6188 = vadd.f32 %v5979, %v6187
    %v6189 = vpop.f32.mrf.mxu0
    %v6190 = vpop.f32.mrf.mxu0
    %v6191 = vadd.f32 %v5982, %v6190
    %v6192 = vpop.f32.mrf.mxu0
    %6193 = vmatprep.mubr.bf16.mxu0 %v5645
    %6194 = vmatmul.mubr.bf16.gmra.mxu0 %v5644
    %v6195 = vpop.f32.mrf.mxu0
    %v6196 = vadd.f32 %v5987, %v6195
    %v6197 = vpop.f32.mrf.mxu0
    %v6198 = vpop.f32.mrf.mxu0
    %v6199 = vadd.f32 %v5990, %v6198
    %v6200 = vpop.f32.mrf.mxu0
    %6201 = vdwg.mxu0
    %v6202 = vld [vmem:[#allocation3] sm:$0xee]
    %s6203 = scalar_lea.vmem [#allocation8], 256
    %v6204 = vld [vmem:[%s6203] sm:$0xf]
    %v6205 = vld [vmem:[%s6203 + $0x4] sm:$0xf]
    %v6206 = vld [vmem:[%s6203 + $0x8] sm:$0xf]
    %v6207 = vld [vmem:[%s6203 + $0xc] sm:$0xf]
    %v6208 = vld [vmem:[%s6203 + $0x10] sm:$0xf]
    %v6209 = vld [vmem:[%s6203 + $0x14] sm:$0xf]
    %v6210 = vld [vmem:[%s6203 + $0x18] sm:$0xf]
    %v6211 = vld [vmem:[%s6203 + $0x1c] sm:$0xf]
    %v6212 = vld [vmem:[%s6203 + $0x20] sm:$0xf]
    %v6213 = vld [vmem:[%s6203 + $0x24] sm:$0xf]
    %v6214 = vld [vmem:[%s6203 + $0x28] sm:$0xf]
    %v6215 = vld [vmem:[%s6203 + $0x2c] sm:$0xf]
    %v6216 = vld [vmem:[%s6203 + $0x30] sm:$0xf]
    %v6217 = vld [vmem:[%s6203 + $0x34] sm:$0xf]
    %v6218 = vld [vmem:[%s6203 + $0x38] sm:$0xf]
    %v6219 = vld [vmem:[%s6203 + $0x3c] sm:$0xf]
    %v6220 = vld [vmem:[%s6203 + $0x40] sm:$0xf]
    %v6221 = vld [vmem:[%s6203 + $0x44] sm:$0xf]
    %v6222 = vld [vmem:[%s6203 + $0x48] sm:$0xf]
    %v6223 = vld [vmem:[%s6203 + $0x4c] sm:$0xf]
    %v6224 = vld [vmem:[%s6203 + $0x50] sm:$0xf]
    %v6225 = vld [vmem:[%s6203 + $0x54] sm:$0xf]
    %v6226 = vld [vmem:[%s6203 + $0x58] sm:$0xf]
    %v6227 = vld [vmem:[%s6203 + $0x5c] sm:$0xf]
    %v6228 = vld [vmem:[%s6203 + $0x60] sm:$0xf]
    %v6229 = vld [vmem:[%s6203 + $0x64] sm:$0xf]
    %v6230 = vld [vmem:[%s6203 + $0x68] sm:$0xf]
    %v6231 = vld [vmem:[%s6203 + $0x6c] sm:$0xf]
    %v6232 = vld [vmem:[%s6203 + $0x70] sm:$0xf]
    %v6233 = vld [vmem:[%s6203 + $0x74] sm:$0xf]
    %v6234 = vld [vmem:[%s6203 + $0x78] sm:$0xf]
    %v6235 = vld [vmem:[%s6203 + $0x7c] sm:$0xf]
    %v6237 = vunpack.c.l.b16 %v6202
    %v6238 = vunpack.c.h.b16 %v6202
    %v6239 = vpack.c.b16 %v5598, %v6237
    %v6240 = vpack.c.b16 %v5599, %v6238
    %v6241 = vrot.slane %v6239, 1
    %v6242 = vrot.slane %v5632, 1
    %v6243 = vsel %vm1411, %v6241, %v6242
    %v6244 = vrot.slane %v6240, 1
    %v6245 = vrot.slane %v5633, 1
    %v6246 = vsel %vm1411, %v6244, %v6245
    %v6247 = vrot.slane %v5634, 1
    %v6248 = vsel %vm1411, %v6242, %v6247
    %v6249 = vrot.slane %v5635, 1
    %v6250 = vsel %vm1411, %v6245, %v6249
    %v6251 = vrot.slane %v5636, 1
    %v6252 = vsel %vm1411, %v6247, %v6251
    %v6253 = vrot.slane %v5637, 1
    %v6254 = vsel %vm1411, %v6249, %v6253
    %v6255 = vrot.slane %v5638, 1
    %v6256 = vsel %vm1411, %v6251, %v6255
    %v6257 = vrot.slane %v5639, 1
    %v6258 = vsel %vm1411, %v6253, %v6257
    %v6259 = vrot.slane %v5640, 1
    %v6260 = vsel %vm1411, %v6255, %v6259
    %v6261 = vrot.slane %v5641, 1
    %v6262 = vsel %vm1411, %v6257, %v6261
    %v6263 = vrot.slane %v5642, 1
    %v6264 = vsel %vm1411, %v6259, %v6263
    %v6265 = vrot.slane %v5643, 1
    %v6266 = vsel %vm1411, %v6261, %v6265
    %v6267 = vrot.slane %v5644, 1
    %v6268 = vsel %vm1411, %v6263, %v6267
    %v6269 = vrot.slane %v5645, 1
    %v6270 = vsel %vm1411, %v6265, %v6269
    %v6271 = vrot.slane %v5646, 1
    %v6272 = vsel %vm1411, %v6267, %v6271
    %v6273 = vrot.slane %v5647, 1
    %v6274 = vsel %vm1411, %v6269, %v6273
    %v6323 = vunpack.c.l.b16 %v6204
    %v6324 = vunpack.c.l.b16 %v6205
    %v6325 = vunpack.c.l.b16 %v6206
    %v6326 = vunpack.c.l.b16 %v6207
    %v6327 = vunpack.c.l.b16 %v6208
    %v6328 = vunpack.c.l.b16 %v6209
    %v6329 = vunpack.c.l.b16 %v6210
    %v6330 = vunpack.c.l.b16 %v6211
    %v6331 = vunpack.c.l.b16 %v6212
    %v6332 = vunpack.c.l.b16 %v6213
    %v6333 = vunpack.c.l.b16 %v6214
    %v6334 = vunpack.c.l.b16 %v6215
    %v6335 = vunpack.c.l.b16 %v6216
    %v6336 = vunpack.c.l.b16 %v6217
    %v6337 = vunpack.c.l.b16 %v6218
    %v6338 = vunpack.c.l.b16 %v6219
    %v6339 = vunpack.c.l.b16 %v6220
    %v6340 = vunpack.c.l.b16 %v6221
    %v6341 = vunpack.c.l.b16 %v6222
    %v6342 = vunpack.c.l.b16 %v6223
    %v6343 = vunpack.c.l.b16 %v6224
    %v6344 = vunpack.c.l.b16 %v6225
    %v6345 = vunpack.c.l.b16 %v6226
    %v6346 = vunpack.c.l.b16 %v6227
    %v6347 = vunpack.c.l.b16 %v6228
    %v6348 = vunpack.c.l.b16 %v6229
    %v6349 = vunpack.c.l.b16 %v6230
    %v6350 = vunpack.c.l.b16 %v6231
    %v6351 = vunpack.c.l.b16 %v6232
    %v6352 = vunpack.c.l.b16 %v6233
    %v6353 = vunpack.c.l.b16 %v6234
    %v6354 = vunpack.c.l.b16 %v6235
    %v6355 = vpack.c.b16 %v6324, %v6323
    %v6356 = vpack.c.b16 %v6326, %v6325
    %v6357 = vpack.c.b16 %v6328, %v6327
    %v6358 = vpack.c.b16 %v6330, %v6329
    %v6359 = vpack.c.b16 %v6332, %v6331
    %v6360 = vpack.c.b16 %v6334, %v6333
    %v6361 = vpack.c.b16 %v6336, %v6335
    %v6362 = vpack.c.b16 %v6338, %v6337
    %v6363 = vpack.c.b16 %v6340, %v6339
    %v6364 = vpack.c.b16 %v6342, %v6341
    %v6365 = vpack.c.b16 %v6344, %v6343
    %v6366 = vpack.c.b16 %v6346, %v6345
    %v6367 = vpack.c.b16 %v6348, %v6347
    %v6368 = vpack.c.b16 %v6350, %v6349
    %v6369 = vpack.c.b16 %v6352, %v6351
    %v6370 = vpack.c.b16 %v6354, %v6353
    %6387 = vmatprep.subr.bf16.mxu0 0
    %6388 = vmatpush1.bf16.msra.mxu0 %v6362
    %6389 = vmatprep.subr.bf16.mxu0 0
    %6390 = vmatpush1.bf16.msra.mxu0 %v6361
    %6391 = vmatprep.subr.bf16.mxu0 0
    %6392 = vmatpush1.bf16.msra.mxu0 %v6360
    %6393 = vmatprep.subr.bf16.mxu0 0
    %6394 = vmatpush1.bf16.msra.mxu0 %v6359
    %6395 = vmatprep.subr.bf16.mxu0 0
    %6396 = vmatpush1.bf16.msra.mxu0 %v6358
    %6397 = vmatprep.subr.bf16.mxu0 0
    %6398 = vmatpush1.bf16.msra.mxu0 %v6357
    %6399 = vmatprep.subr.bf16.mxu0 0
    %6400 = vmatpush1.bf16.msra.mxu0 %v6356
    %6401 = vmatprep.subr.bf16.mxu0 0
    %6402 = vmatpush1.bf16.msra.mxu0 %v6355
    %6403 = vmatprep.subr.bf16.mxu0 0
    %6404 = vmatpush2.bf16.msra.mxu0 %v6370
    %6405 = vmatprep.subr.bf16.mxu0 0
    %6406 = vmatpush2.bf16.msra.mxu0 %v6369
    %6407 = vmatprep.subr.bf16.mxu0 0
    %6408 = vmatpush2.bf16.msra.mxu0 %v6368
    %6409 = vmatprep.subr.bf16.mxu0 0
    %6410 = vmatpush2.bf16.msra.mxu0 %v6367
    %6411 = vmatprep.subr.bf16.mxu0 0
    %6412 = vmatpush2.bf16.msra.mxu0 %v6366
    %6413 = vmatprep.subr.bf16.mxu0 0
    %6414 = vmatpush2.bf16.msra.mxu0 %v6365
    %6415 = vmatprep.subr.bf16.mxu0 0
    %6416 = vmatpush2.bf16.msra.mxu0 %v6364
    %6417 = vmatprep.subr.bf16.mxu0 0
    %6418 = vmatpush2.bf16.msra.mxu0 %v6363
    %6419 = vmatprep.mubr.bf16.mxu0 %v6246
    %6420 = vmatmul.mubr.bf16.gmra.mxu0 %v6243
    %v6421 = vpop.f32.mrf.mxu0
    %v6422 = vadd.f32 0.0, %v6421
    %v6423 = vpop.f32.mrf.mxu0
    %v6424 = vpop.f32.mrf.mxu0
    %v6425 = vadd.f32 0.0, %v6424
    %v6426 = vpop.f32.mrf.mxu0
    %6427 = vmatprep.mubr.bf16.mxu0 %v6250
    %6428 = vmatmul.mubr.bf16.gmra.mxu0 %v6248
    %v6429 = vpop.f32.mrf.mxu0
    %v6430 = vadd.f32 0.0, %v6429
    %v6431 = vpop.f32.mrf.mxu0
    %v6432 = vpop.f32.mrf.mxu0
    %v6433 = vadd.f32 0.0, %v6432
    %v6434 = vpop.f32.mrf.mxu0
    %6435 = vmatprep.mubr.bf16.mxu0 %v6254
    %6436 = vmatmul.mubr.bf16.gmra.mxu0 %v6252
    %v6437 = vpop.f32.mrf.mxu0
    %v6438 = vadd.f32 0.0, %v6437
    %v6439 = vpop.f32.mrf.mxu0
    %v6440 = vpop.f32.mrf.mxu0
    %v6441 = vadd.f32 0.0, %v6440
    %v6442 = vpop.f32.mrf.mxu0
    %6443 = vmatprep.mubr.bf16.mxu0 %v6258
    %6444 = vmatmul.mubr.bf16.gmra.mxu0 %v6256
    %v6445 = vpop.f32.mrf.mxu0
    %v6446 = vadd.f32 0.0, %v6445
    %v6447 = vpop.f32.mrf.mxu0
    %v6448 = vpop.f32.mrf.mxu0
    %v6449 = vadd.f32 0.0, %v6448
    %v6450 = vpop.f32.mrf.mxu0
    %6451 = vmatprep.mubr.bf16.mxu0 %v6262
    %6452 = vmatmul.mubr.bf16.gmra.mxu0 %v6260
    %v6453 = vpop.f32.mrf.mxu0
    %v6454 = vadd.f32 0.0, %v6453
    %v6455 = vpop.f32.mrf.mxu0
    %v6456 = vpop.f32.mrf.mxu0
    %v6457 = vadd.f32 0.0, %v6456
    %v6458 = vpop.f32.mrf.mxu0
    %6459 = vmatprep.mubr.bf16.mxu0 %v6266
    %6460 = vmatmul.mubr.bf16.gmra.mxu0 %v6264
    %v6461 = vpop.f32.mrf.mxu0
    %v6462 = vadd.f32 0.0, %v6461
    %v6463 = vpop.f32.mrf.mxu0
    %v6464 = vpop.f32.mrf.mxu0
    %v6465 = vadd.f32 0.0, %v6464
    %v6466 = vpop.f32.mrf.mxu0
    %6467 = vmatprep.mubr.bf16.mxu0 %v6270
    %6468 = vmatmul.mubr.bf16.gmra.mxu0 %v6268
    %v6469 = vpop.f32.mrf.mxu0
    %v6470 = vadd.f32 0.0, %v6469
    %v6471 = vpop.f32.mrf.mxu0
    %v6472 = vpop.f32.mrf.mxu0
    %v6473 = vadd.f32 0.0, %v6472
    %v6474 = vpop.f32.mrf.mxu0
    %6475 = vmatprep.mubr.bf16.mxu0 %v6274
    %6476 = vmatmul.mubr.bf16.gmra.mxu0 %v6272
    %v6477 = vpop.f32.mrf.mxu0
    %v6478 = vadd.f32 0.0, %v6477
    %v6479 = vpop.f32.mrf.mxu0
    %v6480 = vpop.f32.mrf.mxu0
    %v6481 = vadd.f32 0.0, %v6480
    %v6482 = vpop.f32.mrf.mxu0
    %6483 = vdwg.mxu0
    %v6484 = vadd.f32 %v6140, %v6422
    %v6485 = vadd.f32 %v6143, %v6425
    %v6486 = vadd.f32 %v6148, %v6430
    %v6487 = vadd.f32 %v6151, %v6433
    %v6488 = vadd.f32 %v6156, %v6438
    %v6489 = vadd.f32 %v6159, %v6441
    %v6490 = vadd.f32 %v6164, %v6446
    %v6491 = vadd.f32 %v6167, %v6449
    %v6492 = vadd.f32 %v6172, %v6454
    %v6493 = vadd.f32 %v6175, %v6457
    %v6494 = vadd.f32 %v6180, %v6462
    %v6495 = vadd.f32 %v6183, %v6465
    %v6496 = vadd.f32 %v6188, %v6470
    %v6497 = vadd.f32 %v6191, %v6473
    %v6498 = vadd.f32 %v6196, %v6478
    %v6499 = vadd.f32 %v6199, %v6481
    %v6500 = vld [vmem:[#allocation3 + $0x80] sm:$0x33]
    %s6501 = scalar_lea.vmem [#allocation8], 384
    %v6502 = vld [vmem:[%s6501] sm:$0xf]
    %v6503 = vld [vmem:[%s6501 + $0x4] sm:$0xf]
    %v6504 = vld [vmem:[%s6501 + $0x8] sm:$0xf]
    %v6505 = vld [vmem:[%s6501 + $0xc] sm:$0xf]
    %v6506 = vld [vmem:[%s6501 + $0x10] sm:$0xf]
    %v6507 = vld [vmem:[%s6501 + $0x14] sm:$0xf]
    %v6508 = vld [vmem:[%s6501 + $0x18] sm:$0xf]
    %v6509 = vld [vmem:[%s6501 + $0x1c] sm:$0xf]
    %v6510 = vld [vmem:[%s6501 + $0x20] sm:$0xf]
    %v6511 = vld [vmem:[%s6501 + $0x24] sm:$0xf]
    %v6512 = vld [vmem:[%s6501 + $0x28] sm:$0xf]
    %v6513 = vld [vmem:[%s6501 + $0x2c] sm:$0xf]
    %v6514 = vld [vmem:[%s6501 + $0x30] sm:$0xf]
    %v6515 = vld [vmem:[%s6501 + $0x34] sm:$0xf]
    %v6516 = vld [vmem:[%s6501 + $0x38] sm:$0xf]
    %v6517 = vld [vmem:[%s6501 + $0x3c] sm:$0xf]
    %v6518 = vld [vmem:[%s6501 + $0x40] sm:$0xf]
    %v6519 = vld [vmem:[%s6501 + $0x44] sm:$0xf]
    %v6520 = vld [vmem:[%s6501 + $0x48] sm:$0xf]
    %v6521 = vld [vmem:[%s6501 + $0x4c] sm:$0xf]
    %v6522 = vld [vmem:[%s6501 + $0x50] sm:$0xf]
    %v6523 = vld [vmem:[%s6501 + $0x54] sm:$0xf]
    %v6524 = vld [vmem:[%s6501 + $0x58] sm:$0xf]
    %v6525 = vld [vmem:[%s6501 + $0x5c] sm:$0xf]
    %v6526 = vld [vmem:[%s6501 + $0x60] sm:$0xf]
    %v6527 = vld [vmem:[%s6501 + $0x64] sm:$0xf]
    %v6528 = vld [vmem:[%s6501 + $0x68] sm:$0xf]
    %v6529 = vld [vmem:[%s6501 + $0x6c] sm:$0xf]
    %v6530 = vld [vmem:[%s6501 + $0x70] sm:$0xf]
    %v6531 = vld [vmem:[%s6501 + $0x74] sm:$0xf]
    %v6532 = vld [vmem:[%s6501 + $0x78] sm:$0xf]
    %v6533 = vld [vmem:[%s6501 + $0x7c] sm:$0xf]
    %v6535 = vunpack.c.l.b16 %v6500
    %v6536 = vunpack.c.h.b16 %v6500
    %v6537 = vpack.c.b16 %v6535, %v6535
    %v6538 = vpack.c.b16 %v6536, %v6536
    %v6540 = vshrl.u32 %v6239, 16
    %v6542 = vrot.slane %v6540, 1
    %v6543 = vshll.u32 %v6239, 16
    %v6545 = vrot.slane %v6543, 2
    %v6546 = vor.u32 %v6542, %v6545
    %v6547 = vrot.slane %v5672, 1
    %v6548 = vrot.slane %v5656, 2
    %v6549 = vor.u32 %v6547, %v6548
    %v6550 = vsel %vm4500, %v6546, %v6549
    %v6552 = vshrl.u32 %v6240, 16
    %v6554 = vrot.slane %v6552, 1
    %v6555 = vshll.u32 %v6240, 16
    %v6557 = vrot.slane %v6555, 2
    %v6558 = vor.u32 %v6554, %v6557
    %v6559 = vrot.slane %v5680, 1
    %v6560 = vrot.slane %v5668, 2
    %v6561 = vor.u32 %v6559, %v6560
    %v6562 = vsel %vm4500, %v6558, %v6561
    %v6563 = vrot.slane %v5688, 1
    %v6564 = vrot.slane %v5676, 2
    %v6565 = vor.u32 %v6563, %v6564
    %v6566 = vsel %vm4500, %v6549, %v6565
    %v6567 = vrot.slane %v5696, 1
    %v6568 = vrot.slane %v5684, 2
    %v6569 = vor.u32 %v6567, %v6568
    %v6570 = vsel %vm4500, %v6561, %v6569
    %v6571 = vrot.slane %v5704, 1
    %v6572 = vrot.slane %v5692, 2
    %v6573 = vor.u32 %v6571, %v6572
    %v6574 = vsel %vm4500, %v6565, %v6573
    %v6575 = vrot.slane %v5712, 1
    %v6576 = vrot.slane %v5700, 2
    %v6577 = vor.u32 %v6575, %v6576
    %v6578 = vsel %vm4500, %v6569, %v6577
    %v6579 = vrot.slane %v5720, 1
    %v6580 = vrot.slane %v5708, 2
    %v6581 = vor.u32 %v6579, %v6580
    %v6582 = vsel %vm4500, %v6573, %v6581
    %v6583 = vrot.slane %v5728, 1
    %v6584 = vrot.slane %v5716, 2
    %v6585 = vor.u32 %v6583, %v6584
    %v6586 = vsel %vm4500, %v6577, %v6585
    %v6587 = vrot.slane %v5736, 1
    %v6588 = vrot.slane %v5724, 2
    %v6589 = vor.u32 %v6587, %v6588
    %v6590 = vsel %vm4500, %v6581, %v6589
    %v6591 = vrot.slane %v5744, 1
    %v6592 = vrot.slane %v5732, 2
    %v6593 = vor.u32 %v6591, %v6592
    %v6594 = vsel %vm4500, %v6585, %v6593
    %v6595 = vrot.slane %v5752, 1
    %v6596 = vrot.slane %v5740, 2
    %v6597 = vor.u32 %v6595, %v6596
    %v6598 = vsel %vm4500, %v6589, %v6597
    %v6599 = vrot.slane %v5760, 1
    %v6600 = vrot.slane %v5748, 2
    %v6601 = vor.u32 %v6599, %v6600
    %v6602 = vsel %vm4500, %v6593, %v6601
    %v6603 = vrot.slane %v5768, 1
    %v6604 = vrot.slane %v5756, 2
    %v6605 = vor.u32 %v6603, %v6604
    %v6606 = vsel %vm4500, %v6597, %v6605
    %v6607 = vrot.slane %v5776, 1
    %v6608 = vrot.slane %v5764, 2
    %v6609 = vor.u32 %v6607, %v6608
    %v6610 = vsel %vm4500, %v6601, %v6609
    %v6612 = vshrl.u32 %v6537, 16
    %v6614 = vrot.slane %v6612, 1
    %v6615 = vshll.u32 %v6537, 16
    %v6617 = vrot.slane %v6615, 2
    %v6618 = vor.u32 %v6614, %v6617
    %v6619 = vsel %vm4500, %v6605, %v6618
    %v6621 = vshrl.u32 %v6538, 16
    %v6623 = vrot.slane %v6621, 1
    %v6624 = vshll.u32 %v6538, 16
    %v6626 = vrot.slane %v6624, 2
    %v6627 = vor.u32 %v6623, %v6626
    %v6628 = vsel %vm4500, %v6609, %v6627
    %v6677 = vunpack.c.l.b16 %v6502
    %v6678 = vunpack.c.l.b16 %v6503
    %v6679 = vunpack.c.l.b16 %v6504
    %v6680 = vunpack.c.l.b16 %v6505
    %v6681 = vunpack.c.l.b16 %v6506
    %v6682 = vunpack.c.l.b16 %v6507
    %v6683 = vunpack.c.l.b16 %v6508
    %v6684 = vunpack.c.l.b16 %v6509
    %v6685 = vunpack.c.l.b16 %v6510
    %v6686 = vunpack.c.l.b16 %v6511
    %v6687 = vunpack.c.l.b16 %v6512
    %v6688 = vunpack.c.l.b16 %v6513
    %v6689 = vunpack.c.l.b16 %v6514
    %v6690 = vunpack.c.l.b16 %v6515
    %v6691 = vunpack.c.l.b16 %v6516
    %v6692 = vunpack.c.l.b16 %v6517
    %v6693 = vunpack.c.l.b16 %v6518
    %v6694 = vunpack.c.l.b16 %v6519
    %v6695 = vunpack.c.l.b16 %v6520
    %v6696 = vunpack.c.l.b16 %v6521
    %v6697 = vunpack.c.l.b16 %v6522
    %v6698 = vunpack.c.l.b16 %v6523
    %v6699 = vunpack.c.l.b16 %v6524
    %v6700 = vunpack.c.l.b16 %v6525
    %v6701 = vunpack.c.l.b16 %v6526
    %v6702 = vunpack.c.l.b16 %v6527
    %v6703 = vunpack.c.l.b16 %v6528
    %v6704 = vunpack.c.l.b16 %v6529
    %v6705 = vunpack.c.l.b16 %v6530
    %v6706 = vunpack.c.l.b16 %v6531
    %v6707 = vunpack.c.l.b16 %v6532
    %v6708 = vunpack.c.l.b16 %v6533
    %v6709 = vpack.c.b16 %v6678, %v6677
    %v6710 = vpack.c.b16 %v6680, %v6679
    %v6711 = vpack.c.b16 %v6682, %v6681
    %v6712 = vpack.c.b16 %v6684, %v6683
    %v6713 = vpack.c.b16 %v6686, %v6685
    %v6714 = vpack.c.b16 %v6688, %v6687
    %v6715 = vpack.c.b16 %v6690, %v6689
    %v6716 = vpack.c.b16 %v6692, %v6691
    %v6717 = vpack.c.b16 %v6694, %v6693
    %v6718 = vpack.c.b16 %v6696, %v6695
    %v6719 = vpack.c.b16 %v6698, %v6697
    %v6720 = vpack.c.b16 %v6700, %v6699
    %v6721 = vpack.c.b16 %v6702, %v6701
    %v6722 = vpack.c.b16 %v6704, %v6703
    %v6723 = vpack.c.b16 %v6706, %v6705
    %v6724 = vpack.c.b16 %v6708, %v6707
    %6741 = vmatprep.subr.bf16.mxu0 0
    %6742 = vmatpush1.bf16.msra.mxu0 %v6716
    %6743 = vmatprep.subr.bf16.mxu0 0
    %6744 = vmatpush1.bf16.msra.mxu0 %v6715
    %6745 = vmatprep.subr.bf16.mxu0 0
    %6746 = vmatpush1.bf16.msra.mxu0 %v6714
    %6747 = vmatprep.subr.bf16.mxu0 0
    %6748 = vmatpush1.bf16.msra.mxu0 %v6713
    %6749 = vmatprep.subr.bf16.mxu0 0
    %6750 = vmatpush1.bf16.msra.mxu0 %v6712
    %6751 = vmatprep.subr.bf16.mxu0 0
    %6752 = vmatpush1.bf16.msra.mxu0 %v6711
    %6753 = vmatprep.subr.bf16.mxu0 0
    %6754 = vmatpush1.bf16.msra.mxu0 %v6710
    %6755 = vmatprep.subr.bf16.mxu0 0
    %6756 = vmatpush1.bf16.msra.mxu0 %v6709
    %6757 = vmatprep.subr.bf16.mxu0 0
    %6758 = vmatpush2.bf16.msra.mxu0 %v6724
    %6759 = vmatprep.subr.bf16.mxu0 0
    %6760 = vmatpush2.bf16.msra.mxu0 %v6723
    %6761 = vmatprep.subr.bf16.mxu0 0
    %6762 = vmatpush2.bf16.msra.mxu0 %v6722
    %6763 = vmatprep.subr.bf16.mxu0 0
    %6764 = vmatpush2.bf16.msra.mxu0 %v6721
    %6765 = vmatprep.subr.bf16.mxu0 0
    %6766 = vmatpush2.bf16.msra.mxu0 %v6720
    %6767 = vmatprep.subr.bf16.mxu0 0
    %6768 = vmatpush2.bf16.msra.mxu0 %v6719
    %6769 = vmatprep.subr.bf16.mxu0 0
    %6770 = vmatpush2.bf16.msra.mxu0 %v6718
    %6771 = vmatprep.subr.bf16.mxu0 0
    %6772 = vmatpush2.bf16.msra.mxu0 %v6717
    %6773 = vmatprep.mubr.bf16.mxu0 %v6562
    %6774 = vmatmul.mubr.bf16.gmra.mxu0 %v6550
    %v6775 = vpop.f32.mrf.mxu0
    %v6776 = vadd.f32 0.0, %v6775
    %v6777 = vpop.f32.mrf.mxu0
    %v6778 = vpop.f32.mrf.mxu0
    %v6779 = vadd.f32 0.0, %v6778
    %v6780 = vpop.f32.mrf.mxu0
    %6781 = vmatprep.mubr.bf16.mxu0 %v6570
    %6782 = vmatmul.mubr.bf16.gmra.mxu0 %v6566
    %v6783 = vpop.f32.mrf.mxu0
    %v6784 = vadd.f32 0.0, %v6783
    %v6785 = vpop.f32.mrf.mxu0
    %v6786 = vpop.f32.mrf.mxu0
    %v6787 = vadd.f32 0.0, %v6786
    %v6788 = vpop.f32.mrf.mxu0
    %6789 = vmatprep.mubr.bf16.mxu0 %v6578
    %6790 = vmatmul.mubr.bf16.gmra.mxu0 %v6574
    %v6791 = vpop.f32.mrf.mxu0
    %v6792 = vadd.f32 0.0, %v6791
    %v6793 = vpop.f32.mrf.mxu0
    %v6794 = vpop.f32.mrf.mxu0
    %v6795 = vadd.f32 0.0, %v6794
    %v6796 = vpop.f32.mrf.mxu0
    %6797 = vmatprep.mubr.bf16.mxu0 %v6586
    %6798 = vmatmul.mubr.bf16.gmra.mxu0 %v6582
    %v6799 = vpop.f32.mrf.mxu0
    %v6800 = vadd.f32 0.0, %v6799
    %v6801 = vpop.f32.mrf.mxu0
    %v6802 = vpop.f32.mrf.mxu0
    %v6803 = vadd.f32 0.0, %v6802
    %v6804 = vpop.f32.mrf.mxu0
    %6805 = vmatprep.mubr.bf16.mxu0 %v6594
    %6806 = vmatmul.mubr.bf16.gmra.mxu0 %v6590
    %v6807 = vpop.f32.mrf.mxu0
    %v6808 = vadd.f32 0.0, %v6807
    %v6809 = vpop.f32.mrf.mxu0
    %v6810 = vpop.f32.mrf.mxu0
    %v6811 = vadd.f32 0.0, %v6810
    %v6812 = vpop.f32.mrf.mxu0
    %6813 = vmatprep.mubr.bf16.mxu0 %v6602
    %6814 = vmatmul.mubr.bf16.gmra.mxu0 %v6598
    %v6815 = vpop.f32.mrf.mxu0
    %v6816 = vadd.f32 0.0, %v6815
    %v6817 = vpop.f32.mrf.mxu0
    %v6818 = vpop.f32.mrf.mxu0
    %v6819 = vadd.f32 0.0, %v6818
    %v6820 = vpop.f32.mrf.mxu0
    %6821 = vmatprep.mubr.bf16.mxu0 %v6610
    %6822 = vmatmul.mubr.bf16.gmra.mxu0 %v6606
    %v6823 = vpop.f32.mrf.mxu0
    %v6824 = vadd.f32 0.0, %v6823
    %v6825 = vpop.f32.mrf.mxu0
    %v6826 = vpop.f32.mrf.mxu0
    %v6827 = vadd.f32 0.0, %v6826
    %v6828 = vpop.f32.mrf.mxu0
    %6829 = vmatprep.mubr.bf16.mxu0 %v6628
    %6830 = vmatmul.mubr.bf16.gmra.mxu0 %v6619
    %v6831 = vpop.f32.mrf.mxu0
    %v6832 = vadd.f32 0.0, %v6831
    %v6833 = vpop.f32.mrf.mxu0
    %v6834 = vpop.f32.mrf.mxu0
    %v6835 = vadd.f32 0.0, %v6834
    %v6836 = vpop.f32.mrf.mxu0
    %6837 = vdwg.mxu0
    %v6838 = vadd.f32 %v6484, %v6776
    %v6839 = vadd.f32 %v6485, %v6779
    %v6840 = vadd.f32 %v6486, %v6784
    %v6841 = vadd.f32 %v6487, %v6787
    %v6842 = vadd.f32 %v6488, %v6792
    %v6843 = vadd.f32 %v6489, %v6795
    %v6844 = vadd.f32 %v6490, %v6800
    %v6845 = vadd.f32 %v6491, %v6803
    %v6846 = vadd.f32 %v6492, %v6808
    %v6847 = vadd.f32 %v6493, %v6811
    %v6848 = vadd.f32 %v6494, %v6816
    %v6849 = vadd.f32 %v6495, %v6819
    %v6850 = vadd.f32 %v6496, %v6824
    %v6851 = vadd.f32 %v6497, %v6827
    %v6852 = vadd.f32 %v6498, %v6832
    %v6853 = vadd.f32 %v6499, %v6835
    %v6854 = vld [vmem:[#allocation3] sm:$0xcc]
    %s6855 = scalar_lea.vmem [#allocation8], 512
    %v6856 = vld [vmem:[%s6855] sm:$0xf]
    %v6857 = vld [vmem:[%s6855 + $0x4] sm:$0xf]
    %v6858 = vld [vmem:[%s6855 + $0x8] sm:$0xf]
    %v6859 = vld [vmem:[%s6855 + $0xc] sm:$0xf]
    %v6860 = vld [vmem:[%s6855 + $0x10] sm:$0xf]
    %v6861 = vld [vmem:[%s6855 + $0x14] sm:$0xf]
    %v6862 = vld [vmem:[%s6855 + $0x18] sm:$0xf]
    %v6863 = vld [vmem:[%s6855 + $0x1c] sm:$0xf]
    %v6864 = vld [vmem:[%s6855 + $0x20] sm:$0xf]
    %v6865 = vld [vmem:[%s6855 + $0x24] sm:$0xf]
    %v6866 = vld [vmem:[%s6855 + $0x28] sm:$0xf]
    %v6867 = vld [vmem:[%s6855 + $0x2c] sm:$0xf]
    %v6868 = vld [vmem:[%s6855 + $0x30] sm:$0xf]
    %v6869 = vld [vmem:[%s6855 + $0x34] sm:$0xf]
    %v6870 = vld [vmem:[%s6855 + $0x38] sm:$0xf]
    %v6871 = vld [vmem:[%s6855 + $0x3c] sm:$0xf]
    %v6872 = vld [vmem:[%s6855 + $0x40] sm:$0xf]
    %v6873 = vld [vmem:[%s6855 + $0x44] sm:$0xf]
    %v6874 = vld [vmem:[%s6855 + $0x48] sm:$0xf]
    %v6875 = vld [vmem:[%s6855 + $0x4c] sm:$0xf]
    %v6876 = vld [vmem:[%s6855 + $0x50] sm:$0xf]
    %v6877 = vld [vmem:[%s6855 + $0x54] sm:$0xf]
    %v6878 = vld [vmem:[%s6855 + $0x58] sm:$0xf]
    %v6879 = vld [vmem:[%s6855 + $0x5c] sm:$0xf]
    %v6880 = vld [vmem:[%s6855 + $0x60] sm:$0xf]
    %v6881 = vld [vmem:[%s6855 + $0x64] sm:$0xf]
    %v6882 = vld [vmem:[%s6855 + $0x68] sm:$0xf]
    %v6883 = vld [vmem:[%s6855 + $0x6c] sm:$0xf]
    %v6884 = vld [vmem:[%s6855 + $0x70] sm:$0xf]
    %v6885 = vld [vmem:[%s6855 + $0x74] sm:$0xf]
    %v6886 = vld [vmem:[%s6855 + $0x78] sm:$0xf]
    %v6887 = vld [vmem:[%s6855 + $0x7c] sm:$0xf]
    %v6889 = vunpack.c.l.b16 %v6854
    %v6890 = vunpack.c.h.b16 %v6854
    %v6891 = vpack.c.b16 %v5598, %v6889
    %v6892 = vpack.c.b16 %v5599, %v6890
    %v6893 = vrot.slane %v6891, 2
    %v6894 = vrot.slane %v5632, 2
    %v6895 = vsel %vm4951, %v6893, %v6894
    %v6896 = vrot.slane %v6892, 2
    %v6897 = vrot.slane %v5633, 2
    %v6898 = vsel %vm4951, %v6896, %v6897
    %v6899 = vrot.slane %v5634, 2
    %v6900 = vsel %vm4951, %v6894, %v6899
    %v6901 = vrot.slane %v5635, 2
    %v6902 = vsel %vm4951, %v6897, %v6901
    %v6903 = vrot.slane %v5636, 2
    %v6904 = vsel %vm4951, %v6899, %v6903
    %v6905 = vrot.slane %v5637, 2
    %v6906 = vsel %vm4951, %v6901, %v6905
    %v6907 = vrot.slane %v5638, 2
    %v6908 = vsel %vm4951, %v6903, %v6907
    %v6909 = vrot.slane %v5639, 2
    %v6910 = vsel %vm4951, %v6905, %v6909
    %v6911 = vrot.slane %v5640, 2
    %v6912 = vsel %vm4951, %v6907, %v6911
    %v6913 = vrot.slane %v5641, 2
    %v6914 = vsel %vm4951, %v6909, %v6913
    %v6915 = vrot.slane %v5642, 2
    %v6916 = vsel %vm4951, %v6911, %v6915
    %v6917 = vrot.slane %v5643, 2
    %v6918 = vsel %vm4951, %v6913, %v6917
    %v6919 = vrot.slane %v5644, 2
    %v6920 = vsel %vm4951, %v6915, %v6919
    %v6921 = vrot.slane %v5645, 2
    %v6922 = vsel %vm4951, %v6917, %v6921
    %v6923 = vrot.slane %v6537, 2
    %v6924 = vsel %vm4951, %v6919, %v6923
    %v6925 = vrot.slane %v6538, 2
    %v6926 = vsel %vm4951, %v6921, %v6925
    %v6975 = vunpack.c.l.b16 %v6856
    %v6976 = vunpack.c.l.b16 %v6857
    %v6977 = vunpack.c.l.b16 %v6858
    %v6978 = vunpack.c.l.b16 %v6859
    %v6979 = vunpack.c.l.b16 %v6860
    %v6980 = vunpack.c.l.b16 %v6861
    %v6981 = vunpack.c.l.b16 %v6862
    %v6982 = vunpack.c.l.b16 %v6863
    %v6983 = vunpack.c.l.b16 %v6864
    %v6984 = vunpack.c.l.b16 %v6865
    %v6985 = vunpack.c.l.b16 %v6866
    %v6986 = vunpack.c.l.b16 %v6867
    %v6987 = vunpack.c.l.b16 %v6868
    %v6988 = vunpack.c.l.b16 %v6869
    %v6989 = vunpack.c.l.b16 %v6870
    %v6990 = vunpack.c.l.b16 %v6871
    %v6991 = vunpack.c.l.b16 %v6872
    %v6992 = vunpack.c.l.b16 %v6873
    %v6993 = vunpack.c.l.b16 %v6874
    %v6994 = vunpack.c.l.b16 %v6875
    %v6995 = vunpack.c.l.b16 %v6876
    %v6996 = vunpack.c.l.b16 %v6877
    %v6997 = vunpack.c.l.b16 %v6878
    %v6998 = vunpack.c.l.b16 %v6879
    %v6999 = vunpack.c.l.b16 %v6880
    %v7000 = vunpack.c.l.b16 %v6881
    %v7001 = vunpack.c.l.b16 %v6882
    %v7002 = vunpack.c.l.b16 %v6883
    %v7003 = vunpack.c.l.b16 %v6884
    %v7004 = vunpack.c.l.b16 %v6885
    %v7005 = vunpack.c.l.b16 %v6886
    %v7006 = vunpack.c.l.b16 %v6887
    %v7007 = vpack.c.b16 %v6976, %v6975
    %v7008 = vpack.c.b16 %v6978, %v6977
    %v7009 = vpack.c.b16 %v6980, %v6979
    %v7010 = vpack.c.b16 %v6982, %v6981
    %v7011 = vpack.c.b16 %v6984, %v6983
    %v7012 = vpack.c.b16 %v6986, %v6985
    %v7013 = vpack.c.b16 %v6988, %v6987
    %v7014 = vpack.c.b16 %v6990, %v6989
    %v7015 = vpack.c.b16 %v6992, %v6991
    %v7016 = vpack.c.b16 %v6994, %v6993
    %v7017 = vpack.c.b16 %v6996, %v6995
    %v7018 = vpack.c.b16 %v6998, %v6997
    %v7019 = vpack.c.b16 %v7000, %v6999
    %v7020 = vpack.c.b16 %v7002, %v7001
    %v7021 = vpack.c.b16 %v7004, %v7003
    %v7022 = vpack.c.b16 %v7006, %v7005
    %7039 = vmatprep.subr.bf16.mxu0 0
    %7040 = vmatpush1.bf16.msra.mxu0 %v7014
    %7041 = vmatprep.subr.bf16.mxu0 0
    %7042 = vmatpush1.bf16.msra.mxu0 %v7013
    %7043 = vmatprep.subr.bf16.mxu0 0
    %7044 = vmatpush1.bf16.msra.mxu0 %v7012
    %7045 = vmatprep.subr.bf16.mxu0 0
    %7046 = vmatpush1.bf16.msra.mxu0 %v7011
    %7047 = vmatprep.subr.bf16.mxu0 0
    %7048 = vmatpush1.bf16.msra.mxu0 %v7010
    %7049 = vmatprep.subr.bf16.mxu0 0
    %7050 = vmatpush1.bf16.msra.mxu0 %v7009
    %7051 = vmatprep.subr.bf16.mxu0 0
    %7052 = vmatpush1.bf16.msra.mxu0 %v7008
    %7053 = vmatprep.subr.bf16.mxu0 0
    %7054 = vmatpush1.bf16.msra.mxu0 %v7007
    %7055 = vmatprep.subr.bf16.mxu0 0
    %7056 = vmatpush2.bf16.msra.mxu0 %v7022
    %7057 = vmatprep.subr.bf16.mxu0 0
    %7058 = vmatpush2.bf16.msra.mxu0 %v7021
    %7059 = vmatprep.subr.bf16.mxu0 0
    %7060 = vmatpush2.bf16.msra.mxu0 %v7020
    %7061 = vmatprep.subr.bf16.mxu0 0
    %7062 = vmatpush2.bf16.msra.mxu0 %v7019
    %7063 = vmatprep.subr.bf16.mxu0 0
    %7064 = vmatpush2.bf16.msra.mxu0 %v7018
    %7065 = vmatprep.subr.bf16.mxu0 0
    %7066 = vmatpush2.bf16.msra.mxu0 %v7017
    %7067 = vmatprep.subr.bf16.mxu0 0
    %7068 = vmatpush2.bf16.msra.mxu0 %v7016
    %7069 = vmatprep.subr.bf16.mxu0 0
    %7070 = vmatpush2.bf16.msra.mxu0 %v7015
    %7071 = vmatprep.mubr.bf16.mxu0 %v6898
    %7072 = vmatmul.mubr.bf16.gmra.mxu0 %v6895
    %v7073 = vpop.f32.mrf.mxu0
    %v7074 = vadd.f32 0.0, %v7073
    %v7075 = vpop.f32.mrf.mxu0
    %v7076 = vpop.f32.mrf.mxu0
    %v7077 = vadd.f32 0.0, %v7076
    %v7078 = vpop.f32.mrf.mxu0
    %7079 = vmatprep.mubr.bf16.mxu0 %v6902
    %7080 = vmatmul.mubr.bf16.gmra.mxu0 %v6900
    %v7081 = vpop.f32.mrf.mxu0
    %v7082 = vadd.f32 0.0, %v7081
    %v7083 = vpop.f32.mrf.mxu0
    %v7084 = vpop.f32.mrf.mxu0
    %v7085 = vadd.f32 0.0, %v7084
    %v7086 = vpop.f32.mrf.mxu0
    %7087 = vmatprep.mubr.bf16.mxu0 %v6906
    %7088 = vmatmul.mubr.bf16.gmra.mxu0 %v6904
    %v7089 = vpop.f32.mrf.mxu0
    %v7090 = vadd.f32 0.0, %v7089
    %v7091 = vpop.f32.mrf.mxu0
    %v7092 = vpop.f32.mrf.mxu0
    %v7093 = vadd.f32 0.0, %v7092
    %v7094 = vpop.f32.mrf.mxu0
    %7095 = vmatprep.mubr.bf16.mxu0 %v6910
    %7096 = vmatmul.mubr.bf16.gmra.mxu0 %v6908
    %v7097 = vpop.f32.mrf.mxu0
    %v7098 = vadd.f32 0.0, %v7097
    %v7099 = vpop.f32.mrf.mxu0
    %v7100 = vpop.f32.mrf.mxu0
    %v7101 = vadd.f32 0.0, %v7100
    %v7102 = vpop.f32.mrf.mxu0
    %7103 = vmatprep.mubr.bf16.mxu0 %v6914
    %7104 = vmatmul.mubr.bf16.gmra.mxu0 %v6912
    %v7105 = vpop.f32.mrf.mxu0
    %v7106 = vadd.f32 0.0, %v7105
    %v7107 = vpop.f32.mrf.mxu0
    %v7108 = vpop.f32.mrf.mxu0
    %v7109 = vadd.f32 0.0, %v7108
    %v7110 = vpop.f32.mrf.mxu0
    %7111 = vmatprep.mubr.bf16.mxu0 %v6918
    %7112 = vmatmul.mubr.bf16.gmra.mxu0 %v6916
    %v7113 = vpop.f32.mrf.mxu0
    %v7114 = vadd.f32 0.0, %v7113
    %v7115 = vpop.f32.mrf.mxu0
    %v7116 = vpop.f32.mrf.mxu0
    %v7117 = vadd.f32 0.0, %v7116
    %v7118 = vpop.f32.mrf.mxu0
    %7119 = vmatprep.mubr.bf16.mxu0 %v6922
    %7120 = vmatmul.mubr.bf16.gmra.mxu0 %v6920
    %v7121 = vpop.f32.mrf.mxu0
    %v7122 = vadd.f32 0.0, %v7121
    %v7123 = vpop.f32.mrf.mxu0
    %v7124 = vpop.f32.mrf.mxu0
    %v7125 = vadd.f32 0.0, %v7124
    %v7126 = vpop.f32.mrf.mxu0
    %7127 = vmatprep.mubr.bf16.mxu0 %v6926
    %7128 = vmatmul.mubr.bf16.gmra.mxu0 %v6924
    %v7129 = vpop.f32.mrf.mxu0
    %v7130 = vadd.f32 0.0, %v7129
    %v7131 = vpop.f32.mrf.mxu0
    %v7132 = vpop.f32.mrf.mxu0
    %v7133 = vadd.f32 0.0, %v7132
    %v7134 = vpop.f32.mrf.mxu0
    %7135 = vdwg.mxu0
    %v7136 = vadd.f32 %v6838, %v7074
    %v7137 = vadd.f32 %v6839, %v7077
    %v7138 = vadd.f32 %v6840, %v7082
    %v7139 = vadd.f32 %v6841, %v7085
    %v7140 = vadd.f32 %v6842, %v7090
    %v7141 = vadd.f32 %v6843, %v7093
    %v7142 = vadd.f32 %v6844, %v7098
    %v7143 = vadd.f32 %v6845, %v7101
    %v7144 = vadd.f32 %v6846, %v7106
    %v7145 = vadd.f32 %v6847, %v7109
    %v7146 = vadd.f32 %v6848, %v7114
    %v7147 = vadd.f32 %v6849, %v7117
    %v7148 = vadd.f32 %v6850, %v7122
    %v7149 = vadd.f32 %v6851, %v7125
    %v7150 = vadd.f32 %v6852, %v7130
    %v7151 = vadd.f32 %v6853, %v7133
    %v7152 = vld [vmem:[#allocation3 + $0x80] sm:$0x77]
    %s7153 = scalar_lea.vmem [#allocation8], 640
    %v7154 = vld [vmem:[%s7153] sm:$0xf]
    %v7155 = vld [vmem:[%s7153 + $0x4] sm:$0xf]
    %v7156 = vld [vmem:[%s7153 + $0x8] sm:$0xf]
    %v7157 = vld [vmem:[%s7153 + $0xc] sm:$0xf]
    %v7158 = vld [vmem:[%s7153 + $0x10] sm:$0xf]
    %v7159 = vld [vmem:[%s7153 + $0x14] sm:$0xf]
    %v7160 = vld [vmem:[%s7153 + $0x18] sm:$0xf]
    %v7161 = vld [vmem:[%s7153 + $0x1c] sm:$0xf]
    %v7162 = vld [vmem:[%s7153 + $0x20] sm:$0xf]
    %v7163 = vld [vmem:[%s7153 + $0x24] sm:$0xf]
    %v7164 = vld [vmem:[%s7153 + $0x28] sm:$0xf]
    %v7165 = vld [vmem:[%s7153 + $0x2c] sm:$0xf]
    %v7166 = vld [vmem:[%s7153 + $0x30] sm:$0xf]
    %v7167 = vld [vmem:[%s7153 + $0x34] sm:$0xf]
    %v7168 = vld [vmem:[%s7153 + $0x38] sm:$0xf]
    %v7169 = vld [vmem:[%s7153 + $0x3c] sm:$0xf]
    %v7170 = vld [vmem:[%s7153 + $0x40] sm:$0xf]
    %v7171 = vld [vmem:[%s7153 + $0x44] sm:$0xf]
    %v7172 = vld [vmem:[%s7153 + $0x48] sm:$0xf]
    %v7173 = vld [vmem:[%s7153 + $0x4c] sm:$0xf]
    %v7174 = vld [vmem:[%s7153 + $0x50] sm:$0xf]
    %v7175 = vld [vmem:[%s7153 + $0x54] sm:$0xf]
    %v7176 = vld [vmem:[%s7153 + $0x58] sm:$0xf]
    %v7177 = vld [vmem:[%s7153 + $0x5c] sm:$0xf]
    %v7178 = vld [vmem:[%s7153 + $0x60] sm:$0xf]
    %v7179 = vld [vmem:[%s7153 + $0x64] sm:$0xf]
    %v7180 = vld [vmem:[%s7153 + $0x68] sm:$0xf]
    %v7181 = vld [vmem:[%s7153 + $0x6c] sm:$0xf]
    %v7182 = vld [vmem:[%s7153 + $0x70] sm:$0xf]
    %v7183 = vld [vmem:[%s7153 + $0x74] sm:$0xf]
    %v7184 = vld [vmem:[%s7153 + $0x78] sm:$0xf]
    %v7185 = vld [vmem:[%s7153 + $0x7c] sm:$0xf]
    %v7187 = vunpack.c.l.b16 %v7152
    %v7188 = vunpack.c.h.b16 %v7152
    %v7189 = vpack.c.b16 %v7187, %v7187
    %v7190 = vpack.c.b16 %v7188, %v7188
    %vm7191 = vsmask.f32 5376
    %v7193 = vshrl.u32 %v6891, 16
    %v7195 = vrot.slane %v7193, 2
    %v7196 = vshll.u32 %v6891, 16
    %v7198 = vrot.slane %v7196, 3
    %v7199 = vor.u32 %v7195, %v7198
    %v7200 = vrot.slane %v5672, 2
    %v7201 = vrot.slane %v5656, 3
    %v7202 = vor.u32 %v7200, %v7201
    %v7203 = vsel %vm7191, %v7199, %v7202
    %v7205 = vshrl.u32 %v6892, 16
    %v7207 = vrot.slane %v7205, 2
    %v7208 = vshll.u32 %v6892, 16
    %v7210 = vrot.slane %v7208, 3
    %v7211 = vor.u32 %v7207, %v7210
    %v7212 = vrot.slane %v5680, 2
    %v7213 = vrot.slane %v5668, 3
    %v7214 = vor.u32 %v7212, %v7213
    %v7215 = vsel %vm7191, %v7211, %v7214
    %v7216 = vrot.slane %v5688, 2
    %v7217 = vrot.slane %v5676, 3
    %v7218 = vor.u32 %v7216, %v7217
    %v7219 = vsel %vm7191, %v7202, %v7218
    %v7220 = vrot.slane %v5696, 2
    %v7221 = vrot.slane %v5684, 3
    %v7222 = vor.u32 %v7220, %v7221
    %v7223 = vsel %vm7191, %v7214, %v7222
    %v7224 = vrot.slane %v5704, 2
    %v7225 = vrot.slane %v5692, 3
    %v7226 = vor.u32 %v7224, %v7225
    %v7227 = vsel %vm7191, %v7218, %v7226
    %v7228 = vrot.slane %v5712, 2
    %v7229 = vrot.slane %v5700, 3
    %v7230 = vor.u32 %v7228, %v7229
    %v7231 = vsel %vm7191, %v7222, %v7230
    %v7232 = vrot.slane %v5720, 2
    %v7233 = vrot.slane %v5708, 3
    %v7234 = vor.u32 %v7232, %v7233
    %v7235 = vsel %vm7191, %v7226, %v7234
    %v7236 = vrot.slane %v5728, 2
    %v7237 = vrot.slane %v5716, 3
    %v7238 = vor.u32 %v7236, %v7237
    %v7239 = vsel %vm7191, %v7230, %v7238
    %v7240 = vrot.slane %v5736, 2
    %v7241 = vrot.slane %v5724, 3
    %v7242 = vor.u32 %v7240, %v7241
    %v7243 = vsel %vm7191, %v7234, %v7242
    %v7244 = vrot.slane %v5744, 2
    %v7245 = vrot.slane %v5732, 3
    %v7246 = vor.u32 %v7244, %v7245
    %v7247 = vsel %vm7191, %v7238, %v7246
    %v7248 = vrot.slane %v5752, 2
    %v7249 = vrot.slane %v5740, 3
    %v7250 = vor.u32 %v7248, %v7249
    %v7251 = vsel %vm7191, %v7242, %v7250
    %v7252 = vrot.slane %v5760, 2
    %v7253 = vrot.slane %v5748, 3
    %v7254 = vor.u32 %v7252, %v7253
    %v7255 = vsel %vm7191, %v7246, %v7254
    %v7256 = vrot.slane %v5768, 2
    %v7257 = vrot.slane %v5756, 3
    %v7258 = vor.u32 %v7256, %v7257
    %v7259 = vsel %vm7191, %v7250, %v7258
    %v7260 = vrot.slane %v5776, 2
    %v7261 = vrot.slane %v5764, 3
    %v7262 = vor.u32 %v7260, %v7261
    %v7263 = vsel %vm7191, %v7254, %v7262
    %v7265 = vshrl.u32 %v7189, 16
    %v7267 = vrot.slane %v7265, 2
    %v7268 = vshll.u32 %v7189, 16
    %v7270 = vrot.slane %v7268, 3
    %v7271 = vor.u32 %v7267, %v7270
    %v7272 = vsel %vm7191, %v7258, %v7271
    %v7274 = vshrl.u32 %v7190, 16
    %v7276 = vrot.slane %v7274, 2
    %v7277 = vshll.u32 %v7190, 16
    %v7279 = vrot.slane %v7277, 3
    %v7280 = vor.u32 %v7276, %v7279
    %v7281 = vsel %vm7191, %v7262, %v7280
    %v7330 = vunpack.c.l.b16 %v7154
    %v7331 = vunpack.c.l.b16 %v7155
    %v7332 = vunpack.c.l.b16 %v7156
    %v7333 = vunpack.c.l.b16 %v7157
    %v7334 = vunpack.c.l.b16 %v7158
    %v7335 = vunpack.c.l.b16 %v7159
    %v7336 = vunpack.c.l.b16 %v7160
    %v7337 = vunpack.c.l.b16 %v7161
    %v7338 = vunpack.c.l.b16 %v7162
    %v7339 = vunpack.c.l.b16 %v7163
    %v7340 = vunpack.c.l.b16 %v7164
    %v7341 = vunpack.c.l.b16 %v7165
    %v7342 = vunpack.c.l.b16 %v7166
    %v7343 = vunpack.c.l.b16 %v7167
    %v7344 = vunpack.c.l.b16 %v7168
    %v7345 = vunpack.c.l.b16 %v7169
    %v7346 = vunpack.c.l.b16 %v7170
    %v7347 = vunpack.c.l.b16 %v7171
    %v7348 = vunpack.c.l.b16 %v7172
    %v7349 = vunpack.c.l.b16 %v7173
    %v7350 = vunpack.c.l.b16 %v7174
    %v7351 = vunpack.c.l.b16 %v7175
    %v7352 = vunpack.c.l.b16 %v7176
    %v7353 = vunpack.c.l.b16 %v7177
    %v7354 = vunpack.c.l.b16 %v7178
    %v7355 = vunpack.c.l.b16 %v7179
    %v7356 = vunpack.c.l.b16 %v7180
    %v7357 = vunpack.c.l.b16 %v7181
    %v7358 = vunpack.c.l.b16 %v7182
    %v7359 = vunpack.c.l.b16 %v7183
    %v7360 = vunpack.c.l.b16 %v7184
    %v7361 = vunpack.c.l.b16 %v7185
    %v7362 = vpack.c.b16 %v7331, %v7330
    %v7363 = vpack.c.b16 %v7333, %v7332
    %v7364 = vpack.c.b16 %v7335, %v7334
    %v7365 = vpack.c.b16 %v7337, %v7336
    %v7366 = vpack.c.b16 %v7339, %v7338
    %v7367 = vpack.c.b16 %v7341, %v7340
    %v7368 = vpack.c.b16 %v7343, %v7342
    %v7369 = vpack.c.b16 %v7345, %v7344
    %v7370 = vpack.c.b16 %v7347, %v7346
    %v7371 = vpack.c.b16 %v7349, %v7348
    %v7372 = vpack.c.b16 %v7351, %v7350
    %v7373 = vpack.c.b16 %v7353, %v7352
    %v7374 = vpack.c.b16 %v7355, %v7354
    %v7375 = vpack.c.b16 %v7357, %v7356
    %v7376 = vpack.c.b16 %v7359, %v7358
    %v7377 = vpack.c.b16 %v7361, %v7360
    %7394 = vmatprep.subr.bf16.mxu0 0
    %7395 = vmatpush1.bf16.msra.mxu0 %v7369
    %7396 = vmatprep.subr.bf16.mxu0 0
    %7397 = vmatpush1.bf16.msra.mxu0 %v7368
    %7398 = vmatprep.subr.bf16.mxu0 0
    %7399 = vmatpush1.bf16.msra.mxu0 %v7367
    %7400 = vmatprep.subr.bf16.mxu0 0
    %7401 = vmatpush1.bf16.msra.mxu0 %v7366
    %7402 = vmatprep.subr.bf16.mxu0 0
    %7403 = vmatpush1.bf16.msra.mxu0 %v7365
    %7404 = vmatprep.subr.bf16.mxu0 0
    %7405 = vmatpush1.bf16.msra.mxu0 %v7364
    %7406 = vmatprep.subr.bf16.mxu0 0
    %7407 = vmatpush1.bf16.msra.mxu0 %v7363
    %7408 = vmatprep.subr.bf16.mxu0 0
    %7409 = vmatpush1.bf16.msra.mxu0 %v7362
    %7410 = vmatprep.subr.bf16.mxu0 0
    %7411 = vmatpush2.bf16.msra.mxu0 %v7377
    %7412 = vmatprep.subr.bf16.mxu0 0
    %7413 = vmatpush2.bf16.msra.mxu0 %v7376
    %7414 = vmatprep.subr.bf16.mxu0 0
    %7415 = vmatpush2.bf16.msra.mxu0 %v7375
    %7416 = vmatprep.subr.bf16.mxu0 0
    %7417 = vmatpush2.bf16.msra.mxu0 %v7374
    %7418 = vmatprep.subr.bf16.mxu0 0
    %7419 = vmatpush2.bf16.msra.mxu0 %v7373
    %7420 = vmatprep.subr.bf16.mxu0 0
    %7421 = vmatpush2.bf16.msra.mxu0 %v7372
    %7422 = vmatprep.subr.bf16.mxu0 0
    %7423 = vmatpush2.bf16.msra.mxu0 %v7371
    %7424 = vmatprep.subr.bf16.mxu0 0
    %7425 = vmatpush2.bf16.msra.mxu0 %v7370
    %7426 = vmatprep.mubr.bf16.mxu0 %v7215
    %7427 = vmatmul.mubr.bf16.gmra.mxu0 %v7203
    %v7428 = vpop.f32.mrf.mxu0
    %v7429 = vadd.f32 0.0, %v7428
    %v7430 = vpop.f32.mrf.mxu0
    %v7431 = vpop.f32.mrf.mxu0
    %v7432 = vadd.f32 0.0, %v7431
    %v7433 = vpop.f32.mrf.mxu0
    %7434 = vmatprep.mubr.bf16.mxu0 %v7223
    %7435 = vmatmul.mubr.bf16.gmra.mxu0 %v7219
    %v7436 = vpop.f32.mrf.mxu0
    %v7437 = vadd.f32 0.0, %v7436
    %v7438 = vpop.f32.mrf.mxu0
    %v7439 = vpop.f32.mrf.mxu0
    %v7440 = vadd.f32 0.0, %v7439
    %v7441 = vpop.f32.mrf.mxu0
    %7442 = vmatprep.mubr.bf16.mxu0 %v7231
    %7443 = vmatmul.mubr.bf16.gmra.mxu0 %v7227
    %v7444 = vpop.f32.mrf.mxu0
    %v7445 = vadd.f32 0.0, %v7444
    %v7446 = vpop.f32.mrf.mxu0
    %v7447 = vpop.f32.mrf.mxu0
    %v7448 = vadd.f32 0.0, %v7447
    %v7449 = vpop.f32.mrf.mxu0
    %7450 = vmatprep.mubr.bf16.mxu0 %v7239
    %7451 = vmatmul.mubr.bf16.gmra.mxu0 %v7235
    %v7452 = vpop.f32.mrf.mxu0
    %v7453 = vadd.f32 0.0, %v7452
    %v7454 = vpop.f32.mrf.mxu0
    %v7455 = vpop.f32.mrf.mxu0
    %v7456 = vadd.f32 0.0, %v7455
    %v7457 = vpop.f32.mrf.mxu0
    %7458 = vmatprep.mubr.bf16.mxu0 %v7247
    %7459 = vmatmul.mubr.bf16.gmra.mxu0 %v7243
    %v7460 = vpop.f32.mrf.mxu0
    %v7461 = vadd.f32 0.0, %v7460
    %v7462 = vpop.f32.mrf.mxu0
    %v7463 = vpop.f32.mrf.mxu0
    %v7464 = vadd.f32 0.0, %v7463
    %v7465 = vpop.f32.mrf.mxu0
    %7466 = vmatprep.mubr.bf16.mxu0 %v7255
    %7467 = vmatmul.mubr.bf16.gmra.mxu0 %v7251
    %v7468 = vpop.f32.mrf.mxu0
    %v7469 = vadd.f32 0.0, %v7468
    %v7470 = vpop.f32.mrf.mxu0
    %v7471 = vpop.f32.mrf.mxu0
    %v7472 = vadd.f32 0.0, %v7471
    %v7473 = vpop.f32.mrf.mxu0
    %7474 = vmatprep.mubr.bf16.mxu0 %v7263
    %7475 = vmatmul.mubr.bf16.gmra.mxu0 %v7259
    %v7476 = vpop.f32.mrf.mxu0
    %v7477 = vadd.f32 0.0, %v7476
    %v7478 = vpop.f32.mrf.mxu0
    %v7479 = vpop.f32.mrf.mxu0
    %v7480 = vadd.f32 0.0, %v7479
    %v7481 = vpop.f32.mrf.mxu0
    %7482 = vmatprep.mubr.bf16.mxu0 %v7281
    %7483 = vmatmul.mubr.bf16.gmra.mxu0 %v7272
    %v7484 = vpop.f32.mrf.mxu0
    %v7485 = vadd.f32 0.0, %v7484
    %v7486 = vpop.f32.mrf.mxu0
    %v7487 = vpop.f32.mrf.mxu0
    %v7488 = vadd.f32 0.0, %v7487
    %v7489 = vpop.f32.mrf.mxu0
    %7490 = vdwg.mxu0
    %v7491 = vadd.f32 %v7136, %v7429
    %v7492 = vadd.f32 %v7137, %v7432
    %v7493 = vadd.f32 %v7138, %v7437
    %v7494 = vadd.f32 %v7139, %v7440
    %v7495 = vadd.f32 %v7140, %v7445
    %v7496 = vadd.f32 %v7141, %v7448
    %v7497 = vadd.f32 %v7142, %v7453
    %v7498 = vadd.f32 %v7143, %v7456
    %v7499 = vadd.f32 %v7144, %v7461
    %v7500 = vadd.f32 %v7145, %v7464
    %v7501 = vadd.f32 %v7146, %v7469
    %v7502 = vadd.f32 %v7147, %v7472
    %v7503 = vadd.f32 %v7148, %v7477
    %v7504 = vadd.f32 %v7149, %v7480
    %v7505 = vadd.f32 %v7150, %v7485
    %v7506 = vadd.f32 %v7151, %v7488
    %v7507 = vld [vmem:[#allocation3] sm:$0x88]
    %s7508 = scalar_lea.vmem [#allocation8], 768
    %v7509 = vld [vmem:[%s7508] sm:$0xf]
    %v7510 = vld [vmem:[%s7508 + $0x4] sm:$0xf]
    %v7511 = vld [vmem:[%s7508 + $0x8] sm:$0xf]
    %v7512 = vld [vmem:[%s7508 + $0xc] sm:$0xf]
    %v7513 = vld [vmem:[%s7508 + $0x10] sm:$0xf]
    %v7514 = vld [vmem:[%s7508 + $0x14] sm:$0xf]
    %v7515 = vld [vmem:[%s7508 + $0x18] sm:$0xf]
    %v7516 = vld [vmem:[%s7508 + $0x1c] sm:$0xf]
    %v7517 = vld [vmem:[%s7508 + $0x20] sm:$0xf]
    %v7518 = vld [vmem:[%s7508 + $0x24] sm:$0xf]
    %v7519 = vld [vmem:[%s7508 + $0x28] sm:$0xf]
    %v7520 = vld [vmem:[%s7508 + $0x2c] sm:$0xf]
    %v7521 = vld [vmem:[%s7508 + $0x30] sm:$0xf]
    %v7522 = vld [vmem:[%s7508 + $0x34] sm:$0xf]
    %v7523 = vld [vmem:[%s7508 + $0x38] sm:$0xf]
    %v7524 = vld [vmem:[%s7508 + $0x3c] sm:$0xf]
    %v7525 = vld [vmem:[%s7508 + $0x40] sm:$0xf]
    %v7526 = vld [vmem:[%s7508 + $0x44] sm:$0xf]
    %v7527 = vld [vmem:[%s7508 + $0x48] sm:$0xf]
    %v7528 = vld [vmem:[%s7508 + $0x4c] sm:$0xf]
    %v7529 = vld [vmem:[%s7508 + $0x50] sm:$0xf]
    %v7530 = vld [vmem:[%s7508 + $0x54] sm:$0xf]
    %v7531 = vld [vmem:[%s7508 + $0x58] sm:$0xf]
    %v7532 = vld [vmem:[%s7508 + $0x5c] sm:$0xf]
    %v7533 = vld [vmem:[%s7508 + $0x60] sm:$0xf]
    %v7534 = vld [vmem:[%s7508 + $0x64] sm:$0xf]
    %v7535 = vld [vmem:[%s7508 + $0x68] sm:$0xf]
    %v7536 = vld [vmem:[%s7508 + $0x6c] sm:$0xf]
    %v7537 = vld [vmem:[%s7508 + $0x70] sm:$0xf]
    %v7538 = vld [vmem:[%s7508 + $0x74] sm:$0xf]
    %v7539 = vld [vmem:[%s7508 + $0x78] sm:$0xf]
    %v7540 = vld [vmem:[%s7508 + $0x7c] sm:$0xf]
    %v7542 = vunpack.c.l.b16 %v7507
    %v7543 = vunpack.c.h.b16 %v7507
    %v7544 = vpack.c.b16 %v5598, %v7542
    %v7545 = vpack.c.b16 %v5599, %v7543
    %vm7546 = vcmask 1044480
    %v7547 = vrot.slane %v7544, 3
    %v7548 = vrot.slane %v5632, 3
    %v7549 = vsel %vm7546, %v7547, %v7548
    %v7550 = vrot.slane %v7545, 3
    %v7551 = vrot.slane %v5633, 3
    %v7552 = vsel %vm7546, %v7550, %v7551
    %v7553 = vrot.slane %v5634, 3
    %v7554 = vsel %vm7546, %v7548, %v7553
    %v7555 = vrot.slane %v5635, 3
    %v7556 = vsel %vm7546, %v7551, %v7555
    %v7557 = vrot.slane %v5636, 3
    %v7558 = vsel %vm7546, %v7553, %v7557
    %v7559 = vrot.slane %v5637, 3
    %v7560 = vsel %vm7546, %v7555, %v7559
    %v7561 = vrot.slane %v5638, 3
    %v7562 = vsel %vm7546, %v7557, %v7561
    %v7563 = vrot.slane %v5639, 3
    %v7564 = vsel %vm7546, %v7559, %v7563
    %v7565 = vrot.slane %v5640, 3
    %v7566 = vsel %vm7546, %v7561, %v7565
    %v7567 = vrot.slane %v5641, 3
    %v7568 = vsel %vm7546, %v7563, %v7567
    %v7569 = vrot.slane %v5642, 3
    %v7570 = vsel %vm7546, %v7565, %v7569
    %v7571 = vrot.slane %v5643, 3
    %v7572 = vsel %vm7546, %v7567, %v7571
    %v7573 = vrot.slane %v5644, 3
    %v7574 = vsel %vm7546, %v7569, %v7573
    %v7575 = vrot.slane %v5645, 3
    %v7576 = vsel %vm7546, %v7571, %v7575
    %v7577 = vrot.slane %v7189, 3
    %v7578 = vsel %vm7546, %v7573, %v7577
    %v7579 = vrot.slane %v7190, 3
    %v7580 = vsel %vm7546, %v7575, %v7579
    %v7629 = vunpack.c.l.b16 %v7509
    %v7630 = vunpack.c.l.b16 %v7510
    %v7631 = vunpack.c.l.b16 %v7511
    %v7632 = vunpack.c.l.b16 %v7512
    %v7633 = vunpack.c.l.b16 %v7513
    %v7634 = vunpack.c.l.b16 %v7514
    %v7635 = vunpack.c.l.b16 %v7515
    %v7636 = vunpack.c.l.b16 %v7516
    %v7637 = vunpack.c.l.b16 %v7517
    %v7638 = vunpack.c.l.b16 %v7518
    %v7639 = vunpack.c.l.b16 %v7519
    %v7640 = vunpack.c.l.b16 %v7520
    %v7641 = vunpack.c.l.b16 %v7521
    %v7642 = vunpack.c.l.b16 %v7522
    %v7643 = vunpack.c.l.b16 %v7523
    %v7644 = vunpack.c.l.b16 %v7524
    %v7645 = vunpack.c.l.b16 %v7525
    %v7646 = vunpack.c.l.b16 %v7526
    %v7647 = vunpack.c.l.b16 %v7527
    %v7648 = vunpack.c.l.b16 %v7528
    %v7649 = vunpack.c.l.b16 %v7529
    %v7650 = vunpack.c.l.b16 %v7530
    %v7651 = vunpack.c.l.b16 %v7531
    %v7652 = vunpack.c.l.b16 %v7532
    %v7653 = vunpack.c.l.b16 %v7533
    %v7654 = vunpack.c.l.b16 %v7534
    %v7655 = vunpack.c.l.b16 %v7535
    %v7656 = vunpack.c.l.b16 %v7536
    %v7657 = vunpack.c.l.b16 %v7537
    %v7658 = vunpack.c.l.b16 %v7538
    %v7659 = vunpack.c.l.b16 %v7539
    %v7660 = vunpack.c.l.b16 %v7540
    %v7661 = vpack.c.b16 %v7630, %v7629
    %v7662 = vpack.c.b16 %v7632, %v7631
    %v7663 = vpack.c.b16 %v7634, %v7633
    %v7664 = vpack.c.b16 %v7636, %v7635
    %v7665 = vpack.c.b16 %v7638, %v7637
    %v7666 = vpack.c.b16 %v7640, %v7639
    %v7667 = vpack.c.b16 %v7642, %v7641
    %v7668 = vpack.c.b16 %v7644, %v7643
    %v7669 = vpack.c.b16 %v7646, %v7645
    %v7670 = vpack.c.b16 %v7648, %v7647
    %v7671 = vpack.c.b16 %v7650, %v7649
    %v7672 = vpack.c.b16 %v7652, %v7651
    %v7673 = vpack.c.b16 %v7654, %v7653
    %v7674 = vpack.c.b16 %v7656, %v7655
    %v7675 = vpack.c.b16 %v7658, %v7657
    %v7676 = vpack.c.b16 %v7660, %v7659
    %7693 = vmatprep.subr.bf16.mxu0 0
    %7694 = vmatpush1.bf16.msra.mxu0 %v7668
    %7695 = vmatprep.subr.bf16.mxu0 0
    %7696 = vmatpush1.bf16.msra.mxu0 %v7667
    %7697 = vmatprep.subr.bf16.mxu0 0
    %7698 = vmatpush1.bf16.msra.mxu0 %v7666
    %7699 = vmatprep.subr.bf16.mxu0 0
    %7700 = vmatpush1.bf16.msra.mxu0 %v7665
    %7701 = vmatprep.subr.bf16.mxu0 0
    %7702 = vmatpush1.bf16.msra.mxu0 %v7664
    %7703 = vmatprep.subr.bf16.mxu0 0
    %7704 = vmatpush1.bf16.msra.mxu0 %v7663
    %7705 = vmatprep.subr.bf16.mxu0 0
    %7706 = vmatpush1.bf16.msra.mxu0 %v7662
    %7707 = vmatprep.subr.bf16.mxu0 0
    %7708 = vmatpush1.bf16.msra.mxu0 %v7661
    %7709 = vmatprep.subr.bf16.mxu0 0
    %7710 = vmatpush2.bf16.msra.mxu0 %v7676
    %7711 = vmatprep.subr.bf16.mxu0 0
    %7712 = vmatpush2.bf16.msra.mxu0 %v7675
    %7713 = vmatprep.subr.bf16.mxu0 0
    %7714 = vmatpush2.bf16.msra.mxu0 %v7674
    %7715 = vmatprep.subr.bf16.mxu0 0
    %7716 = vmatpush2.bf16.msra.mxu0 %v7673
    %7717 = vmatprep.subr.bf16.mxu0 0
    %7718 = vmatpush2.bf16.msra.mxu0 %v7672
    %7719 = vmatprep.subr.bf16.mxu0 0
    %7720 = vmatpush2.bf16.msra.mxu0 %v7671
    %7721 = vmatprep.subr.bf16.mxu0 0
    %7722 = vmatpush2.bf16.msra.mxu0 %v7670
    %7723 = vmatprep.subr.bf16.mxu0 0
    %7724 = vmatpush2.bf16.msra.mxu0 %v7669
    %7725 = vmatprep.mubr.bf16.mxu0 %v7552
    %7726 = vmatmul.mubr.bf16.gmra.mxu0 %v7549
    %v7727 = vpop.f32.mrf.mxu0
    %v7728 = vadd.f32 0.0, %v7727
    %v7729 = vpop.f32.mrf.mxu0
    %v7730 = vpop.f32.mrf.mxu0
    %v7731 = vadd.f32 0.0, %v7730
    %v7732 = vpop.f32.mrf.mxu0
    %7733 = vmatprep.mubr.bf16.mxu0 %v7556
    %7734 = vmatmul.mubr.bf16.gmra.mxu0 %v7554
    %v7735 = vpop.f32.mrf.mxu0
    %v7736 = vadd.f32 0.0, %v7735
    %v7737 = vpop.f32.mrf.mxu0
    %v7738 = vpop.f32.mrf.mxu0
    %v7739 = vadd.f32 0.0, %v7738
    %v7740 = vpop.f32.mrf.mxu0
    %7741 = vmatprep.mubr.bf16.mxu0 %v7560
    %7742 = vmatmul.mubr.bf16.gmra.mxu0 %v7558
    %v7743 = vpop.f32.mrf.mxu0
    %v7744 = vadd.f32 0.0, %v7743
    %v7745 = vpop.f32.mrf.mxu0
    %v7746 = vpop.f32.mrf.mxu0
    %v7747 = vadd.f32 0.0, %v7746
    %v7748 = vpop.f32.mrf.mxu0
    %7749 = vmatprep.mubr.bf16.mxu0 %v7564
    %7750 = vmatmul.mubr.bf16.gmra.mxu0 %v7562
    %v7751 = vpop.f32.mrf.mxu0
    %v7752 = vadd.f32 0.0, %v7751
    %v7753 = vpop.f32.mrf.mxu0
    %v7754 = vpop.f32.mrf.mxu0
    %v7755 = vadd.f32 0.0, %v7754
    %v7756 = vpop.f32.mrf.mxu0
    %7757 = vmatprep.mubr.bf16.mxu0 %v7568
    %7758 = vmatmul.mubr.bf16.gmra.mxu0 %v7566
    %v7759 = vpop.f32.mrf.mxu0
    %v7760 = vadd.f32 0.0, %v7759
    %v7761 = vpop.f32.mrf.mxu0
    %v7762 = vpop.f32.mrf.mxu0
    %v7763 = vadd.f32 0.0, %v7762
    %v7764 = vpop.f32.mrf.mxu0
    %7765 = vmatprep.mubr.bf16.mxu0 %v7572
    %7766 = vmatmul.mubr.bf16.gmra.mxu0 %v7570
    %v7767 = vpop.f32.mrf.mxu0
    %v7768 = vadd.f32 0.0, %v7767
    %v7769 = vpop.f32.mrf.mxu0
    %v7770 = vpop.f32.mrf.mxu0
    %v7771 = vadd.f32 0.0, %v7770
    %v7772 = vpop.f32.mrf.mxu0
    %7773 = vmatprep.mubr.bf16.mxu0 %v7576
    %7774 = vmatmul.mubr.bf16.gmra.mxu0 %v7574
    %v7775 = vpop.f32.mrf.mxu0
    %v7776 = vadd.f32 0.0, %v7775
    %v7777 = vpop.f32.mrf.mxu0
    %v7778 = vpop.f32.mrf.mxu0
    %v7779 = vadd.f32 0.0, %v7778
    %v7780 = vpop.f32.mrf.mxu0
    %7781 = vmatprep.mubr.bf16.mxu0 %v7580
    %7782 = vmatmul.mubr.bf16.gmra.mxu0 %v7578
    %v7783 = vpop.f32.mrf.mxu0
    %v7784 = vadd.f32 0.0, %v7783
    %v7785 = vpop.f32.mrf.mxu0
    %v7786 = vpop.f32.mrf.mxu0
    %v7787 = vadd.f32 0.0, %v7786
    %v7788 = vpop.f32.mrf.mxu0
    %7789 = vdwg.mxu0
    %v7790 = vadd.f32 %v7491, %v7728
    %v7791 = vadd.f32 %v7492, %v7731
    %v7792 = vadd.f32 %v7493, %v7736
    %v7793 = vadd.f32 %v7494, %v7739
    %v7794 = vadd.f32 %v7495, %v7744
    %v7795 = vadd.f32 %v7496, %v7747
    %v7796 = vadd.f32 %v7497, %v7752
    %v7797 = vadd.f32 %v7498, %v7755
    %v7798 = vadd.f32 %v7499, %v7760
    %v7799 = vadd.f32 %v7500, %v7763
    %v7800 = vadd.f32 %v7501, %v7768
    %v7801 = vadd.f32 %v7502, %v7771
    %v7802 = vadd.f32 %v7503, %v7776
    %v7803 = vadd.f32 %v7504, %v7779
    %v7804 = vadd.f32 %v7505, %v7784
    %v7805 = vadd.f32 %v7506, %v7787
    %v7806 = vld [vmem:[#allocation3 + $0x80] sm:$0xff]
    %s7807 = scalar_lea.vmem [#allocation8], 896
    %v7808 = vld [vmem:[%s7807] sm:$0xf]
    %v7809 = vld [vmem:[%s7807 + $0x4] sm:$0xf]
    %v7810 = vld [vmem:[%s7807 + $0x8] sm:$0xf]
    %v7811 = vld [vmem:[%s7807 + $0xc] sm:$0xf]
    %v7812 = vld [vmem:[%s7807 + $0x10] sm:$0xf]
    %v7813 = vld [vmem:[%s7807 + $0x14] sm:$0xf]
    %v7814 = vld [vmem:[%s7807 + $0x18] sm:$0xf]
    %v7815 = vld [vmem:[%s7807 + $0x1c] sm:$0xf]
    %v7816 = vld [vmem:[%s7807 + $0x20] sm:$0xf]
    %v7817 = vld [vmem:[%s7807 + $0x24] sm:$0xf]
    %v7818 = vld [vmem:[%s7807 + $0x28] sm:$0xf]
    %v7819 = vld [vmem:[%s7807 + $0x2c] sm:$0xf]
    %v7820 = vld [vmem:[%s7807 + $0x30] sm:$0xf]
    %v7821 = vld [vmem:[%s7807 + $0x34] sm:$0xf]
    %v7822 = vld [vmem:[%s7807 + $0x38] sm:$0xf]
    %v7823 = vld [vmem:[%s7807 + $0x3c] sm:$0xf]
    %v7824 = vld [vmem:[%s7807 + $0x40] sm:$0xf]
    %v7825 = vld [vmem:[%s7807 + $0x44] sm:$0xf]
    %v7826 = vld [vmem:[%s7807 + $0x48] sm:$0xf]
    %v7827 = vld [vmem:[%s7807 + $0x4c] sm:$0xf]
    %v7828 = vld [vmem:[%s7807 + $0x50] sm:$0xf]
    %v7829 = vld [vmem:[%s7807 + $0x54] sm:$0xf]
    %v7830 = vld [vmem:[%s7807 + $0x58] sm:$0xf]
    %v7831 = vld [vmem:[%s7807 + $0x5c] sm:$0xf]
    %v7832 = vld [vmem:[%s7807 + $0x60] sm:$0xf]
    %v7833 = vld [vmem:[%s7807 + $0x64] sm:$0xf]
    %v7834 = vld [vmem:[%s7807 + $0x68] sm:$0xf]
    %v7835 = vld [vmem:[%s7807 + $0x6c] sm:$0xf]
    %v7836 = vld [vmem:[%s7807 + $0x70] sm:$0xf]
    %v7837 = vld [vmem:[%s7807 + $0x74] sm:$0xf]
    %v7838 = vld [vmem:[%s7807 + $0x78] sm:$0xf]
    %v7839 = vld [vmem:[%s7807 + $0x7c] sm:$0xf]
    %v7841 = vunpack.c.l.b16 %v7806
    %v7842 = vunpack.c.h.b16 %v7806
    %v7843 = vpack.c.b16 %v7841, %v7841
    %v7844 = vpack.c.b16 %v7842, %v7842
    %vm7845 = vsmask.f32 4352
    %v7847 = vshrl.u32 %v7544, 16
    %v7849 = vrot.slane %v7847, 3
    %v7850 = vshll.u32 %v7544, 16
    %v7852 = vrot.slane %v7850, 4
    %v7853 = vor.u32 %v7849, %v7852
    %v7854 = vrot.slane %v5672, 3
    %v7855 = vrot.slane %v5656, 4
    %v7856 = vor.u32 %v7854, %v7855
    %v7857 = vsel %vm7845, %v7853, %v7856
    %v7859 = vshrl.u32 %v7545, 16
    %v7861 = vrot.slane %v7859, 3
    %v7862 = vshll.u32 %v7545, 16
    %v7864 = vrot.slane %v7862, 4
    %v7865 = vor.u32 %v7861, %v7864
    %v7866 = vrot.slane %v5680, 3
    %v7867 = vrot.slane %v5668, 4
    %v7868 = vor.u32 %v7866, %v7867
    %v7869 = vsel %vm7845, %v7865, %v7868
    %v7870 = vrot.slane %v5688, 3
    %v7871 = vrot.slane %v5676, 4
    %v7872 = vor.u32 %v7870, %v7871
    %v7873 = vsel %vm7845, %v7856, %v7872
    %v7874 = vrot.slane %v5696, 3
    %v7875 = vrot.slane %v5684, 4
    %v7876 = vor.u32 %v7874, %v7875
    %v7877 = vsel %vm7845, %v7868, %v7876
    %v7878 = vrot.slane %v5704, 3
    %v7879 = vrot.slane %v5692, 4
    %v7880 = vor.u32 %v7878, %v7879
    %v7881 = vsel %vm7845, %v7872, %v7880
    %v7882 = vrot.slane %v5712, 3
    %v7883 = vrot.slane %v5700, 4
    %v7884 = vor.u32 %v7882, %v7883
    %v7885 = vsel %vm7845, %v7876, %v7884
    %v7886 = vrot.slane %v5720, 3
    %v7887 = vrot.slane %v5708, 4
    %v7888 = vor.u32 %v7886, %v7887
    %v7889 = vsel %vm7845, %v7880, %v7888
    %v7890 = vrot.slane %v5728, 3
    %v7891 = vrot.slane %v5716, 4
    %v7892 = vor.u32 %v7890, %v7891
    %v7893 = vsel %vm7845, %v7884, %v7892
    %v7894 = vrot.slane %v5736, 3
    %v7895 = vrot.slane %v5724, 4
    %v7896 = vor.u32 %v7894, %v7895
    %v7897 = vsel %vm7845, %v7888, %v7896
    %v7898 = vrot.slane %v5744, 3
    %v7899 = vrot.slane %v5732, 4
    %v7900 = vor.u32 %v7898, %v7899
    %v7901 = vsel %vm7845, %v7892, %v7900
    %v7902 = vrot.slane %v5752, 3
    %v7903 = vrot.slane %v5740, 4
    %v7904 = vor.u32 %v7902, %v7903
    %v7905 = vsel %vm7845, %v7896, %v7904
    %v7906 = vrot.slane %v5760, 3
    %v7907 = vrot.slane %v5748, 4
    %v7908 = vor.u32 %v7906, %v7907
    %v7909 = vsel %vm7845, %v7900, %v7908
    %v7910 = vrot.slane %v5768, 3
    %v7911 = vrot.slane %v5756, 4
    %v7912 = vor.u32 %v7910, %v7911
    %v7913 = vsel %vm7845, %v7904, %v7912
    %v7914 = vrot.slane %v5776, 3
    %v7915 = vrot.slane %v5764, 4
    %v7916 = vor.u32 %v7914, %v7915
    %v7917 = vsel %vm7845, %v7908, %v7916
    %v7919 = vshrl.u32 %v7843, 16
    %v7921 = vrot.slane %v7919, 3
    %v7922 = vshll.u32 %v7843, 16
    %v7924 = vrot.slane %v7922, 4
    %v7925 = vor.u32 %v7921, %v7924
    %v7926 = vsel %vm7845, %v7912, %v7925
    %v7928 = vshrl.u32 %v7844, 16
    %v7930 = vrot.slane %v7928, 3
    %v7931 = vshll.u32 %v7844, 16
    %v7933 = vrot.slane %v7931, 4
    %v7934 = vor.u32 %v7930, %v7933
    %v7935 = vsel %vm7845, %v7916, %v7934
    %v7984 = vunpack.c.l.b16 %v7808
    %v7985 = vunpack.c.l.b16 %v7809
    %v7986 = vunpack.c.l.b16 %v7810
    %v7987 = vunpack.c.l.b16 %v7811
    %v7988 = vunpack.c.l.b16 %v7812
    %v7989 = vunpack.c.l.b16 %v7813
    %v7990 = vunpack.c.l.b16 %v7814
    %v7991 = vunpack.c.l.b16 %v7815
    %v7992 = vunpack.c.l.b16 %v7816
    %v7993 = vunpack.c.l.b16 %v7817
    %v7994 = vunpack.c.l.b16 %v7818
    %v7995 = vunpack.c.l.b16 %v7819
    %v7996 = vunpack.c.l.b16 %v7820
    %v7997 = vunpack.c.l.b16 %v7821
    %v7998 = vunpack.c.l.b16 %v7822
    %v7999 = vunpack.c.l.b16 %v7823
    %v8000 = vunpack.c.l.b16 %v7824
    %v8001 = vunpack.c.l.b16 %v7825
    %v8002 = vunpack.c.l.b16 %v7826
    %v8003 = vunpack.c.l.b16 %v7827
    %v8004 = vunpack.c.l.b16 %v7828
    %v8005 = vunpack.c.l.b16 %v7829
    %v8006 = vunpack.c.l.b16 %v7830
    %v8007 = vunpack.c.l.b16 %v7831
    %v8008 = vunpack.c.l.b16 %v7832
    %v8009 = vunpack.c.l.b16 %v7833
    %v8010 = vunpack.c.l.b16 %v7834
    %v8011 = vunpack.c.l.b16 %v7835
    %v8012 = vunpack.c.l.b16 %v7836
    %v8013 = vunpack.c.l.b16 %v7837
    %v8014 = vunpack.c.l.b16 %v7838
    %v8015 = vunpack.c.l.b16 %v7839
    %v8016 = vpack.c.b16 %v7985, %v7984
    %v8017 = vpack.c.b16 %v7987, %v7986
    %v8018 = vpack.c.b16 %v7989, %v7988
    %v8019 = vpack.c.b16 %v7991, %v7990
    %v8020 = vpack.c.b16 %v7993, %v7992
    %v8021 = vpack.c.b16 %v7995, %v7994
    %v8022 = vpack.c.b16 %v7997, %v7996
    %v8023 = vpack.c.b16 %v7999, %v7998
    %v8024 = vpack.c.b16 %v8001, %v8000
    %v8025 = vpack.c.b16 %v8003, %v8002
    %v8026 = vpack.c.b16 %v8005, %v8004
    %v8027 = vpack.c.b16 %v8007, %v8006
    %v8028 = vpack.c.b16 %v8009, %v8008
    %v8029 = vpack.c.b16 %v8011, %v8010
    %v8030 = vpack.c.b16 %v8013, %v8012
    %v8031 = vpack.c.b16 %v8015, %v8014
    %8048 = vmatprep.subr.bf16.mxu0 0
    %8049 = vmatpush1.bf16.msra.mxu0 %v8023
    %8050 = vmatprep.subr.bf16.mxu0 0
    %8051 = vmatpush1.bf16.msra.mxu0 %v8022
    %8052 = vmatprep.subr.bf16.mxu0 0
    %8053 = vmatpush1.bf16.msra.mxu0 %v8021
    %8054 = vmatprep.subr.bf16.mxu0 0
    %8055 = vmatpush1.bf16.msra.mxu0 %v8020
    %8056 = vmatprep.subr.bf16.mxu0 0
    %8057 = vmatpush1.bf16.msra.mxu0 %v8019
    %8058 = vmatprep.subr.bf16.mxu0 0
    %8059 = vmatpush1.bf16.msra.mxu0 %v8018
    %8060 = vmatprep.subr.bf16.mxu0 0
    %8061 = vmatpush1.bf16.msra.mxu0 %v8017
    %8062 = vmatprep.subr.bf16.mxu0 0
    %8063 = vmatpush1.bf16.msra.mxu0 %v8016
    %8064 = vmatprep.subr.bf16.mxu0 0
    %8065 = vmatpush2.bf16.msra.mxu0 %v8031
    %8066 = vmatprep.subr.bf16.mxu0 0
    %8067 = vmatpush2.bf16.msra.mxu0 %v8030
    %8068 = vmatprep.subr.bf16.mxu0 0
    %8069 = vmatpush2.bf16.msra.mxu0 %v8029
    %8070 = vmatprep.subr.bf16.mxu0 0
    %8071 = vmatpush2.bf16.msra.mxu0 %v8028
    %8072 = vmatprep.subr.bf16.mxu0 0
    %8073 = vmatpush2.bf16.msra.mxu0 %v8027
    %8074 = vmatprep.subr.bf16.mxu0 0
    %8075 = vmatpush2.bf16.msra.mxu0 %v8026
    %8076 = vmatprep.subr.bf16.mxu0 0
    %8077 = vmatpush2.bf16.msra.mxu0 %v8025
    %8078 = vmatprep.subr.bf16.mxu0 0
    %8079 = vmatpush2.bf16.msra.mxu0 %v8024
    %8080 = vmatprep.mubr.bf16.mxu0 %v7869
    %8081 = vmatmul.mubr.bf16.gmra.mxu0 %v7857
    %v8082 = vpop.f32.mrf.mxu0
    %v8083 = vadd.f32 0.0, %v8082
    %v8084 = vpop.f32.mrf.mxu0
    %v8085 = vpop.f32.mrf.mxu0
    %v8086 = vadd.f32 0.0, %v8085
    %v8087 = vpop.f32.mrf.mxu0
    %8088 = vmatprep.mubr.bf16.mxu0 %v7877
    %8089 = vmatmul.mubr.bf16.gmra.mxu0 %v7873
    %v8090 = vpop.f32.mrf.mxu0
    %v8091 = vadd.f32 0.0, %v8090
    %v8092 = vpop.f32.mrf.mxu0
    %v8093 = vpop.f32.mrf.mxu0
    %v8094 = vadd.f32 0.0, %v8093
    %v8095 = vpop.f32.mrf.mxu0
    %8096 = vmatprep.mubr.bf16.mxu0 %v7885
    %8097 = vmatmul.mubr.bf16.gmra.mxu0 %v7881
    %v8098 = vpop.f32.mrf.mxu0
    %v8099 = vadd.f32 0.0, %v8098
    %v8100 = vpop.f32.mrf.mxu0
    %v8101 = vpop.f32.mrf.mxu0
    %v8102 = vadd.f32 0.0, %v8101
    %v8103 = vpop.f32.mrf.mxu0
    %8104 = vmatprep.mubr.bf16.mxu0 %v7893
    %8105 = vmatmul.mubr.bf16.gmra.mxu0 %v7889
    %v8106 = vpop.f32.mrf.mxu0
    %v8107 = vadd.f32 0.0, %v8106
    %v8108 = vpop.f32.mrf.mxu0
    %v8109 = vpop.f32.mrf.mxu0
    %v8110 = vadd.f32 0.0, %v8109
    %v8111 = vpop.f32.mrf.mxu0
    %8112 = vmatprep.mubr.bf16.mxu0 %v7901
    %8113 = vmatmul.mubr.bf16.gmra.mxu0 %v7897
    %v8114 = vpop.f32.mrf.mxu0
    %v8115 = vadd.f32 0.0, %v8114
    %v8116 = vpop.f32.mrf.mxu0
    %v8117 = vpop.f32.mrf.mxu0
    %v8118 = vadd.f32 0.0, %v8117
    %v8119 = vpop.f32.mrf.mxu0
    %8120 = vmatprep.mubr.bf16.mxu0 %v7909
    %8121 = vmatmul.mubr.bf16.gmra.mxu0 %v7905
    %v8122 = vpop.f32.mrf.mxu0
    %v8123 = vadd.f32 0.0, %v8122
    %v8124 = vpop.f32.mrf.mxu0
    %v8125 = vpop.f32.mrf.mxu0
    %v8126 = vadd.f32 0.0, %v8125
    %v8127 = vpop.f32.mrf.mxu0
    %8128 = vmatprep.mubr.bf16.mxu0 %v7917
    %8129 = vmatmul.mubr.bf16.gmra.mxu0 %v7913
    %v8130 = vpop.f32.mrf.mxu0
    %v8131 = vadd.f32 0.0, %v8130
    %v8132 = vpop.f32.mrf.mxu0
    %v8133 = vpop.f32.mrf.mxu0
    %v8134 = vadd.f32 0.0, %v8133
    %v8135 = vpop.f32.mrf.mxu0
    %8136 = vmatprep.mubr.bf16.mxu0 %v7935
    %8137 = vmatmul.mubr.bf16.gmra.mxu0 %v7926
    %v8138 = vpop.f32.mrf.mxu0
    %v8139 = vadd.f32 0.0, %v8138
    %v8140 = vpop.f32.mrf.mxu0
    %v8141 = vpop.f32.mrf.mxu0
    %v8142 = vadd.f32 0.0, %v8141
    %v8143 = vpop.f32.mrf.mxu0
    %8144 = vdwg.mxu0
    %v8145 = vadd.f32 %v7790, %v8083
    %v8146 = vadd.f32 %v7791, %v8086
    %v8147 = vadd.f32 %v7792, %v8091
    %v8148 = vadd.f32 %v7793, %v8094
    %v8149 = vadd.f32 %v7794, %v8099
    %v8150 = vadd.f32 %v7795, %v8102
    %v8151 = vadd.f32 %v7796, %v8107
    %v8152 = vadd.f32 %v7797, %v8110
    %v8153 = vadd.f32 %v7798, %v8115
    %v8154 = vadd.f32 %v7799, %v8118
    %v8155 = vadd.f32 %v7800, %v8123
    %v8156 = vadd.f32 %v7801, %v8126
    %v8157 = vadd.f32 %v7802, %v8131
    %v8158 = vadd.f32 %v7803, %v8134
    %v8159 = vadd.f32 %v7804, %v8139
    %v8160 = vadd.f32 %v7805, %v8142
    %s8161 = scalar_lea.vmem [#allocation8], 1024
    %v8162 = vld [vmem:[%s8161] sm:$0xf]
    %v8163 = vld [vmem:[%s8161 + $0x4] sm:$0xf]
    %v8164 = vld [vmem:[%s8161 + $0x8] sm:$0xf]
    %v8165 = vld [vmem:[%s8161 + $0xc] sm:$0xf]
    %v8166 = vld [vmem:[%s8161 + $0x10] sm:$0xf]
    %v8167 = vld [vmem:[%s8161 + $0x14] sm:$0xf]
    %v8168 = vld [vmem:[%s8161 + $0x18] sm:$0xf]
    %v8169 = vld [vmem:[%s8161 + $0x1c] sm:$0xf]
    %v8170 = vld [vmem:[%s8161 + $0x20] sm:$0xf]
    %v8171 = vld [vmem:[%s8161 + $0x24] sm:$0xf]
    %v8172 = vld [vmem:[%s8161 + $0x28] sm:$0xf]
    %v8173 = vld [vmem:[%s8161 + $0x2c] sm:$0xf]
    %v8174 = vld [vmem:[%s8161 + $0x30] sm:$0xf]
    %v8175 = vld [vmem:[%s8161 + $0x34] sm:$0xf]
    %v8176 = vld [vmem:[%s8161 + $0x38] sm:$0xf]
    %v8177 = vld [vmem:[%s8161 + $0x3c] sm:$0xf]
    %v8178 = vld [vmem:[%s8161 + $0x40] sm:$0xf]
    %v8179 = vld [vmem:[%s8161 + $0x44] sm:$0xf]
    %v8180 = vld [vmem:[%s8161 + $0x48] sm:$0xf]
    %v8181 = vld [vmem:[%s8161 + $0x4c] sm:$0xf]
    %v8182 = vld [vmem:[%s8161 + $0x50] sm:$0xf]
    %v8183 = vld [vmem:[%s8161 + $0x54] sm:$0xf]
    %v8184 = vld [vmem:[%s8161 + $0x58] sm:$0xf]
    %v8185 = vld [vmem:[%s8161 + $0x5c] sm:$0xf]
    %v8186 = vld [vmem:[%s8161 + $0x60] sm:$0xf]
    %v8187 = vld [vmem:[%s8161 + $0x64] sm:$0xf]
    %v8188 = vld [vmem:[%s8161 + $0x68] sm:$0xf]
    %v8189 = vld [vmem:[%s8161 + $0x6c] sm:$0xf]
    %v8190 = vld [vmem:[%s8161 + $0x70] sm:$0xf]
    %v8191 = vld [vmem:[%s8161 + $0x74] sm:$0xf]
    %v8192 = vld [vmem:[%s8161 + $0x78] sm:$0xf]
    %v8193 = vld [vmem:[%s8161 + $0x7c] sm:$0xf]
    %v8194 = vpack.c.b16 %v5600, %v5598
    %v8195 = vpack.c.b16 %v5601, %v5599
    %v8196 = vpack.c.b16 %v5604, %v5602
    %v8197 = vpack.c.b16 %v5605, %v5603
    %v8198 = vpack.c.b16 %v5608, %v5606
    %v8199 = vpack.c.b16 %v5609, %v5607
    %v8200 = vpack.c.b16 %v5612, %v5610
    %v8201 = vpack.c.b16 %v5613, %v5611
    %v8202 = vpack.c.b16 %v5616, %v5614
    %v8203 = vpack.c.b16 %v5617, %v5615
    %v8204 = vpack.c.b16 %v5620, %v5618
    %v8205 = vpack.c.b16 %v5621, %v5619
    %v8206 = vpack.c.b16 %v5624, %v5622
    %v8207 = vpack.c.b16 %v5625, %v5623
    %v8208 = vpack.c.b16 %v7841, %v5626
    %v8209 = vpack.c.b16 %v7842, %v5627
    %v8258 = vunpack.c.l.b16 %v8162
    %v8259 = vunpack.c.l.b16 %v8163
    %v8260 = vunpack.c.l.b16 %v8164
    %v8261 = vunpack.c.l.b16 %v8165
    %v8262 = vunpack.c.l.b16 %v8166
    %v8263 = vunpack.c.l.b16 %v8167
    %v8264 = vunpack.c.l.b16 %v8168
    %v8265 = vunpack.c.l.b16 %v8169
    %v8266 = vunpack.c.l.b16 %v8170
    %v8267 = vunpack.c.l.b16 %v8171
    %v8268 = vunpack.c.l.b16 %v8172
    %v8269 = vunpack.c.l.b16 %v8173
    %v8270 = vunpack.c.l.b16 %v8174
    %v8271 = vunpack.c.l.b16 %v8175
    %v8272 = vunpack.c.l.b16 %v8176
    %v8273 = vunpack.c.l.b16 %v8177
    %v8274 = vunpack.c.l.b16 %v8178
    %v8275 = vunpack.c.l.b16 %v8179
    %v8276 = vunpack.c.l.b16 %v8180
    %v8277 = vunpack.c.l.b16 %v8181
    %v8278 = vunpack.c.l.b16 %v8182
    %v8279 = vunpack.c.l.b16 %v8183
    %v8280 = vunpack.c.l.b16 %v8184
    %v8281 = vunpack.c.l.b16 %v8185
    %v8282 = vunpack.c.l.b16 %v8186
    %v8283 = vunpack.c.l.b16 %v8187
    %v8284 = vunpack.c.l.b16 %v8188
    %v8285 = vunpack.c.l.b16 %v8189
    %v8286 = vunpack.c.l.b16 %v8190
    %v8287 = vunpack.c.l.b16 %v8191
    %v8288 = vunpack.c.l.b16 %v8192
    %v8289 = vunpack.c.l.b16 %v8193
    %v8290 = vpack.c.b16 %v8259, %v8258
    %v8291 = vpack.c.b16 %v8261, %v8260
    %v8292 = vpack.c.b16 %v8263, %v8262
    %v8293 = vpack.c.b16 %v8265, %v8264
    %v8294 = vpack.c.b16 %v8267, %v8266
    %v8295 = vpack.c.b16 %v8269, %v8268
    %v8296 = vpack.c.b16 %v8271, %v8270
    %v8297 = vpack.c.b16 %v8273, %v8272
    %v8298 = vpack.c.b16 %v8275, %v8274
    %v8299 = vpack.c.b16 %v8277, %v8276
    %v8300 = vpack.c.b16 %v8279, %v8278
    %v8301 = vpack.c.b16 %v8281, %v8280
    %v8302 = vpack.c.b16 %v8283, %v8282
    %v8303 = vpack.c.b16 %v8285, %v8284
    %v8304 = vpack.c.b16 %v8287, %v8286
    %v8305 = vpack.c.b16 %v8289, %v8288
    %8322 = vmatprep.subr.bf16.mxu0 0
    %8323 = vmatpush1.bf16.msra.mxu0 %v8297
    %8324 = vmatprep.subr.bf16.mxu0 0
    %8325 = vmatpush1.bf16.msra.mxu0 %v8296
    %8326 = vmatprep.subr.bf16.mxu0 0
    %8327 = vmatpush1.bf16.msra.mxu0 %v8295
    %8328 = vmatprep.subr.bf16.mxu0 0
    %8329 = vmatpush1.bf16.msra.mxu0 %v8294
    %8330 = vmatprep.subr.bf16.mxu0 0
    %8331 = vmatpush1.bf16.msra.mxu0 %v8293
    %8332 = vmatprep.subr.bf16.mxu0 0
    %8333 = vmatpush1.bf16.msra.mxu0 %v8292
    %8334 = vmatprep.subr.bf16.mxu0 0
    %8335 = vmatpush1.bf16.msra.mxu0 %v8291
    %8336 = vmatprep.subr.bf16.mxu0 0
    %8337 = vmatpush1.bf16.msra.mxu0 %v8290
    %8338 = vmatprep.subr.bf16.mxu0 0
    %8339 = vmatpush2.bf16.msra.mxu0 %v8305
    %8340 = vmatprep.subr.bf16.mxu0 0
    %8341 = vmatpush2.bf16.msra.mxu0 %v8304
    %8342 = vmatprep.subr.bf16.mxu0 0
    %8343 = vmatpush2.bf16.msra.mxu0 %v8303
    %8344 = vmatprep.subr.bf16.mxu0 0
    %8345 = vmatpush2.bf16.msra.mxu0 %v8302
    %8346 = vmatprep.subr.bf16.mxu0 0
    %8347 = vmatpush2.bf16.msra.mxu0 %v8301
    %8348 = vmatprep.subr.bf16.mxu0 0
    %8349 = vmatpush2.bf16.msra.mxu0 %v8300
    %8350 = vmatprep.subr.bf16.mxu0 0
    %8351 = vmatpush2.bf16.msra.mxu0 %v8299
    %8352 = vmatprep.subr.bf16.mxu0 0
    %8353 = vmatpush2.bf16.msra.mxu0 %v8298
    %8354 = vmatprep.mubr.bf16.mxu0 %v8195
    %8355 = vmatmul.mubr.bf16.gmra.mxu0 %v8194
    %v8356 = vpop.f32.mrf.mxu0
    %v8357 = vadd.f32 0.0, %v8356
    %v8358 = vpop.f32.mrf.mxu0
    %v8359 = vpop.f32.mrf.mxu0
    %v8360 = vadd.f32 0.0, %v8359
    %v8361 = vpop.f32.mrf.mxu0
    %8362 = vmatprep.mubr.bf16.mxu0 %v8197
    %8363 = vmatmul.mubr.bf16.gmra.mxu0 %v8196
    %v8364 = vpop.f32.mrf.mxu0
    %v8365 = vadd.f32 0.0, %v8364
    %v8366 = vpop.f32.mrf.mxu0
    %v8367 = vpop.f32.mrf.mxu0
    %v8368 = vadd.f32 0.0, %v8367
    %v8369 = vpop.f32.mrf.mxu0
    %8370 = vmatprep.mubr.bf16.mxu0 %v8199
    %8371 = vmatmul.mubr.bf16.gmra.mxu0 %v8198
    %v8372 = vpop.f32.mrf.mxu0
    %v8373 = vadd.f32 0.0, %v8372
    %v8374 = vpop.f32.mrf.mxu0
    %v8375 = vpop.f32.mrf.mxu0
    %v8376 = vadd.f32 0.0, %v8375
    %v8377 = vpop.f32.mrf.mxu0
    %8378 = vmatprep.mubr.bf16.mxu0 %v8201
    %8379 = vmatmul.mubr.bf16.gmra.mxu0 %v8200
    %v8380 = vpop.f32.mrf.mxu0
    %v8381 = vadd.f32 0.0, %v8380
    %v8382 = vpop.f32.mrf.mxu0
    %v8383 = vpop.f32.mrf.mxu0
    %v8384 = vadd.f32 0.0, %v8383
    %v8385 = vpop.f32.mrf.mxu0
    %8386 = vmatprep.mubr.bf16.mxu0 %v8203
    %8387 = vmatmul.mubr.bf16.gmra.mxu0 %v8202
    %v8388 = vpop.f32.mrf.mxu0
    %v8389 = vadd.f32 0.0, %v8388
    %v8390 = vpop.f32.mrf.mxu0
    %v8391 = vpop.f32.mrf.mxu0
    %v8392 = vadd.f32 0.0, %v8391
    %v8393 = vpop.f32.mrf.mxu0
    %8394 = vmatprep.mubr.bf16.mxu0 %v8205
    %8395 = vmatmul.mubr.bf16.gmra.mxu0 %v8204
    %v8396 = vpop.f32.mrf.mxu0
    %v8397 = vadd.f32 0.0, %v8396
    %v8398 = vpop.f32.mrf.mxu0
    %v8399 = vpop.f32.mrf.mxu0
    %v8400 = vadd.f32 0.0, %v8399
    %v8401 = vpop.f32.mrf.mxu0
    %8402 = vmatprep.mubr.bf16.mxu0 %v8207
    %8403 = vmatmul.mubr.bf16.gmra.mxu0 %v8206
    %v8404 = vpop.f32.mrf.mxu0
    %v8405 = vadd.f32 0.0, %v8404
    %v8406 = vpop.f32.mrf.mxu0
    %v8407 = vpop.f32.mrf.mxu0
    %v8408 = vadd.f32 0.0, %v8407
    %v8409 = vpop.f32.mrf.mxu0
    %8410 = vmatprep.mubr.bf16.mxu0 %v8209
    %8411 = vmatmul.mubr.bf16.gmra.mxu0 %v8208
    %v8412 = vpop.f32.mrf.mxu0
    %v8413 = vadd.f32 0.0, %v8412
    %v8414 = vpop.f32.mrf.mxu0
    %v8415 = vpop.f32.mrf.mxu0
    %v8416 = vadd.f32 0.0, %v8415
    %v8417 = vpop.f32.mrf.mxu0
    %8418 = vdwg.mxu0
    %v8419 = vadd.f32 %v8145, %v8357
    %v8420 = vadd.f32 %v8146, %v8360
    %v8421 = vadd.f32 %v8147, %v8365
    %v8422 = vadd.f32 %v8148, %v8368
    %v8423 = vadd.f32 %v8149, %v8373
    %v8424 = vadd.f32 %v8150, %v8376
    %v8425 = vadd.f32 %v8151, %v8381
    %v8426 = vadd.f32 %v8152, %v8384
    %v8427 = vadd.f32 %v8153, %v8389
    %v8428 = vadd.f32 %v8154, %v8392
    %v8429 = vadd.f32 %v8155, %v8397
    %v8430 = vadd.f32 %v8156, %v8400
    %v8431 = vadd.f32 %v8157, %v8405
    %v8432 = vadd.f32 %v8158, %v8408
    %v8433 = vadd.f32 %v8159, %v8413
    %v8434 = vadd.f32 %v8160, %v8416
    %v8435 = vld [vmem:[#allocation3 + $0x8] sm:$0xff]
    %v8436 = vld [vmem:[#allocation3 + $0x10] sm:$0xff]
    %v8437 = vld [vmem:[#allocation3 + $0x18] sm:$0xff]
    %v8438 = vld [vmem:[#allocation3 + $0x20] sm:$0xff]
    %v8439 = vld [vmem:[#allocation3 + $0x28] sm:$0xff]
    %v8440 = vld [vmem:[#allocation3 + $0x30] sm:$0xff]
    %v8441 = vld [vmem:[#allocation3 + $0x38] sm:$0xff]
    %v8442 = vld [vmem:[#allocation3 + $0x40] sm:$0xff]
    %v8443 = vld [vmem:[#allocation3 + $0x48] sm:$0xff]
    %v8444 = vld [vmem:[#allocation3 + $0x50] sm:$0xff]
    %v8445 = vld [vmem:[#allocation3 + $0x58] sm:$0xff]
    %v8446 = vld [vmem:[#allocation3 + $0x60] sm:$0xff]
    %v8447 = vld [vmem:[#allocation3 + $0x68] sm:$0xff]
    %v8448 = vld [vmem:[#allocation3 + $0x70] sm:$0xff]
    %v8449 = vld [vmem:[#allocation3 + $0x78] sm:$0xff]
    %v8450 = vld [vmem:[#allocation3 + $0x80] sm:$0xff]
    %v8451 = vld [vmem:[#allocation3 + $0x88] sm:$0x11]
    %s8452 = scalar_lea.vmem [#allocation8], 1152
    %v8453 = vld [vmem:[%s8452] sm:$0xf]
    %v8454 = vld [vmem:[%s8452 + $0x4] sm:$0xf]
    %v8455 = vld [vmem:[%s8452 + $0x8] sm:$0xf]
    %v8456 = vld [vmem:[%s8452 + $0xc] sm:$0xf]
    %v8457 = vld [vmem:[%s8452 + $0x10] sm:$0xf]
    %v8458 = vld [vmem:[%s8452 + $0x14] sm:$0xf]
    %v8459 = vld [vmem:[%s8452 + $0x18] sm:$0xf]
    %v8460 = vld [vmem:[%s8452 + $0x1c] sm:$0xf]
    %v8461 = vld [vmem:[%s8452 + $0x20] sm:$0xf]
    %v8462 = vld [vmem:[%s8452 + $0x24] sm:$0xf]
    %v8463 = vld [vmem:[%s8452 + $0x28] sm:$0xf]
    %v8464 = vld [vmem:[%s8452 + $0x2c] sm:$0xf]
    %v8465 = vld [vmem:[%s8452 + $0x30] sm:$0xf]
    %v8466 = vld [vmem:[%s8452 + $0x34] sm:$0xf]
    %v8467 = vld [vmem:[%s8452 + $0x38] sm:$0xf]
    %v8468 = vld [vmem:[%s8452 + $0x3c] sm:$0xf]
    %v8469 = vld [vmem:[%s8452 + $0x40] sm:$0xf]
    %v8470 = vld [vmem:[%s8452 + $0x44] sm:$0xf]
    %v8471 = vld [vmem:[%s8452 + $0x48] sm:$0xf]
    %v8472 = vld [vmem:[%s8452 + $0x4c] sm:$0xf]
    %v8473 = vld [vmem:[%s8452 + $0x50] sm:$0xf]
    %v8474 = vld [vmem:[%s8452 + $0x54] sm:$0xf]
    %v8475 = vld [vmem:[%s8452 + $0x58] sm:$0xf]
    %v8476 = vld [vmem:[%s8452 + $0x5c] sm:$0xf]
    %v8477 = vld [vmem:[%s8452 + $0x60] sm:$0xf]
    %v8478 = vld [vmem:[%s8452 + $0x64] sm:$0xf]
    %v8479 = vld [vmem:[%s8452 + $0x68] sm:$0xf]
    %v8480 = vld [vmem:[%s8452 + $0x6c] sm:$0xf]
    %v8481 = vld [vmem:[%s8452 + $0x70] sm:$0xf]
    %v8482 = vld [vmem:[%s8452 + $0x74] sm:$0xf]
    %v8483 = vld [vmem:[%s8452 + $0x78] sm:$0xf]
    %v8484 = vld [vmem:[%s8452 + $0x7c] sm:$0xf]
    %v8502 = vunpack.c.l.b16 %v8435
    %v8503 = vunpack.c.h.b16 %v8435
    %v8504 = vunpack.c.l.b16 %v8436
    %v8505 = vunpack.c.h.b16 %v8436
    %v8506 = vunpack.c.l.b16 %v8437
    %v8507 = vunpack.c.h.b16 %v8437
    %v8508 = vunpack.c.l.b16 %v8438
    %v8509 = vunpack.c.h.b16 %v8438
    %v8510 = vunpack.c.l.b16 %v8439
    %v8511 = vunpack.c.h.b16 %v8439
    %v8512 = vunpack.c.l.b16 %v8440
    %v8513 = vunpack.c.h.b16 %v8440
    %v8514 = vunpack.c.l.b16 %v8441
    %v8515 = vunpack.c.h.b16 %v8441
    %v8516 = vunpack.c.l.b16 %v8442
    %v8517 = vunpack.c.h.b16 %v8442
    %v8518 = vunpack.c.l.b16 %v8443
    %v8519 = vunpack.c.h.b16 %v8443
    %v8520 = vunpack.c.l.b16 %v8444
    %v8521 = vunpack.c.h.b16 %v8444
    %v8522 = vunpack.c.l.b16 %v8445
    %v8523 = vunpack.c.h.b16 %v8445
    %v8524 = vunpack.c.l.b16 %v8446
    %v8525 = vunpack.c.h.b16 %v8446
    %v8526 = vunpack.c.l.b16 %v8447
    %v8527 = vunpack.c.h.b16 %v8447
    %v8528 = vunpack.c.l.b16 %v8448
    %v8529 = vunpack.c.h.b16 %v8448
    %v8530 = vunpack.c.l.b16 %v8449
    %v8531 = vunpack.c.h.b16 %v8449
    %v8532 = vunpack.c.l.b16 %v8450
    %v8533 = vunpack.c.h.b16 %v8450
    %v8534 = vunpack.c.l.b16 %v8451
    %v8535 = vunpack.c.h.b16 %v8451
    %v8536 = vpack.c.b16 %v8504, %v8502
    %v8537 = vpack.c.b16 %v8505, %v8503
    %v8538 = vpack.c.b16 %v8508, %v8506
    %v8539 = vpack.c.b16 %v8509, %v8507
    %v8540 = vpack.c.b16 %v8512, %v8510
    %v8541 = vpack.c.b16 %v8513, %v8511
    %v8542 = vpack.c.b16 %v8516, %v8514
    %v8543 = vpack.c.b16 %v8517, %v8515
    %v8544 = vpack.c.b16 %v8520, %v8518
    %v8545 = vpack.c.b16 %v8521, %v8519
    %v8546 = vpack.c.b16 %v8524, %v8522
    %v8547 = vpack.c.b16 %v8525, %v8523
    %v8548 = vpack.c.b16 %v8528, %v8526
    %v8549 = vpack.c.b16 %v8529, %v8527
    %v8550 = vpack.c.b16 %v8532, %v8530
    %v8551 = vpack.c.b16 %v8533, %v8531
    %v8552 = vpack.c.b16 %v8534, %v8534
    %v8553 = vpack.c.b16 %v8535, %v8535
    %v8555 = vshrl.u32 %v8536, 16
    %v8557 = vshll.u32 %v8536, 16
    %v8559 = vrot.slane %v8557, 1
    %v8560 = vor.u32 %v8555, %v8559
    %v8562 = vshll.u32 %v8538, 16
    %v8564 = vrot.slane %v8562, 1
    %v8565 = vsel %vm710, %v8560, %v8564
    %v8567 = vshrl.u32 %v8537, 16
    %v8569 = vshll.u32 %v8537, 16
    %v8571 = vrot.slane %v8569, 1
    %v8572 = vor.u32 %v8567, %v8571
    %v8574 = vshll.u32 %v8539, 16
    %v8576 = vrot.slane %v8574, 1
    %v8577 = vsel %vm710, %v8572, %v8576
    %v8578 = vshrl.u32 %v8538, 16
    %v8580 = vor.u32 %v8578, %v8564
    %v8582 = vshll.u32 %v8540, 16
    %v8584 = vrot.slane %v8582, 1
    %v8585 = vsel %vm710, %v8580, %v8584
    %v8586 = vshrl.u32 %v8539, 16
    %v8588 = vor.u32 %v8586, %v8576
    %v8590 = vshll.u32 %v8541, 16
    %v8592 = vrot.slane %v8590, 1
    %v8593 = vsel %vm710, %v8588, %v8592
    %v8594 = vshrl.u32 %v8540, 16
    %v8596 = vor.u32 %v8594, %v8584
    %v8598 = vshll.u32 %v8542, 16
    %v8600 = vrot.slane %v8598, 1
    %v8601 = vsel %vm710, %v8596, %v8600
    %v8602 = vshrl.u32 %v8541, 16
    %v8604 = vor.u32 %v8602, %v8592
    %v8606 = vshll.u32 %v8543, 16
    %v8608 = vrot.slane %v8606, 1
    %v8609 = vsel %vm710, %v8604, %v8608
    %v8610 = vshrl.u32 %v8542, 16
    %v8612 = vor.u32 %v8610, %v8600
    %v8614 = vshll.u32 %v8544, 16
    %v8616 = vrot.slane %v8614, 1
    %v8617 = vsel %vm710, %v8612, %v8616
    %v8618 = vshrl.u32 %v8543, 16
    %v8620 = vor.u32 %v8618, %v8608
    %v8622 = vshll.u32 %v8545, 16
    %v8624 = vrot.slane %v8622, 1
    %v8625 = vsel %vm710, %v8620, %v8624
    %v8626 = vshrl.u32 %v8544, 16
    %v8628 = vor.u32 %v8626, %v8616
    %v8630 = vshll.u32 %v8546, 16
    %v8632 = vrot.slane %v8630, 1
    %v8633 = vsel %vm710, %v8628, %v8632
    %v8634 = vshrl.u32 %v8545, 16
    %v8636 = vor.u32 %v8634, %v8624
    %v8638 = vshll.u32 %v8547, 16
    %v8640 = vrot.slane %v8638, 1
    %v8641 = vsel %vm710, %v8636, %v8640
    %v8642 = vshrl.u32 %v8546, 16
    %v8644 = vor.u32 %v8642, %v8632
    %v8646 = vshll.u32 %v8548, 16
    %v8648 = vrot.slane %v8646, 1
    %v8649 = vsel %vm710, %v8644, %v8648
    %v8650 = vshrl.u32 %v8547, 16
    %v8652 = vor.u32 %v8650, %v8640
    %v8654 = vshll.u32 %v8549, 16
    %v8656 = vrot.slane %v8654, 1
    %v8657 = vsel %vm710, %v8652, %v8656
    %v8658 = vshrl.u32 %v8548, 16
    %v8660 = vor.u32 %v8658, %v8648
    %v8662 = vshll.u32 %v8550, 16
    %v8664 = vrot.slane %v8662, 1
    %v8665 = vsel %vm710, %v8660, %v8664
    %v8666 = vshrl.u32 %v8549, 16
    %v8668 = vor.u32 %v8666, %v8656
    %v8670 = vshll.u32 %v8551, 16
    %v8672 = vrot.slane %v8670, 1
    %v8673 = vsel %vm710, %v8668, %v8672
    %v8674 = vshrl.u32 %v8550, 16
    %v8676 = vor.u32 %v8674, %v8664
    %v8678 = vshll.u32 %v8552, 16
    %v8680 = vrot.slane %v8678, 1
    %v8681 = vsel %vm710, %v8676, %v8680
    %v8682 = vshrl.u32 %v8551, 16
    %v8684 = vor.u32 %v8682, %v8672
    %v8686 = vshll.u32 %v8553, 16
    %v8688 = vrot.slane %v8686, 1
    %v8689 = vsel %vm710, %v8684, %v8688
    %v8738 = vunpack.c.l.b16 %v8453
    %v8739 = vunpack.c.l.b16 %v8454
    %v8740 = vunpack.c.l.b16 %v8455
    %v8741 = vunpack.c.l.b16 %v8456
    %v8742 = vunpack.c.l.b16 %v8457
    %v8743 = vunpack.c.l.b16 %v8458
    %v8744 = vunpack.c.l.b16 %v8459
    %v8745 = vunpack.c.l.b16 %v8460
    %v8746 = vunpack.c.l.b16 %v8461
    %v8747 = vunpack.c.l.b16 %v8462
    %v8748 = vunpack.c.l.b16 %v8463
    %v8749 = vunpack.c.l.b16 %v8464
    %v8750 = vunpack.c.l.b16 %v8465
    %v8751 = vunpack.c.l.b16 %v8466
    %v8752 = vunpack.c.l.b16 %v8467
    %v8753 = vunpack.c.l.b16 %v8468
    %v8754 = vunpack.c.l.b16 %v8469
    %v8755 = vunpack.c.l.b16 %v8470
    %v8756 = vunpack.c.l.b16 %v8471
    %v8757 = vunpack.c.l.b16 %v8472
    %v8758 = vunpack.c.l.b16 %v8473
    %v8759 = vunpack.c.l.b16 %v8474
    %v8760 = vunpack.c.l.b16 %v8475
    %v8761 = vunpack.c.l.b16 %v8476
    %v8762 = vunpack.c.l.b16 %v8477
    %v8763 = vunpack.c.l.b16 %v8478
    %v8764 = vunpack.c.l.b16 %v8479
    %v8765 = vunpack.c.l.b16 %v8480
    %v8766 = vunpack.c.l.b16 %v8481
    %v8767 = vunpack.c.l.b16 %v8482
    %v8768 = vunpack.c.l.b16 %v8483
    %v8769 = vunpack.c.l.b16 %v8484
    %v8770 = vpack.c.b16 %v8739, %v8738
    %v8771 = vpack.c.b16 %v8741, %v8740
    %v8772 = vpack.c.b16 %v8743, %v8742
    %v8773 = vpack.c.b16 %v8745, %v8744
    %v8774 = vpack.c.b16 %v8747, %v8746
    %v8775 = vpack.c.b16 %v8749, %v8748
    %v8776 = vpack.c.b16 %v8751, %v8750
    %v8777 = vpack.c.b16 %v8753, %v8752
    %v8778 = vpack.c.b16 %v8755, %v8754
    %v8779 = vpack.c.b16 %v8757, %v8756
    %v8780 = vpack.c.b16 %v8759, %v8758
    %v8781 = vpack.c.b16 %v8761, %v8760
    %v8782 = vpack.c.b16 %v8763, %v8762
    %v8783 = vpack.c.b16 %v8765, %v8764
    %v8784 = vpack.c.b16 %v8767, %v8766
    %v8785 = vpack.c.b16 %v8769, %v8768
    %8802 = vmatprep.subr.bf16.mxu0 0
    %8803 = vmatpush1.bf16.msra.mxu0 %v8777
    %8804 = vmatprep.subr.bf16.mxu0 0
    %8805 = vmatpush1.bf16.msra.mxu0 %v8776
    %8806 = vmatprep.subr.bf16.mxu0 0
    %8807 = vmatpush1.bf16.msra.mxu0 %v8775
    %8808 = vmatprep.subr.bf16.mxu0 0
    %8809 = vmatpush1.bf16.msra.mxu0 %v8774
    %8810 = vmatprep.subr.bf16.mxu0 0
    %8811 = vmatpush1.bf16.msra.mxu0 %v8773
    %8812 = vmatprep.subr.bf16.mxu0 0
    %8813 = vmatpush1.bf16.msra.mxu0 %v8772
    %8814 = vmatprep.subr.bf16.mxu0 0
    %8815 = vmatpush1.bf16.msra.mxu0 %v8771
    %8816 = vmatprep.subr.bf16.mxu0 0
    %8817 = vmatpush1.bf16.msra.mxu0 %v8770
    %8818 = vmatprep.subr.bf16.mxu0 0
    %8819 = vmatpush2.bf16.msra.mxu0 %v8785
    %8820 = vmatprep.subr.bf16.mxu0 0
    %8821 = vmatpush2.bf16.msra.mxu0 %v8784
    %8822 = vmatprep.subr.bf16.mxu0 0
    %8823 = vmatpush2.bf16.msra.mxu0 %v8783
    %8824 = vmatprep.subr.bf16.mxu0 0
    %8825 = vmatpush2.bf16.msra.mxu0 %v8782
    %8826 = vmatprep.subr.bf16.mxu0 0
    %8827 = vmatpush2.bf16.msra.mxu0 %v8781
    %8828 = vmatprep.subr.bf16.mxu0 0
    %8829 = vmatpush2.bf16.msra.mxu0 %v8780
    %8830 = vmatprep.subr.bf16.mxu0 0
    %8831 = vmatpush2.bf16.msra.mxu0 %v8779
    %8832 = vmatprep.subr.bf16.mxu0 0
    %8833 = vmatpush2.bf16.msra.mxu0 %v8778
    %8834 = vmatprep.mubr.bf16.mxu0 %v8577
    %8835 = vmatmul.mubr.bf16.gmra.mxu0 %v8565
    %v8836 = vpop.f32.mrf.mxu0
    %v8837 = vadd.f32 0.0, %v8836
    %v8838 = vpop.f32.mrf.mxu0
    %v8839 = vpop.f32.mrf.mxu0
    %v8840 = vadd.f32 0.0, %v8839
    %v8841 = vpop.f32.mrf.mxu0
    %8842 = vmatprep.mubr.bf16.mxu0 %v8593
    %8843 = vmatmul.mubr.bf16.gmra.mxu0 %v8585
    %v8844 = vpop.f32.mrf.mxu0
    %v8845 = vadd.f32 0.0, %v8844
    %v8846 = vpop.f32.mrf.mxu0
    %v8847 = vpop.f32.mrf.mxu0
    %v8848 = vadd.f32 0.0, %v8847
    %v8849 = vpop.f32.mrf.mxu0
    %8850 = vmatprep.mubr.bf16.mxu0 %v8609
    %8851 = vmatmul.mubr.bf16.gmra.mxu0 %v8601
    %v8852 = vpop.f32.mrf.mxu0
    %v8853 = vadd.f32 0.0, %v8852
    %v8854 = vpop.f32.mrf.mxu0
    %v8855 = vpop.f32.mrf.mxu0
    %v8856 = vadd.f32 0.0, %v8855
    %v8857 = vpop.f32.mrf.mxu0
    %8858 = vmatprep.mubr.bf16.mxu0 %v8625
    %8859 = vmatmul.mubr.bf16.gmra.mxu0 %v8617
    %v8860 = vpop.f32.mrf.mxu0
    %v8861 = vadd.f32 0.0, %v8860
    %v8862 = vpop.f32.mrf.mxu0
    %v8863 = vpop.f32.mrf.mxu0
    %v8864 = vadd.f32 0.0, %v8863
    %v8865 = vpop.f32.mrf.mxu0
    %8866 = vmatprep.mubr.bf16.mxu0 %v8641
    %8867 = vmatmul.mubr.bf16.gmra.mxu0 %v8633
    %v8868 = vpop.f32.mrf.mxu0
    %v8869 = vadd.f32 0.0, %v8868
    %v8870 = vpop.f32.mrf.mxu0
    %v8871 = vpop.f32.mrf.mxu0
    %v8872 = vadd.f32 0.0, %v8871
    %v8873 = vpop.f32.mrf.mxu0
    %8874 = vmatprep.mubr.bf16.mxu0 %v8657
    %8875 = vmatmul.mubr.bf16.gmra.mxu0 %v8649
    %v8876 = vpop.f32.mrf.mxu0
    %v8877 = vadd.f32 0.0, %v8876
    %v8878 = vpop.f32.mrf.mxu0
    %v8879 = vpop.f32.mrf.mxu0
    %v8880 = vadd.f32 0.0, %v8879
    %v8881 = vpop.f32.mrf.mxu0
    %8882 = vmatprep.mubr.bf16.mxu0 %v8673
    %8883 = vmatmul.mubr.bf16.gmra.mxu0 %v8665
    %v8884 = vpop.f32.mrf.mxu0
    %v8885 = vadd.f32 0.0, %v8884
    %v8886 = vpop.f32.mrf.mxu0
    %v8887 = vpop.f32.mrf.mxu0
    %v8888 = vadd.f32 0.0, %v8887
    %v8889 = vpop.f32.mrf.mxu0
    %8890 = vmatprep.mubr.bf16.mxu0 %v8689
    %8891 = vmatmul.mubr.bf16.gmra.mxu0 %v8681
    %v8892 = vpop.f32.mrf.mxu0
    %v8893 = vadd.f32 0.0, %v8892
    %v8894 = vpop.f32.mrf.mxu0
    %v8895 = vpop.f32.mrf.mxu0
    %v8896 = vadd.f32 0.0, %v8895
    %v8897 = vpop.f32.mrf.mxu0
    %8898 = vdwg.mxu0
    %v8899 = vadd.f32 %v8419, %v8837
    %v8900 = vadd.f32 %v8420, %v8840
    %v8901 = vadd.f32 %v8421, %v8845
    %v8902 = vadd.f32 %v8422, %v8848
    %v8903 = vadd.f32 %v8423, %v8853
    %v8904 = vadd.f32 %v8424, %v8856
    %v8905 = vadd.f32 %v8425, %v8861
    %v8906 = vadd.f32 %v8426, %v8864
    %v8907 = vadd.f32 %v8427, %v8869
    %v8908 = vadd.f32 %v8428, %v8872
    %v8909 = vadd.f32 %v8429, %v8877
    %v8910 = vadd.f32 %v8430, %v8880
    %v8911 = vadd.f32 %v8431, %v8885
    %v8912 = vadd.f32 %v8432, %v8888
    %v8913 = vadd.f32 %v8433, %v8893
    %v8914 = vadd.f32 %v8434, %v8896
    %v8915 = vld [vmem:[%s8] sm:$0xf]
    %v8916 = vpack.c.bf16 %v8900, %v8899
    %v8917 = vpack.c.bf16 %v8902, %v8901
    %v8918 = vpack.c.bf16 %v8904, %v8903
    %v8919 = vpack.c.bf16 %v8906, %v8905
    %v8920 = vpack.c.bf16 %v8908, %v8907
    %v8921 = vpack.c.bf16 %v8910, %v8909
    %v8922 = vpack.c.bf16 %v8912, %v8911
    %v8923 = vpack.c.bf16 %v8914, %v8913
    %v8924 = vld [vmem:[%s7] sm:$0x1]
    %v8926 = vlaneseq
    %v8927 = vshrl.u32 %v8926, 7
    %v8928 = vsub.s32 0, %v8927
    %v8929 = vrot.slane %v8924, %v8928
    %8931 = vmatprep.subr.bf16.mxu0 0
    %8932 = vmatpush1.bf16.msra.mxu0 %v8923
    %8933 = vmatprep.subr.bf16.mxu0 0
    %8934 = vmatpush1.bf16.msra.mxu0 %v8922
    %8935 = vmatprep.subr.bf16.mxu0 0
    %8936 = vmatpush1.bf16.msra.mxu0 %v8921
    %8937 = vmatprep.subr.bf16.mxu0 0
    %8938 = vmatpush1.bf16.msra.mxu0 %v8920
    %8939 = vmatprep.subr.bf16.mxu0 0
    %8940 = vmatpush1.bf16.msra.mxu0 %v8919
    %8941 = vmatprep.subr.bf16.mxu0 0
    %8942 = vmatpush1.bf16.msra.mxu0 %v8918
    %8943 = vmatprep.subr.bf16.mxu0 0
    %8944 = vmatpush1.bf16.msra.mxu0 %v8917
    %8945 = vmatprep.subr.bf16.mxu0 0
    %8946 = vmatpush1.bf16.msra.mxu0 %v8916
    %8947 = vmatprep.subr.bf16.mxu0 0
    %8948 = vmatpush2.bf16.msra.mxu0 0
    %8949 = vmatprep.subr.bf16.mxu0 0
    %8950 = vmatpush2.bf16.msra.mxu0 0
    %8951 = vmatprep.subr.bf16.mxu0 0
    %8952 = vmatpush2.bf16.msra.mxu0 0
    %8953 = vmatprep.subr.bf16.mxu0 0
    %8954 = vmatpush2.bf16.msra.mxu0 0
    %8955 = vmatprep.subr.bf16.mxu0 0
    %8956 = vmatpush2.bf16.msra.mxu0 0
    %8957 = vmatprep.subr.bf16.mxu0 0
    %8958 = vmatpush2.bf16.msra.mxu0 0
    %8959 = vmatprep.subr.bf16.mxu0 0
    %8960 = vmatpush2.bf16.msra.mxu0 0
    %8961 = vmatprep.subr.bf16.mxu0 0
    %8962 = vmatpush2.bf16.msra.mxu0 0
    %8963 = vmatprep.mubr.bf16.mxu0 0
    %8964 = vmatmul.mubr.bf16.gmra.mxu0 %v8915
    %v8965 = vpop.f32.mrf.mxu0
    %v8966 = vadd.f32 %v8929, %v8965
    %v8967 = vpop.f32.mrf.mxu0
    %v8968 = vpop.f32.mrf.mxu0
    %v8969 = vpop.f32.mrf.mxu0
    %8970 = vdwg.mxu0
    %v8971 = vtanh.pop %v8966
    %v8972 = vpack.c.bf16 %v8971, %v8971
    %v8973 = vld [vmem:[%s9] sm:$0xf]
    %v8974 = vld [vmem:[%s9 + $0x4] sm:$0xf]
    %v8975 = vld [vmem:[%s9 + $0x8] sm:$0xf]
    %v8976 = vld [vmem:[%s9 + $0xc] sm:$0xf]
    %v8977 = vld [vmem:[%s9 + $0x10] sm:$0xf]
    %v8978 = vld [vmem:[%s9 + $0x14] sm:$0xf]
    %v8979 = vld [vmem:[%s9 + $0x18] sm:$0xf]
    %v8980 = vld [vmem:[%s9 + $0x1c] sm:$0xf]
    %v8981 = vld [vmem:[%s9 + $0x20] sm:$0xf]
    %v8982 = vld [vmem:[%s9 + $0x24] sm:$0xf]
    %v8983 = vld [vmem:[%s9 + $0x28] sm:$0xf]
    %v8984 = vld [vmem:[%s9 + $0x2c] sm:$0xf]
    %v8985 = vld [vmem:[%s9 + $0x30] sm:$0xf]
    %v8986 = vld [vmem:[%s9 + $0x34] sm:$0xf]
    %v8987 = vld [vmem:[%s9 + $0x38] sm:$0xf]
    %v8988 = vld [vmem:[%s9 + $0x3c] sm:$0xf]
    %v8989 = vld [vmem:[%s10] sm:$0x1]
    %v8991 = vlaneseq
    %v8992 = vshrl.u32 %v8991, 7
    %v8993 = vsub.s32 0, %v8992
    %v8994 = vrot.slane %v8989, %v8993
    %v9012 = vunpack.c.l.b16 %v8973
    %v9013 = vunpack.c.l.b16 %v8974
    %v9014 = vunpack.c.l.b16 %v8975
    %v9015 = vunpack.c.l.b16 %v8976
    %v9016 = vunpack.c.l.b16 %v8977
    %v9017 = vunpack.c.l.b16 %v8978
    %v9018 = vunpack.c.l.b16 %v8979
    %v9019 = vunpack.c.l.b16 %v8980
    %v9020 = vunpack.c.l.b16 %v8981
    %v9021 = vunpack.c.l.b16 %v8982
    %v9022 = vunpack.c.l.b16 %v8983
    %v9023 = vunpack.c.l.b16 %v8984
    %v9024 = vunpack.c.l.b16 %v8985
    %v9025 = vunpack.c.l.b16 %v8986
    %v9026 = vunpack.c.l.b16 %v8987
    %v9027 = vunpack.c.l.b16 %v8988
    %v9028 = vpack.c.b16 %v9013, %v9012
    %v9029 = vpack.c.b16 %v9015, %v9014
    %v9030 = vpack.c.b16 %v9017, %v9016
    %v9031 = vpack.c.b16 %v9019, %v9018
    %v9032 = vpack.c.b16 %v9021, %v9020
    %v9033 = vpack.c.b16 %v9023, %v9022
    %v9034 = vpack.c.b16 %v9025, %v9024
    %v9035 = vpack.c.b16 %v9027, %v9026
    %9044 = vmatprep.subr.bf16.mxu0 0
    %9045 = vmatpush1.bf16.msra.mxu0 %v9035
    %9046 = vmatprep.subr.bf16.mxu0 0
    %9047 = vmatpush1.bf16.msra.mxu0 %v9034
    %9048 = vmatprep.subr.bf16.mxu0 0
    %9049 = vmatpush1.bf16.msra.mxu0 %v9033
    %9050 = vmatprep.subr.bf16.mxu0 0
    %9051 = vmatpush1.bf16.msra.mxu0 %v9032
    %9052 = vmatprep.subr.bf16.mxu0 0
    %9053 = vmatpush1.bf16.msra.mxu0 %v9031
    %9054 = vmatprep.subr.bf16.mxu0 0
    %9055 = vmatpush1.bf16.msra.mxu0 %v9030
    %9056 = vmatprep.subr.bf16.mxu0 0
    %9057 = vmatpush1.bf16.msra.mxu0 %v9029
    %9058 = vmatprep.subr.bf16.mxu0 0
    %9059 = vmatpush1.bf16.msra.mxu0 %v9028
    %9060 = vmatprep.subr.bf16.mxu0 0
    %9061 = vmatpush2.bf16.msra.mxu0 0
    %9062 = vmatprep.subr.bf16.mxu0 0
    %9063 = vmatpush2.bf16.msra.mxu0 0
    %9064 = vmatprep.subr.bf16.mxu0 0
    %9065 = vmatpush2.bf16.msra.mxu0 0
    %9066 = vmatprep.subr.bf16.mxu0 0
    %9067 = vmatpush2.bf16.msra.mxu0 0
    %9068 = vmatprep.subr.bf16.mxu0 0
    %9069 = vmatpush2.bf16.msra.mxu0 0
    %9070 = vmatprep.subr.bf16.mxu0 0
    %9071 = vmatpush2.bf16.msra.mxu0 0
    %9072 = vmatprep.subr.bf16.mxu0 0
    %9073 = vmatpush2.bf16.msra.mxu0 0
    %9074 = vmatprep.subr.bf16.mxu0 0
    %9075 = vmatpush2.bf16.msra.mxu0 0
    %9076 = vmatprep.mubr.bf16.mxu0 0
    %9077 = vmatmul.mubr.bf16.gmra.mxu0 %v8972
    %v9078 = vpop.f32.mrf.mxu0
    %v9079 = vadd.f32 %v8994, %v9078
    %v9080 = vpop.f32.mrf.mxu0
    %v9081 = vpop.f32.mrf.mxu0
    %v9082 = vpop.f32.mrf.mxu0
    %9083 = vdwg.mxu0
    %v9084 = vtanh.pop %v9079
    %v9085 = vpack.c.bf16 %v9084, %v9084
    %v9086 = vld [vmem:[%s11] sm:$0xf]
    %v9087 = vld [vmem:[%s11 + $0x4] sm:$0xf]
    %v9088 = vld [vmem:[%s11 + $0x8] sm:$0xf]
    %v9089 = vld [vmem:[%s11 + $0xc] sm:$0xf]
    %v9090 = vld [vmem:[%s11 + $0x10] sm:$0xf]
    %v9091 = vld [vmem:[%s11 + $0x14] sm:$0xf]
    %v9092 = vld [vmem:[%s11 + $0x18] sm:$0xf]
    %v9093 = vld [vmem:[%s11 + $0x1c] sm:$0xf]
    %v9094 = vld [vmem:[%s11 + $0x20] sm:$0xf]
    %v9095 = vld [vmem:[%s11 + $0x24] sm:$0xf]
    %v9096 = vld [vmem:[%s11 + $0x28] sm:$0xf]
    %v9097 = vld [vmem:[%s11 + $0x2c] sm:$0xf]
    %v9098 = vld [vmem:[%s11 + $0x30] sm:$0xf]
    %v9099 = vld [vmem:[%s11 + $0x34] sm:$0xf]
    %v9100 = vld [vmem:[%s11 + $0x38] sm:$0xf]
    %v9101 = vld [vmem:[%s11 + $0x3c] sm:$0xf]
    %v9102 = vld [vmem:[%s12] sm:$0x1]
    %v9104 = vlaneseq
    %v9105 = vshrl.u32 %v9104, 7
    %v9106 = vsub.s32 0, %v9105
    %v9107 = vrot.slane %v9102, %v9106
    %v9125 = vunpack.c.l.b16 %v9086
    %v9126 = vunpack.c.l.b16 %v9087
    %v9127 = vunpack.c.l.b16 %v9088
    %v9128 = vunpack.c.l.b16 %v9089
    %v9129 = vunpack.c.l.b16 %v9090
    %v9130 = vunpack.c.l.b16 %v9091
    %v9131 = vunpack.c.l.b16 %v9092
    %v9132 = vunpack.c.l.b16 %v9093
    %v9133 = vunpack.c.l.b16 %v9094
    %v9134 = vunpack.c.l.b16 %v9095
    %v9135 = vunpack.c.l.b16 %v9096
    %v9136 = vunpack.c.l.b16 %v9097
    %v9137 = vunpack.c.l.b16 %v9098
    %v9138 = vunpack.c.l.b16 %v9099
    %v9139 = vunpack.c.l.b16 %v9100
    %v9140 = vunpack.c.l.b16 %v9101
    %v9141 = vpack.c.b16 %v9126, %v9125
    %v9142 = vpack.c.b16 %v9128, %v9127
    %v9143 = vpack.c.b16 %v9130, %v9129
    %v9144 = vpack.c.b16 %v9132, %v9131
    %v9145 = vpack.c.b16 %v9134, %v9133
    %v9146 = vpack.c.b16 %v9136, %v9135
    %v9147 = vpack.c.b16 %v9138, %v9137
    %v9148 = vpack.c.b16 %v9140, %v9139
    %9157 = vmatprep.subr.bf16.mxu0 0
    %9158 = vmatpush1.bf16.msra.mxu0 %v9148
    %9159 = vmatprep.subr.bf16.mxu0 0
    %9160 = vmatpush1.bf16.msra.mxu0 %v9147
    %9161 = vmatprep.subr.bf16.mxu0 0
    %9162 = vmatpush1.bf16.msra.mxu0 %v9146
    %9163 = vmatprep.subr.bf16.mxu0 0
    %9164 = vmatpush1.bf16.msra.mxu0 %v9145
    %9165 = vmatprep.subr.bf16.mxu0 0
    %9166 = vmatpush1.bf16.msra.mxu0 %v9144
    %9167 = vmatprep.subr.bf16.mxu0 0
    %9168 = vmatpush1.bf16.msra.mxu0 %v9143
    %9169 = vmatprep.subr.bf16.mxu0 0
    %9170 = vmatpush1.bf16.msra.mxu0 %v9142
    %9171 = vmatprep.subr.bf16.mxu0 0
    %9172 = vmatpush1.bf16.msra.mxu0 %v9141
    %9173 = vmatprep.subr.bf16.mxu0 0
    %9174 = vmatpush2.bf16.msra.mxu0 0
    %9175 = vmatprep.subr.bf16.mxu0 0
    %9176 = vmatpush2.bf16.msra.mxu0 0
    %9177 = vmatprep.subr.bf16.mxu0 0
    %9178 = vmatpush2.bf16.msra.mxu0 0
    %9179 = vmatprep.subr.bf16.mxu0 0
    %9180 = vmatpush2.bf16.msra.mxu0 0
    %9181 = vmatprep.subr.bf16.mxu0 0
    %9182 = vmatpush2.bf16.msra.mxu0 0
    %9183 = vmatprep.subr.bf16.mxu0 0
    %9184 = vmatpush2.bf16.msra.mxu0 0
    %9185 = vmatprep.subr.bf16.mxu0 0
    %9186 = vmatpush2.bf16.msra.mxu0 0
    %9187 = vmatprep.subr.bf16.mxu0 0
    %9188 = vmatpush2.bf16.msra.mxu0 0
    %9189 = vmatprep.mubr.bf16.mxu0 0
    %9190 = vmatmul.mubr.bf16.gmra.mxu0 %v9085
    %v9191 = vpop.f32.mrf.mxu0
    %v9192 = vadd.f32 %v9107, %v9191
    %v9193 = vpop.f32.mrf.mxu0
    %v9194 = vpop.f32.mrf.mxu0
    %v9195 = vpop.f32.mrf.mxu0
    %9196 = vdwg.mxu0
    %9197 = vst [vmem:[%s13] sm:$0xff] %v9192
    // Predicated region
    $region66: #{lenet_forward_fused.1} parent=1 // pred_check
      _
    $region67: #{lenet_forward_fused.1} parent=1 // pred_check_branch
      %9199 = sbr.rel (0) target = $region69
    $region68: #{lenet_forward_fused.1} parent=1 // pred_region
      _
    $region69: #{lenet_forward_fused.1} parent=1 // pred_fallthru
      _
    // Predicated region
    $region70: #{lenet_forward_fused.1} parent=1 // pred_check
      _
    $region71: #{lenet_forward_fused.1} parent=1 // pred_check_branch
      %9201 = sbr.rel (0) target = $region73
    $region72: #{lenet_forward_fused.1} parent=1 // pred_region
      _
    $region73: #{lenet_forward_fused.1} parent=1 // pred_fallthru
      _
    %9202 = vsyncpa [#allocation5], 1
    %9203 = vsyncpa [#allocation7], 1

</llo_original>
